<compile_context>
chip_gen: v7x
topology: tpu7x:2x2x1
jax: 0.10.0
libtpu: 0.0.40
codegen_flags: <defaults>
</compile_context>

<pallas_src>
import jax
import jax.numpy as jnp
from jax.experimental import pallas as pl
from jax.experimental.pallas import tpu as pltpu

# ----- model hyper-params (from the PyTorch module) -----
EMB_DIM = 128          # embedding_dim
HIDDEN = 128           # lstm_size
NUM_LAYERS = 3
SEQ_LEN = 1            # sequence_length (becomes the LSTM batch axis)
N_VOCAB = 256          # synthetic vocab size (multiple of 128, lane friendly)
BATCH = 8              # small pytorch batch (becomes the LSTM time axis T)

assert EMB_DIM == HIDDEN, "kernel reuses one (L, D, 4H) weight stack; needs EMB_DIM == HIDDEN"


def lstm_fc_kernel(idx_ref, emb_ref, wih_hbm, whh_hbm, b_ref, wfc_hbm, bfc_ref,
                   logits_ref, h_ref, c_ref,
                   wih_buf, whh_buf, wfc_buf, sems):
    """Single invocation: one-hot embedding gather + wavefront 3-layer LSTM + Linear."""
    T = logits_ref.shape[0]
    H = HIDDEN
    L = NUM_LAYERS

    # ---- kick off all weight DMAs; they land while early compute runs ----
    ih_cp, hh_cp = [], []
    for l in range(L):
        c_ih = pltpu.make_async_copy(wih_hbm.at[l], wih_buf.at[l], sems.at[2 * l])
        c_hh = pltpu.make_async_copy(whh_hbm.at[l], whh_buf.at[l], sems.at[2 * l + 1])
        c_ih.start()
        c_hh.start()
        ih_cp.append(c_ih)
        hh_cp.append(c_hh)
    fc_cp = pltpu.make_async_copy(wfc_hbm, wfc_buf, sems.at[2 * L])
    fc_cp.start()

    # ---- embedding gather as a one-hot MXU matmul (exact bf16 row selection) ----
    row = jax.lax.broadcasted_iota(jnp.int32, (T, N_VOCAB), 0)
    col = jax.lax.broadcasted_iota(jnp.int32, (T, N_VOCAB), 1)
    tgt = jnp.zeros((T, N_VOCAB), jnp.int32)
    for t in range(T):                       # static unroll; idx comes from SMEM prefetch
        tgt = jnp.where(row == t, idx_ref[t], tgt)
    onehot = jnp.where(col == tgt, jnp.float32(1.0), jnp.float32(0.0)).astype(jnp.bfloat16)
    x_emb = jnp.dot(onehot, emb_ref[...],
                    preferred_element_type=jnp.float32)          # (T, D) f32, exact bf16 rows
    x_bf = x_emb.astype(jnp.bfloat16)

    # ---- layer-0 input projection hoisted (one MXU matmul, bias folded) ----
    ih_cp[0].wait()
    hh_cp[0].wait()
    xw0 = jnp.dot(x_bf, wih_buf[0],
                  preferred_element_type=jnp.float32) + b_ref[0]  # (T, 4H) f32

    # ---- wavefront recurrence: step s handles all cells with layer + time == s ----
    h = [jnp.zeros((1, H), jnp.float32) for _ in range(L)]
    c = [jnp.zeros((1, H), jnp.float32) for _ in range(L)]
    outs = []
    for s in range(T + L - 1):
        if 1 <= s < L:                      # layer `s` becomes active at this step
            ih_cp[s].wait()
            hh_cp[s].wait()
        h_prev = list(h)                    # snapshot of states after step s-1
        for l in range(L):
            t = s - l
            if t < 0 or t >= T:
                continue                    # statically inactive cell
            if l == 0:
                g = xw0[t:t + 1, :] + jnp.dot(
                    h_prev[0].astype(jnp.bfloat16), whh_buf[0],
                    preferred_element_type=jnp.float32)
            else:
                # input to layer l at time t is layer l-1's output from step s-1
                g = (jnp.dot(h_prev[l - 1].astype(jnp.bfloat16), wih_buf[l],
                             preferred_element_type=jnp.float32)
                     + jnp.dot(h_prev[l].astype(jnp.bfloat16), whh_buf[l],
                               preferred_element_type=jnp.float32)
                     + b_ref[l])
            i_g = jax.nn.sigmoid(g[:, 0 * H:1 * H])
            f_g = jax.nn.sigmoid(g[:, 1 * H:2 * H])
            g_g = jnp.tanh(g[:, 2 * H:3 * H])
            o_g = jax.nn.sigmoid(g[:, 3 * H:4 * H])
            c[l] = f_g * c[l] + i_g * g_g
            h[l] = o_g * jnp.tanh(c[l])
            if l == L - 1:
                outs.append(h[l])           # final-layer output at time t

    for l in range(L):
        h_ref[l, :, :] = h[l]
        c_ref[l, :, :] = c[l]

    # ---- final Linear over the whole sequence (bf16 operands, f32 accumulate) ----
    y = jnp.concatenate(outs, axis=0).astype(jnp.bfloat16)        # (T, H)
    fc_cp.wait()
    logits_ref[...] = (jnp.dot(y, wfc_buf[...],
                               preferred_element_type=jnp.float32) + bfc_ref[...])


def model_forward(x_idx, params):
    """x_idx: int32 (B, S=1). Returns (logits (B, 1, N_VOCAB), (h_n, c_n))."""
    B, S = x_idx.shape
    T = B * S
    idx_flat = x_idx.reshape(T).astype(jnp.int32)

    grid_spec = pltpu.PrefetchScalarGridSpec(
        num_scalar_prefetch=1,                 # idx_flat -> SMEM
        grid=(1,),
        in_specs=[
            pl.BlockSpec((N_VOCAB, EMB_DIM), lambda i, idx: (0, 0)),        # emb table (bf16)
            pl.BlockSpec(memory_space=pl.ANY),                              # W_ih^T stack (HBM)
            pl.BlockSpec(memory_space=pl.ANY),                              # W_hh^T stack (HBM)
            pl.BlockSpec((NUM_LAYERS, 1, 4 * HIDDEN), lambda i, idx: (0, 0, 0)),  # bias (f32)
            pl.BlockSpec(memory_space=pl.ANY),                              # W_fc^T (HBM)
            pl.BlockSpec((1, N_VOCAB), lambda i, idx: (0, 0)),              # b_fc (f32)
        ],
        out_specs=[
            pl.BlockSpec((T, N_VOCAB), lambda i, idx: (0, 0)),              # logits
            pl.BlockSpec((NUM_LAYERS, 1, HIDDEN), lambda i, idx: (0, 0, 0)),  # h_n
            pl.BlockSpec((NUM_LAYERS, 1, HIDDEN), lambda i, idx: (0, 0, 0)),  # c_n
        ],
        scratch_shapes=[
            pltpu.VMEM((NUM_LAYERS, EMB_DIM, 4 * HIDDEN), jnp.bfloat16),    # W_ih buffers
            pltpu.VMEM((NUM_LAYERS, HIDDEN, 4 * HIDDEN), jnp.bfloat16),     # W_hh buffers
            pltpu.VMEM((HIDDEN, N_VOCAB), jnp.bfloat16),                    # W_fc buffer
            pltpu.SemaphoreType.DMA((2 * NUM_LAYERS + 1,)),                 # per-copy sems
        ],
    )

    logits, h_n, c_n = pl.pallas_call(
        lstm_fc_kernel,
        out_shape=(
            jax.ShapeDtypeStruct((T, N_VOCAB), jnp.float32),
            jax.ShapeDtypeStruct((NUM_LAYERS, SEQ_LEN, HIDDEN), jnp.float32),
            jax.ShapeDtypeStruct((NUM_LAYERS, SEQ_LEN, HIDDEN), jnp.float32),
        ),
        grid_spec=grid_spec,
        compiler_params=pltpu.CompilerParams(
            dimension_semantics=("arbitrary",)),
    )(idx_flat, params["embedding"], params["w_ih_t"], params["w_hh_t"],
      params["bias"], params["w_fc_t"], params["b_fc"])

    logits = logits.reshape(T, SEQ_LEN, N_VOCAB)
    return logits, (h_n, c_n)


def init_params(key):
    ks = jax.random.split(key, 4 + 4 * NUM_LAYERS)
    k_inv = 1.0 / jnp.sqrt(HIDDEN)
    emb = jax.random.normal(ks[0], (N_VOCAB, EMB_DIM), jnp.float32)

    wih_t, whh_t, bias = [], [], []
    for l in range(NUM_LAYERS):
        kw1, kw2, kb1, kb2 = ks[4 + 4 * l: 8 + 4 * l]
        w_ih = jax.random.uniform(kw1, (4 * HIDDEN, EMB_DIM), jnp.float32,
                                  -k_inv, k_inv)
        w_hh = jax.random.uniform(kw2, (4 * HIDDEN, HIDDEN), jnp.float32,
                                  -k_inv, k_inv)
        b_ih = jax.random.uniform(kb1, (4 * HIDDEN,), jnp.float32, -k_inv, k_inv)
        b_hh = jax.random.uniform(kb2, (4 * HIDDEN,), jnp.float32, -k_inv, k_inv)
        wih_t.append(w_ih.T)
        whh_t.append(w_hh.T)
        bias.append((b_ih + b_hh).reshape(1, 4 * HIDDEN))

    w_fc = jax.random.uniform(ks[1], (N_VOCAB, HIDDEN), jnp.float32, -k_inv, k_inv)
    b_fc = jax.random.uniform(ks[2], (N_VOCAB,), jnp.float32, -k_inv, k_inv)

    return {
        "embedding": emb.astype(jnp.bfloat16),                   # (V, D) bf16
        "w_ih_t": jnp.stack(wih_t).astype(jnp.bfloat16),         # (L, D, 4H) bf16
        "w_hh_t": jnp.stack(whh_t).astype(jnp.bfloat16),         # (L, H, 4H) bf16
        "bias": jnp.stack(bias),                                 # (L, 1, 4H) f32
        "w_fc_t": w_fc.T.astype(jnp.bfloat16),                   # (H, V) bf16
        "b_fc": b_fc.reshape(1, N_VOCAB),                        # (1, V) f32
    }


def reference_forward(x_idx, params):
    """Pure-JAX reference (same eval semantics, same bf16-operand math)."""
    x = params["embedding"][x_idx.reshape(-1)].astype(jnp.float32)   # (T, D)
    T = x.shape[0]
    hs, cs = [], []
    for l in range(NUM_LAYERS):
        wih = params["w_ih_t"][l]                                    # bf16
        whh = params["w_hh_t"][l]                                    # bf16
        xw = jnp.dot(x.astype(jnp.bfloat16), wih,
                     preferred_element_type=jnp.float32) + params["bias"][l]
        h = jnp.zeros((1, HIDDEN), jnp.float32)
        c = jnp.zeros((1, HIDDEN), jnp.float32)
        outs = []
        for t in range(T):
            g = xw[t:t + 1] + jnp.dot(h.astype(jnp.bfloat16), whh,
                                      preferred_element_type=jnp.float32)
            i_g = jax.nn.sigmoid(g[:, 0:HIDDEN])
            f_g = jax.nn.sigmoid(g[:, HIDDEN:2 * HIDDEN])
            g_g = jnp.tanh(g[:, 2 * HIDDEN:3 * HIDDEN])
            o_g = jax.nn.sigmoid(g[:, 3 * HIDDEN:4 * HIDDEN])
            c = f_g * c + i_g * g_g
            h = o_g * jnp.tanh(c)
            outs.append(h)
        x = jnp.concatenate(outs, axis=0)
        hs.append(h)
        cs.append(c)
    logits = (jnp.dot(x.astype(jnp.bfloat16), params["w_fc_t"],
                      preferred_element_type=jnp.float32) + params["b_fc"])
    return (logits.reshape(T, SEQ_LEN, N_VOCAB),
            (jnp.stack(hs), jnp.stack(cs)))


if __name__ == "__main__":
    key = jax.random.PRNGKey(0)
    k_params, k_x = jax.random.split(key)
    params = init_params(k_params)
    x = jax.random.randint(k_x, (BATCH, SEQ_LEN), 0, N_VOCAB, dtype=jnp.int32)

    logits, (h_n, c_n) = jax.block_until_ready(model_forward(x, params))

    ref_logits, (ref_h, ref_c) = reference_forward(x, params)
    assert logits.shape == (BATCH, SEQ_LEN, N_VOCAB)
    assert h_n.shape == (NUM_LAYERS, SEQ_LEN, HIDDEN)
    assert c_n.shape == (NUM_LAYERS, SEQ_LEN, HIDDEN)
    assert jnp.allclose(logits, ref_logits, atol=1e-3, rtol=1e-3)
    assert jnp.allclose(h_n, ref_h, atol=1e-3, rtol=1e-3)
    assert jnp.allclose(c_n, ref_c, atol=1e-3, rtol=1e-3)

    print("KERNEL_OK")
</pallas_src>

<mosaic_0001>
module attributes {stable_mosaic.version = 11 : i64} {
  func.func @lstm_fc_kernel(%arg0: i32, %arg1: memref<8xi32, #tpu.memory_space<smem>>, %arg2: memref<256x128xbf16, #tpu.memory_space<vmem>>, %arg3: memref<3x128x512xbf16, #tpu.memory_space<any>>, %arg4: memref<3x128x512xbf16, #tpu.memory_space<any>>, %arg5: memref<3x1x512xf32, #tpu.memory_space<vmem>>, %arg6: memref<128x256xbf16, #tpu.memory_space<any>>, %arg7: memref<1x256xf32, #tpu.memory_space<vmem>>, %arg8: memref<8x256xf32, #tpu.memory_space<vmem>>, %arg9: memref<3x1x128xf32, #tpu.memory_space<vmem>>, %arg10: memref<3x1x128xf32, #tpu.memory_space<vmem>>, %arg11: memref<3x128x512xbf16, #tpu.memory_space<vmem>>, %arg12: memref<3x128x512xbf16, #tpu.memory_space<vmem>>, %arg13: memref<128x256xbf16, #tpu.memory_space<vmem>>, %arg14: memref<7x!tpu.dma_semaphore, #tpu.memory_space<semaphore_mem>>) attributes {dimension_semantics = [#tpu.dimension_semantics<arbitrary>], iteration_bounds = array<i64: 1>, scalar_prefetch = 1 : i64, scratch_operands = 4 : i64, tpu.core_type = #tpu.core_type<tc>, window_params = [{pipeline_mode = #tpu.pipeline_mode<synchronous>, transform_indices = @transform_0, window_bounds = array<i64: 256, 128>}, {}, {}, {pipeline_mode = #tpu.pipeline_mode<synchronous>, transform_indices = @transform_3, window_bounds = array<i64: 3, 1, 512>}, {}, {pipeline_mode = #tpu.pipeline_mode<synchronous>, transform_indices = @transform_5, window_bounds = array<i64: 1, 256>}, {pipeline_mode = #tpu.pipeline_mode<synchronous>, transform_indices = @transform_6, window_bounds = array<i64: 8, 256>}, {pipeline_mode = #tpu.pipeline_mode<synchronous>, transform_indices = @transform_7, window_bounds = array<i64: 3, 1, 128>}, {pipeline_mode = #tpu.pipeline_mode<synchronous>, transform_indices = @transform_8, window_bounds = array<i64: 3, 1, 128>}]} {
    %c0_i32 = arith.constant 0 : i32
    %c0_i32_0 = arith.constant 0 : i32
    %c0_i32_1 = arith.constant 0 : i32
    %c0_i32_2 = arith.constant 0 : i32
    %c0_i32_3 = arith.constant 0 : i32
    %0 = tpu.memref_slice %arg3[%c0_i32, %c0_i32_2, %c0_i32_3] : memref<3x128x512xbf16, #tpu.memory_space<any>> -> memref<1x128x512xbf16, #tpu.memory_space<any>>
    %1 = tpu.memref_squeeze %0 : memref<1x128x512xbf16, #tpu.memory_space<any>> -> memref<128x512xbf16, #tpu.memory_space<any>>
    %c0_i32_4 = arith.constant 0 : i32
    %c0_i32_5 = arith.constant 0 : i32
    %2 = tpu.memref_slice %arg11[%c0_i32_0, %c0_i32_4, %c0_i32_5] : memref<3x128x512xbf16, #tpu.memory_space<vmem>> -> memref<1x128x512xbf16, #tpu.memory_space<vmem>>
    %3 = tpu.memref_squeeze %2 : memref<1x128x512xbf16, #tpu.memory_space<vmem>> -> memref<128x512xbf16, #tpu.memory_space<vmem>>
    %4 = tpu.memref_slice %arg14[%c0_i32_1] : memref<7x!tpu.dma_semaphore, #tpu.memory_space<semaphore_mem>> -> memref<1x!tpu.dma_semaphore, #tpu.memory_space<semaphore_mem>>
    %5 = tpu.memref_squeeze %4 : memref<1x!tpu.dma_semaphore, #tpu.memory_space<semaphore_mem>> -> memref<!tpu.dma_semaphore, #tpu.memory_space<semaphore_mem>>
    tpu.enqueue_dma source(%1 : memref<128x512xbf16, #tpu.memory_space<any>>) target(%3 : memref<128x512xbf16, #tpu.memory_space<vmem>>) target_semaphore(%5 : memref<!tpu.dma_semaphore, #tpu.memory_space<semaphore_mem>>)
    %c0_i32_6 = arith.constant 0 : i32
    %c0_i32_7 = arith.constant 0 : i32
    %c1_i32 = arith.constant 1 : i32
    %c0_i32_8 = arith.constant 0 : i32
    %c0_i32_9 = arith.constant 0 : i32
    %6 = tpu.memref_slice %arg4[%c0_i32_6, %c0_i32_8, %c0_i32_9] : memref<3x128x512xbf16, #tpu.memory_space<any>> -> memref<1x128x512xbf16, #tpu.memory_space<any>>
    %7 = tpu.memref_squeeze %6 : memref<1x128x512xbf16, #tpu.memory_space<any>> -> memref<128x512xbf16, #tpu.memory_space<any>>
    %c0_i32_10 = arith.constant 0 : i32
    %c0_i32_11 = arith.constant 0 : i32
    %8 = tpu.memref_slice %arg12[%c0_i32_7, %c0_i32_10, %c0_i32_11] : memref<3x128x512xbf16, #tpu.memory_space<vmem>> -> memref<1x128x512xbf16, #tpu.memory_space<vmem>>
    %9 = tpu.memref_squeeze %8 : memref<1x128x512xbf16, #tpu.memory_space<vmem>> -> memref<128x512xbf16, #tpu.memory_space<vmem>>
    %10 = tpu.memref_slice %arg14[%c1_i32] : memref<7x!tpu.dma_semaphore, #tpu.memory_space<semaphore_mem>> -> memref<1x!tpu.dma_semaphore, #tpu.memory_space<semaphore_mem>>
    %11 = tpu.memref_squeeze %10 : memref<1x!tpu.dma_semaphore, #tpu.memory_space<semaphore_mem>> -> memref<!tpu.dma_semaphore, #tpu.memory_space<semaphore_mem>>
    tpu.enqueue_dma source(%7 : memref<128x512xbf16, #tpu.memory_space<any>>) target(%9 : memref<128x512xbf16, #tpu.memory_space<vmem>>) target_semaphore(%11 : memref<!tpu.dma_semaphore, #tpu.memory_space<semaphore_mem>>)
    %c1_i32_12 = arith.constant 1 : i32
    %c1_i32_13 = arith.constant 1 : i32
    %c2_i32 = arith.constant 2 : i32
    %c0_i32_14 = arith.constant 0 : i32
    %c0_i32_15 = arith.constant 0 : i32
    %12 = tpu.memref_slice %arg3[%c1_i32_12, %c0_i32_14, %c0_i32_15] : memref<3x128x512xbf16, #tpu.memory_space<any>> -> memref<1x128x512xbf16, #tpu.memory_space<any>>
    %13 = tpu.memref_squeeze %12 : memref<1x128x512xbf16, #tpu.memory_space<any>> -> memref<128x512xbf16, #tpu.memory_space<any>>
    %c0_i32_16 = arith.constant 0 : i32
    %c0_i32_17 = arith.constant 0 : i32
    %14 = tpu.memref_slice %arg11[%c1_i32_13, %c0_i32_16, %c0_i32_17] : memref<3x128x512xbf16, #tpu.memory_space<vmem>> -> memref<1x128x512xbf16, #tpu.memory_space<vmem>>
    %15 = tpu.memref_squeeze %14 : memref<1x128x512xbf16, #tpu.memory_space<vmem>> -> memref<128x512xbf16, #tpu.memory_space<vmem>>
    %16 = tpu.memref_slice %arg14[%c2_i32] : memref<7x!tpu.dma_semaphore, #tpu.memory_space<semaphore_mem>> -> memref<1x!tpu.dma_semaphore, #tpu.memory_space<semaphore_mem>>
    %17 = tpu.memref_squeeze %16 : memref<1x!tpu.dma_semaphore, #tpu.memory_space<semaphore_mem>> -> memref<!tpu.dma_semaphore, #tpu.memory_space<semaphore_mem>>
    tpu.enqueue_dma source(%13 : memref<128x512xbf16, #tpu.memory_space<any>>) target(%15 : memref<128x512xbf16, #tpu.memory_space<vmem>>) target_semaphore(%17 : memref<!tpu.dma_semaphore, #tpu.memory_space<semaphore_mem>>)
    %c1_i32_18 = arith.constant 1 : i32
    %c1_i32_19 = arith.constant 1 : i32
    %c3_i32 = arith.constant 3 : i32
    %c0_i32_20 = arith.constant 0 : i32
    %c0_i32_21 = arith.constant 0 : i32
    %18 = tpu.memref_slice %arg4[%c1_i32_18, %c0_i32_20, %c0_i32_21] : memref<3x128x512xbf16, #tpu.memory_space<any>> -> memref<1x128x512xbf16, #tpu.memory_space<any>>
    %19 = tpu.memref_squeeze %18 : memref<1x128x512xbf16, #tpu.memory_space<any>> -> memref<128x512xbf16, #tpu.memory_space<any>>
    %c0_i32_22 = arith.constant 0 : i32
    %c0_i32_23 = arith.constant 0 : i32
    %20 = tpu.memref_slice %arg12[%c1_i32_19, %c0_i32_22, %c0_i32_23] : memref<3x128x512xbf16, #tpu.memory_space<vmem>> -> memref<1x128x512xbf16, #tpu.memory_space<vmem>>
    %21 = tpu.memref_squeeze %20 : memref<1x128x512xbf16, #tpu.memory_space<vmem>> -> memref<128x512xbf16, #tpu.memory_space<vmem>>
    %22 = tpu.memref_slice %arg14[%c3_i32] : memref<7x!tpu.dma_semaphore, #tpu.memory_space<semaphore_mem>> -> memref<1x!tpu.dma_semaphore, #tpu.memory_space<semaphore_mem>>
    %23 = tpu.memref_squeeze %22 : memref<1x!tpu.dma_semaphore, #tpu.memory_space<semaphore_mem>> -> memref<!tpu.dma_semaphore, #tpu.memory_space<semaphore_mem>>
    tpu.enqueue_dma source(%19 : memref<128x512xbf16, #tpu.memory_space<any>>) target(%21 : memref<128x512xbf16, #tpu.memory_space<vmem>>) target_semaphore(%23 : memref<!tpu.dma_semaphore, #tpu.memory_space<semaphore_mem>>)
    %c2_i32_24 = arith.constant 2 : i32
    %c2_i32_25 = arith.constant 2 : i32
    %c4_i32 = arith.constant 4 : i32
    %c0_i32_26 = arith.constant 0 : i32
    %c0_i32_27 = arith.constant 0 : i32
    %24 = tpu.memref_slice %arg3[%c2_i32_24, %c0_i32_26, %c0_i32_27] : memref<3x128x512xbf16, #tpu.memory_space<any>> -> memref<1x128x512xbf16, #tpu.memory_space<any>>
    %25 = tpu.memref_squeeze %24 : memref<1x128x512xbf16, #tpu.memory_space<any>> -> memref<128x512xbf16, #tpu.memory_space<any>>
    %c0_i32_28 = arith.constant 0 : i32
    %c0_i32_29 = arith.constant 0 : i32
    %26 = tpu.memref_slice %arg11[%c2_i32_25, %c0_i32_28, %c0_i32_29] : memref<3x128x512xbf16, #tpu.memory_space<vmem>> -> memref<1x128x512xbf16, #tpu.memory_space<vmem>>
    %27 = tpu.memref_squeeze %26 : memref<1x128x512xbf16, #tpu.memory_space<vmem>> -> memref<128x512xbf16, #tpu.memory_space<vmem>>
    %28 = tpu.memref_slice %arg14[%c4_i32] : memref<7x!tpu.dma_semaphore, #tpu.memory_space<semaphore_mem>> -> memref<1x!tpu.dma_semaphore, #tpu.memory_space<semaphore_mem>>
    %29 = tpu.memref_squeeze %28 : memref<1x!tpu.dma_semaphore, #tpu.memory_space<semaphore_mem>> -> memref<!tpu.dma_semaphore, #tpu.memory_space<semaphore_mem>>
    tpu.enqueue_dma source(%25 : memref<128x512xbf16, #tpu.memory_space<any>>) target(%27 : memref<128x512xbf16, #tpu.memory_space<vmem>>) target_semaphore(%29 : memref<!tpu.dma_semaphore, #tpu.memory_space<semaphore_mem>>)
    %c2_i32_30 = arith.constant 2 : i32
    %c2_i32_31 = arith.constant 2 : i32
    %c5_i32 = arith.constant 5 : i32
    %c0_i32_32 = arith.constant 0 : i32
    %c0_i32_33 = arith.constant 0 : i32
    %30 = tpu.memref_slice %arg4[%c2_i32_30, %c0_i32_32, %c0_i32_33] : memref<3x128x512xbf16, #tpu.memory_space<any>> -> memref<1x128x512xbf16, #tpu.memory_space<any>>
    %31 = tpu.memref_squeeze %30 : memref<1x128x512xbf16, #tpu.memory_space<any>> -> memref<128x512xbf16, #tpu.memory_space<any>>
    %c0_i32_34 = arith.constant 0 : i32
    %c0_i32_35 = arith.constant 0 : i32
    %32 = tpu.memref_slice %arg12[%c2_i32_31, %c0_i32_34, %c0_i32_35] : memref<3x128x512xbf16, #tpu.memory_space<vmem>> -> memref<1x128x512xbf16, #tpu.memory_space<vmem>>
    %33 = tpu.memref_squeeze %32 : memref<1x128x512xbf16, #tpu.memory_space<vmem>> -> memref<128x512xbf16, #tpu.memory_space<vmem>>
    %34 = tpu.memref_slice %arg14[%c5_i32] : memref<7x!tpu.dma_semaphore, #tpu.memory_space<semaphore_mem>> -> memref<1x!tpu.dma_semaphore, #tpu.memory_space<semaphore_mem>>
    %35 = tpu.memref_squeeze %34 : memref<1x!tpu.dma_semaphore, #tpu.memory_space<semaphore_mem>> -> memref<!tpu.dma_semaphore, #tpu.memory_space<semaphore_mem>>
    tpu.enqueue_dma source(%31 : memref<128x512xbf16, #tpu.memory_space<any>>) target(%33 : memref<128x512xbf16, #tpu.memory_space<vmem>>) target_semaphore(%35 : memref<!tpu.dma_semaphore, #tpu.memory_space<semaphore_mem>>)
    %c6_i32 = arith.constant 6 : i32
    %36 = tpu.memref_slice %arg14[%c6_i32] : memref<7x!tpu.dma_semaphore, #tpu.memory_space<semaphore_mem>> -> memref<1x!tpu.dma_semaphore, #tpu.memory_space<semaphore_mem>>
    %37 = tpu.memref_squeeze %36 : memref<1x!tpu.dma_semaphore, #tpu.memory_space<semaphore_mem>> -> memref<!tpu.dma_semaphore, #tpu.memory_space<semaphore_mem>>
    tpu.enqueue_dma source(%arg6 : memref<128x256xbf16, #tpu.memory_space<any>>) target(%arg13 : memref<128x256xbf16, #tpu.memory_space<vmem>>) target_semaphore(%37 : memref<!tpu.dma_semaphore, #tpu.memory_space<semaphore_mem>>)
    %38 = tpu.iota {dimensions = array<i32: 0>} : vector<8x256xi32>
    %39 = tpu.iota {dimensions = array<i32: 1>} : vector<8x256xi32>
    %c0_i32_36 = arith.constant 0 : i32
    %40 = vector.broadcast %c0_i32_36 : i32 to vector<8x256xi32>
    %c0_i32_37 = arith.constant 0 : i32
    %41 = vector.broadcast %c0_i32_37 : i32 to vector<8x256xi32>
    %42 = arith.cmpi eq, %38, %41 : vector<8x256xi32>
    %c0 = arith.constant 0 : index
    %43 = memref.load %arg1[%c0] : memref<8xi32, #tpu.memory_space<smem>>
    %44 = vector.broadcast %43 : i32 to vector<8x256xi32>
    %45 = arith.select %42, %44, %40 : vector<8x256xi1>, vector<8x256xi32>
    %c1_i32_38 = arith.constant 1 : i32
    %46 = vector.broadcast %c1_i32_38 : i32 to vector<8x256xi32>
    %47 = arith.cmpi eq, %38, %46 : vector<8x256xi32>
    %c1 = arith.constant 1 : index
    %48 = memref.load %arg1[%c1] : memref<8xi32, #tpu.memory_space<smem>>
    %49 = vector.broadcast %48 : i32 to vector<8x256xi32>
    %50 = arith.select %47, %49, %45 : vector<8x256xi1>, vector<8x256xi32>
    %c2_i32_39 = arith.constant 2 : i32
    %51 = vector.broadcast %c2_i32_39 : i32 to vector<8x256xi32>
    %52 = arith.cmpi eq, %38, %51 : vector<8x256xi32>
    %c2 = arith.constant 2 : index
    %53 = memref.load %arg1[%c2] : memref<8xi32, #tpu.memory_space<smem>>
    %54 = vector.broadcast %53 : i32 to vector<8x256xi32>
    %55 = arith.select %52, %54, %50 : vector<8x256xi1>, vector<8x256xi32>
    %c3_i32_40 = arith.constant 3 : i32
    %56 = vector.broadcast %c3_i32_40 : i32 to vector<8x256xi32>
    %57 = arith.cmpi eq, %38, %56 : vector<8x256xi32>
    %c3 = arith.constant 3 : index
    %58 = memref.load %arg1[%c3] : memref<8xi32, #tpu.memory_space<smem>>
    %59 = vector.broadcast %58 : i32 to vector<8x256xi32>
    %60 = arith.select %57, %59, %55 : vector<8x256xi1>, vector<8x256xi32>
    %c4_i32_41 = arith.constant 4 : i32
    %61 = vector.broadcast %c4_i32_41 : i32 to vector<8x256xi32>
    %62 = arith.cmpi eq, %38, %61 : vector<8x256xi32>
    %c4 = arith.constant 4 : index
    %63 = memref.load %arg1[%c4] : memref<8xi32, #tpu.memory_space<smem>>
    %64 = vector.broadcast %63 : i32 to vector<8x256xi32>
    %65 = arith.select %62, %64, %60 : vector<8x256xi1>, vector<8x256xi32>
    %c5_i32_42 = arith.constant 5 : i32
    %66 = vector.broadcast %c5_i32_42 : i32 to vector<8x256xi32>
    %67 = arith.cmpi eq, %38, %66 : vector<8x256xi32>
    %c5 = arith.constant 5 : index
    %68 = memref.load %arg1[%c5] : memref<8xi32, #tpu.memory_space<smem>>
    %69 = vector.broadcast %68 : i32 to vector<8x256xi32>
    %70 = arith.select %67, %69, %65 : vector<8x256xi1>, vector<8x256xi32>
    %c6_i32_43 = arith.constant 6 : i32
    %71 = vector.broadcast %c6_i32_43 : i32 to vector<8x256xi32>
    %72 = arith.cmpi eq, %38, %71 : vector<8x256xi32>
    %c6 = arith.constant 6 : index
    %73 = memref.load %arg1[%c6] : memref<8xi32, #tpu.memory_space<smem>>
    %74 = vector.broadcast %73 : i32 to vector<8x256xi32>
    %75 = arith.select %72, %74, %70 : vector<8x256xi1>, vector<8x256xi32>
    %c7_i32 = arith.constant 7 : i32
    %76 = vector.broadcast %c7_i32 : i32 to vector<8x256xi32>
    %77 = arith.cmpi eq, %38, %76 : vector<8x256xi32>
    %c7 = arith.constant 7 : index
    %78 = memref.load %arg1[%c7] : memref<8xi32, #tpu.memory_space<smem>>
    %79 = vector.broadcast %78 : i32 to vector<8x256xi32>
    %80 = arith.select %77, %79, %75 : vector<8x256xi1>, vector<8x256xi32>
    %81 = arith.cmpi eq, %39, %80 : vector<8x256xi32>
    %cst = arith.constant 1.000000e+00 : f32
    %cst_44 = arith.constant 0.000000e+00 : f32
    %82 = vector.broadcast %cst : f32 to vector<8x256xf32>
    %83 = vector.broadcast %cst_44 : f32 to vector<8x256xf32>
    %84 = arith.select %81, %82, %83 : vector<8x256xi1>, vector<8x256xf32>
    %85 = arith.truncf %84 : vector<8x256xf32> to vector<8x256xbf16>
    %c0_45 = arith.constant 0 : index
    %c0_46 = arith.constant 0 : index
    %86 = vector.load %arg2[%c0_45, %c0_46] : memref<256x128xbf16, #tpu.memory_space<vmem>>, vector<256x128xbf16>
    %cst_47 = arith.constant dense<0.000000e+00> : vector<8x128xf32>
    %87 = tpu.matmul %85, %86, %cst_47 {dimension_numbers = #tpu.dot_dimension_numbers<[1], [0], [0], [1], [0, 0, 1, 1], [], []>} : vector<8x256xbf16>, vector<256x128xbf16>, vector<8x128xf32> -> vector<8x128xf32>
    %88 = arith.truncf %87 : vector<8x128xf32> to vector<8x128xbf16>
    %c0_i32_48 = arith.constant 0 : i32
    %c0_i32_49 = arith.constant 0 : i32
    %c0_i32_50 = arith.constant 0 : i32
    %c0_i32_51 = arith.constant 0 : i32
    %c0_i32_52 = arith.constant 0 : i32
    %89 = tpu.memref_slice %arg3[%c0_i32_48, %c0_i32_51, %c0_i32_52] : memref<3x128x512xbf16, #tpu.memory_space<any>> -> memref<1x128x512xbf16, #tpu.memory_space<any>>
    %90 = tpu.memref_squeeze %89 : memref<1x128x512xbf16, #tpu.memory_space<any>> -> memref<128x512xbf16, #tpu.memory_space<any>>
    %c0_i32_53 = arith.constant 0 : i32
    %c0_i32_54 = arith.constant 0 : i32
    %91 = tpu.memref_slice %arg11[%c0_i32_49, %c0_i32_53, %c0_i32_54] : memref<3x128x512xbf16, #tpu.memory_space<vmem>> -> memref<1x128x512xbf16, #tpu.memory_space<vmem>>
    %92 = tpu.memref_squeeze %91 : memref<1x128x512xbf16, #tpu.memory_space<vmem>> -> memref<128x512xbf16, #tpu.memory_space<vmem>>
    %93 = tpu.memref_slice %arg14[%c0_i32_50] : memref<7x!tpu.dma_semaphore, #tpu.memory_space<semaphore_mem>> -> memref<1x!tpu.dma_semaphore, #tpu.memory_space<semaphore_mem>>
    %94 = tpu.memref_squeeze %93 : memref<1x!tpu.dma_semaphore, #tpu.memory_space<semaphore_mem>> -> memref<!tpu.dma_semaphore, #tpu.memory_space<semaphore_mem>>
    tpu.wait_dma2 semaphore(%94 : memref<!tpu.dma_semaphore, #tpu.memory_space<semaphore_mem>>) src(%90 : memref<128x512xbf16, #tpu.memory_space<any>>) dst(%92 : memref<128x512xbf16, #tpu.memory_space<vmem>>)
    %c0_i32_55 = arith.constant 0 : i32
    %c0_i32_56 = arith.constant 0 : i32
    %c1_i32_57 = arith.constant 1 : i32
    %c0_i32_58 = arith.constant 0 : i32
    %c0_i32_59 = arith.constant 0 : i32
    %95 = tpu.memref_slice %arg4[%c0_i32_55, %c0_i32_58, %c0_i32_59] : memref<3x128x512xbf16, #tpu.memory_space<any>> -> memref<1x128x512xbf16, #tpu.memory_space<any>>
    %96 = tpu.memref_squeeze %95 : memref<1x128x512xbf16, #tpu.memory_space<any>> -> memref<128x512xbf16, #tpu.memory_space<any>>
    %c0_i32_60 = arith.constant 0 : i32
    %c0_i32_61 = arith.constant 0 : i32
    %97 = tpu.memref_slice %arg12[%c0_i32_56, %c0_i32_60, %c0_i32_61] : memref<3x128x512xbf16, #tpu.memory_space<vmem>> -> memref<1x128x512xbf16, #tpu.memory_space<vmem>>
    %98 = tpu.memref_squeeze %97 : memref<1x128x512xbf16, #tpu.memory_space<vmem>> -> memref<128x512xbf16, #tpu.memory_space<vmem>>
    %99 = tpu.memref_slice %arg14[%c1_i32_57] : memref<7x!tpu.dma_semaphore, #tpu.memory_space<semaphore_mem>> -> memref<1x!tpu.dma_semaphore, #tpu.memory_space<semaphore_mem>>
    %100 = tpu.memref_squeeze %99 : memref<1x!tpu.dma_semaphore, #tpu.memory_space<semaphore_mem>> -> memref<!tpu.dma_semaphore, #tpu.memory_space<semaphore_mem>>
    tpu.wait_dma2 semaphore(%100 : memref<!tpu.dma_semaphore, #tpu.memory_space<semaphore_mem>>) src(%96 : memref<128x512xbf16, #tpu.memory_space<any>>) dst(%98 : memref<128x512xbf16, #tpu.memory_space<vmem>>)
    %c0_62 = arith.constant 0 : index
    %c0_63 = arith.constant 0 : index
    %c0_64 = arith.constant 0 : index
    %101 = vector.load %arg11[%c0_62, %c0_63, %c0_64] : memref<3x128x512xbf16, #tpu.memory_space<vmem>>, vector<1x128x512xbf16>
    %102 = vector.shape_cast %101 : vector<1x128x512xbf16> to vector<128x512xbf16>
    %cst_65 = arith.constant dense<0.000000e+00> : vector<8x512xf32>
    %103 = tpu.matmul %88, %102, %cst_65 {dimension_numbers = #tpu.dot_dimension_numbers<[1], [0], [0], [1], [0, 0, 1, 1], [], []>} : vector<8x128xbf16>, vector<128x512xbf16>, vector<8x512xf32> -> vector<8x512xf32>
    %c0_66 = arith.constant 0 : index
    %c0_67 = arith.constant 0 : index
    %c0_68 = arith.constant 0 : index
    %104 = vector.load %arg5[%c0_66, %c0_67, %c0_68] : memref<3x1x512xf32, #tpu.memory_space<vmem>>, vector<1x1x512xf32>
    %105 = vector.shape_cast %104 : vector<1x1x512xf32> to vector<1x512xf32>
    %106 = vector.broadcast %105 : vector<1x512xf32> to vector<8x512xf32>
    %107 = arith.addf %103, %106 : vector<8x512xf32>
    %cst_69 = arith.constant 0.000000e+00 : f32
    %108 = vector.broadcast %cst_69 : f32 to vector<1x128xf32>
    %cst_70 = arith.constant 0.000000e+00 : f32
    %109 = vector.broadcast %cst_70 : f32 to vector<1x128xf32>
    %cst_71 = arith.constant 0.000000e+00 : f32
    %110 = vector.broadcast %cst_71 : f32 to vector<1x128xf32>
    %cst_72 = arith.constant 0.000000e+00 : f32
    %111 = vector.broadcast %cst_72 : f32 to vector<1x128xf32>
    %cst_73 = arith.constant 0.000000e+00 : f32
    %112 = vector.broadcast %cst_73 : f32 to vector<1x128xf32>
    %cst_74 = arith.constant 0.000000e+00 : f32
    %113 = vector.broadcast %cst_74 : f32 to vector<1x128xf32>
    %114 = vector.extract_strided_slice %107 {offsets = [0, 0], sizes = [1, 512], strides = [1, 1]} : vector<8x512xf32> to vector<1x512xf32>
    %115 = arith.truncf %108 : vector<1x128xf32> to vector<1x128xbf16>
    %c0_75 = arith.constant 0 : index
    %c0_76 = arith.constant 0 : index
    %c0_77 = arith.constant 0 : index
    %116 = vector.load %arg12[%c0_75, %c0_76, %c0_77] : memref<3x128x512xbf16, #tpu.memory_space<vmem>>, vector<1x128x512xbf16>
    %117 = vector.shape_cast %116 : vector<1x128x512xbf16> to vector<128x512xbf16>
    %cst_78 = arith.constant dense<0.000000e+00> : vector<1x512xf32>
    %118 = tpu.matmul %115, %117, %cst_78 {dimension_numbers = #tpu.dot_dimension_numbers<[1], [0], [0], [1], [0, 0, 1, 1], [], []>} : vector<1x128xbf16>, vector<128x512xbf16>, vector<1x512xf32> -> vector<1x512xf32>
    %119 = arith.addf %114, %118 : vector<1x512xf32>
    %120 = vector.extract_strided_slice %119 {offsets = [0, 0], sizes = [1, 128], strides = [1, 1]} : vector<1x512xf32> to vector<1x128xf32>
    %121 = arith.negf %120 : vector<1x128xf32>
    %122 = math.exp %121 : vector<1x128xf32>
    %cst_79 = arith.constant 1.000000e+00 : f32
    %123 = vector.broadcast %cst_79 : f32 to vector<1x128xf32>
    %124 = arith.addf %123, %122 : vector<1x128xf32>
    %125 = arith.divf %123, %124 : vector<1x128xf32>
    %126 = vector.extract_strided_slice %119 {offsets = [0, 128], sizes = [1, 128], strides = [1, 1]} : vector<1x512xf32> to vector<1x128xf32>
    %127 = arith.negf %126 : vector<1x128xf32>
    %128 = math.exp %127 : vector<1x128xf32>
    %cst_80 = arith.constant 1.000000e+00 : f32
    %129 = vector.broadcast %cst_80 : f32 to vector<1x128xf32>
    %130 = arith.addf %129, %128 : vector<1x128xf32>
    %131 = arith.divf %129, %130 : vector<1x128xf32>
    %132 = vector.extract_strided_slice %119 {offsets = [0, 256], sizes = [1, 128], strides = [1, 1]} : vector<1x512xf32> to vector<1x128xf32>
    %133 = math.tanh %132 : vector<1x128xf32>
    %134 = vector.extract_strided_slice %119 {offsets = [0, 384], sizes = [1, 128], strides = [1, 1]} : vector<1x512xf32> to vector<1x128xf32>
    %135 = arith.negf %134 : vector<1x128xf32>
    %136 = math.exp %135 : vector<1x128xf32>
    %cst_81 = arith.constant 1.000000e+00 : f32
    %137 = vector.broadcast %cst_81 : f32 to vector<1x128xf32>
    %138 = arith.addf %137, %136 : vector<1x128xf32>
    %139 = arith.divf %137, %138 : vector<1x128xf32>
    %140 = arith.mulf %131, %111 : vector<1x128xf32>
    %141 = arith.mulf %125, %133 : vector<1x128xf32>
    %142 = arith.addf %140, %141 : vector<1x128xf32>
    %143 = math.tanh %142 : vector<1x128xf32>
    %144 = arith.mulf %139, %143 : vector<1x128xf32>
    %c1_i32_82 = arith.constant 1 : i32
    %c1_i32_83 = arith.constant 1 : i32
    %c2_i32_84 = arith.constant 2 : i32
    %c0_i32_85 = arith.constant 0 : i32
    %c0_i32_86 = arith.constant 0 : i32
    %145 = tpu.memref_slice %arg3[%c1_i32_82, %c0_i32_85, %c0_i32_86] : memref<3x128x512xbf16, #tpu.memory_space<any>> -> memref<1x128x512xbf16, #tpu.memory_space<any>>
    %146 = tpu.memref_squeeze %145 : memref<1x128x512xbf16, #tpu.memory_space<any>> -> memref<128x512xbf16, #tpu.memory_space<any>>
    %c0_i32_87 = arith.constant 0 : i32
    %c0_i32_88 = arith.constant 0 : i32
    %147 = tpu.memref_slice %arg11[%c1_i32_83, %c0_i32_87, %c0_i32_88] : memref<3x128x512xbf16, #tpu.memory_space<vmem>> -> memref<1x128x512xbf16, #tpu.memory_space<vmem>>
    %148 = tpu.memref_squeeze %147 : memref<1x128x512xbf16, #tpu.memory_space<vmem>> -> memref<128x512xbf16, #tpu.memory_space<vmem>>
    %149 = tpu.memref_slice %arg14[%c2_i32_84] : memref<7x!tpu.dma_semaphore, #tpu.memory_space<semaphore_mem>> -> memref<1x!tpu.dma_semaphore, #tpu.memory_space<semaphore_mem>>
    %150 = tpu.memref_squeeze %149 : memref<1x!tpu.dma_semaphore, #tpu.memory_space<semaphore_mem>> -> memref<!tpu.dma_semaphore, #tpu.memory_space<semaphore_mem>>
    tpu.wait_dma2 semaphore(%150 : memref<!tpu.dma_semaphore, #tpu.memory_space<semaphore_mem>>) src(%146 : memref<128x512xbf16, #tpu.memory_space<any>>) dst(%148 : memref<128x512xbf16, #tpu.memory_space<vmem>>)
    %c1_i32_89 = arith.constant 1 : i32
    %c1_i32_90 = arith.constant 1 : i32
    %c3_i32_91 = arith.constant 3 : i32
    %c0_i32_92 = arith.constant 0 : i32
    %c0_i32_93 = arith.constant 0 : i32
    %151 = tpu.memref_slice %arg4[%c1_i32_89, %c0_i32_92, %c0_i32_93] : memref<3x128x512xbf16, #tpu.memory_space<any>> -> memref<1x128x512xbf16, #tpu.memory_space<any>>
    %152 = tpu.memref_squeeze %151 : memref<1x128x512xbf16, #tpu.memory_space<any>> -> memref<128x512xbf16, #tpu.memory_space<any>>
    %c0_i32_94 = arith.constant 0 : i32
    %c0_i32_95 = arith.constant 0 : i32
    %153 = tpu.memref_slice %arg12[%c1_i32_90, %c0_i32_94, %c0_i32_95] : memref<3x128x512xbf16, #tpu.memory_space<vmem>> -> memref<1x128x512xbf16, #tpu.memory_space<vmem>>
    %154 = tpu.memref_squeeze %153 : memref<1x128x512xbf16, #tpu.memory_space<vmem>> -> memref<128x512xbf16, #tpu.memory_space<vmem>>
    %155 = tpu.memref_slice %arg14[%c3_i32_91] : memref<7x!tpu.dma_semaphore, #tpu.memory_space<semaphore_mem>> -> memref<1x!tpu.dma_semaphore, #tpu.memory_space<semaphore_mem>>
    %156 = tpu.memref_squeeze %155 : memref<1x!tpu.dma_semaphore, #tpu.memory_space<semaphore_mem>> -> memref<!tpu.dma_semaphore, #tpu.memory_space<semaphore_mem>>
    tpu.wait_dma2 semaphore(%156 : memref<!tpu.dma_semaphore, #tpu.memory_space<semaphore_mem>>) src(%152 : memref<128x512xbf16, #tpu.memory_space<any>>) dst(%154 : memref<128x512xbf16, #tpu.memory_space<vmem>>)
    %157 = vector.extract_strided_slice %107 {offsets = [1, 0], sizes = [1, 512], strides = [1, 1]} : vector<8x512xf32> to vector<1x512xf32>
    %158 = arith.truncf %144 : vector<1x128xf32> to vector<1x128xbf16>
    %c0_96 = arith.constant 0 : index
    %c0_97 = arith.constant 0 : index
    %c0_98 = arith.constant 0 : index
    %159 = vector.load %arg12[%c0_96, %c0_97, %c0_98] : memref<3x128x512xbf16, #tpu.memory_space<vmem>>, vector<1x128x512xbf16>
    %160 = vector.shape_cast %159 : vector<1x128x512xbf16> to vector<128x512xbf16>
    %cst_99 = arith.constant dense<0.000000e+00> : vector<1x512xf32>
    %161 = tpu.matmul %158, %160, %cst_99 {dimension_numbers = #tpu.dot_dimension_numbers<[1], [0], [0], [1], [0, 0, 1, 1], [], []>} : vector<1x128xbf16>, vector<128x512xbf16>, vector<1x512xf32> -> vector<1x512xf32>
    %162 = arith.addf %157, %161 : vector<1x512xf32>
    %163 = vector.extract_strided_slice %162 {offsets = [0, 0], sizes = [1, 128], strides = [1, 1]} : vector<1x512xf32> to vector<1x128xf32>
    %164 = arith.negf %163 : vector<1x128xf32>
    %165 = math.exp %164 : vector<1x128xf32>
    %cst_100 = arith.constant 1.000000e+00 : f32
    %166 = vector.broadcast %cst_100 : f32 to vector<1x128xf32>
    %167 = arith.addf %166, %165 : vector<1x128xf32>
    %168 = arith.divf %166, %167 : vector<1x128xf32>
    %169 = vector.extract_strided_slice %162 {offsets = [0, 128], sizes = [1, 128], strides = [1, 1]} : vector<1x512xf32> to vector<1x128xf32>
    %170 = arith.negf %169 : vector<1x128xf32>
    %171 = math.exp %170 : vector<1x128xf32>
    %cst_101 = arith.constant 1.000000e+00 : f32
    %172 = vector.broadcast %cst_101 : f32 to vector<1x128xf32>
    %173 = arith.addf %172, %171 : vector<1x128xf32>
    %174 = arith.divf %172, %173 : vector<1x128xf32>
    %175 = vector.extract_strided_slice %162 {offsets = [0, 256], sizes = [1, 128], strides = [1, 1]} : vector<1x512xf32> to vector<1x128xf32>
    %176 = math.tanh %175 : vector<1x128xf32>
    %177 = vector.extract_strided_slice %162 {offsets = [0, 384], sizes = [1, 128], strides = [1, 1]} : vector<1x512xf32> to vector<1x128xf32>
    %178 = arith.negf %177 : vector<1x128xf32>
    %179 = math.exp %178 : vector<1x128xf32>
    %cst_102 = arith.constant 1.000000e+00 : f32
    %180 = vector.broadcast %cst_102 : f32 to vector<1x128xf32>
    %181 = arith.addf %180, %179 : vector<1x128xf32>
    %182 = arith.divf %180, %181 : vector<1x128xf32>
    %183 = arith.mulf %174, %142 : vector<1x128xf32>
    %184 = arith.mulf %168, %176 : vector<1x128xf32>
    %185 = arith.addf %183, %184 : vector<1x128xf32>
    %186 = math.tanh %185 : vector<1x128xf32>
    %187 = arith.mulf %182, %186 : vector<1x128xf32>
    %188 = arith.truncf %144 : vector<1x128xf32> to vector<1x128xbf16>
    %c1_103 = arith.constant 1 : index
    %c0_104 = arith.constant 0 : index
    %c0_105 = arith.constant 0 : index
    %189 = vector.load %arg11[%c1_103, %c0_104, %c0_105] : memref<3x128x512xbf16, #tpu.memory_space<vmem>>, vector<1x128x512xbf16>
    %190 = vector.shape_cast %189 : vector<1x128x512xbf16> to vector<128x512xbf16>
    %cst_106 = arith.constant dense<0.000000e+00> : vector<1x512xf32>
    %191 = tpu.matmul %188, %190, %cst_106 {dimension_numbers = #tpu.dot_dimension_numbers<[1], [0], [0], [1], [0, 0, 1, 1], [], []>} : vector<1x128xbf16>, vector<128x512xbf16>, vector<1x512xf32> -> vector<1x512xf32>
    %192 = arith.truncf %109 : vector<1x128xf32> to vector<1x128xbf16>
    %c1_107 = arith.constant 1 : index
    %c0_108 = arith.constant 0 : index
    %c0_109 = arith.constant 0 : index
    %193 = vector.load %arg12[%c1_107, %c0_108, %c0_109] : memref<3x128x512xbf16, #tpu.memory_space<vmem>>, vector<1x128x512xbf16>
    %194 = vector.shape_cast %193 : vector<1x128x512xbf16> to vector<128x512xbf16>
    %cst_110 = arith.constant dense<0.000000e+00> : vector<1x512xf32>
    %195 = tpu.matmul %192, %194, %cst_110 {dimension_numbers = #tpu.dot_dimension_numbers<[1], [0], [0], [1], [0, 0, 1, 1], [], []>} : vector<1x128xbf16>, vector<128x512xbf16>, vector<1x512xf32> -> vector<1x512xf32>
    %196 = arith.addf %191, %195 : vector<1x512xf32>
    %c1_111 = arith.constant 1 : index
    %c0_112 = arith.constant 0 : index
    %c0_113 = arith.constant 0 : index
    %197 = vector.load %arg5[%c1_111, %c0_112, %c0_113] : memref<3x1x512xf32, #tpu.memory_space<vmem>>, vector<1x1x512xf32>
    %198 = vector.shape_cast %197 : vector<1x1x512xf32> to vector<1x512xf32>
    %199 = arith.addf %196, %198 : vector<1x512xf32>
    %200 = vector.extract_strided_slice %199 {offsets = [0, 0], sizes = [1, 128], strides = [1, 1]} : vector<1x512xf32> to vector<1x128xf32>
    %201 = arith.negf %200 : vector<1x128xf32>
    %202 = math.exp %201 : vector<1x128xf32>
    %cst_114 = arith.constant 1.000000e+00 : f32
    %203 = vector.broadcast %cst_114 : f32 to vector<1x128xf32>
    %204 = arith.addf %203, %202 : vector<1x128xf32>
    %205 = arith.divf %203, %204 : vector<1x128xf32>
    %206 = vector.extract_strided_slice %199 {offsets = [0, 128], sizes = [1, 128], strides = [1, 1]} : vector<1x512xf32> to vector<1x128xf32>
    %207 = arith.negf %206 : vector<1x128xf32>
    %208 = math.exp %207 : vector<1x128xf32>
    %cst_115 = arith.constant 1.000000e+00 : f32
    %209 = vector.broadcast %cst_115 : f32 to vector<1x128xf32>
    %210 = arith.addf %209, %208 : vector<1x128xf32>
    %211 = arith.divf %209, %210 : vector<1x128xf32>
    %212 = vector.extract_strided_slice %199 {offsets = [0, 256], sizes = [1, 128], strides = [1, 1]} : vector<1x512xf32> to vector<1x128xf32>
    %213 = math.tanh %212 : vector<1x128xf32>
    %214 = vector.extract_strided_slice %199 {offsets = [0, 384], sizes = [1, 128], strides = [1, 1]} : vector<1x512xf32> to vector<1x128xf32>
    %215 = arith.negf %214 : vector<1x128xf32>
    %216 = math.exp %215 : vector<1x128xf32>
    %cst_116 = arith.constant 1.000000e+00 : f32
    %217 = vector.broadcast %cst_116 : f32 to vector<1x128xf32>
    %218 = arith.addf %217, %216 : vector<1x128xf32>
    %219 = arith.divf %217, %218 : vector<1x128xf32>
    %220 = arith.mulf %211, %112 : vector<1x128xf32>
    %221 = arith.mulf %205, %213 : vector<1x128xf32>
    %222 = arith.addf %220, %221 : vector<1x128xf32>
    %223 = math.tanh %222 : vector<1x128xf32>
    %224 = arith.mulf %219, %223 : vector<1x128xf32>
    %c2_i32_117 = arith.constant 2 : i32
    %c2_i32_118 = arith.constant 2 : i32
    %c4_i32_119 = arith.constant 4 : i32
    %c0_i32_120 = arith.constant 0 : i32
    %c0_i32_121 = arith.constant 0 : i32
    %225 = tpu.memref_slice %arg3[%c2_i32_117, %c0_i32_120, %c0_i32_121] : memref<3x128x512xbf16, #tpu.memory_space<any>> -> memref<1x128x512xbf16, #tpu.memory_space<any>>
    %226 = tpu.memref_squeeze %225 : memref<1x128x512xbf16, #tpu.memory_space<any>> -> memref<128x512xbf16, #tpu.memory_space<any>>
    %c0_i32_122 = arith.constant 0 : i32
    %c0_i32_123 = arith.constant 0 : i32
    %227 = tpu.memref_slice %arg11[%c2_i32_118, %c0_i32_122, %c0_i32_123] : memref<3x128x512xbf16, #tpu.memory_space<vmem>> -> memref<1x128x512xbf16, #tpu.memory_space<vmem>>
    %228 = tpu.memref_squeeze %227 : memref<1x128x512xbf16, #tpu.memory_space<vmem>> -> memref<128x512xbf16, #tpu.memory_space<vmem>>
    %229 = tpu.memref_slice %arg14[%c4_i32_119] : memref<7x!tpu.dma_semaphore, #tpu.memory_space<semaphore_mem>> -> memref<1x!tpu.dma_semaphore, #tpu.memory_space<semaphore_mem>>
    %230 = tpu.memref_squeeze %229 : memref<1x!tpu.dma_semaphore, #tpu.memory_space<semaphore_mem>> -> memref<!tpu.dma_semaphore, #tpu.memory_space<semaphore_mem>>
    tpu.wait_dma2 semaphore(%230 : memref<!tpu.dma_semaphore, #tpu.memory_space<semaphore_mem>>) src(%226 : memref<128x512xbf16, #tpu.memory_space<any>>) dst(%228 : memref<128x512xbf16, #tpu.memory_space<vmem>>)
    %c2_i32_124 = arith.constant 2 : i32
    %c2_i32_125 = arith.constant 2 : i32
    %c5_i32_126 = arith.constant 5 : i32
    %c0_i32_127 = arith.constant 0 : i32
    %c0_i32_128 = arith.constant 0 : i32
    %231 = tpu.memref_slice %arg4[%c2_i32_124, %c0_i32_127, %c0_i32_128] : memref<3x128x512xbf16, #tpu.memory_space<any>> -> memref<1x128x512xbf16, #tpu.memory_space<any>>
    %232 = tpu.memref_squeeze %231 : memref<1x128x512xbf16, #tpu.memory_space<any>> -> memref<128x512xbf16, #tpu.memory_space<any>>
    %c0_i32_129 = arith.constant 0 : i32
    %c0_i32_130 = arith.constant 0 : i32
    %233 = tpu.memref_slice %arg12[%c2_i32_125, %c0_i32_129, %c0_i32_130] : memref<3x128x512xbf16, #tpu.memory_space<vmem>> -> memref<1x128x512xbf16, #tpu.memory_space<vmem>>
    %234 = tpu.memref_squeeze %233 : memref<1x128x512xbf16, #tpu.memory_space<vmem>> -> memref<128x512xbf16, #tpu.memory_space<vmem>>
    %235 = tpu.memref_slice %arg14[%c5_i32_126] : memref<7x!tpu.dma_semaphore, #tpu.memory_space<semaphore_mem>> -> memref<1x!tpu.dma_semaphore, #tpu.memory_space<semaphore_mem>>
    %236 = tpu.memref_squeeze %235 : memref<1x!tpu.dma_semaphore, #tpu.memory_space<semaphore_mem>> -> memref<!tpu.dma_semaphore, #tpu.memory_space<semaphore_mem>>
    tpu.wait_dma2 semaphore(%236 : memref<!tpu.dma_semaphore, #tpu.memory_space<semaphore_mem>>) src(%232 : memref<128x512xbf16, #tpu.memory_space<any>>) dst(%234 : memref<128x512xbf16, #tpu.memory_space<vmem>>)
    %237 = vector.extract_strided_slice %107 {offsets = [2, 0], sizes = [1, 512], strides = [1, 1]} : vector<8x512xf32> to vector<1x512xf32>
    %238 = arith.truncf %187 : vector<1x128xf32> to vector<1x128xbf16>
    %c0_131 = arith.constant 0 : index
    %c0_132 = arith.constant 0 : index
    %c0_133 = arith.constant 0 : index
    %239 = vector.load %arg12[%c0_131, %c0_132, %c0_133] : memref<3x128x512xbf16, #tpu.memory_space<vmem>>, vector<1x128x512xbf16>
    %240 = vector.shape_cast %239 : vector<1x128x512xbf16> to vector<128x512xbf16>
    %cst_134 = arith.constant dense<0.000000e+00> : vector<1x512xf32>
    %241 = tpu.matmul %238, %240, %cst_134 {dimension_numbers = #tpu.dot_dimension_numbers<[1], [0], [0], [1], [0, 0, 1, 1], [], []>} : vector<1x128xbf16>, vector<128x512xbf16>, vector<1x512xf32> -> vector<1x512xf32>
    %242 = arith.addf %237, %241 : vector<1x512xf32>
    %243 = vector.extract_strided_slice %242 {offsets = [0, 0], sizes = [1, 128], strides = [1, 1]} : vector<1x512xf32> to vector<1x128xf32>
    %244 = arith.negf %243 : vector<1x128xf32>
    %245 = math.exp %244 : vector<1x128xf32>
    %cst_135 = arith.constant 1.000000e+00 : f32
    %246 = vector.broadcast %cst_135 : f32 to vector<1x128xf32>
    %247 = arith.addf %246, %245 : vector<1x128xf32>
    %248 = arith.divf %246, %247 : vector<1x128xf32>
    %249 = vector.extract_strided_slice %242 {offsets = [0, 128], sizes = [1, 128], strides = [1, 1]} : vector<1x512xf32> to vector<1x128xf32>
    %250 = arith.negf %249 : vector<1x128xf32>
    %251 = math.exp %250 : vector<1x128xf32>
    %cst_136 = arith.constant 1.000000e+00 : f32
    %252 = vector.broadcast %cst_136 : f32 to vector<1x128xf32>
    %253 = arith.addf %252, %251 : vector<1x128xf32>
    %254 = arith.divf %252, %253 : vector<1x128xf32>
    %255 = vector.extract_strided_slice %242 {offsets = [0, 256], sizes = [1, 128], strides = [1, 1]} : vector<1x512xf32> to vector<1x128xf32>
    %256 = math.tanh %255 : vector<1x128xf32>
    %257 = vector.extract_strided_slice %242 {offsets = [0, 384], sizes = [1, 128], strides = [1, 1]} : vector<1x512xf32> to vector<1x128xf32>
    %258 = arith.negf %257 : vector<1x128xf32>
    %259 = math.exp %258 : vector<1x128xf32>
    %cst_137 = arith.constant 1.000000e+00 : f32
    %260 = vector.broadcast %cst_137 : f32 to vector<1x128xf32>
    %261 = arith.addf %260, %259 : vector<1x128xf32>
    %262 = arith.divf %260, %261 : vector<1x128xf32>
    %263 = arith.mulf %254, %185 : vector<1x128xf32>
    %264 = arith.mulf %248, %256 : vector<1x128xf32>
    %265 = arith.addf %263, %264 : vector<1x128xf32>
    %266 = math.tanh %265 : vector<1x128xf32>
    %267 = arith.mulf %262, %266 : vector<1x128xf32>
    %268 = arith.truncf %187 : vector<1x128xf32> to vector<1x128xbf16>
    %c1_138 = arith.constant 1 : index
    %c0_139 = arith.constant 0 : index
    %c0_140 = arith.constant 0 : index
    %269 = vector.load %arg11[%c1_138, %c0_139, %c0_140] : memref<3x128x512xbf16, #tpu.memory_space<vmem>>, vector<1x128x512xbf16>
    %270 = vector.shape_cast %269 : vector<1x128x512xbf16> to vector<128x512xbf16>
    %cst_141 = arith.constant dense<0.000000e+00> : vector<1x512xf32>
    %271 = tpu.matmul %268, %270, %cst_141 {dimension_numbers = #tpu.dot_dimension_numbers<[1], [0], [0], [1], [0, 0, 1, 1], [], []>} : vector<1x128xbf16>, vector<128x512xbf16>, vector<1x512xf32> -> vector<1x512xf32>
    %272 = arith.truncf %224 : vector<1x128xf32> to vector<1x128xbf16>
    %c1_142 = arith.constant 1 : index
    %c0_143 = arith.constant 0 : index
    %c0_144 = arith.constant 0 : index
    %273 = vector.load %arg12[%c1_142, %c0_143, %c0_144] : memref<3x128x512xbf16, #tpu.memory_space<vmem>>, vector<1x128x512xbf16>
    %274 = vector.shape_cast %273 : vector<1x128x512xbf16> to vector<128x512xbf16>
    %cst_145 = arith.constant dense<0.000000e+00> : vector<1x512xf32>
    %275 = tpu.matmul %272, %274, %cst_145 {dimension_numbers = #tpu.dot_dimension_numbers<[1], [0], [0], [1], [0, 0, 1, 1], [], []>} : vector<1x128xbf16>, vector<128x512xbf16>, vector<1x512xf32> -> vector<1x512xf32>
    %276 = arith.addf %271, %275 : vector<1x512xf32>
    %c1_146 = arith.constant 1 : index
    %c0_147 = arith.constant 0 : index
    %c0_148 = arith.constant 0 : index
    %277 = vector.load %arg5[%c1_146, %c0_147, %c0_148] : memref<3x1x512xf32, #tpu.memory_space<vmem>>, vector<1x1x512xf32>
    %278 = vector.shape_cast %277 : vector<1x1x512xf32> to vector<1x512xf32>
    %279 = arith.addf %276, %278 : vector<1x512xf32>
    %280 = vector.extract_strided_slice %279 {offsets = [0, 0], sizes = [1, 128], strides = [1, 1]} : vector<1x512xf32> to vector<1x128xf32>
    %281 = arith.negf %280 : vector<1x128xf32>
    %282 = math.exp %281 : vector<1x128xf32>
    %cst_149 = arith.constant 1.000000e+00 : f32
    %283 = vector.broadcast %cst_149 : f32 to vector<1x128xf32>
    %284 = arith.addf %283, %282 : vector<1x128xf32>
    %285 = arith.divf %283, %284 : vector<1x128xf32>
    %286 = vector.extract_strided_slice %279 {offsets = [0, 128], sizes = [1, 128], strides = [1, 1]} : vector<1x512xf32> to vector<1x128xf32>
    %287 = arith.negf %286 : vector<1x128xf32>
    %288 = math.exp %287 : vector<1x128xf32>
    %cst_150 = arith.constant 1.000000e+00 : f32
    %289 = vector.broadcast %cst_150 : f32 to vector<1x128xf32>
    %290 = arith.addf %289, %288 : vector<1x128xf32>
    %291 = arith.divf %289, %290 : vector<1x128xf32>
    %292 = vector.extract_strided_slice %279 {offsets = [0, 256], sizes = [1, 128], strides = [1, 1]} : vector<1x512xf32> to vector<1x128xf32>
    %293 = math.tanh %292 : vector<1x128xf32>
    %294 = vector.extract_strided_slice %279 {offsets = [0, 384], sizes = [1, 128], strides = [1, 1]} : vector<1x512xf32> to vector<1x128xf32>
    %295 = arith.negf %294 : vector<1x128xf32>
    %296 = math.exp %295 : vector<1x128xf32>
    %cst_151 = arith.constant 1.000000e+00 : f32
    %297 = vector.broadcast %cst_151 : f32 to vector<1x128xf32>
    %298 = arith.addf %297, %296 : vector<1x128xf32>
    %299 = arith.divf %297, %298 : vector<1x128xf32>
    %300 = arith.mulf %291, %222 : vector<1x128xf32>
    %301 = arith.mulf %285, %293 : vector<1x128xf32>
    %302 = arith.addf %300, %301 : vector<1x128xf32>
    %303 = math.tanh %302 : vector<1x128xf32>
    %304 = arith.mulf %299, %303 : vector<1x128xf32>
    %305 = arith.truncf %224 : vector<1x128xf32> to vector<1x128xbf16>
    %c2_152 = arith.constant 2 : index
    %c0_153 = arith.constant 0 : index
    %c0_154 = arith.constant 0 : index
    %306 = vector.load %arg11[%c2_152, %c0_153, %c0_154] : memref<3x128x512xbf16, #tpu.memory_space<vmem>>, vector<1x128x512xbf16>
    %307 = vector.shape_cast %306 : vector<1x128x512xbf16> to vector<128x512xbf16>
    %cst_155 = arith.constant dense<0.000000e+00> : vector<1x512xf32>
    %308 = tpu.matmul %305, %307, %cst_155 {dimension_numbers = #tpu.dot_dimension_numbers<[1], [0], [0], [1], [0, 0, 1, 1], [], []>} : vector<1x128xbf16>, vector<128x512xbf16>, vector<1x512xf32> -> vector<1x512xf32>
    %309 = arith.truncf %110 : vector<1x128xf32> to vector<1x128xbf16>
    %c2_156 = arith.constant 2 : index
    %c0_157 = arith.constant 0 : index
    %c0_158 = arith.constant 0 : index
    %310 = vector.load %arg12[%c2_156, %c0_157, %c0_158] : memref<3x128x512xbf16, #tpu.memory_space<vmem>>, vector<1x128x512xbf16>
    %311 = vector.shape_cast %310 : vector<1x128x512xbf16> to vector<128x512xbf16>
    %cst_159 = arith.constant dense<0.000000e+00> : vector<1x512xf32>
    %312 = tpu.matmul %309, %311, %cst_159 {dimension_numbers = #tpu.dot_dimension_numbers<[1], [0], [0], [1], [0, 0, 1, 1], [], []>} : vector<1x128xbf16>, vector<128x512xbf16>, vector<1x512xf32> -> vector<1x512xf32>
    %313 = arith.addf %308, %312 : vector<1x512xf32>
    %c2_160 = arith.constant 2 : index
    %c0_161 = arith.constant 0 : index
    %c0_162 = arith.constant 0 : index
    %314 = vector.load %arg5[%c2_160, %c0_161, %c0_162] : memref<3x1x512xf32, #tpu.memory_space<vmem>>, vector<1x1x512xf32>
    %315 = vector.shape_cast %314 : vector<1x1x512xf32> to vector<1x512xf32>
    %316 = arith.addf %313, %315 : vector<1x512xf32>
    %317 = vector.extract_strided_slice %316 {offsets = [0, 0], sizes = [1, 128], strides = [1, 1]} : vector<1x512xf32> to vector<1x128xf32>
    %318 = arith.negf %317 : vector<1x128xf32>
    %319 = math.exp %318 : vector<1x128xf32>
    %cst_163 = arith.constant 1.000000e+00 : f32
    %320 = vector.broadcast %cst_163 : f32 to vector<1x128xf32>
    %321 = arith.addf %320, %319 : vector<1x128xf32>
    %322 = arith.divf %320, %321 : vector<1x128xf32>
    %323 = vector.extract_strided_slice %316 {offsets = [0, 128], sizes = [1, 128], strides = [1, 1]} : vector<1x512xf32> to vector<1x128xf32>
    %324 = arith.negf %323 : vector<1x128xf32>
    %325 = math.exp %324 : vector<1x128xf32>
    %cst_164 = arith.constant 1.000000e+00 : f32
    %326 = vector.broadcast %cst_164 : f32 to vector<1x128xf32>
    %327 = arith.addf %326, %325 : vector<1x128xf32>
    %328 = arith.divf %326, %327 : vector<1x128xf32>
    %329 = vector.extract_strided_slice %316 {offsets = [0, 256], sizes = [1, 128], strides = [1, 1]} : vector<1x512xf32> to vector<1x128xf32>
    %330 = math.tanh %329 : vector<1x128xf32>
    %331 = vector.extract_strided_slice %316 {offsets = [0, 384], sizes = [1, 128], strides = [1, 1]} : vector<1x512xf32> to vector<1x128xf32>
    %332 = arith.negf %331 : vector<1x128xf32>
    %333 = math.exp %332 : vector<1x128xf32>
    %cst_165 = arith.constant 1.000000e+00 : f32
    %334 = vector.broadcast %cst_165 : f32 to vector<1x128xf32>
    %335 = arith.addf %334, %333 : vector<1x128xf32>
    %336 = arith.divf %334, %335 : vector<1x128xf32>
    %337 = arith.mulf %328, %113 : vector<1x128xf32>
    %338 = arith.mulf %322, %330 : vector<1x128xf32>
    %339 = arith.addf %337, %338 : vector<1x128xf32>
    %340 = math.tanh %339 : vector<1x128xf32>
    %341 = arith.mulf %336, %340 : vector<1x128xf32>
    %342 = vector.extract_strided_slice %107 {offsets = [3, 0], sizes = [1, 512], strides = [1, 1]} : vector<8x512xf32> to vector<1x512xf32>
    %343 = arith.truncf %267 : vector<1x128xf32> to vector<1x128xbf16>
    %c0_166 = arith.constant 0 : index
    %c0_167 = arith.constant 0 : index
    %c0_168 = arith.constant 0 : index
    %344 = vector.load %arg12[%c0_166, %c0_167, %c0_168] : memref<3x128x512xbf16, #tpu.memory_space<vmem>>, vector<1x128x512xbf16>
    %345 = vector.shape_cast %344 : vector<1x128x512xbf16> to vector<128x512xbf16>
    %cst_169 = arith.constant dense<0.000000e+00> : vector<1x512xf32>
    %346 = tpu.matmul %343, %345, %cst_169 {dimension_numbers = #tpu.dot_dimension_numbers<[1], [0], [0], [1], [0, 0, 1, 1], [], []>} : vector<1x128xbf16>, vector<128x512xbf16>, vector<1x512xf32> -> vector<1x512xf32>
    %347 = arith.addf %342, %346 : vector<1x512xf32>
    %348 = vector.extract_strided_slice %347 {offsets = [0, 0], sizes = [1, 128], strides = [1, 1]} : vector<1x512xf32> to vector<1x128xf32>
    %349 = arith.negf %348 : vector<1x128xf32>
    %350 = math.exp %349 : vector<1x128xf32>
    %cst_170 = arith.constant 1.000000e+00 : f32
    %351 = vector.broadcast %cst_170 : f32 to vector<1x128xf32>
    %352 = arith.addf %351, %350 : vector<1x128xf32>
    %353 = arith.divf %351, %352 : vector<1x128xf32>
    %354 = vector.extract_strided_slice %347 {offsets = [0, 128], sizes = [1, 128], strides = [1, 1]} : vector<1x512xf32> to vector<1x128xf32>
    %355 = arith.negf %354 : vector<1x128xf32>
    %356 = math.exp %355 : vector<1x128xf32>
    %cst_171 = arith.constant 1.000000e+00 : f32
    %357 = vector.broadcast %cst_171 : f32 to vector<1x128xf32>
    %358 = arith.addf %357, %356 : vector<1x128xf32>
    %359 = arith.divf %357, %358 : vector<1x128xf32>
    %360 = vector.extract_strided_slice %347 {offsets = [0, 256], sizes = [1, 128], strides = [1, 1]} : vector<1x512xf32> to vector<1x128xf32>
    %361 = math.tanh %360 : vector<1x128xf32>
    %362 = vector.extract_strided_slice %347 {offsets = [0, 384], sizes = [1, 128], strides = [1, 1]} : vector<1x512xf32> to vector<1x128xf32>
    %363 = arith.negf %362 : vector<1x128xf32>
    %364 = math.exp %363 : vector<1x128xf32>
    %cst_172 = arith.constant 1.000000e+00 : f32
    %365 = vector.broadcast %cst_172 : f32 to vector<1x128xf32>
    %366 = arith.addf %365, %364 : vector<1x128xf32>
    %367 = arith.divf %365, %366 : vector<1x128xf32>
    %368 = arith.mulf %359, %265 : vector<1x128xf32>
    %369 = arith.mulf %353, %361 : vector<1x128xf32>
    %370 = arith.addf %368, %369 : vector<1x128xf32>
    %371 = math.tanh %370 : vector<1x128xf32>
    %372 = arith.mulf %367, %371 : vector<1x128xf32>
    %373 = arith.truncf %267 : vector<1x128xf32> to vector<1x128xbf16>
    %c1_173 = arith.constant 1 : index
    %c0_174 = arith.constant 0 : index
    %c0_175 = arith.constant 0 : index
    %374 = vector.load %arg11[%c1_173, %c0_174, %c0_175] : memref<3x128x512xbf16, #tpu.memory_space<vmem>>, vector<1x128x512xbf16>
    %375 = vector.shape_cast %374 : vector<1x128x512xbf16> to vector<128x512xbf16>
    %cst_176 = arith.constant dense<0.000000e+00> : vector<1x512xf32>
    %376 = tpu.matmul %373, %375, %cst_176 {dimension_numbers = #tpu.dot_dimension_numbers<[1], [0], [0], [1], [0, 0, 1, 1], [], []>} : vector<1x128xbf16>, vector<128x512xbf16>, vector<1x512xf32> -> vector<1x512xf32>
    %377 = arith.truncf %304 : vector<1x128xf32> to vector<1x128xbf16>
    %c1_177 = arith.constant 1 : index
    %c0_178 = arith.constant 0 : index
    %c0_179 = arith.constant 0 : index
    %378 = vector.load %arg12[%c1_177, %c0_178, %c0_179] : memref<3x128x512xbf16, #tpu.memory_space<vmem>>, vector<1x128x512xbf16>
    %379 = vector.shape_cast %378 : vector<1x128x512xbf16> to vector<128x512xbf16>
    %cst_180 = arith.constant dense<0.000000e+00> : vector<1x512xf32>
    %380 = tpu.matmul %377, %379, %cst_180 {dimension_numbers = #tpu.dot_dimension_numbers<[1], [0], [0], [1], [0, 0, 1, 1], [], []>} : vector<1x128xbf16>, vector<128x512xbf16>, vector<1x512xf32> -> vector<1x512xf32>
    %381 = arith.addf %376, %380 : vector<1x512xf32>
    %c1_181 = arith.constant 1 : index
    %c0_182 = arith.constant 0 : index
    %c0_183 = arith.constant 0 : index
    %382 = vector.load %arg5[%c1_181, %c0_182, %c0_183] : memref<3x1x512xf32, #tpu.memory_space<vmem>>, vector<1x1x512xf32>
    %383 = vector.shape_cast %382 : vector<1x1x512xf32> to vector<1x512xf32>
    %384 = arith.addf %381, %383 : vector<1x512xf32>
    %385 = vector.extract_strided_slice %384 {offsets = [0, 0], sizes = [1, 128], strides = [1, 1]} : vector<1x512xf32> to vector<1x128xf32>
    %386 = arith.negf %385 : vector<1x128xf32>
    %387 = math.exp %386 : vector<1x128xf32>
    %cst_184 = arith.constant 1.000000e+00 : f32
    %388 = vector.broadcast %cst_184 : f32 to vector<1x128xf32>
    %389 = arith.addf %388, %387 : vector<1x128xf32>
    %390 = arith.divf %388, %389 : vector<1x128xf32>
    %391 = vector.extract_strided_slice %384 {offsets = [0, 128], sizes = [1, 128], strides = [1, 1]} : vector<1x512xf32> to vector<1x128xf32>
    %392 = arith.negf %391 : vector<1x128xf32>
    %393 = math.exp %392 : vector<1x128xf32>
    %cst_185 = arith.constant 1.000000e+00 : f32
    %394 = vector.broadcast %cst_185 : f32 to vector<1x128xf32>
    %395 = arith.addf %394, %393 : vector<1x128xf32>
    %396 = arith.divf %394, %395 : vector<1x128xf32>
    %397 = vector.extract_strided_slice %384 {offsets = [0, 256], sizes = [1, 128], strides = [1, 1]} : vector<1x512xf32> to vector<1x128xf32>
    %398 = math.tanh %397 : vector<1x128xf32>
    %399 = vector.extract_strided_slice %384 {offsets = [0, 384], sizes = [1, 128], strides = [1, 1]} : vector<1x512xf32> to vector<1x128xf32>
    %400 = arith.negf %399 : vector<1x128xf32>
    %401 = math.exp %400 : vector<1x128xf32>
    %cst_186 = arith.constant 1.000000e+00 : f32
    %402 = vector.broadcast %cst_186 : f32 to vector<1x128xf32>
    %403 = arith.addf %402, %401 : vector<1x128xf32>
    %404 = arith.divf %402, %403 : vector<1x128xf32>
    %405 = arith.mulf %396, %302 : vector<1x128xf32>
    %406 = arith.mulf %390, %398 : vector<1x128xf32>
    %407 = arith.addf %405, %406 : vector<1x128xf32>
    %408 = math.tanh %407 : vector<1x128xf32>
    %409 = arith.mulf %404, %408 : vector<1x128xf32>
    %410 = arith.truncf %304 : vector<1x128xf32> to vector<1x128xbf16>
    %c2_187 = arith.constant 2 : index
    %c0_188 = arith.constant 0 : index
    %c0_189 = arith.constant 0 : index
    %411 = vector.load %arg11[%c2_187, %c0_188, %c0_189] : memref<3x128x512xbf16, #tpu.memory_space<vmem>>, vector<1x128x512xbf16>
    %412 = vector.shape_cast %411 : vector<1x128x512xbf16> to vector<128x512xbf16>
    %cst_190 = arith.constant dense<0.000000e+00> : vector<1x512xf32>
    %413 = tpu.matmul %410, %412, %cst_190 {dimension_numbers = #tpu.dot_dimension_numbers<[1], [0], [0], [1], [0, 0, 1, 1], [], []>} : vector<1x128xbf16>, vector<128x512xbf16>, vector<1x512xf32> -> vector<1x512xf32>
    %414 = arith.truncf %341 : vector<1x128xf32> to vector<1x128xbf16>
    %c2_191 = arith.constant 2 : index
    %c0_192 = arith.constant 0 : index
    %c0_193 = arith.constant 0 : index
    %415 = vector.load %arg12[%c2_191, %c0_192, %c0_193] : memref<3x128x512xbf16, #tpu.memory_space<vmem>>, vector<1x128x512xbf16>
    %416 = vector.shape_cast %415 : vector<1x128x512xbf16> to vector<128x512xbf16>
    %cst_194 = arith.constant dense<0.000000e+00> : vector<1x512xf32>
    %417 = tpu.matmul %414, %416, %cst_194 {dimension_numbers = #tpu.dot_dimension_numbers<[1], [0], [0], [1], [0, 0, 1, 1], [], []>} : vector<1x128xbf16>, vector<128x512xbf16>, vector<1x512xf32> -> vector<1x512xf32>
    %418 = arith.addf %413, %417 : vector<1x512xf32>
    %c2_195 = arith.constant 2 : index
    %c0_196 = arith.constant 0 : index
    %c0_197 = arith.constant 0 : index
    %419 = vector.load %arg5[%c2_195, %c0_196, %c0_197] : memref<3x1x512xf32, #tpu.memory_space<vmem>>, vector<1x1x512xf32>
    %420 = vector.shape_cast %419 : vector<1x1x512xf32> to vector<1x512xf32>
    %421 = arith.addf %418, %420 : vector<1x512xf32>
    %422 = vector.extract_strided_slice %421 {offsets = [0, 0], sizes = [1, 128], strides = [1, 1]} : vector<1x512xf32> to vector<1x128xf32>
    %423 = arith.negf %422 : vector<1x128xf32>
    %424 = math.exp %423 : vector<1x128xf32>
    %cst_198 = arith.constant 1.000000e+00 : f32
    %425 = vector.broadcast %cst_198 : f32 to vector<1x128xf32>
    %426 = arith.addf %425, %424 : vector<1x128xf32>
    %427 = arith.divf %425, %426 : vector<1x128xf32>
    %428 = vector.extract_strided_slice %421 {offsets = [0, 128], sizes = [1, 128], strides = [1, 1]} : vector<1x512xf32> to vector<1x128xf32>
    %429 = arith.negf %428 : vector<1x128xf32>
    %430 = math.exp %429 : vector<1x128xf32>
    %cst_199 = arith.constant 1.000000e+00 : f32
    %431 = vector.broadcast %cst_199 : f32 to vector<1x128xf32>
    %432 = arith.addf %431, %430 : vector<1x128xf32>
    %433 = arith.divf %431, %432 : vector<1x128xf32>
    %434 = vector.extract_strided_slice %421 {offsets = [0, 256], sizes = [1, 128], strides = [1, 1]} : vector<1x512xf32> to vector<1x128xf32>
    %435 = math.tanh %434 : vector<1x128xf32>
    %436 = vector.extract_strided_slice %421 {offsets = [0, 384], sizes = [1, 128], strides = [1, 1]} : vector<1x512xf32> to vector<1x128xf32>
    %437 = arith.negf %436 : vector<1x128xf32>
    %438 = math.exp %437 : vector<1x128xf32>
    %cst_200 = arith.constant 1.000000e+00 : f32
    %439 = vector.broadcast %cst_200 : f32 to vector<1x128xf32>
    %440 = arith.addf %439, %438 : vector<1x128xf32>
    %441 = arith.divf %439, %440 : vector<1x128xf32>
    %442 = arith.mulf %433, %339 : vector<1x128xf32>
    %443 = arith.mulf %427, %435 : vector<1x128xf32>
    %444 = arith.addf %442, %443 : vector<1x128xf32>
    %445 = math.tanh %444 : vector<1x128xf32>
    %446 = arith.mulf %441, %445 : vector<1x128xf32>
    %447 = vector.extract_strided_slice %107 {offsets = [4, 0], sizes = [1, 512], strides = [1, 1]} : vector<8x512xf32> to vector<1x512xf32>
    %448 = arith.truncf %372 : vector<1x128xf32> to vector<1x128xbf16>
    %c0_201 = arith.constant 0 : index
    %c0_202 = arith.constant 0 : index
    %c0_203 = arith.constant 0 : index
    %449 = vector.load %arg12[%c0_201, %c0_202, %c0_203] : memref<3x128x512xbf16, #tpu.memory_space<vmem>>, vector<1x128x512xbf16>
    %450 = vector.shape_cast %449 : vector<1x128x512xbf16> to vector<128x512xbf16>
    %cst_204 = arith.constant dense<0.000000e+00> : vector<1x512xf32>
    %451 = tpu.matmul %448, %450, %cst_204 {dimension_numbers = #tpu.dot_dimension_numbers<[1], [0], [0], [1], [0, 0, 1, 1], [], []>} : vector<1x128xbf16>, vector<128x512xbf16>, vector<1x512xf32> -> vector<1x512xf32>
    %452 = arith.addf %447, %451 : vector<1x512xf32>
    %453 = vector.extract_strided_slice %452 {offsets = [0, 0], sizes = [1, 128], strides = [1, 1]} : vector<1x512xf32> to vector<1x128xf32>
    %454 = arith.negf %453 : vector<1x128xf32>
    %455 = math.exp %454 : vector<1x128xf32>
    %cst_205 = arith.constant 1.000000e+00 : f32
    %456 = vector.broadcast %cst_205 : f32 to vector<1x128xf32>
    %457 = arith.addf %456, %455 : vector<1x128xf32>
    %458 = arith.divf %456, %457 : vector<1x128xf32>
    %459 = vector.extract_strided_slice %452 {offsets = [0, 128], sizes = [1, 128], strides = [1, 1]} : vector<1x512xf32> to vector<1x128xf32>
    %460 = arith.negf %459 : vector<1x128xf32>
    %461 = math.exp %460 : vector<1x128xf32>
    %cst_206 = arith.constant 1.000000e+00 : f32
    %462 = vector.broadcast %cst_206 : f32 to vector<1x128xf32>
    %463 = arith.addf %462, %461 : vector<1x128xf32>
    %464 = arith.divf %462, %463 : vector<1x128xf32>
    %465 = vector.extract_strided_slice %452 {offsets = [0, 256], sizes = [1, 128], strides = [1, 1]} : vector<1x512xf32> to vector<1x128xf32>
    %466 = math.tanh %465 : vector<1x128xf32>
    %467 = vector.extract_strided_slice %452 {offsets = [0, 384], sizes = [1, 128], strides = [1, 1]} : vector<1x512xf32> to vector<1x128xf32>
    %468 = arith.negf %467 : vector<1x128xf32>
    %469 = math.exp %468 : vector<1x128xf32>
    %cst_207 = arith.constant 1.000000e+00 : f32
    %470 = vector.broadcast %cst_207 : f32 to vector<1x128xf32>
    %471 = arith.addf %470, %469 : vector<1x128xf32>
    %472 = arith.divf %470, %471 : vector<1x128xf32>
    %473 = arith.mulf %464, %370 : vector<1x128xf32>
    %474 = arith.mulf %458, %466 : vector<1x128xf32>
    %475 = arith.addf %473, %474 : vector<1x128xf32>
    %476 = math.tanh %475 : vector<1x128xf32>
    %477 = arith.mulf %472, %476 : vector<1x128xf32>
    %478 = arith.truncf %372 : vector<1x128xf32> to vector<1x128xbf16>
    %c1_208 = arith.constant 1 : index
    %c0_209 = arith.constant 0 : index
    %c0_210 = arith.constant 0 : index
    %479 = vector.load %arg11[%c1_208, %c0_209, %c0_210] : memref<3x128x512xbf16, #tpu.memory_space<vmem>>, vector<1x128x512xbf16>
    %480 = vector.shape_cast %479 : vector<1x128x512xbf16> to vector<128x512xbf16>
    %cst_211 = arith.constant dense<0.000000e+00> : vector<1x512xf32>
    %481 = tpu.matmul %478, %480, %cst_211 {dimension_numbers = #tpu.dot_dimension_numbers<[1], [0], [0], [1], [0, 0, 1, 1], [], []>} : vector<1x128xbf16>, vector<128x512xbf16>, vector<1x512xf32> -> vector<1x512xf32>
    %482 = arith.truncf %409 : vector<1x128xf32> to vector<1x128xbf16>
    %c1_212 = arith.constant 1 : index
    %c0_213 = arith.constant 0 : index
    %c0_214 = arith.constant 0 : index
    %483 = vector.load %arg12[%c1_212, %c0_213, %c0_214] : memref<3x128x512xbf16, #tpu.memory_space<vmem>>, vector<1x128x512xbf16>
    %484 = vector.shape_cast %483 : vector<1x128x512xbf16> to vector<128x512xbf16>
    %cst_215 = arith.constant dense<0.000000e+00> : vector<1x512xf32>
    %485 = tpu.matmul %482, %484, %cst_215 {dimension_numbers = #tpu.dot_dimension_numbers<[1], [0], [0], [1], [0, 0, 1, 1], [], []>} : vector<1x128xbf16>, vector<128x512xbf16>, vector<1x512xf32> -> vector<1x512xf32>
    %486 = arith.addf %481, %485 : vector<1x512xf32>
    %c1_216 = arith.constant 1 : index
    %c0_217 = arith.constant 0 : index
    %c0_218 = arith.constant 0 : index
    %487 = vector.load %arg5[%c1_216, %c0_217, %c0_218] : memref<3x1x512xf32, #tpu.memory_space<vmem>>, vector<1x1x512xf32>
    %488 = vector.shape_cast %487 : vector<1x1x512xf32> to vector<1x512xf32>
    %489 = arith.addf %486, %488 : vector<1x512xf32>
    %490 = vector.extract_strided_slice %489 {offsets = [0, 0], sizes = [1, 128], strides = [1, 1]} : vector<1x512xf32> to vector<1x128xf32>
    %491 = arith.negf %490 : vector<1x128xf32>
    %492 = math.exp %491 : vector<1x128xf32>
    %cst_219 = arith.constant 1.000000e+00 : f32
    %493 = vector.broadcast %cst_219 : f32 to vector<1x128xf32>
    %494 = arith.addf %493, %492 : vector<1x128xf32>
    %495 = arith.divf %493, %494 : vector<1x128xf32>
    %496 = vector.extract_strided_slice %489 {offsets = [0, 128], sizes = [1, 128], strides = [1, 1]} : vector<1x512xf32> to vector<1x128xf32>
    %497 = arith.negf %496 : vector<1x128xf32>
    %498 = math.exp %497 : vector<1x128xf32>
    %cst_220 = arith.constant 1.000000e+00 : f32
    %499 = vector.broadcast %cst_220 : f32 to vector<1x128xf32>
    %500 = arith.addf %499, %498 : vector<1x128xf32>
    %501 = arith.divf %499, %500 : vector<1x128xf32>
    %502 = vector.extract_strided_slice %489 {offsets = [0, 256], sizes = [1, 128], strides = [1, 1]} : vector<1x512xf32> to vector<1x128xf32>
    %503 = math.tanh %502 : vector<1x128xf32>
    %504 = vector.extract_strided_slice %489 {offsets = [0, 384], sizes = [1, 128], strides = [1, 1]} : vector<1x512xf32> to vector<1x128xf32>
    %505 = arith.negf %504 : vector<1x128xf32>
    %506 = math.exp %505 : vector<1x128xf32>
    %cst_221 = arith.constant 1.000000e+00 : f32
    %507 = vector.broadcast %cst_221 : f32 to vector<1x128xf32>
    %508 = arith.addf %507, %506 : vector<1x128xf32>
    %509 = arith.divf %507, %508 : vector<1x128xf32>
    %510 = arith.mulf %501, %407 : vector<1x128xf32>
    %511 = arith.mulf %495, %503 : vector<1x128xf32>
    %512 = arith.addf %510, %511 : vector<1x128xf32>
    %513 = math.tanh %512 : vector<1x128xf32>
    %514 = arith.mulf %509, %513 : vector<1x128xf32>
    %515 = arith.truncf %409 : vector<1x128xf32> to vector<1x128xbf16>
    %c2_222 = arith.constant 2 : index
    %c0_223 = arith.constant 0 : index
    %c0_224 = arith.constant 0 : index
    %516 = vector.load %arg11[%c2_222, %c0_223, %c0_224] : memref<3x128x512xbf16, #tpu.memory_space<vmem>>, vector<1x128x512xbf16>
    %517 = vector.shape_cast %516 : vector<1x128x512xbf16> to vector<128x512xbf16>
    %cst_225 = arith.constant dense<0.000000e+00> : vector<1x512xf32>
    %518 = tpu.matmul %515, %517, %cst_225 {dimension_numbers = #tpu.dot_dimension_numbers<[1], [0], [0], [1], [0, 0, 1, 1], [], []>} : vector<1x128xbf16>, vector<128x512xbf16>, vector<1x512xf32> -> vector<1x512xf32>
    %519 = arith.truncf %446 : vector<1x128xf32> to vector<1x128xbf16>
    %c2_226 = arith.constant 2 : index
    %c0_227 = arith.constant 0 : index
    %c0_228 = arith.constant 0 : index
    %520 = vector.load %arg12[%c2_226, %c0_227, %c0_228] : memref<3x128x512xbf16, #tpu.memory_space<vmem>>, vector<1x128x512xbf16>
    %521 = vector.shape_cast %520 : vector<1x128x512xbf16> to vector<128x512xbf16>
    %cst_229 = arith.constant dense<0.000000e+00> : vector<1x512xf32>
    %522 = tpu.matmul %519, %521, %cst_229 {dimension_numbers = #tpu.dot_dimension_numbers<[1], [0], [0], [1], [0, 0, 1, 1], [], []>} : vector<1x128xbf16>, vector<128x512xbf16>, vector<1x512xf32> -> vector<1x512xf32>
    %523 = arith.addf %518, %522 : vector<1x512xf32>
    %c2_230 = arith.constant 2 : index
    %c0_231 = arith.constant 0 : index
    %c0_232 = arith.constant 0 : index
    %524 = vector.load %arg5[%c2_230, %c0_231, %c0_232] : memref<3x1x512xf32, #tpu.memory_space<vmem>>, vector<1x1x512xf32>
    %525 = vector.shape_cast %524 : vector<1x1x512xf32> to vector<1x512xf32>
    %526 = arith.addf %523, %525 : vector<1x512xf32>
    %527 = vector.extract_strided_slice %526 {offsets = [0, 0], sizes = [1, 128], strides = [1, 1]} : vector<1x512xf32> to vector<1x128xf32>
    %528 = arith.negf %527 : vector<1x128xf32>
    %529 = math.exp %528 : vector<1x128xf32>
    %cst_233 = arith.constant 1.000000e+00 : f32
    %530 = vector.broadcast %cst_233 : f32 to vector<1x128xf32>
    %531 = arith.addf %530, %529 : vector<1x128xf32>
    %532 = arith.divf %530, %531 : vector<1x128xf32>
    %533 = vector.extract_strided_slice %526 {offsets = [0, 128], sizes = [1, 128], strides = [1, 1]} : vector<1x512xf32> to vector<1x128xf32>
    %534 = arith.negf %533 : vector<1x128xf32>
    %535 = math.exp %534 : vector<1x128xf32>
    %cst_234 = arith.constant 1.000000e+00 : f32
    %536 = vector.broadcast %cst_234 : f32 to vector<1x128xf32>
    %537 = arith.addf %536, %535 : vector<1x128xf32>
    %538 = arith.divf %536, %537 : vector<1x128xf32>
    %539 = vector.extract_strided_slice %526 {offsets = [0, 256], sizes = [1, 128], strides = [1, 1]} : vector<1x512xf32> to vector<1x128xf32>
    %540 = math.tanh %539 : vector<1x128xf32>
    %541 = vector.extract_strided_slice %526 {offsets = [0, 384], sizes = [1, 128], strides = [1, 1]} : vector<1x512xf32> to vector<1x128xf32>
    %542 = arith.negf %541 : vector<1x128xf32>
    %543 = math.exp %542 : vector<1x128xf32>
    %cst_235 = arith.constant 1.000000e+00 : f32
    %544 = vector.broadcast %cst_235 : f32 to vector<1x128xf32>
    %545 = arith.addf %544, %543 : vector<1x128xf32>
    %546 = arith.divf %544, %545 : vector<1x128xf32>
    %547 = arith.mulf %538, %444 : vector<1x128xf32>
    %548 = arith.mulf %532, %540 : vector<1x128xf32>
    %549 = arith.addf %547, %548 : vector<1x128xf32>
    %550 = math.tanh %549 : vector<1x128xf32>
    %551 = arith.mulf %546, %550 : vector<1x128xf32>
    %552 = vector.extract_strided_slice %107 {offsets = [5, 0], sizes = [1, 512], strides = [1, 1]} : vector<8x512xf32> to vector<1x512xf32>
    %553 = arith.truncf %477 : vector<1x128xf32> to vector<1x128xbf16>
    %c0_236 = arith.constant 0 : index
    %c0_237 = arith.constant 0 : index
    %c0_238 = arith.constant 0 : index
    %554 = vector.load %arg12[%c0_236, %c0_237, %c0_238] : memref<3x128x512xbf16, #tpu.memory_space<vmem>>, vector<1x128x512xbf16>
    %555 = vector.shape_cast %554 : vector<1x128x512xbf16> to vector<128x512xbf16>
    %cst_239 = arith.constant dense<0.000000e+00> : vector<1x512xf32>
    %556 = tpu.matmul %553, %555, %cst_239 {dimension_numbers = #tpu.dot_dimension_numbers<[1], [0], [0], [1], [0, 0, 1, 1], [], []>} : vector<1x128xbf16>, vector<128x512xbf16>, vector<1x512xf32> -> vector<1x512xf32>
    %557 = arith.addf %552, %556 : vector<1x512xf32>
    %558 = vector.extract_strided_slice %557 {offsets = [0, 0], sizes = [1, 128], strides = [1, 1]} : vector<1x512xf32> to vector<1x128xf32>
    %559 = arith.negf %558 : vector<1x128xf32>
    %560 = math.exp %559 : vector<1x128xf32>
    %cst_240 = arith.constant 1.000000e+00 : f32
    %561 = vector.broadcast %cst_240 : f32 to vector<1x128xf32>
    %562 = arith.addf %561, %560 : vector<1x128xf32>
    %563 = arith.divf %561, %562 : vector<1x128xf32>
    %564 = vector.extract_strided_slice %557 {offsets = [0, 128], sizes = [1, 128], strides = [1, 1]} : vector<1x512xf32> to vector<1x128xf32>
    %565 = arith.negf %564 : vector<1x128xf32>
    %566 = math.exp %565 : vector<1x128xf32>
    %cst_241 = arith.constant 1.000000e+00 : f32
    %567 = vector.broadcast %cst_241 : f32 to vector<1x128xf32>
    %568 = arith.addf %567, %566 : vector<1x128xf32>
    %569 = arith.divf %567, %568 : vector<1x128xf32>
    %570 = vector.extract_strided_slice %557 {offsets = [0, 256], sizes = [1, 128], strides = [1, 1]} : vector<1x512xf32> to vector<1x128xf32>
    %571 = math.tanh %570 : vector<1x128xf32>
    %572 = vector.extract_strided_slice %557 {offsets = [0, 384], sizes = [1, 128], strides = [1, 1]} : vector<1x512xf32> to vector<1x128xf32>
    %573 = arith.negf %572 : vector<1x128xf32>
    %574 = math.exp %573 : vector<1x128xf32>
    %cst_242 = arith.constant 1.000000e+00 : f32
    %575 = vector.broadcast %cst_242 : f32 to vector<1x128xf32>
    %576 = arith.addf %575, %574 : vector<1x128xf32>
    %577 = arith.divf %575, %576 : vector<1x128xf32>
    %578 = arith.mulf %569, %475 : vector<1x128xf32>
    %579 = arith.mulf %563, %571 : vector<1x128xf32>
    %580 = arith.addf %578, %579 : vector<1x128xf32>
    %581 = math.tanh %580 : vector<1x128xf32>
    %582 = arith.mulf %577, %581 : vector<1x128xf32>
    %583 = arith.truncf %477 : vector<1x128xf32> to vector<1x128xbf16>
    %c1_243 = arith.constant 1 : index
    %c0_244 = arith.constant 0 : index
    %c0_245 = arith.constant 0 : index
    %584 = vector.load %arg11[%c1_243, %c0_244, %c0_245] : memref<3x128x512xbf16, #tpu.memory_space<vmem>>, vector<1x128x512xbf16>
    %585 = vector.shape_cast %584 : vector<1x128x512xbf16> to vector<128x512xbf16>
    %cst_246 = arith.constant dense<0.000000e+00> : vector<1x512xf32>
    %586 = tpu.matmul %583, %585, %cst_246 {dimension_numbers = #tpu.dot_dimension_numbers<[1], [0], [0], [1], [0, 0, 1, 1], [], []>} : vector<1x128xbf16>, vector<128x512xbf16>, vector<1x512xf32> -> vector<1x512xf32>
    %587 = arith.truncf %514 : vector<1x128xf32> to vector<1x128xbf16>
    %c1_247 = arith.constant 1 : index
    %c0_248 = arith.constant 0 : index
    %c0_249 = arith.constant 0 : index
    %588 = vector.load %arg12[%c1_247, %c0_248, %c0_249] : memref<3x128x512xbf16, #tpu.memory_space<vmem>>, vector<1x128x512xbf16>
    %589 = vector.shape_cast %588 : vector<1x128x512xbf16> to vector<128x512xbf16>
    %cst_250 = arith.constant dense<0.000000e+00> : vector<1x512xf32>
    %590 = tpu.matmul %587, %589, %cst_250 {dimension_numbers = #tpu.dot_dimension_numbers<[1], [0], [0], [1], [0, 0, 1, 1], [], []>} : vector<1x128xbf16>, vector<128x512xbf16>, vector<1x512xf32> -> vector<1x512xf32>
    %591 = arith.addf %586, %590 : vector<1x512xf32>
    %c1_251 = arith.constant 1 : index
    %c0_252 = arith.constant 0 : index
    %c0_253 = arith.constant 0 : index
    %592 = vector.load %arg5[%c1_251, %c0_252, %c0_253] : memref<3x1x512xf32, #tpu.memory_space<vmem>>, vector<1x1x512xf32>
    %593 = vector.shape_cast %592 : vector<1x1x512xf32> to vector<1x512xf32>
    %594 = arith.addf %591, %593 : vector<1x512xf32>
    %595 = vector.extract_strided_slice %594 {offsets = [0, 0], sizes = [1, 128], strides = [1, 1]} : vector<1x512xf32> to vector<1x128xf32>
    %596 = arith.negf %595 : vector<1x128xf32>
    %597 = math.exp %596 : vector<1x128xf32>
    %cst_254 = arith.constant 1.000000e+00 : f32
    %598 = vector.broadcast %cst_254 : f32 to vector<1x128xf32>
    %599 = arith.addf %598, %597 : vector<1x128xf32>
    %600 = arith.divf %598, %599 : vector<1x128xf32>
    %601 = vector.extract_strided_slice %594 {offsets = [0, 128], sizes = [1, 128], strides = [1, 1]} : vector<1x512xf32> to vector<1x128xf32>
    %602 = arith.negf %601 : vector<1x128xf32>
    %603 = math.exp %602 : vector<1x128xf32>
    %cst_255 = arith.constant 1.000000e+00 : f32
    %604 = vector.broadcast %cst_255 : f32 to vector<1x128xf32>
    %605 = arith.addf %604, %603 : vector<1x128xf32>
    %606 = arith.divf %604, %605 : vector<1x128xf32>
    %607 = vector.extract_strided_slice %594 {offsets = [0, 256], sizes = [1, 128], strides = [1, 1]} : vector<1x512xf32> to vector<1x128xf32>
    %608 = math.tanh %607 : vector<1x128xf32>
    %609 = vector.extract_strided_slice %594 {offsets = [0, 384], sizes = [1, 128], strides = [1, 1]} : vector<1x512xf32> to vector<1x128xf32>
    %610 = arith.negf %609 : vector<1x128xf32>
    %611 = math.exp %610 : vector<1x128xf32>
    %cst_256 = arith.constant 1.000000e+00 : f32
    %612 = vector.broadcast %cst_256 : f32 to vector<1x128xf32>
    %613 = arith.addf %612, %611 : vector<1x128xf32>
    %614 = arith.divf %612, %613 : vector<1x128xf32>
    %615 = arith.mulf %606, %512 : vector<1x128xf32>
    %616 = arith.mulf %600, %608 : vector<1x128xf32>
    %617 = arith.addf %615, %616 : vector<1x128xf32>
    %618 = math.tanh %617 : vector<1x128xf32>
    %619 = arith.mulf %614, %618 : vector<1x128xf32>
    %620 = arith.truncf %514 : vector<1x128xf32> to vector<1x128xbf16>
    %c2_257 = arith.constant 2 : index
    %c0_258 = arith.constant 0 : index
    %c0_259 = arith.constant 0 : index
    %621 = vector.load %arg11[%c2_257, %c0_258, %c0_259] : memref<3x128x512xbf16, #tpu.memory_space<vmem>>, vector<1x128x512xbf16>
    %622 = vector.shape_cast %621 : vector<1x128x512xbf16> to vector<128x512xbf16>
    %cst_260 = arith.constant dense<0.000000e+00> : vector<1x512xf32>
    %623 = tpu.matmul %620, %622, %cst_260 {dimension_numbers = #tpu.dot_dimension_numbers<[1], [0], [0], [1], [0, 0, 1, 1], [], []>} : vector<1x128xbf16>, vector<128x512xbf16>, vector<1x512xf32> -> vector<1x512xf32>
    %624 = arith.truncf %551 : vector<1x128xf32> to vector<1x128xbf16>
    %c2_261 = arith.constant 2 : index
    %c0_262 = arith.constant 0 : index
    %c0_263 = arith.constant 0 : index
    %625 = vector.load %arg12[%c2_261, %c0_262, %c0_263] : memref<3x128x512xbf16, #tpu.memory_space<vmem>>, vector<1x128x512xbf16>
    %626 = vector.shape_cast %625 : vector<1x128x512xbf16> to vector<128x512xbf16>
    %cst_264 = arith.constant dense<0.000000e+00> : vector<1x512xf32>
    %627 = tpu.matmul %624, %626, %cst_264 {dimension_numbers = #tpu.dot_dimension_numbers<[1], [0], [0], [1], [0, 0, 1, 1], [], []>} : vector<1x128xbf16>, vector<128x512xbf16>, vector<1x512xf32> -> vector<1x512xf32>
    %628 = arith.addf %623, %627 : vector<1x512xf32>
    %c2_265 = arith.constant 2 : index
    %c0_266 = arith.constant 0 : index
    %c0_267 = arith.constant 0 : index
    %629 = vector.load %arg5[%c2_265, %c0_266, %c0_267] : memref<3x1x512xf32, #tpu.memory_space<vmem>>, vector<1x1x512xf32>
    %630 = vector.shape_cast %629 : vector<1x1x512xf32> to vector<1x512xf32>
    %631 = arith.addf %628, %630 : vector<1x512xf32>
    %632 = vector.extract_strided_slice %631 {offsets = [0, 0], sizes = [1, 128], strides = [1, 1]} : vector<1x512xf32> to vector<1x128xf32>
    %633 = arith.negf %632 : vector<1x128xf32>
    %634 = math.exp %633 : vector<1x128xf32>
    %cst_268 = arith.constant 1.000000e+00 : f32
    %635 = vector.broadcast %cst_268 : f32 to vector<1x128xf32>
    %636 = arith.addf %635, %634 : vector<1x128xf32>
    %637 = arith.divf %635, %636 : vector<1x128xf32>
    %638 = vector.extract_strided_slice %631 {offsets = [0, 128], sizes = [1, 128], strides = [1, 1]} : vector<1x512xf32> to vector<1x128xf32>
    %639 = arith.negf %638 : vector<1x128xf32>
    %640 = math.exp %639 : vector<1x128xf32>
    %cst_269 = arith.constant 1.000000e+00 : f32
    %641 = vector.broadcast %cst_269 : f32 to vector<1x128xf32>
    %642 = arith.addf %641, %640 : vector<1x128xf32>
    %643 = arith.divf %641, %642 : vector<1x128xf32>
    %644 = vector.extract_strided_slice %631 {offsets = [0, 256], sizes = [1, 128], strides = [1, 1]} : vector<1x512xf32> to vector<1x128xf32>
    %645 = math.tanh %644 : vector<1x128xf32>
    %646 = vector.extract_strided_slice %631 {offsets = [0, 384], sizes = [1, 128], strides = [1, 1]} : vector<1x512xf32> to vector<1x128xf32>
    %647 = arith.negf %646 : vector<1x128xf32>
    %648 = math.exp %647 : vector<1x128xf32>
    %cst_270 = arith.constant 1.000000e+00 : f32
    %649 = vector.broadcast %cst_270 : f32 to vector<1x128xf32>
    %650 = arith.addf %649, %648 : vector<1x128xf32>
    %651 = arith.divf %649, %650 : vector<1x128xf32>
    %652 = arith.mulf %643, %549 : vector<1x128xf32>
    %653 = arith.mulf %637, %645 : vector<1x128xf32>
    %654 = arith.addf %652, %653 : vector<1x128xf32>
    %655 = math.tanh %654 : vector<1x128xf32>
    %656 = arith.mulf %651, %655 : vector<1x128xf32>
    %657 = vector.extract_strided_slice %107 {offsets = [6, 0], sizes = [1, 512], strides = [1, 1]} : vector<8x512xf32> to vector<1x512xf32>
    %658 = arith.truncf %582 : vector<1x128xf32> to vector<1x128xbf16>
    %c0_271 = arith.constant 0 : index
    %c0_272 = arith.constant 0 : index
    %c0_273 = arith.constant 0 : index
    %659 = vector.load %arg12[%c0_271, %c0_272, %c0_273] : memref<3x128x512xbf16, #tpu.memory_space<vmem>>, vector<1x128x512xbf16>
    %660 = vector.shape_cast %659 : vector<1x128x512xbf16> to vector<128x512xbf16>
    %cst_274 = arith.constant dense<0.000000e+00> : vector<1x512xf32>
    %661 = tpu.matmul %658, %660, %cst_274 {dimension_numbers = #tpu.dot_dimension_numbers<[1], [0], [0], [1], [0, 0, 1, 1], [], []>} : vector<1x128xbf16>, vector<128x512xbf16>, vector<1x512xf32> -> vector<1x512xf32>
    %662 = arith.addf %657, %661 : vector<1x512xf32>
    %663 = vector.extract_strided_slice %662 {offsets = [0, 0], sizes = [1, 128], strides = [1, 1]} : vector<1x512xf32> to vector<1x128xf32>
    %664 = arith.negf %663 : vector<1x128xf32>
    %665 = math.exp %664 : vector<1x128xf32>
    %cst_275 = arith.constant 1.000000e+00 : f32
    %666 = vector.broadcast %cst_275 : f32 to vector<1x128xf32>
    %667 = arith.addf %666, %665 : vector<1x128xf32>
    %668 = arith.divf %666, %667 : vector<1x128xf32>
    %669 = vector.extract_strided_slice %662 {offsets = [0, 128], sizes = [1, 128], strides = [1, 1]} : vector<1x512xf32> to vector<1x128xf32>
    %670 = arith.negf %669 : vector<1x128xf32>
    %671 = math.exp %670 : vector<1x128xf32>
    %cst_276 = arith.constant 1.000000e+00 : f32
    %672 = vector.broadcast %cst_276 : f32 to vector<1x128xf32>
    %673 = arith.addf %672, %671 : vector<1x128xf32>
    %674 = arith.divf %672, %673 : vector<1x128xf32>
    %675 = vector.extract_strided_slice %662 {offsets = [0, 256], sizes = [1, 128], strides = [1, 1]} : vector<1x512xf32> to vector<1x128xf32>
    %676 = math.tanh %675 : vector<1x128xf32>
    %677 = vector.extract_strided_slice %662 {offsets = [0, 384], sizes = [1, 128], strides = [1, 1]} : vector<1x512xf32> to vector<1x128xf32>
    %678 = arith.negf %677 : vector<1x128xf32>
    %679 = math.exp %678 : vector<1x128xf32>
    %cst_277 = arith.constant 1.000000e+00 : f32
    %680 = vector.broadcast %cst_277 : f32 to vector<1x128xf32>
    %681 = arith.addf %680, %679 : vector<1x128xf32>
    %682 = arith.divf %680, %681 : vector<1x128xf32>
    %683 = arith.mulf %674, %580 : vector<1x128xf32>
    %684 = arith.mulf %668, %676 : vector<1x128xf32>
    %685 = arith.addf %683, %684 : vector<1x128xf32>
    %686 = math.tanh %685 : vector<1x128xf32>
    %687 = arith.mulf %682, %686 : vector<1x128xf32>
    %688 = arith.truncf %582 : vector<1x128xf32> to vector<1x128xbf16>
    %c1_278 = arith.constant 1 : index
    %c0_279 = arith.constant 0 : index
    %c0_280 = arith.constant 0 : index
    %689 = vector.load %arg11[%c1_278, %c0_279, %c0_280] : memref<3x128x512xbf16, #tpu.memory_space<vmem>>, vector<1x128x512xbf16>
    %690 = vector.shape_cast %689 : vector<1x128x512xbf16> to vector<128x512xbf16>
    %cst_281 = arith.constant dense<0.000000e+00> : vector<1x512xf32>
    %691 = tpu.matmul %688, %690, %cst_281 {dimension_numbers = #tpu.dot_dimension_numbers<[1], [0], [0], [1], [0, 0, 1, 1], [], []>} : vector<1x128xbf16>, vector<128x512xbf16>, vector<1x512xf32> -> vector<1x512xf32>
    %692 = arith.truncf %619 : vector<1x128xf32> to vector<1x128xbf16>
    %c1_282 = arith.constant 1 : index
    %c0_283 = arith.constant 0 : index
    %c0_284 = arith.constant 0 : index
    %693 = vector.load %arg12[%c1_282, %c0_283, %c0_284] : memref<3x128x512xbf16, #tpu.memory_space<vmem>>, vector<1x128x512xbf16>
    %694 = vector.shape_cast %693 : vector<1x128x512xbf16> to vector<128x512xbf16>
    %cst_285 = arith.constant dense<0.000000e+00> : vector<1x512xf32>
    %695 = tpu.matmul %692, %694, %cst_285 {dimension_numbers = #tpu.dot_dimension_numbers<[1], [0], [0], [1], [0, 0, 1, 1], [], []>} : vector<1x128xbf16>, vector<128x512xbf16>, vector<1x512xf32> -> vector<1x512xf32>
    %696 = arith.addf %691, %695 : vector<1x512xf32>
    %c1_286 = arith.constant 1 : index
    %c0_287 = arith.constant 0 : index
    %c0_288 = arith.constant 0 : index
    %697 = vector.load %arg5[%c1_286, %c0_287, %c0_288] : memref<3x1x512xf32, #tpu.memory_space<vmem>>, vector<1x1x512xf32>
    %698 = vector.shape_cast %697 : vector<1x1x512xf32> to vector<1x512xf32>
    %699 = arith.addf %696, %698 : vector<1x512xf32>
    %700 = vector.extract_strided_slice %699 {offsets = [0, 0], sizes = [1, 128], strides = [1, 1]} : vector<1x512xf32> to vector<1x128xf32>
    %701 = arith.negf %700 : vector<1x128xf32>
    %702 = math.exp %701 : vector<1x128xf32>
    %cst_289 = arith.constant 1.000000e+00 : f32
    %703 = vector.broadcast %cst_289 : f32 to vector<1x128xf32>
    %704 = arith.addf %703, %702 : vector<1x128xf32>
    %705 = arith.divf %703, %704 : vector<1x128xf32>
    %706 = vector.extract_strided_slice %699 {offsets = [0, 128], sizes = [1, 128], strides = [1, 1]} : vector<1x512xf32> to vector<1x128xf32>
    %707 = arith.negf %706 : vector<1x128xf32>
    %708 = math.exp %707 : vector<1x128xf32>
    %cst_290 = arith.constant 1.000000e+00 : f32
    %709 = vector.broadcast %cst_290 : f32 to vector<1x128xf32>
    %710 = arith.addf %709, %708 : vector<1x128xf32>
    %711 = arith.divf %709, %710 : vector<1x128xf32>
    %712 = vector.extract_strided_slice %699 {offsets = [0, 256], sizes = [1, 128], strides = [1, 1]} : vector<1x512xf32> to vector<1x128xf32>
    %713 = math.tanh %712 : vector<1x128xf32>
    %714 = vector.extract_strided_slice %699 {offsets = [0, 384], sizes = [1, 128], strides = [1, 1]} : vector<1x512xf32> to vector<1x128xf32>
    %715 = arith.negf %714 : vector<1x128xf32>
    %716 = math.exp %715 : vector<1x128xf32>
    %cst_291 = arith.constant 1.000000e+00 : f32
    %717 = vector.broadcast %cst_291 : f32 to vector<1x128xf32>
    %718 = arith.addf %717, %716 : vector<1x128xf32>
    %719 = arith.divf %717, %718 : vector<1x128xf32>
    %720 = arith.mulf %711, %617 : vector<1x128xf32>
    %721 = arith.mulf %705, %713 : vector<1x128xf32>
    %722 = arith.addf %720, %721 : vector<1x128xf32>
    %723 = math.tanh %722 : vector<1x128xf32>
    %724 = arith.mulf %719, %723 : vector<1x128xf32>
    %725 = arith.truncf %619 : vector<1x128xf32> to vector<1x128xbf16>
    %c2_292 = arith.constant 2 : index
    %c0_293 = arith.constant 0 : index
    %c0_294 = arith.constant 0 : index
    %726 = vector.load %arg11[%c2_292, %c0_293, %c0_294] : memref<3x128x512xbf16, #tpu.memory_space<vmem>>, vector<1x128x512xbf16>
    %727 = vector.shape_cast %726 : vector<1x128x512xbf16> to vector<128x512xbf16>
    %cst_295 = arith.constant dense<0.000000e+00> : vector<1x512xf32>
    %728 = tpu.matmul %725, %727, %cst_295 {dimension_numbers = #tpu.dot_dimension_numbers<[1], [0], [0], [1], [0, 0, 1, 1], [], []>} : vector<1x128xbf16>, vector<128x512xbf16>, vector<1x512xf32> -> vector<1x512xf32>
    %729 = arith.truncf %656 : vector<1x128xf32> to vector<1x128xbf16>
    %c2_296 = arith.constant 2 : index
    %c0_297 = arith.constant 0 : index
    %c0_298 = arith.constant 0 : index
    %730 = vector.load %arg12[%c2_296, %c0_297, %c0_298] : memref<3x128x512xbf16, #tpu.memory_space<vmem>>, vector<1x128x512xbf16>
    %731 = vector.shape_cast %730 : vector<1x128x512xbf16> to vector<128x512xbf16>
    %cst_299 = arith.constant dense<0.000000e+00> : vector<1x512xf32>
    %732 = tpu.matmul %729, %731, %cst_299 {dimension_numbers = #tpu.dot_dimension_numbers<[1], [0], [0], [1], [0, 0, 1, 1], [], []>} : vector<1x128xbf16>, vector<128x512xbf16>, vector<1x512xf32> -> vector<1x512xf32>
    %733 = arith.addf %728, %732 : vector<1x512xf32>
    %c2_300 = arith.constant 2 : index
    %c0_301 = arith.constant 0 : index
    %c0_302 = arith.constant 0 : index
    %734 = vector.load %arg5[%c2_300, %c0_301, %c0_302] : memref<3x1x512xf32, #tpu.memory_space<vmem>>, vector<1x1x512xf32>
    %735 = vector.shape_cast %734 : vector<1x1x512xf32> to vector<1x512xf32>
    %736 = arith.addf %733, %735 : vector<1x512xf32>
    %737 = vector.extract_strided_slice %736 {offsets = [0, 0], sizes = [1, 128], strides = [1, 1]} : vector<1x512xf32> to vector<1x128xf32>
    %738 = arith.negf %737 : vector<1x128xf32>
    %739 = math.exp %738 : vector<1x128xf32>
    %cst_303 = arith.constant 1.000000e+00 : f32
    %740 = vector.broadcast %cst_303 : f32 to vector<1x128xf32>
    %741 = arith.addf %740, %739 : vector<1x128xf32>
    %742 = arith.divf %740, %741 : vector<1x128xf32>
    %743 = vector.extract_strided_slice %736 {offsets = [0, 128], sizes = [1, 128], strides = [1, 1]} : vector<1x512xf32> to vector<1x128xf32>
    %744 = arith.negf %743 : vector<1x128xf32>
    %745 = math.exp %744 : vector<1x128xf32>
    %cst_304 = arith.constant 1.000000e+00 : f32
    %746 = vector.broadcast %cst_304 : f32 to vector<1x128xf32>
    %747 = arith.addf %746, %745 : vector<1x128xf32>
    %748 = arith.divf %746, %747 : vector<1x128xf32>
    %749 = vector.extract_strided_slice %736 {offsets = [0, 256], sizes = [1, 128], strides = [1, 1]} : vector<1x512xf32> to vector<1x128xf32>
    %750 = math.tanh %749 : vector<1x128xf32>
    %751 = vector.extract_strided_slice %736 {offsets = [0, 384], sizes = [1, 128], strides = [1, 1]} : vector<1x512xf32> to vector<1x128xf32>
    %752 = arith.negf %751 : vector<1x128xf32>
    %753 = math.exp %752 : vector<1x128xf32>
    %cst_305 = arith.constant 1.000000e+00 : f32
    %754 = vector.broadcast %cst_305 : f32 to vector<1x128xf32>
    %755 = arith.addf %754, %753 : vector<1x128xf32>
    %756 = arith.divf %754, %755 : vector<1x128xf32>
    %757 = arith.mulf %748, %654 : vector<1x128xf32>
    %758 = arith.mulf %742, %750 : vector<1x128xf32>
    %759 = arith.addf %757, %758 : vector<1x128xf32>
    %760 = math.tanh %759 : vector<1x128xf32>
    %761 = arith.mulf %756, %760 : vector<1x128xf32>
    %762 = vector.extract_strided_slice %107 {offsets = [7, 0], sizes = [1, 512], strides = [1, 1]} : vector<8x512xf32> to vector<1x512xf32>
    %763 = arith.truncf %687 : vector<1x128xf32> to vector<1x128xbf16>
    %c0_306 = arith.constant 0 : index
    %c0_307 = arith.constant 0 : index
    %c0_308 = arith.constant 0 : index
    %764 = vector.load %arg12[%c0_306, %c0_307, %c0_308] : memref<3x128x512xbf16, #tpu.memory_space<vmem>>, vector<1x128x512xbf16>
    %765 = vector.shape_cast %764 : vector<1x128x512xbf16> to vector<128x512xbf16>
    %cst_309 = arith.constant dense<0.000000e+00> : vector<1x512xf32>
    %766 = tpu.matmul %763, %765, %cst_309 {dimension_numbers = #tpu.dot_dimension_numbers<[1], [0], [0], [1], [0, 0, 1, 1], [], []>} : vector<1x128xbf16>, vector<128x512xbf16>, vector<1x512xf32> -> vector<1x512xf32>
    %767 = arith.addf %762, %766 : vector<1x512xf32>
    %768 = vector.extract_strided_slice %767 {offsets = [0, 0], sizes = [1, 128], strides = [1, 1]} : vector<1x512xf32> to vector<1x128xf32>
    %769 = arith.negf %768 : vector<1x128xf32>
    %770 = math.exp %769 : vector<1x128xf32>
    %cst_310 = arith.constant 1.000000e+00 : f32
    %771 = vector.broadcast %cst_310 : f32 to vector<1x128xf32>
    %772 = arith.addf %771, %770 : vector<1x128xf32>
    %773 = arith.divf %771, %772 : vector<1x128xf32>
    %774 = vector.extract_strided_slice %767 {offsets = [0, 128], sizes = [1, 128], strides = [1, 1]} : vector<1x512xf32> to vector<1x128xf32>
    %775 = arith.negf %774 : vector<1x128xf32>
    %776 = math.exp %775 : vector<1x128xf32>
    %cst_311 = arith.constant 1.000000e+00 : f32
    %777 = vector.broadcast %cst_311 : f32 to vector<1x128xf32>
    %778 = arith.addf %777, %776 : vector<1x128xf32>
    %779 = arith.divf %777, %778 : vector<1x128xf32>
    %780 = vector.extract_strided_slice %767 {offsets = [0, 256], sizes = [1, 128], strides = [1, 1]} : vector<1x512xf32> to vector<1x128xf32>
    %781 = math.tanh %780 : vector<1x128xf32>
    %782 = vector.extract_strided_slice %767 {offsets = [0, 384], sizes = [1, 128], strides = [1, 1]} : vector<1x512xf32> to vector<1x128xf32>
    %783 = arith.negf %782 : vector<1x128xf32>
    %784 = math.exp %783 : vector<1x128xf32>
    %cst_312 = arith.constant 1.000000e+00 : f32
    %785 = vector.broadcast %cst_312 : f32 to vector<1x128xf32>
    %786 = arith.addf %785, %784 : vector<1x128xf32>
    %787 = arith.divf %785, %786 : vector<1x128xf32>
    %788 = arith.mulf %779, %685 : vector<1x128xf32>
    %789 = arith.mulf %773, %781 : vector<1x128xf32>
    %790 = arith.addf %788, %789 : vector<1x128xf32>
    %791 = math.tanh %790 : vector<1x128xf32>
    %792 = arith.mulf %787, %791 : vector<1x128xf32>
    %793 = arith.truncf %687 : vector<1x128xf32> to vector<1x128xbf16>
    %c1_313 = arith.constant 1 : index
    %c0_314 = arith.constant 0 : index
    %c0_315 = arith.constant 0 : index
    %794 = vector.load %arg11[%c1_313, %c0_314, %c0_315] : memref<3x128x512xbf16, #tpu.memory_space<vmem>>, vector<1x128x512xbf16>
    %795 = vector.shape_cast %794 : vector<1x128x512xbf16> to vector<128x512xbf16>
    %cst_316 = arith.constant dense<0.000000e+00> : vector<1x512xf32>
    %796 = tpu.matmul %793, %795, %cst_316 {dimension_numbers = #tpu.dot_dimension_numbers<[1], [0], [0], [1], [0, 0, 1, 1], [], []>} : vector<1x128xbf16>, vector<128x512xbf16>, vector<1x512xf32> -> vector<1x512xf32>
    %797 = arith.truncf %724 : vector<1x128xf32> to vector<1x128xbf16>
    %c1_317 = arith.constant 1 : index
    %c0_318 = arith.constant 0 : index
    %c0_319 = arith.constant 0 : index
    %798 = vector.load %arg12[%c1_317, %c0_318, %c0_319] : memref<3x128x512xbf16, #tpu.memory_space<vmem>>, vector<1x128x512xbf16>
    %799 = vector.shape_cast %798 : vector<1x128x512xbf16> to vector<128x512xbf16>
    %cst_320 = arith.constant dense<0.000000e+00> : vector<1x512xf32>
    %800 = tpu.matmul %797, %799, %cst_320 {dimension_numbers = #tpu.dot_dimension_numbers<[1], [0], [0], [1], [0, 0, 1, 1], [], []>} : vector<1x128xbf16>, vector<128x512xbf16>, vector<1x512xf32> -> vector<1x512xf32>
    %801 = arith.addf %796, %800 : vector<1x512xf32>
    %c1_321 = arith.constant 1 : index
    %c0_322 = arith.constant 0 : index
    %c0_323 = arith.constant 0 : index
    %802 = vector.load %arg5[%c1_321, %c0_322, %c0_323] : memref<3x1x512xf32, #tpu.memory_space<vmem>>, vector<1x1x512xf32>
    %803 = vector.shape_cast %802 : vector<1x1x512xf32> to vector<1x512xf32>
    %804 = arith.addf %801, %803 : vector<1x512xf32>
    %805 = vector.extract_strided_slice %804 {offsets = [0, 0], sizes = [1, 128], strides = [1, 1]} : vector<1x512xf32> to vector<1x128xf32>
    %806 = arith.negf %805 : vector<1x128xf32>
    %807 = math.exp %806 : vector<1x128xf32>
    %cst_324 = arith.constant 1.000000e+00 : f32
    %808 = vector.broadcast %cst_324 : f32 to vector<1x128xf32>
    %809 = arith.addf %808, %807 : vector<1x128xf32>
    %810 = arith.divf %808, %809 : vector<1x128xf32>
    %811 = vector.extract_strided_slice %804 {offsets = [0, 128], sizes = [1, 128], strides = [1, 1]} : vector<1x512xf32> to vector<1x128xf32>
    %812 = arith.negf %811 : vector<1x128xf32>
    %813 = math.exp %812 : vector<1x128xf32>
    %cst_325 = arith.constant 1.000000e+00 : f32
    %814 = vector.broadcast %cst_325 : f32 to vector<1x128xf32>
    %815 = arith.addf %814, %813 : vector<1x128xf32>
    %816 = arith.divf %814, %815 : vector<1x128xf32>
    %817 = vector.extract_strided_slice %804 {offsets = [0, 256], sizes = [1, 128], strides = [1, 1]} : vector<1x512xf32> to vector<1x128xf32>
    %818 = math.tanh %817 : vector<1x128xf32>
    %819 = vector.extract_strided_slice %804 {offsets = [0, 384], sizes = [1, 128], strides = [1, 1]} : vector<1x512xf32> to vector<1x128xf32>
    %820 = arith.negf %819 : vector<1x128xf32>
    %821 = math.exp %820 : vector<1x128xf32>
    %cst_326 = arith.constant 1.000000e+00 : f32
    %822 = vector.broadcast %cst_326 : f32 to vector<1x128xf32>
    %823 = arith.addf %822, %821 : vector<1x128xf32>
    %824 = arith.divf %822, %823 : vector<1x128xf32>
    %825 = arith.mulf %816, %722 : vector<1x128xf32>
    %826 = arith.mulf %810, %818 : vector<1x128xf32>
    %827 = arith.addf %825, %826 : vector<1x128xf32>
    %828 = math.tanh %827 : vector<1x128xf32>
    %829 = arith.mulf %824, %828 : vector<1x128xf32>
    %830 = arith.truncf %724 : vector<1x128xf32> to vector<1x128xbf16>
    %c2_327 = arith.constant 2 : index
    %c0_328 = arith.constant 0 : index
    %c0_329 = arith.constant 0 : index
    %831 = vector.load %arg11[%c2_327, %c0_328, %c0_329] : memref<3x128x512xbf16, #tpu.memory_space<vmem>>, vector<1x128x512xbf16>
    %832 = vector.shape_cast %831 : vector<1x128x512xbf16> to vector<128x512xbf16>
    %cst_330 = arith.constant dense<0.000000e+00> : vector<1x512xf32>
    %833 = tpu.matmul %830, %832, %cst_330 {dimension_numbers = #tpu.dot_dimension_numbers<[1], [0], [0], [1], [0, 0, 1, 1], [], []>} : vector<1x128xbf16>, vector<128x512xbf16>, vector<1x512xf32> -> vector<1x512xf32>
    %834 = arith.truncf %761 : vector<1x128xf32> to vector<1x128xbf16>
    %c2_331 = arith.constant 2 : index
    %c0_332 = arith.constant 0 : index
    %c0_333 = arith.constant 0 : index
    %835 = vector.load %arg12[%c2_331, %c0_332, %c0_333] : memref<3x128x512xbf16, #tpu.memory_space<vmem>>, vector<1x128x512xbf16>
    %836 = vector.shape_cast %835 : vector<1x128x512xbf16> to vector<128x512xbf16>
    %cst_334 = arith.constant dense<0.000000e+00> : vector<1x512xf32>
    %837 = tpu.matmul %834, %836, %cst_334 {dimension_numbers = #tpu.dot_dimension_numbers<[1], [0], [0], [1], [0, 0, 1, 1], [], []>} : vector<1x128xbf16>, vector<128x512xbf16>, vector<1x512xf32> -> vector<1x512xf32>
    %838 = arith.addf %833, %837 : vector<1x512xf32>
    %c2_335 = arith.constant 2 : index
    %c0_336 = arith.constant 0 : index
    %c0_337 = arith.constant 0 : index
    %839 = vector.load %arg5[%c2_335, %c0_336, %c0_337] : memref<3x1x512xf32, #tpu.memory_space<vmem>>, vector<1x1x512xf32>
    %840 = vector.shape_cast %839 : vector<1x1x512xf32> to vector<1x512xf32>
    %841 = arith.addf %838, %840 : vector<1x512xf32>
    %842 = vector.extract_strided_slice %841 {offsets = [0, 0], sizes = [1, 128], strides = [1, 1]} : vector<1x512xf32> to vector<1x128xf32>
    %843 = arith.negf %842 : vector<1x128xf32>
    %844 = math.exp %843 : vector<1x128xf32>
    %cst_338 = arith.constant 1.000000e+00 : f32
    %845 = vector.broadcast %cst_338 : f32 to vector<1x128xf32>
    %846 = arith.addf %845, %844 : vector<1x128xf32>
    %847 = arith.divf %845, %846 : vector<1x128xf32>
    %848 = vector.extract_strided_slice %841 {offsets = [0, 128], sizes = [1, 128], strides = [1, 1]} : vector<1x512xf32> to vector<1x128xf32>
    %849 = arith.negf %848 : vector<1x128xf32>
    %850 = math.exp %849 : vector<1x128xf32>
    %cst_339 = arith.constant 1.000000e+00 : f32
    %851 = vector.broadcast %cst_339 : f32 to vector<1x128xf32>
    %852 = arith.addf %851, %850 : vector<1x128xf32>
    %853 = arith.divf %851, %852 : vector<1x128xf32>
    %854 = vector.extract_strided_slice %841 {offsets = [0, 256], sizes = [1, 128], strides = [1, 1]} : vector<1x512xf32> to vector<1x128xf32>
    %855 = math.tanh %854 : vector<1x128xf32>
    %856 = vector.extract_strided_slice %841 {offsets = [0, 384], sizes = [1, 128], strides = [1, 1]} : vector<1x512xf32> to vector<1x128xf32>
    %857 = arith.negf %856 : vector<1x128xf32>
    %858 = math.exp %857 : vector<1x128xf32>
    %cst_340 = arith.constant 1.000000e+00 : f32
    %859 = vector.broadcast %cst_340 : f32 to vector<1x128xf32>
    %860 = arith.addf %859, %858 : vector<1x128xf32>
    %861 = arith.divf %859, %860 : vector<1x128xf32>
    %862 = arith.mulf %853, %759 : vector<1x128xf32>
    %863 = arith.mulf %847, %855 : vector<1x128xf32>
    %864 = arith.addf %862, %863 : vector<1x128xf32>
    %865 = math.tanh %864 : vector<1x128xf32>
    %866 = arith.mulf %861, %865 : vector<1x128xf32>
    %867 = arith.truncf %792 : vector<1x128xf32> to vector<1x128xbf16>
    %c1_341 = arith.constant 1 : index
    %c0_342 = arith.constant 0 : index
    %c0_343 = arith.constant 0 : index
    %868 = vector.load %arg11[%c1_341, %c0_342, %c0_343] : memref<3x128x512xbf16, #tpu.memory_space<vmem>>, vector<1x128x512xbf16>
    %869 = vector.shape_cast %868 : vector<1x128x512xbf16> to vector<128x512xbf16>
    %cst_344 = arith.constant dense<0.000000e+00> : vector<1x512xf32>
    %870 = tpu.matmul %867, %869, %cst_344 {dimension_numbers = #tpu.dot_dimension_numbers<[1], [0], [0], [1], [0, 0, 1, 1], [], []>} : vector<1x128xbf16>, vector<128x512xbf16>, vector<1x512xf32> -> vector<1x512xf32>
    %871 = arith.truncf %829 : vector<1x128xf32> to vector<1x128xbf16>
    %c1_345 = arith.constant 1 : index
    %c0_346 = arith.constant 0 : index
    %c0_347 = arith.constant 0 : index
    %872 = vector.load %arg12[%c1_345, %c0_346, %c0_347] : memref<3x128x512xbf16, #tpu.memory_space<vmem>>, vector<1x128x512xbf16>
    %873 = vector.shape_cast %872 : vector<1x128x512xbf16> to vector<128x512xbf16>
    %cst_348 = arith.constant dense<0.000000e+00> : vector<1x512xf32>
    %874 = tpu.matmul %871, %873, %cst_348 {dimension_numbers = #tpu.dot_dimension_numbers<[1], [0], [0], [1], [0, 0, 1, 1], [], []>} : vector<1x128xbf16>, vector<128x512xbf16>, vector<1x512xf32> -> vector<1x512xf32>
    %875 = arith.addf %870, %874 : vector<1x512xf32>
    %c1_349 = arith.constant 1 : index
    %c0_350 = arith.constant 0 : index
    %c0_351 = arith.constant 0 : index
    %876 = vector.load %arg5[%c1_349, %c0_350, %c0_351] : memref<3x1x512xf32, #tpu.memory_space<vmem>>, vector<1x1x512xf32>
    %877 = vector.shape_cast %876 : vector<1x1x512xf32> to vector<1x512xf32>
    %878 = arith.addf %875, %877 : vector<1x512xf32>
    %879 = vector.extract_strided_slice %878 {offsets = [0, 0], sizes = [1, 128], strides = [1, 1]} : vector<1x512xf32> to vector<1x128xf32>
    %880 = arith.negf %879 : vector<1x128xf32>
    %881 = math.exp %880 : vector<1x128xf32>
    %cst_352 = arith.constant 1.000000e+00 : f32
    %882 = vector.broadcast %cst_352 : f32 to vector<1x128xf32>
    %883 = arith.addf %882, %881 : vector<1x128xf32>
    %884 = arith.divf %882, %883 : vector<1x128xf32>
    %885 = vector.extract_strided_slice %878 {offsets = [0, 128], sizes = [1, 128], strides = [1, 1]} : vector<1x512xf32> to vector<1x128xf32>
    %886 = arith.negf %885 : vector<1x128xf32>
    %887 = math.exp %886 : vector<1x128xf32>
    %cst_353 = arith.constant 1.000000e+00 : f32
    %888 = vector.broadcast %cst_353 : f32 to vector<1x128xf32>
    %889 = arith.addf %888, %887 : vector<1x128xf32>
    %890 = arith.divf %888, %889 : vector<1x128xf32>
    %891 = vector.extract_strided_slice %878 {offsets = [0, 256], sizes = [1, 128], strides = [1, 1]} : vector<1x512xf32> to vector<1x128xf32>
    %892 = math.tanh %891 : vector<1x128xf32>
    %893 = vector.extract_strided_slice %878 {offsets = [0, 384], sizes = [1, 128], strides = [1, 1]} : vector<1x512xf32> to vector<1x128xf32>
    %894 = arith.negf %893 : vector<1x128xf32>
    %895 = math.exp %894 : vector<1x128xf32>
    %cst_354 = arith.constant 1.000000e+00 : f32
    %896 = vector.broadcast %cst_354 : f32 to vector<1x128xf32>
    %897 = arith.addf %896, %895 : vector<1x128xf32>
    %898 = arith.divf %896, %897 : vector<1x128xf32>
    %899 = arith.mulf %890, %827 : vector<1x128xf32>
    %900 = arith.mulf %884, %892 : vector<1x128xf32>
    %901 = arith.addf %899, %900 : vector<1x128xf32>
    %902 = math.tanh %901 : vector<1x128xf32>
    %903 = arith.mulf %898, %902 : vector<1x128xf32>
    %904 = arith.truncf %829 : vector<1x128xf32> to vector<1x128xbf16>
    %c2_355 = arith.constant 2 : index
    %c0_356 = arith.constant 0 : index
    %c0_357 = arith.constant 0 : index
    %905 = vector.load %arg11[%c2_355, %c0_356, %c0_357] : memref<3x128x512xbf16, #tpu.memory_space<vmem>>, vector<1x128x512xbf16>
    %906 = vector.shape_cast %905 : vector<1x128x512xbf16> to vector<128x512xbf16>
    %cst_358 = arith.constant dense<0.000000e+00> : vector<1x512xf32>
    %907 = tpu.matmul %904, %906, %cst_358 {dimension_numbers = #tpu.dot_dimension_numbers<[1], [0], [0], [1], [0, 0, 1, 1], [], []>} : vector<1x128xbf16>, vector<128x512xbf16>, vector<1x512xf32> -> vector<1x512xf32>
    %908 = arith.truncf %866 : vector<1x128xf32> to vector<1x128xbf16>
    %c2_359 = arith.constant 2 : index
    %c0_360 = arith.constant 0 : index
    %c0_361 = arith.constant 0 : index
    %909 = vector.load %arg12[%c2_359, %c0_360, %c0_361] : memref<3x128x512xbf16, #tpu.memory_space<vmem>>, vector<1x128x512xbf16>
    %910 = vector.shape_cast %909 : vector<1x128x512xbf16> to vector<128x512xbf16>
    %cst_362 = arith.constant dense<0.000000e+00> : vector<1x512xf32>
    %911 = tpu.matmul %908, %910, %cst_362 {dimension_numbers = #tpu.dot_dimension_numbers<[1], [0], [0], [1], [0, 0, 1, 1], [], []>} : vector<1x128xbf16>, vector<128x512xbf16>, vector<1x512xf32> -> vector<1x512xf32>
    %912 = arith.addf %907, %911 : vector<1x512xf32>
    %c2_363 = arith.constant 2 : index
    %c0_364 = arith.constant 0 : index
    %c0_365 = arith.constant 0 : index
    %913 = vector.load %arg5[%c2_363, %c0_364, %c0_365] : memref<3x1x512xf32, #tpu.memory_space<vmem>>, vector<1x1x512xf32>
    %914 = vector.shape_cast %913 : vector<1x1x512xf32> to vector<1x512xf32>
    %915 = arith.addf %912, %914 : vector<1x512xf32>
    %916 = vector.extract_strided_slice %915 {offsets = [0, 0], sizes = [1, 128], strides = [1, 1]} : vector<1x512xf32> to vector<1x128xf32>
    %917 = arith.negf %916 : vector<1x128xf32>
    %918 = math.exp %917 : vector<1x128xf32>
    %cst_366 = arith.constant 1.000000e+00 : f32
    %919 = vector.broadcast %cst_366 : f32 to vector<1x128xf32>
    %920 = arith.addf %919, %918 : vector<1x128xf32>
    %921 = arith.divf %919, %920 : vector<1x128xf32>
    %922 = vector.extract_strided_slice %915 {offsets = [0, 128], sizes = [1, 128], strides = [1, 1]} : vector<1x512xf32> to vector<1x128xf32>
    %923 = arith.negf %922 : vector<1x128xf32>
    %924 = math.exp %923 : vector<1x128xf32>
    %cst_367 = arith.constant 1.000000e+00 : f32
    %925 = vector.broadcast %cst_367 : f32 to vector<1x128xf32>
    %926 = arith.addf %925, %924 : vector<1x128xf32>
    %927 = arith.divf %925, %926 : vector<1x128xf32>
    %928 = vector.extract_strided_slice %915 {offsets = [0, 256], sizes = [1, 128], strides = [1, 1]} : vector<1x512xf32> to vector<1x128xf32>
    %929 = math.tanh %928 : vector<1x128xf32>
    %930 = vector.extract_strided_slice %915 {offsets = [0, 384], sizes = [1, 128], strides = [1, 1]} : vector<1x512xf32> to vector<1x128xf32>
    %931 = arith.negf %930 : vector<1x128xf32>
    %932 = math.exp %931 : vector<1x128xf32>
    %cst_368 = arith.constant 1.000000e+00 : f32
    %933 = vector.broadcast %cst_368 : f32 to vector<1x128xf32>
    %934 = arith.addf %933, %932 : vector<1x128xf32>
    %935 = arith.divf %933, %934 : vector<1x128xf32>
    %936 = arith.mulf %927, %864 : vector<1x128xf32>
    %937 = arith.mulf %921, %929 : vector<1x128xf32>
    %938 = arith.addf %936, %937 : vector<1x128xf32>
    %939 = math.tanh %938 : vector<1x128xf32>
    %940 = arith.mulf %935, %939 : vector<1x128xf32>
    %941 = arith.truncf %903 : vector<1x128xf32> to vector<1x128xbf16>
    %c2_369 = arith.constant 2 : index
    %c0_370 = arith.constant 0 : index
    %c0_371 = arith.constant 0 : index
    %942 = vector.load %arg11[%c2_369, %c0_370, %c0_371] : memref<3x128x512xbf16, #tpu.memory_space<vmem>>, vector<1x128x512xbf16>
    %943 = vector.shape_cast %942 : vector<1x128x512xbf16> to vector<128x512xbf16>
    %cst_372 = arith.constant dense<0.000000e+00> : vector<1x512xf32>
    %944 = tpu.matmul %941, %943, %cst_372 {dimension_numbers = #tpu.dot_dimension_numbers<[1], [0], [0], [1], [0, 0, 1, 1], [], []>} : vector<1x128xbf16>, vector<128x512xbf16>, vector<1x512xf32> -> vector<1x512xf32>
    %945 = arith.truncf %940 : vector<1x128xf32> to vector<1x128xbf16>
    %c2_373 = arith.constant 2 : index
    %c0_374 = arith.constant 0 : index
    %c0_375 = arith.constant 0 : index
    %946 = vector.load %arg12[%c2_373, %c0_374, %c0_375] : memref<3x128x512xbf16, #tpu.memory_space<vmem>>, vector<1x128x512xbf16>
    %947 = vector.shape_cast %946 : vector<1x128x512xbf16> to vector<128x512xbf16>
    %cst_376 = arith.constant dense<0.000000e+00> : vector<1x512xf32>
    %948 = tpu.matmul %945, %947, %cst_376 {dimension_numbers = #tpu.dot_dimension_numbers<[1], [0], [0], [1], [0, 0, 1, 1], [], []>} : vector<1x128xbf16>, vector<128x512xbf16>, vector<1x512xf32> -> vector<1x512xf32>
    %949 = arith.addf %944, %948 : vector<1x512xf32>
    %c2_377 = arith.constant 2 : index
    %c0_378 = arith.constant 0 : index
    %c0_379 = arith.constant 0 : index
    %950 = vector.load %arg5[%c2_377, %c0_378, %c0_379] : memref<3x1x512xf32, #tpu.memory_space<vmem>>, vector<1x1x512xf32>
    %951 = vector.shape_cast %950 : vector<1x1x512xf32> to vector<1x512xf32>
    %952 = arith.addf %949, %951 : vector<1x512xf32>
    %953 = vector.extract_strided_slice %952 {offsets = [0, 0], sizes = [1, 128], strides = [1, 1]} : vector<1x512xf32> to vector<1x128xf32>
    %954 = arith.negf %953 : vector<1x128xf32>
    %955 = math.exp %954 : vector<1x128xf32>
    %cst_380 = arith.constant 1.000000e+00 : f32
    %956 = vector.broadcast %cst_380 : f32 to vector<1x128xf32>
    %957 = arith.addf %956, %955 : vector<1x128xf32>
    %958 = arith.divf %956, %957 : vector<1x128xf32>
    %959 = vector.extract_strided_slice %952 {offsets = [0, 128], sizes = [1, 128], strides = [1, 1]} : vector<1x512xf32> to vector<1x128xf32>
    %960 = arith.negf %959 : vector<1x128xf32>
    %961 = math.exp %960 : vector<1x128xf32>
    %cst_381 = arith.constant 1.000000e+00 : f32
    %962 = vector.broadcast %cst_381 : f32 to vector<1x128xf32>
    %963 = arith.addf %962, %961 : vector<1x128xf32>
    %964 = arith.divf %962, %963 : vector<1x128xf32>
    %965 = vector.extract_strided_slice %952 {offsets = [0, 256], sizes = [1, 128], strides = [1, 1]} : vector<1x512xf32> to vector<1x128xf32>
    %966 = math.tanh %965 : vector<1x128xf32>
    %967 = vector.extract_strided_slice %952 {offsets = [0, 384], sizes = [1, 128], strides = [1, 1]} : vector<1x512xf32> to vector<1x128xf32>
    %968 = arith.negf %967 : vector<1x128xf32>
    %969 = math.exp %968 : vector<1x128xf32>
    %cst_382 = arith.constant 1.000000e+00 : f32
    %970 = vector.broadcast %cst_382 : f32 to vector<1x128xf32>
    %971 = arith.addf %970, %969 : vector<1x128xf32>
    %972 = arith.divf %970, %971 : vector<1x128xf32>
    %973 = arith.mulf %964, %938 : vector<1x128xf32>
    %974 = arith.mulf %958, %966 : vector<1x128xf32>
    %975 = arith.addf %973, %974 : vector<1x128xf32>
    %976 = math.tanh %975 : vector<1x128xf32>
    %977 = arith.mulf %972, %976 : vector<1x128xf32>
    %c0_383 = arith.constant 0 : index
    %c0_384 = arith.constant 0 : index
    %c0_385 = arith.constant 0 : index
    %978 = vector.load %arg9[%c0_383, %c0_384, %c0_385] : memref<3x1x128xf32, #tpu.memory_space<vmem>>, vector<1x1x128xf32>
    %979 = vector.shape_cast %978 : vector<1x1x128xf32> to vector<1x128xf32>
    %980 = vector.shape_cast %792 : vector<1x128xf32> to vector<1x1x128xf32>
    tpu.vector_store %arg9[%c0_383, %c0_384, %c0_385], %980 {strides = array<i32>} : memref<3x1x128xf32, #tpu.memory_space<vmem>>, vector<1x1x128xf32>,
    %c0_386 = arith.constant 0 : index
    %c0_387 = arith.constant 0 : index
    %c0_388 = arith.constant 0 : index
    %981 = vector.load %arg10[%c0_386, %c0_387, %c0_388] : memref<3x1x128xf32, #tpu.memory_space<vmem>>, vector<1x1x128xf32>
    %982 = vector.shape_cast %981 : vector<1x1x128xf32> to vector<1x128xf32>
    %983 = vector.shape_cast %790 : vector<1x128xf32> to vector<1x1x128xf32>
    tpu.vector_store %arg10[%c0_386, %c0_387, %c0_388], %983 {strides = array<i32>} : memref<3x1x128xf32, #tpu.memory_space<vmem>>, vector<1x1x128xf32>,
    %c1_389 = arith.constant 1 : index
    %c0_390 = arith.constant 0 : index
    %c0_391 = arith.constant 0 : index
    %984 = vector.load %arg9[%c1_389, %c0_390, %c0_391] : memref<3x1x128xf32, #tpu.memory_space<vmem>>, vector<1x1x128xf32>
    %985 = vector.shape_cast %984 : vector<1x1x128xf32> to vector<1x128xf32>
    %986 = vector.shape_cast %903 : vector<1x128xf32> to vector<1x1x128xf32>
    tpu.vector_store %arg9[%c1_389, %c0_390, %c0_391], %986 {strides = array<i32>} : memref<3x1x128xf32, #tpu.memory_space<vmem>>, vector<1x1x128xf32>,
    %c1_392 = arith.constant 1 : index
    %c0_393 = arith.constant 0 : index
    %c0_394 = arith.constant 0 : index
    %987 = vector.load %arg10[%c1_392, %c0_393, %c0_394] : memref<3x1x128xf32, #tpu.memory_space<vmem>>, vector<1x1x128xf32>
    %988 = vector.shape_cast %987 : vector<1x1x128xf32> to vector<1x128xf32>
    %989 = vector.shape_cast %901 : vector<1x128xf32> to vector<1x1x128xf32>
    tpu.vector_store %arg10[%c1_392, %c0_393, %c0_394], %989 {strides = array<i32>} : memref<3x1x128xf32, #tpu.memory_space<vmem>>, vector<1x1x128xf32>,
    %c2_395 = arith.constant 2 : index
    %c0_396 = arith.constant 0 : index
    %c0_397 = arith.constant 0 : index
    %990 = vector.load %arg9[%c2_395, %c0_396, %c0_397] : memref<3x1x128xf32, #tpu.memory_space<vmem>>, vector<1x1x128xf32>
    %991 = vector.shape_cast %990 : vector<1x1x128xf32> to vector<1x128xf32>
    %992 = vector.shape_cast %977 : vector<1x128xf32> to vector<1x1x128xf32>
    tpu.vector_store %arg9[%c2_395, %c0_396, %c0_397], %992 {strides = array<i32>} : memref<3x1x128xf32, #tpu.memory_space<vmem>>, vector<1x1x128xf32>,
    %c2_398 = arith.constant 2 : index
    %c0_399 = arith.constant 0 : index
    %c0_400 = arith.constant 0 : index
    %993 = vector.load %arg10[%c2_398, %c0_399, %c0_400] : memref<3x1x128xf32, #tpu.memory_space<vmem>>, vector<1x1x128xf32>
    %994 = vector.shape_cast %993 : vector<1x1x128xf32> to vector<1x128xf32>
    %995 = vector.shape_cast %975 : vector<1x128xf32> to vector<1x1x128xf32>
    tpu.vector_store %arg10[%c2_398, %c0_399, %c0_400], %995 {strides = array<i32>} : memref<3x1x128xf32, #tpu.memory_space<vmem>>, vector<1x1x128xf32>,
    %996 = tpu.concatenate %341, %446, %551, %656, %761, %866, %940, %977 in 0 : vector<1x128xf32>, vector<1x128xf32>, vector<1x128xf32>, vector<1x128xf32>, vector<1x128xf32>, vector<1x128xf32>, vector<1x128xf32>, vector<1x128xf32> -> vector<8x128xf32>
    %997 = arith.truncf %996 : vector<8x128xf32> to vector<8x128xbf16>
    %c6_i32_401 = arith.constant 6 : i32
    %998 = tpu.memref_slice %arg14[%c6_i32_401] : memref<7x!tpu.dma_semaphore, #tpu.memory_space<semaphore_mem>> -> memref<1x!tpu.dma_semaphore, #tpu.memory_space<semaphore_mem>>
    %999 = tpu.memref_squeeze %998 : memref<1x!tpu.dma_semaphore, #tpu.memory_space<semaphore_mem>> -> memref<!tpu.dma_semaphore, #tpu.memory_space<semaphore_mem>>
    tpu.wait_dma2 semaphore(%999 : memref<!tpu.dma_semaphore, #tpu.memory_space<semaphore_mem>>) src(%arg6 : memref<128x256xbf16, #tpu.memory_space<any>>) dst(%arg13 : memref<128x256xbf16, #tpu.memory_space<vmem>>)
    %c0_402 = arith.constant 0 : index
    %c0_403 = arith.constant 0 : index
    %1000 = vector.load %arg13[%c0_402, %c0_403] : memref<128x256xbf16, #tpu.memory_space<vmem>>, vector<128x256xbf16>
    %cst_404 = arith.constant dense<0.000000e+00> : vector<8x256xf32>
    %1001 = tpu.matmul %997, %1000, %cst_404 {dimension_numbers = #tpu.dot_dimension_numbers<[1], [0], [0], [1], [0, 0, 1, 1], [], []>} : vector<8x128xbf16>, vector<128x256xbf16>, vector<8x256xf32> -> vector<8x256xf32>
    %c0_405 = arith.constant 0 : index
    %c0_406 = arith.constant 0 : index
    %1002 = vector.load %arg7[%c0_405, %c0_406] : memref<1x256xf32, #tpu.memory_space<vmem>>, vector<1x256xf32>
    %1003 = vector.broadcast %1002 : vector<1x256xf32> to vector<8x256xf32>
    %1004 = arith.addf %1001, %1003 : vector<8x256xf32>
    %c0_407 = arith.constant 0 : index
    %c0_408 = arith.constant 0 : index
    %1005 = vector.load %arg8[%c0_407, %c0_408] : memref<8x256xf32, #tpu.memory_space<vmem>>, vector<8x256xf32>
    tpu.vector_store %arg8[%c0_407, %c0_408], %1004 {strides = array<i32>} : memref<8x256xf32, #tpu.memory_space<vmem>>, vector<8x256xf32>,
    return
  }
  func.func @transform_0(%arg0: i32, %arg1: memref<8xi32, #tpu.memory_space<smem>>) -> (i32, i32) {
    %c0_i32 = arith.constant 0 : i32
    %c0_i32_0 = arith.constant 0 : i32
    %c0_i32_1 = arith.constant 0 : i32
    return %c0_i32, %c0_i32_0 : i32, i32
  }
  func.func @transform_3(%arg0: i32, %arg1: memref<8xi32, #tpu.memory_space<smem>>) -> (i32, i32, i32) {
    %c0_i32 = arith.constant 0 : i32
    %c0_i32_0 = arith.constant 0 : i32
    %c0_i32_1 = arith.constant 0 : i32
    %c0_i32_2 = arith.constant 0 : i32
    return %c0_i32, %c0_i32_0, %c0_i32_1 : i32, i32, i32
  }
  func.func @transform_5(%arg0: i32, %arg1: memref<8xi32, #tpu.memory_space<smem>>) -> (i32, i32) {
    %c0_i32 = arith.constant 0 : i32
    %c0_i32_0 = arith.constant 0 : i32
    %c0_i32_1 = arith.constant 0 : i32
    return %c0_i32, %c0_i32_0 : i32, i32
  }
  func.func @transform_6(%arg0: i32, %arg1: memref<8xi32, #tpu.memory_space<smem>>) -> (i32, i32) {
    %c0_i32 = arith.constant 0 : i32
    %c0_i32_0 = arith.constant 0 : i32
    %c0_i32_1 = arith.constant 0 : i32
    return %c0_i32, %c0_i32_0 : i32, i32
  }
  func.func @transform_7(%arg0: i32, %arg1: memref<8xi32, #tpu.memory_space<smem>>) -> (i32, i32, i32) {
    %c0_i32 = arith.constant 0 : i32
    %c0_i32_0 = arith.constant 0 : i32
    %c0_i32_1 = arith.constant 0 : i32
    %c0_i32_2 = arith.constant 0 : i32
    return %c0_i32, %c0_i32_0, %c0_i32_1 : i32, i32, i32
  }
  func.func @transform_8(%arg0: i32, %arg1: memref<8xi32, #tpu.memory_space<smem>>) -> (i32, i32, i32) {
    %c0_i32 = arith.constant 0 : i32
    %c0_i32_0 = arith.constant 0 : i32
    %c0_i32_1 = arith.constant 0 : i32
    %c0_i32_2 = arith.constant 0 : i32
    return %c0_i32, %c0_i32_0, %c0_i32_1 : i32, i32, i32
  }
}

</mosaic_0001>

<llo_original>
// kernel: tpu_custom_call.1
$region0: #{tpu_custom_call.1}
  #allocation0 [shape = 'u32[]', space=smem, size = 0x4, offset = 0x4, fixed_abs, tag = 'smem constant byte address 0x4 - core index']
  #allocation1 [shape = 'u32[144,128]{1,0:T(1,128)}', space=vmem, size = 0x12000, scoped, tag = 'internal scratch']
  #allocation2 [shape = 'bf16[3,128,512]{2,1,0:T(16,128)(2,1)}', space=vmem, size = 0x60000, scoped, tag = 'scratch operand']
  #allocation3 [shape = 'bf16[3,128,512]{2,1,0:T(16,128)(2,1)}', space=vmem, size = 0x60000, scoped, tag = 'scratch operand']
  #allocation4 [shape = 'bf16[128,256]{1,0:T(16,128)(2,1)}', space=vmem, size = 0x10000, scoped, tag = 'scratch operand']
  #allocation5 [shape = 's32[7]{0}', space=sflag, size = 0x1c, scoped, tag = 'scratch operand']
  #allocation6 [shape = 's32[1]{0}', space=sflag, size = 0x4, scoped, tag = 'scoped memory for tpu_custom_call.1']
  #allocation7 [shape = 'u8[512]{0}', space=smem, size = 0x200, scoped, tag = 'prefetched SMEM operand 0']
  #allocation15 [shape = 's32[]', space=sflag, size = 0x4, offset = 0, fixed_abs, tag = 'sflag constant byte address 0x0 - dummy sync flag']
  #allocation17 [shape = 's32[]', space=sflag, size = 0x4, offset = 0, fixed_abs, tag = 'sflag constant byte address 0x0 - dummy sync flag']
  #allocation19 [shape = 's32[]', space=sflag, size = 0x4, offset = 0, fixed_abs, tag = 'sflag constant byte address 0x0 - dummy sync flag']
  #allocation21 [shape = 's32[]', space=sflag, size = 0x4, offset = 0, fixed_abs, tag = 'sflag constant byte address 0x0 - dummy sync flag']
  #allocation23 [shape = 's32[]', space=sflag, size = 0x4, offset = 0, fixed_abs, tag = 'sflag constant byte address 0x0 - dummy sync flag']
  #allocation25 [shape = 's32[]', space=sflag, size = 0x4, offset = 0, fixed_abs, tag = 'sflag constant byte address 0x0 - dummy sync flag']
  #allocation27 [shape = 's32[]', space=sflag, size = 0x4, offset = 0, fixed_abs, tag = 'sflag constant byte address 0x0 - dummy sync flag']
  %s0 = inlined_call_operand.hbm [shape: s32[8], index: 0, kind: input, shape index: {}]
  %s1 = inlined_call_operand.hbm [shape: bf16[256,128], index: 1, kind: input, shape index: {}]
  %s2 = inlined_call_operand.hbm [shape: bf16[3,128,512], index: 2, kind: input, shape index: {}]
  %s3 = inlined_call_operand.hbm [shape: bf16[3,128,512], index: 3, kind: input, shape index: {}]
  %s4 = inlined_call_operand.vmem [shape: f32[3,1,512], index: 4, kind: input, shape index: {}]
  %s5 = inlined_call_operand.hbm [shape: bf16[128,256], index: 5, kind: input, shape index: {}]
  %s6 = inlined_call_operand.vmem [shape: f32[1,256], index: 6, kind: input, shape index: {}]
  %s7 = inlined_call_operand.hbm [shape: f32[8,256], index: 7, kind: output, shape index: {0}]
  %s8 = inlined_call_operand.hbm [shape: f32[3,1,128], index: 8, kind: output, shape index: {1}]
  %s9 = inlined_call_operand.hbm [shape: f32[3,1,128], index: 9, kind: output, shape index: {2}]
  %10 = xla_tuple %s7, %s8, %s9
  %s11 = sld [smem:[#allocation0]]
  $region42: #{tpu_custom_call.1} parent=0
    _
  %s13 = ssub.s32 1, %s11
  %s14 = scalar_select 0, %s13, %s11
  %16 = dma.hbm_to_smem %s0, 16, [#allocation7], [#allocation6]
  %17 = dma.done [#allocation6], 16
  %18 = sfence
  $region1: #{tpu_custom_call.1} parent=0
    #allocation8 [shape = 'u8[65536]{0}', space=vmem, size = 0x10000, scoped, tag = 'input window, operand 1, single buffered']
    #allocation9 [shape = 's32[1]{0}', space=sflag, size = 0x4, scoped, tag = 'scoped memory for tpu_custom_call.1']
    #allocation10 [shape = 's32[1]{0}', space=sflag, size = 0x4, scoped, tag = 'scoped memory for tpu_custom_call.1']
    #allocation11 [shape = 'u8[8192]{0}', space=vmem, size = 0x2000, scoped, tag = 'output window, operand 0, single buffered']
    #allocation12 [shape = 'u8[1536]{0}', space=vmem, size = 0x800, scoped, tag = 'output window, operand 1, single buffered']
    #allocation13 [shape = 's32[1]{0}', space=sflag, size = 0x4, scoped, tag = 'scoped memory for tpu_custom_call.1']
    #allocation14 [shape = 'u8[1536]{0}', space=vmem, size = 0x800, scoped, tag = 'output window, operand 2, single buffered']
    #allocation16 [shape = 'u32[9]{0}', space=smem, size = 0x24, scoped, tag = 'DMA stride descriptor']
    #allocation18 [shape = 'u32[9]{0}', space=smem, size = 0x24, scoped, tag = 'DMA stride descriptor']
    #allocation20 [shape = 'u32[9]{0}', space=smem, size = 0x24, scoped, tag = 'DMA stride descriptor']
    #allocation22 [shape = 'u32[9]{0}', space=smem, size = 0x24, scoped, tag = 'DMA stride descriptor']
    #allocation24 [shape = 'u32[9]{0}', space=smem, size = 0x24, scoped, tag = 'DMA stride descriptor']
    #allocation26 [shape = 'u32[9]{0}', space=smem, size = 0x24, scoped, tag = 'DMA stride descriptor']
    #allocation28 [shape = 'u32[9]{0}', space=smem, size = 0x24, scoped, tag = 'DMA stride descriptor']
    %19 = vsyncpa [#allocation9], 0
    %20 = vsyncpa [#allocation10], 0
    %21 = vsyncpa [#allocation13], 0
    // Predicated region
    $region2: #{tpu_custom_call.1} parent=1 // pred_check
      _
    $region3: #{tpu_custom_call.1} parent=1 // pred_check_branch
      %23 = sbr.rel (0) target = $region5
    $region4: #{tpu_custom_call.1} parent=1 // pred_region
      %s25 = ssub.s32 2048, 2048
      %26 = vsyncadd [#allocation9], %s25
      %s27 = sshll.u32 [#allocation8], 4
      %s28 = int_to_ptr.vmem [resolvable:$true] %s27
      %33 = dma.hbm_to_vmem [thread:$0]  %s1, 2048, %s28, [#allocation9], 64, 64, 4
    $region5: #{tpu_custom_call.1} parent=1 // pred_fallthru
      _
    // Predicated region
    $region6: #{tpu_custom_call.1} parent=1 // pred_check
      _
    $region7: #{tpu_custom_call.1} parent=1 // pred_check_branch
      %35 = sbr.rel (0) target = $region9
    $region8: #{tpu_custom_call.1} parent=1 // pred_region
      _
    $region9: #{tpu_custom_call.1} parent=1 // pred_fallthru
      _
    // Predicated region
    $region10: #{tpu_custom_call.1} parent=1 // pred_check
      _
    $region11: #{tpu_custom_call.1} parent=1 // pred_check_branch
      %37 = sbr.rel (0) target = $region13
    $region12: #{tpu_custom_call.1} parent=1 // pred_region
      _
    $region13: #{tpu_custom_call.1} parent=1 // pred_fallthru
      _
    // Predicated region
    $region14: #{tpu_custom_call.1} parent=1 // pred_check
      _
    $region15: #{tpu_custom_call.1} parent=1 // pred_check_branch
      %39 = sbr.rel (0) target = $region17
    $region16: #{tpu_custom_call.1} parent=1 // pred_region
      %40 = dma.done [#allocation9], 2048
    $region17: #{tpu_custom_call.1} parent=1 // pred_fallthru
      _
    %s43 = sshll.u32 1, 14
    %s44 = sxor.u32 4294967295, %s43
    %s46 = sld [smem:[#allocation0]]
    %s47 = sadd.s32 2, %s46
    %s49 = sshll.u32 7, 26
    %s50 = sxor.u32 4294967295, %s49
    %s51 = sand.u32 0, %s50
    %s52 = sshll.u32 %s47, 26
    %s53 = sor.u32 %s51, %s52
    %s54 = sshll.u32 [#allocation2], 4
    %s55 = int_to_ptr.vmem [resolvable:$true] %s54
    %58 = sst [smem:[#allocation16]] 512
    %s59 = scalar_lea.smem [#allocation16], 1
    %60 = sst [smem:[%s59]] 512
    %s61 = scalar_lea.smem [#allocation16], 2
    %62 = sst [smem:[%s61]] 4
    %s63 = scalar_lea.smem [#allocation16], 3
    %64 = sst [smem:[%s63]] 64
    %s65 = scalar_lea.smem [#allocation16], 4
    %66 = sst [smem:[%s65]] 128
    %s67 = scalar_lea.smem [#allocation16], 5
    %68 = sst [smem:[%s67]] 2
    %s69 = scalar_lea.smem [#allocation16], 6
    %70 = sst [smem:[%s69]] 256
    %s71 = scalar_lea.smem [#allocation16], 7
    %72 = sst [smem:[%s71]] 64
    %s73 = scalar_lea.smem [#allocation16], 8
    %74 = sst [smem:[%s73]] 4
    %76 = dma.general %s2, 4096, %s55, [#allocation5], [#allocation15], [#allocation16], %s53, 0
    %s77 = scalar_lea.sflag [#allocation5], 1
    %s79 = sshll.u32 1, 14
    %s80 = sxor.u32 4294967295, %s79
    %s82 = sadd.s32 2, %s46
    %s84 = sshll.u32 7, 26
    %s85 = sxor.u32 4294967295, %s84
    %s86 = sand.u32 0, %s85
    %s87 = sshll.u32 %s82, 26
    %s88 = sor.u32 %s86, %s87
    %s89 = sshll.u32 [#allocation3], 4
    %s90 = int_to_ptr.vmem [resolvable:$true] %s89
    %93 = sst [smem:[#allocation18]] 512
    %s94 = scalar_lea.smem [#allocation18], 1
    %95 = sst [smem:[%s94]] 512
    %s96 = scalar_lea.smem [#allocation18], 2
    %97 = sst [smem:[%s96]] 4
    %s98 = scalar_lea.smem [#allocation18], 3
    %99 = sst [smem:[%s98]] 64
    %s100 = scalar_lea.smem [#allocation18], 4
    %101 = sst [smem:[%s100]] 128
    %s102 = scalar_lea.smem [#allocation18], 5
    %103 = sst [smem:[%s102]] 2
    %s104 = scalar_lea.smem [#allocation18], 6
    %105 = sst [smem:[%s104]] 256
    %s106 = scalar_lea.smem [#allocation18], 7
    %107 = sst [smem:[%s106]] 64
    %s108 = scalar_lea.smem [#allocation18], 8
    %109 = sst [smem:[%s108]] 4
    %111 = dma.general %s3, 4096, %s90, %s77, [#allocation17], [#allocation18], %s88, 0
    %s112 = scalar_lea.hbm %s2, 4096
    %s113 = scalar_lea.vmem [#allocation2], 256
    %s114 = scalar_lea.sflag [#allocation5], 2
    %s116 = sshll.u32 1, 14
    %s117 = sxor.u32 4294967295, %s116
    %s119 = sadd.s32 2, %s46
    %s121 = sshll.u32 7, 26
    %s122 = sxor.u32 4294967295, %s121
    %s123 = sand.u32 0, %s122
    %s124 = sshll.u32 %s119, 26
    %s125 = sor.u32 %s123, %s124
    %s126 = sshll.u32 %s113, 4
    %s127 = int_to_ptr.vmem [resolvable:$true] %s126
    %130 = sst [smem:[#allocation20]] 512
    %s131 = scalar_lea.smem [#allocation20], 1
    %132 = sst [smem:[%s131]] 512
    %s133 = scalar_lea.smem [#allocation20], 2
    %134 = sst [smem:[%s133]] 4
    %s135 = scalar_lea.smem [#allocation20], 3
    %136 = sst [smem:[%s135]] 64
    %s137 = scalar_lea.smem [#allocation20], 4
    %138 = sst [smem:[%s137]] 128
    %s139 = scalar_lea.smem [#allocation20], 5
    %140 = sst [smem:[%s139]] 2
    %s141 = scalar_lea.smem [#allocation20], 6
    %142 = sst [smem:[%s141]] 256
    %s143 = scalar_lea.smem [#allocation20], 7
    %144 = sst [smem:[%s143]] 64
    %s145 = scalar_lea.smem [#allocation20], 8
    %146 = sst [smem:[%s145]] 4
    %148 = dma.general %s112, 4096, %s127, %s114, [#allocation19], [#allocation20], %s125, 0
    %s149 = scalar_lea.hbm %s3, 4096
    %s150 = scalar_lea.vmem [#allocation3], 256
    %s151 = scalar_lea.sflag [#allocation5], 3
    %s153 = sshll.u32 1, 14
    %s154 = sxor.u32 4294967295, %s153
    %s156 = sadd.s32 2, %s46
    %s158 = sshll.u32 7, 26
    %s159 = sxor.u32 4294967295, %s158
    %s160 = sand.u32 0, %s159
    %s161 = sshll.u32 %s156, 26
    %s162 = sor.u32 %s160, %s161
    %s163 = sshll.u32 %s150, 4
    %s164 = int_to_ptr.vmem [resolvable:$true] %s163
    %167 = sst [smem:[#allocation22]] 512
    %s168 = scalar_lea.smem [#allocation22], 1
    %169 = sst [smem:[%s168]] 512
    %s170 = scalar_lea.smem [#allocation22], 2
    %171 = sst [smem:[%s170]] 4
    %s172 = scalar_lea.smem [#allocation22], 3
    %173 = sst [smem:[%s172]] 64
    %s174 = scalar_lea.smem [#allocation22], 4
    %175 = sst [smem:[%s174]] 128
    %s176 = scalar_lea.smem [#allocation22], 5
    %177 = sst [smem:[%s176]] 2
    %s178 = scalar_lea.smem [#allocation22], 6
    %179 = sst [smem:[%s178]] 256
    %s180 = scalar_lea.smem [#allocation22], 7
    %181 = sst [smem:[%s180]] 64
    %s182 = scalar_lea.smem [#allocation22], 8
    %183 = sst [smem:[%s182]] 4
    %185 = dma.general %s149, 4096, %s164, %s151, [#allocation21], [#allocation22], %s162, 0
    %s186 = scalar_lea.hbm %s2, 8192
    %s187 = scalar_lea.vmem [#allocation2], 512
    %s188 = scalar_lea.sflag [#allocation5], 4
    %s190 = sshll.u32 1, 14
    %s191 = sxor.u32 4294967295, %s190
    %s193 = sadd.s32 2, %s46
    %s195 = sshll.u32 7, 26
    %s196 = sxor.u32 4294967295, %s195
    %s197 = sand.u32 0, %s196
    %s198 = sshll.u32 %s193, 26
    %s199 = sor.u32 %s197, %s198
    %s200 = sshll.u32 %s187, 4
    %s201 = int_to_ptr.vmem [resolvable:$true] %s200
    %204 = sst [smem:[#allocation24]] 512
    %s205 = scalar_lea.smem [#allocation24], 1
    %206 = sst [smem:[%s205]] 512
    %s207 = scalar_lea.smem [#allocation24], 2
    %208 = sst [smem:[%s207]] 4
    %s209 = scalar_lea.smem [#allocation24], 3
    %210 = sst [smem:[%s209]] 64
    %s211 = scalar_lea.smem [#allocation24], 4
    %212 = sst [smem:[%s211]] 128
    %s213 = scalar_lea.smem [#allocation24], 5
    %214 = sst [smem:[%s213]] 2
    %s215 = scalar_lea.smem [#allocation24], 6
    %216 = sst [smem:[%s215]] 256
    %s217 = scalar_lea.smem [#allocation24], 7
    %218 = sst [smem:[%s217]] 64
    %s219 = scalar_lea.smem [#allocation24], 8
    %220 = sst [smem:[%s219]] 4
    %222 = dma.general %s186, 4096, %s201, %s188, [#allocation23], [#allocation24], %s199, 0
    %s223 = scalar_lea.hbm %s3, 8192
    %s224 = scalar_lea.vmem [#allocation3], 512
    %s225 = scalar_lea.sflag [#allocation5], 5
    %s227 = sshll.u32 1, 14
    %s228 = sxor.u32 4294967295, %s227
    %s230 = sadd.s32 2, %s46
    %s232 = sshll.u32 7, 26
    %s233 = sxor.u32 4294967295, %s232
    %s234 = sand.u32 0, %s233
    %s235 = sshll.u32 %s230, 26
    %s236 = sor.u32 %s234, %s235
    %s237 = sshll.u32 %s224, 4
    %s238 = int_to_ptr.vmem [resolvable:$true] %s237
    %241 = sst [smem:[#allocation26]] 512
    %s242 = scalar_lea.smem [#allocation26], 1
    %243 = sst [smem:[%s242]] 512
    %s244 = scalar_lea.smem [#allocation26], 2
    %245 = sst [smem:[%s244]] 4
    %s246 = scalar_lea.smem [#allocation26], 3
    %247 = sst [smem:[%s246]] 64
    %s248 = scalar_lea.smem [#allocation26], 4
    %249 = sst [smem:[%s248]] 128
    %s250 = scalar_lea.smem [#allocation26], 5
    %251 = sst [smem:[%s250]] 2
    %s252 = scalar_lea.smem [#allocation26], 6
    %253 = sst [smem:[%s252]] 256
    %s254 = scalar_lea.smem [#allocation26], 7
    %255 = sst [smem:[%s254]] 64
    %s256 = scalar_lea.smem [#allocation26], 8
    %257 = sst [smem:[%s256]] 4
    %259 = dma.general %s223, 4096, %s238, %s225, [#allocation25], [#allocation26], %s236, 0
    %s260 = scalar_lea.sflag [#allocation5], 6
    %s262 = sshll.u32 1, 14
    %s263 = sxor.u32 4294967295, %s262
    %s265 = sadd.s32 2, %s46
    %s267 = sshll.u32 7, 26
    %s268 = sxor.u32 4294967295, %s267
    %s269 = sand.u32 0, %s268
    %s270 = sshll.u32 %s265, 26
    %s271 = sor.u32 %s269, %s270
    %s272 = sshll.u32 [#allocation4], 4
    %s273 = int_to_ptr.vmem [resolvable:$true] %s272
    %276 = sst [smem:[#allocation28]] 256
    %s277 = scalar_lea.smem [#allocation28], 1
    %278 = sst [smem:[%s277]] 256
    %s279 = scalar_lea.smem [#allocation28], 2
    %280 = sst [smem:[%s279]] 2
    %s281 = scalar_lea.smem [#allocation28], 3
    %282 = sst [smem:[%s281]] 64
    %s283 = scalar_lea.smem [#allocation28], 4
    %284 = sst [smem:[%s283]] 128
    %s285 = scalar_lea.smem [#allocation28], 5
    %286 = sst [smem:[%s285]] 2
    %s287 = scalar_lea.smem [#allocation28], 6
    %288 = sst [smem:[%s287]] 128
    %s289 = scalar_lea.smem [#allocation28], 7
    %290 = sst [smem:[%s289]] 64
    %s291 = scalar_lea.smem [#allocation28], 8
    %292 = sst [smem:[%s291]] 4
    %294 = dma.general %s5, 2048, %s273, %s260, [#allocation27], [#allocation28], %s271, 0
    %v295 = vlaneseq
    %v296 = vshrl.u32 %v295, 7
    %v297 = vlaneseq
    %v298 = vand.u32 %v297, 127
    %v299 = vadd.s32 %v298, 128
    %vm300 = vcmp.eq.s32.totalorder %v296, 0
    %s301 = sld [smem:[#allocation7]]
    %v302 = vstv %s301
    %v303 = vsel %vm300, %v302, 0
    %vm304 = vcmp.eq.s32.totalorder %v296, 1
    %s305 = sld [smem:[#allocation7 + $0x1]]
    %v306 = vstv %s305
    %v307 = vsel %vm304, %v306, %v303
    %vm308 = vcmp.eq.s32.totalorder %v296, 2
    %s309 = sld [smem:[#allocation7 + $0x2]]
    %v310 = vstv %s309
    %v311 = vsel %vm308, %v310, %v307
    %vm312 = vcmp.eq.s32.totalorder %v296, 3
    %s313 = sld [smem:[#allocation7 + $0x3]]
    %v314 = vstv %s313
    %v315 = vsel %vm312, %v314, %v311
    %vm316 = vcmp.eq.s32.totalorder %v296, 4
    %s317 = sld [smem:[#allocation7 + $0x4]]
    %v318 = vstv %s317
    %v319 = vsel %vm316, %v318, %v315
    %vm320 = vcmp.eq.s32.totalorder %v296, 5
    %s321 = sld [smem:[#allocation7 + $0x5]]
    %v322 = vstv %s321
    %v323 = vsel %vm320, %v322, %v319
    %vm324 = vcmp.eq.s32.totalorder %v296, 6
    %s325 = sld [smem:[#allocation7 + $0x6]]
    %v326 = vstv %s325
    %v327 = vsel %vm324, %v326, %v323
    %vm328 = vcmp.eq.s32.totalorder %v296, 7
    %s329 = sld [smem:[#allocation7 + $0x7]]
    %v330 = vstv %s329
    %v331 = vsel %vm328, %v330, %v327
    %vm332 = vcmp.eq.s32.totalorder %v298, %v331
    %vm333 = vcmp.eq.s32.totalorder %v299, %v331
    %v334 = vsel %vm332, 1.0, 0.0
    %v335 = vsel %vm333, 1.0, 0.0
    %v336 = vpack.c.bf16 %v334, %v334
    %v337 = vpack.c.bf16 %v335, %v335
    %v338 = vld [vmem:[#allocation8] sm:$0xf]
    %v339 = vld [vmem:[#allocation8 + $0x4] sm:$0xf]
    %v340 = vld [vmem:[#allocation8 + $0x8] sm:$0xf]
    %v341 = vld [vmem:[#allocation8 + $0xc] sm:$0xf]
    %v342 = vld [vmem:[#allocation8 + $0x10] sm:$0xf]
    %v343 = vld [vmem:[#allocation8 + $0x14] sm:$0xf]
    %v344 = vld [vmem:[#allocation8 + $0x18] sm:$0xf]
    %v345 = vld [vmem:[#allocation8 + $0x1c] sm:$0xf]
    %v346 = vld [vmem:[#allocation8 + $0x20] sm:$0xf]
    %v347 = vld [vmem:[#allocation8 + $0x24] sm:$0xf]
    %v348 = vld [vmem:[#allocation8 + $0x28] sm:$0xf]
    %v349 = vld [vmem:[#allocation8 + $0x2c] sm:$0xf]
    %v350 = vld [vmem:[#allocation8 + $0x30] sm:$0xf]
    %v351 = vld [vmem:[#allocation8 + $0x34] sm:$0xf]
    %v352 = vld [vmem:[#allocation8 + $0x38] sm:$0xf]
    %v353 = vld [vmem:[#allocation8 + $0x3c] sm:$0xf]
    %v354 = vld [vmem:[#allocation8 + $0x40] sm:$0xf]
    %v355 = vld [vmem:[#allocation8 + $0x44] sm:$0xf]
    %v356 = vld [vmem:[#allocation8 + $0x48] sm:$0xf]
    %v357 = vld [vmem:[#allocation8 + $0x4c] sm:$0xf]
    %v358 = vld [vmem:[#allocation8 + $0x50] sm:$0xf]
    %v359 = vld [vmem:[#allocation8 + $0x54] sm:$0xf]
    %v360 = vld [vmem:[#allocation8 + $0x58] sm:$0xf]
    %v361 = vld [vmem:[#allocation8 + $0x5c] sm:$0xf]
    %v362 = vld [vmem:[#allocation8 + $0x60] sm:$0xf]
    %v363 = vld [vmem:[#allocation8 + $0x64] sm:$0xf]
    %v364 = vld [vmem:[#allocation8 + $0x68] sm:$0xf]
    %v365 = vld [vmem:[#allocation8 + $0x6c] sm:$0xf]
    %v366 = vld [vmem:[#allocation8 + $0x70] sm:$0xf]
    %v367 = vld [vmem:[#allocation8 + $0x74] sm:$0xf]
    %v368 = vld [vmem:[#allocation8 + $0x78] sm:$0xf]
    %v369 = vld [vmem:[#allocation8 + $0x7c] sm:$0xf]
    %v402 = vunpack.c.l.b16 %v338
    %v403 = vunpack.c.l.b16 %v339
    %v404 = vunpack.c.l.b16 %v340
    %v405 = vunpack.c.l.b16 %v341
    %v406 = vunpack.c.l.b16 %v342
    %v407 = vunpack.c.l.b16 %v343
    %v408 = vunpack.c.l.b16 %v344
    %v409 = vunpack.c.l.b16 %v345
    %v410 = vunpack.c.l.b16 %v346
    %v411 = vunpack.c.l.b16 %v347
    %v412 = vunpack.c.l.b16 %v348
    %v413 = vunpack.c.l.b16 %v349
    %v414 = vunpack.c.l.b16 %v350
    %v415 = vunpack.c.l.b16 %v351
    %v416 = vunpack.c.l.b16 %v352
    %v417 = vunpack.c.l.b16 %v353
    %v418 = vunpack.c.l.b16 %v354
    %v419 = vunpack.c.l.b16 %v355
    %v420 = vunpack.c.l.b16 %v356
    %v421 = vunpack.c.l.b16 %v357
    %v422 = vunpack.c.l.b16 %v358
    %v423 = vunpack.c.l.b16 %v359
    %v424 = vunpack.c.l.b16 %v360
    %v425 = vunpack.c.l.b16 %v361
    %v426 = vunpack.c.l.b16 %v362
    %v427 = vunpack.c.l.b16 %v363
    %v428 = vunpack.c.l.b16 %v364
    %v429 = vunpack.c.l.b16 %v365
    %v430 = vunpack.c.l.b16 %v366
    %v431 = vunpack.c.l.b16 %v367
    %v432 = vunpack.c.l.b16 %v368
    %v433 = vunpack.c.l.b16 %v369
    %v434 = vpack.c.b16 %v403, %v402
    %v435 = vpack.c.b16 %v405, %v404
    %v436 = vpack.c.b16 %v407, %v406
    %v437 = vpack.c.b16 %v409, %v408
    %v438 = vpack.c.b16 %v411, %v410
    %v439 = vpack.c.b16 %v413, %v412
    %v440 = vpack.c.b16 %v415, %v414
    %v441 = vpack.c.b16 %v417, %v416
    %v442 = vpack.c.b16 %v419, %v418
    %v443 = vpack.c.b16 %v421, %v420
    %v444 = vpack.c.b16 %v423, %v422
    %v445 = vpack.c.b16 %v425, %v424
    %v446 = vpack.c.b16 %v427, %v426
    %v447 = vpack.c.b16 %v429, %v428
    %v448 = vpack.c.b16 %v431, %v430
    %v449 = vpack.c.b16 %v433, %v432
    %466 = vmatprep.subr.bf16.mxu0 0
    %467 = vmatpush1.bf16.msra.mxu0 %v434
    %468 = vmatprep.subr.bf16.mxu0 0
    %469 = vmatpush1.bf16.msra.mxu0 %v435
    %470 = vmatprep.subr.bf16.mxu0 0
    %471 = vmatpush1.bf16.msra.mxu0 %v436
    %472 = vmatprep.subr.bf16.mxu0 0
    %473 = vmatpush1.bf16.msra.mxu0 %v437
    %474 = vmatprep.subr.bf16.mxu0 0
    %475 = vmatpush1.bf16.msra.mxu0 %v438
    %476 = vmatprep.subr.bf16.mxu0 0
    %477 = vmatpush1.bf16.msra.mxu0 %v439
    %478 = vmatprep.subr.bf16.mxu0 0
    %479 = vmatpush1.bf16.msra.mxu0 %v440
    %480 = vmatprep.subr.bf16.mxu0 0
    %481 = vmatpush1.bf16.msra.mxu0 %v441
    %482 = vmatprep.subr.bf16.mxu0 0
    %483 = vmatpush1.bf16.msra.mxu0 %v442
    %484 = vmatprep.subr.bf16.mxu0 0
    %485 = vmatpush1.bf16.msra.mxu0 %v443
    %486 = vmatprep.subr.bf16.mxu0 0
    %487 = vmatpush1.bf16.msra.mxu0 %v444
    %488 = vmatprep.subr.bf16.mxu0 0
    %489 = vmatpush1.bf16.msra.mxu0 %v445
    %490 = vmatprep.subr.bf16.mxu0 0
    %491 = vmatpush1.bf16.msra.mxu0 %v446
    %492 = vmatprep.subr.bf16.mxu0 0
    %493 = vmatpush1.bf16.msra.mxu0 %v447
    %494 = vmatprep.subr.bf16.mxu0 0
    %495 = vmatpush1.bf16.msra.mxu0 %v448
    %496 = vmatprep.subr.bf16.mxu0 0
    %497 = vmatpush1.bf16.msra.mxu0 %v449
    %498 = vmatprep.mubr.bf16.mxu0 %v337
    %499 = vmatmul.mubr.bf16.gmra.mrb[0].mxu0 %v336
    %v500 = vpop.f32.mrb[0].mxu0
    %v501 = vadd.f32 0.0, %v500
    %v502 = vpop.f32.mrb[0].mxu0
    %v503 = vpop.f32.mrb[0].mxu0
    %v504 = vpop.f32.mrb[0].mxu0
    %505 = vdwg.mxu0
    %v506 = vpack.c.bf16 %v501, %v501
    %s507 = smul.u32 4, 16
    %s508 = smul.u32 %s507, 4
    %s509 = sshll.u32 %s508, 4
    %510 = dma.done [#allocation5], %s509
    %s511 = sshll.u32 %s508, 4
    %512 = dma.done %s77, %s511
    %v513 = vld [vmem:[#allocation2] sm:$0xff]
    %v514 = vld [vmem:[#allocation2 + $0x8] sm:$0xff]
    %v515 = vld [vmem:[#allocation2 + $0x10] sm:$0xff]
    %v516 = vld [vmem:[#allocation2 + $0x18] sm:$0xff]
    %v517 = vld [vmem:[#allocation2 + $0x20] sm:$0xff]
    %v518 = vld [vmem:[#allocation2 + $0x28] sm:$0xff]
    %v519 = vld [vmem:[#allocation2 + $0x30] sm:$0xff]
    %v520 = vld [vmem:[#allocation2 + $0x38] sm:$0xff]
    %v521 = vld [vmem:[#allocation2 + $0x40] sm:$0xff]
    %v522 = vld [vmem:[#allocation2 + $0x48] sm:$0xff]
    %v523 = vld [vmem:[#allocation2 + $0x50] sm:$0xff]
    %v524 = vld [vmem:[#allocation2 + $0x58] sm:$0xff]
    %v525 = vld [vmem:[#allocation2 + $0x60] sm:$0xff]
    %v526 = vld [vmem:[#allocation2 + $0x68] sm:$0xff]
    %v527 = vld [vmem:[#allocation2 + $0x70] sm:$0xff]
    %v528 = vld [vmem:[#allocation2 + $0x78] sm:$0xff]
    %v529 = vld [vmem:[#allocation2 + $0x80] sm:$0xff]
    %v530 = vld [vmem:[#allocation2 + $0x88] sm:$0xff]
    %v531 = vld [vmem:[#allocation2 + $0x90] sm:$0xff]
    %v532 = vld [vmem:[#allocation2 + $0x98] sm:$0xff]
    %v533 = vld [vmem:[#allocation2 + $0xa0] sm:$0xff]
    %v534 = vld [vmem:[#allocation2 + $0xa8] sm:$0xff]
    %v535 = vld [vmem:[#allocation2 + $0xb0] sm:$0xff]
    %v536 = vld [vmem:[#allocation2 + $0xb8] sm:$0xff]
    %v537 = vld [vmem:[#allocation2 + $0xc0] sm:$0xff]
    %v538 = vld [vmem:[#allocation2 + $0xc8] sm:$0xff]
    %v539 = vld [vmem:[#allocation2 + $0xd0] sm:$0xff]
    %v540 = vld [vmem:[#allocation2 + $0xd8] sm:$0xff]
    %v541 = vld [vmem:[#allocation2 + $0xe0] sm:$0xff]
    %v542 = vld [vmem:[#allocation2 + $0xe8] sm:$0xff]
    %v543 = vld [vmem:[#allocation2 + $0xf0] sm:$0xff]
    %v544 = vld [vmem:[#allocation2 + $0xf8] sm:$0xff]
    %v545 = vld [vmem:[%s4] sm:$0xf]
    %v547 = vlaneseq
    %v548 = vshrl.u32 %v547, 7
    %v549 = vsub.s32 0, %v548
    %v550 = vrot.slane %v545, %v549
    %v551 = vlaneseq
    %v552 = vshrl.u32 %v551, 7
    %v553 = vsub.s32 1, %v552
    %v554 = vrot.slane %v545, %v553
    %v555 = vlaneseq
    %v556 = vshrl.u32 %v555, 7
    %v557 = vsub.s32 2, %v556
    %v558 = vrot.slane %v545, %v557
    %v559 = vlaneseq
    %v560 = vshrl.u32 %v559, 7
    %v561 = vsub.s32 3, %v560
    %v562 = vrot.slane %v545, %v561
    %567 = vmatprep.subr.bf16.mxu0 %v514
    %568 = vmatpush1.bf16.msra.mxu0 %v513
    %569 = vmatprep.subr.bf16.mxu0 %v518
    %570 = vmatpush1.bf16.msra.mxu0 %v517
    %571 = vmatprep.subr.bf16.mxu0 %v522
    %572 = vmatpush1.bf16.msra.mxu0 %v521
    %573 = vmatprep.subr.bf16.mxu0 %v526
    %574 = vmatpush1.bf16.msra.mxu0 %v525
    %575 = vmatprep.subr.bf16.mxu0 %v530
    %576 = vmatpush1.bf16.msra.mxu0 %v529
    %577 = vmatprep.subr.bf16.mxu0 %v534
    %578 = vmatpush1.bf16.msra.mxu0 %v533
    %579 = vmatprep.subr.bf16.mxu0 %v538
    %580 = vmatpush1.bf16.msra.mxu0 %v537
    %581 = vmatprep.subr.bf16.mxu0 %v542
    %582 = vmatpush1.bf16.msra.mxu0 %v541
    %583 = vmatprep.subr.bf16.mxu0 0
    %584 = vmatpush1.bf16.msra.mxu0 0
    %585 = vmatprep.subr.bf16.mxu0 0
    %586 = vmatpush1.bf16.msra.mxu0 0
    %587 = vmatprep.subr.bf16.mxu0 0
    %588 = vmatpush1.bf16.msra.mxu0 0
    %589 = vmatprep.subr.bf16.mxu0 0
    %590 = vmatpush1.bf16.msra.mxu0 0
    %591 = vmatprep.subr.bf16.mxu0 0
    %592 = vmatpush1.bf16.msra.mxu0 0
    %593 = vmatprep.subr.bf16.mxu0 0
    %594 = vmatpush1.bf16.msra.mxu0 0
    %595 = vmatprep.subr.bf16.mxu0 0
    %596 = vmatpush1.bf16.msra.mxu0 0
    %597 = vmatprep.subr.bf16.mxu0 0
    %598 = vmatpush1.bf16.msra.mxu0 0
    %599 = vmatprep.mubr.bf16.mxu0 0
    %600 = vmatmul.mubr.bf16.gmra.mrb[0].mxu0 %v506
    %v601 = vpop.f32.mrb[0].mxu0
    %v602 = vadd.f32 %v550, %v601
    %v603 = vpop.f32.mrb[0].mxu0
    %v604 = vadd.f32 %v554, %v603
    %v605 = vpop.f32.mrb[0].mxu0
    %v606 = vpop.f32.mrb[0].mxu0
    %607 = vdwg.mxu0
    %608 = vmatprep.subr.bf16.mxu0 %v516
    %609 = vmatpush1.bf16.msra.mxu0 %v515
    %610 = vmatprep.subr.bf16.mxu0 %v520
    %611 = vmatpush1.bf16.msra.mxu0 %v519
    %612 = vmatprep.subr.bf16.mxu0 %v524
    %613 = vmatpush1.bf16.msra.mxu0 %v523
    %614 = vmatprep.subr.bf16.mxu0 %v528
    %615 = vmatpush1.bf16.msra.mxu0 %v527
    %616 = vmatprep.subr.bf16.mxu0 %v532
    %617 = vmatpush1.bf16.msra.mxu0 %v531
    %618 = vmatprep.subr.bf16.mxu0 %v536
    %619 = vmatpush1.bf16.msra.mxu0 %v535
    %620 = vmatprep.subr.bf16.mxu0 %v540
    %621 = vmatpush1.bf16.msra.mxu0 %v539
    %622 = vmatprep.subr.bf16.mxu0 %v544
    %623 = vmatpush1.bf16.msra.mxu0 %v543
    %624 = vmatprep.subr.bf16.mxu0 0
    %625 = vmatpush1.bf16.msra.mxu0 0
    %626 = vmatprep.subr.bf16.mxu0 0
    %627 = vmatpush1.bf16.msra.mxu0 0
    %628 = vmatprep.subr.bf16.mxu0 0
    %629 = vmatpush1.bf16.msra.mxu0 0
    %630 = vmatprep.subr.bf16.mxu0 0
    %631 = vmatpush1.bf16.msra.mxu0 0
    %632 = vmatprep.subr.bf16.mxu0 0
    %633 = vmatpush1.bf16.msra.mxu0 0
    %634 = vmatprep.subr.bf16.mxu0 0
    %635 = vmatpush1.bf16.msra.mxu0 0
    %636 = vmatprep.subr.bf16.mxu0 0
    %637 = vmatpush1.bf16.msra.mxu0 0
    %638 = vmatprep.subr.bf16.mxu0 0
    %639 = vmatpush1.bf16.msra.mxu0 0
    %640 = vmatprep.mubr.bf16.mxu0 0
    %641 = vmatmul.mubr.bf16.gmra.mrb[0].mxu0 %v506
    %v642 = vpop.f32.mrb[0].mxu0
    %v643 = vadd.f32 %v558, %v642
    %v644 = vpop.f32.mrb[0].mxu0
    %v645 = vadd.f32 %v562, %v644
    %v646 = vpop.f32.mrb[0].mxu0
    %v647 = vpop.f32.mrb[0].mxu0
    %648 = vdwg.mxu0
    %v649 = vld [vmem:[#allocation3] sm:$0xff]
    %v650 = vld [vmem:[#allocation3 + $0x8] sm:$0xff]
    %v651 = vld [vmem:[#allocation3 + $0x10] sm:$0xff]
    %v652 = vld [vmem:[#allocation3 + $0x18] sm:$0xff]
    %v653 = vld [vmem:[#allocation3 + $0x20] sm:$0xff]
    %v654 = vld [vmem:[#allocation3 + $0x28] sm:$0xff]
    %v655 = vld [vmem:[#allocation3 + $0x30] sm:$0xff]
    %v656 = vld [vmem:[#allocation3 + $0x38] sm:$0xff]
    %v657 = vld [vmem:[#allocation3 + $0x40] sm:$0xff]
    %v658 = vld [vmem:[#allocation3 + $0x48] sm:$0xff]
    %v659 = vld [vmem:[#allocation3 + $0x50] sm:$0xff]
    %v660 = vld [vmem:[#allocation3 + $0x58] sm:$0xff]
    %v661 = vld [vmem:[#allocation3 + $0x60] sm:$0xff]
    %v662 = vld [vmem:[#allocation3 + $0x68] sm:$0xff]
    %v663 = vld [vmem:[#allocation3 + $0x70] sm:$0xff]
    %v664 = vld [vmem:[#allocation3 + $0x78] sm:$0xff]
    %v665 = vld [vmem:[#allocation3 + $0x80] sm:$0xff]
    %v666 = vld [vmem:[#allocation3 + $0x88] sm:$0xff]
    %v667 = vld [vmem:[#allocation3 + $0x90] sm:$0xff]
    %v668 = vld [vmem:[#allocation3 + $0x98] sm:$0xff]
    %v669 = vld [vmem:[#allocation3 + $0xa0] sm:$0xff]
    %v670 = vld [vmem:[#allocation3 + $0xa8] sm:$0xff]
    %v671 = vld [vmem:[#allocation3 + $0xb0] sm:$0xff]
    %v672 = vld [vmem:[#allocation3 + $0xb8] sm:$0xff]
    %v673 = vld [vmem:[#allocation3 + $0xc0] sm:$0xff]
    %v674 = vld [vmem:[#allocation3 + $0xc8] sm:$0xff]
    %v675 = vld [vmem:[#allocation3 + $0xd0] sm:$0xff]
    %v676 = vld [vmem:[#allocation3 + $0xd8] sm:$0xff]
    %v677 = vld [vmem:[#allocation3 + $0xe0] sm:$0xff]
    %v678 = vld [vmem:[#allocation3 + $0xe8] sm:$0xff]
    %v679 = vld [vmem:[#allocation3 + $0xf0] sm:$0xff]
    %v680 = vld [vmem:[#allocation3 + $0xf8] sm:$0xff]
    %681 = vmatprep.subr.bf16.mxu0 %v650
    %682 = vmatpush1.bf16.msra.mxu0 %v649
    %683 = vmatprep.subr.bf16.mxu0 %v654
    %684 = vmatpush1.bf16.msra.mxu0 %v653
    %685 = vmatprep.subr.bf16.mxu0 %v658
    %686 = vmatpush1.bf16.msra.mxu0 %v657
    %687 = vmatprep.subr.bf16.mxu0 %v662
    %688 = vmatpush1.bf16.msra.mxu0 %v661
    %689 = vmatprep.subr.bf16.mxu0 %v666
    %690 = vmatpush1.bf16.msra.mxu0 %v665
    %691 = vmatprep.subr.bf16.mxu0 %v670
    %692 = vmatpush1.bf16.msra.mxu0 %v669
    %693 = vmatprep.subr.bf16.mxu0 %v674
    %694 = vmatpush1.bf16.msra.mxu0 %v673
    %695 = vmatprep.subr.bf16.mxu0 %v678
    %696 = vmatpush1.bf16.msra.mxu0 %v677
    %697 = vmatprep.subr.bf16.mxu0 0
    %698 = vmatpush1.bf16.msra.mxu0 0
    %699 = vmatprep.subr.bf16.mxu0 0
    %700 = vmatpush1.bf16.msra.mxu0 0
    %701 = vmatprep.subr.bf16.mxu0 0
    %702 = vmatpush1.bf16.msra.mxu0 0
    %703 = vmatprep.subr.bf16.mxu0 0
    %704 = vmatpush1.bf16.msra.mxu0 0
    %705 = vmatprep.subr.bf16.mxu0 0
    %706 = vmatpush1.bf16.msra.mxu0 0
    %707 = vmatprep.subr.bf16.mxu0 0
    %708 = vmatpush1.bf16.msra.mxu0 0
    %709 = vmatprep.subr.bf16.mxu0 0
    %710 = vmatpush1.bf16.msra.mxu0 0
    %711 = vmatprep.subr.bf16.mxu0 0
    %712 = vmatpush1.bf16.msra.mxu0 0
    %713 = vmatprep.mubr.bf16.mxu0 0
    %714 = vmatmul.mubr.bf16.gmra.mrb[0].mxu0 0
    %v715 = vpop.f32.mrb[0].mxu0
    %v716 = vadd.f32 0.0, %v715
    %v717 = vpop.f32.mrb[0].mxu0
    %v718 = vadd.f32 0.0, %v717
    %v719 = vpop.f32.mrb[0].mxu0
    %v720 = vpop.f32.mrb[0].mxu0
    %721 = vdwg.mxu0
    %722 = vmatprep.subr.bf16.mxu0 %v652
    %723 = vmatpush1.bf16.msra.mxu0 %v651
    %724 = vmatprep.subr.bf16.mxu0 %v656
    %725 = vmatpush1.bf16.msra.mxu0 %v655
    %726 = vmatprep.subr.bf16.mxu0 %v660
    %727 = vmatpush1.bf16.msra.mxu0 %v659
    %728 = vmatprep.subr.bf16.mxu0 %v664
    %729 = vmatpush1.bf16.msra.mxu0 %v663
    %730 = vmatprep.subr.bf16.mxu0 %v668
    %731 = vmatpush1.bf16.msra.mxu0 %v667
    %732 = vmatprep.subr.bf16.mxu0 %v672
    %733 = vmatpush1.bf16.msra.mxu0 %v671
    %734 = vmatprep.subr.bf16.mxu0 %v676
    %735 = vmatpush1.bf16.msra.mxu0 %v675
    %736 = vmatprep.subr.bf16.mxu0 %v680
    %737 = vmatpush1.bf16.msra.mxu0 %v679
    %738 = vmatprep.subr.bf16.mxu0 0
    %739 = vmatpush1.bf16.msra.mxu0 0
    %740 = vmatprep.subr.bf16.mxu0 0
    %741 = vmatpush1.bf16.msra.mxu0 0
    %742 = vmatprep.subr.bf16.mxu0 0
    %743 = vmatpush1.bf16.msra.mxu0 0
    %744 = vmatprep.subr.bf16.mxu0 0
    %745 = vmatpush1.bf16.msra.mxu0 0
    %746 = vmatprep.subr.bf16.mxu0 0
    %747 = vmatpush1.bf16.msra.mxu0 0
    %748 = vmatprep.subr.bf16.mxu0 0
    %749 = vmatpush1.bf16.msra.mxu0 0
    %750 = vmatprep.subr.bf16.mxu0 0
    %751 = vmatpush1.bf16.msra.mxu0 0
    %752 = vmatprep.subr.bf16.mxu0 0
    %753 = vmatpush1.bf16.msra.mxu0 0
    %754 = vmatprep.mubr.bf16.mxu0 0
    %755 = vmatmul.mubr.bf16.gmra.mrb[0].mxu0 0
    %v756 = vpop.f32.mrb[0].mxu0
    %v757 = vadd.f32 0.0, %v756
    %v758 = vpop.f32.mrb[0].mxu0
    %v759 = vadd.f32 0.0, %v758
    %v760 = vpop.f32.mrb[0].mxu0
    %v761 = vpop.f32.mrb[0].mxu0
    %762 = vdwg.mxu0
    %v763 = vadd.f32 %v602, %v716
    %v764 = vadd.f32 %v604, %v718
    %v765 = vadd.f32 %v643, %v757
    %v766 = vadd.f32 %v645, %v759
    %v767 = vxor.u32 %v763, 2147483648
    %v768 = vmul.f32 %v767, 1.442695
    %v769 = vpow.pop %v768
    %v770 = vadd.f32 %v769, 1.0
    %v771 = vrcp.pop %v770
    %v772 = vmul.f32 1.0, %v771
    %v773 = vxor.u32 %v764, 2147483648
    %v774 = vmul.f32 %v773, 1.442695
    %v775 = vpow.pop %v774
    %v776 = vadd.f32 %v775, 1.0
    %v777 = vrcp.pop %v776
    %v778 = vmul.f32 1.0, %v777
    %v779 = vtanh.pop %v765
    %v780 = vxor.u32 %v766, 2147483648
    %v781 = vmul.f32 %v780, 1.442695
    %v782 = vpow.pop %v781
    %v783 = vadd.f32 %v782, 1.0
    %v784 = vrcp.pop %v783
    %v785 = vmul.f32 1.0, %v784
    %v786 = vmul.f32 %v778, 0.0
    %v787 = vmul.f32 %v772, %v779
    %v788 = vadd.f32 %v786, %v787
    %v789 = vtanh.pop %v788
    %v790 = vmul.f32 %v785, %v789
    %s791 = sshll.u32 %s508, 4
    %792 = dma.done %s114, %s791
    %s793 = sshll.u32 %s508, 4
    %794 = dma.done %s151, %s793
    %v795 = vpack.c.bf16 %v790, %v790
    %v796 = vld [vmem:[#allocation3] sm:$0xff]
    %v797 = vld [vmem:[#allocation3 + $0x8] sm:$0xff]
    %v798 = vld [vmem:[#allocation3 + $0x10] sm:$0xff]
    %v799 = vld [vmem:[#allocation3 + $0x18] sm:$0xff]
    %v800 = vld [vmem:[#allocation3 + $0x20] sm:$0xff]
    %v801 = vld [vmem:[#allocation3 + $0x28] sm:$0xff]
    %v802 = vld [vmem:[#allocation3 + $0x30] sm:$0xff]
    %v803 = vld [vmem:[#allocation3 + $0x38] sm:$0xff]
    %v804 = vld [vmem:[#allocation3 + $0x40] sm:$0xff]
    %v805 = vld [vmem:[#allocation3 + $0x48] sm:$0xff]
    %v806 = vld [vmem:[#allocation3 + $0x50] sm:$0xff]
    %v807 = vld [vmem:[#allocation3 + $0x58] sm:$0xff]
    %v808 = vld [vmem:[#allocation3 + $0x60] sm:$0xff]
    %v809 = vld [vmem:[#allocation3 + $0x68] sm:$0xff]
    %v810 = vld [vmem:[#allocation3 + $0x70] sm:$0xff]
    %v811 = vld [vmem:[#allocation3 + $0x78] sm:$0xff]
    %v812 = vld [vmem:[#allocation3 + $0x80] sm:$0xff]
    %v813 = vld [vmem:[#allocation3 + $0x88] sm:$0xff]
    %v814 = vld [vmem:[#allocation3 + $0x90] sm:$0xff]
    %v815 = vld [vmem:[#allocation3 + $0x98] sm:$0xff]
    %v816 = vld [vmem:[#allocation3 + $0xa0] sm:$0xff]
    %v817 = vld [vmem:[#allocation3 + $0xa8] sm:$0xff]
    %v818 = vld [vmem:[#allocation3 + $0xb0] sm:$0xff]
    %v819 = vld [vmem:[#allocation3 + $0xb8] sm:$0xff]
    %v820 = vld [vmem:[#allocation3 + $0xc0] sm:$0xff]
    %v821 = vld [vmem:[#allocation3 + $0xc8] sm:$0xff]
    %v822 = vld [vmem:[#allocation3 + $0xd0] sm:$0xff]
    %v823 = vld [vmem:[#allocation3 + $0xd8] sm:$0xff]
    %v824 = vld [vmem:[#allocation3 + $0xe0] sm:$0xff]
    %v825 = vld [vmem:[#allocation3 + $0xe8] sm:$0xff]
    %v826 = vld [vmem:[#allocation3 + $0xf0] sm:$0xff]
    %v827 = vld [vmem:[#allocation3 + $0xf8] sm:$0xff]
    %828 = vmatprep.subr.bf16.mxu0 %v797
    %829 = vmatpush1.bf16.msra.mxu0 %v796
    %830 = vmatprep.subr.bf16.mxu0 %v801
    %831 = vmatpush1.bf16.msra.mxu0 %v800
    %832 = vmatprep.subr.bf16.mxu0 %v805
    %833 = vmatpush1.bf16.msra.mxu0 %v804
    %834 = vmatprep.subr.bf16.mxu0 %v809
    %835 = vmatpush1.bf16.msra.mxu0 %v808
    %836 = vmatprep.subr.bf16.mxu0 %v813
    %837 = vmatpush1.bf16.msra.mxu0 %v812
    %838 = vmatprep.subr.bf16.mxu0 %v817
    %839 = vmatpush1.bf16.msra.mxu0 %v816
    %840 = vmatprep.subr.bf16.mxu0 %v821
    %841 = vmatpush1.bf16.msra.mxu0 %v820
    %842 = vmatprep.subr.bf16.mxu0 %v825
    %843 = vmatpush1.bf16.msra.mxu0 %v824
    %844 = vmatprep.subr.bf16.mxu0 0
    %845 = vmatpush1.bf16.msra.mxu0 0
    %846 = vmatprep.subr.bf16.mxu0 0
    %847 = vmatpush1.bf16.msra.mxu0 0
    %848 = vmatprep.subr.bf16.mxu0 0
    %849 = vmatpush1.bf16.msra.mxu0 0
    %850 = vmatprep.subr.bf16.mxu0 0
    %851 = vmatpush1.bf16.msra.mxu0 0
    %852 = vmatprep.subr.bf16.mxu0 0
    %853 = vmatpush1.bf16.msra.mxu0 0
    %854 = vmatprep.subr.bf16.mxu0 0
    %855 = vmatpush1.bf16.msra.mxu0 0
    %856 = vmatprep.subr.bf16.mxu0 0
    %857 = vmatpush1.bf16.msra.mxu0 0
    %858 = vmatprep.subr.bf16.mxu0 0
    %859 = vmatpush1.bf16.msra.mxu0 0
    %860 = vmatprep.mubr.bf16.mxu0 0
    %861 = vmatmul.mubr.bf16.gmra.mrb[0].mxu0 %v795
    %v862 = vpop.f32.mrb[0].mxu0
    %v863 = vadd.f32 0.0, %v862
    %v864 = vpop.f32.mrb[0].mxu0
    %v865 = vadd.f32 0.0, %v864
    %v866 = vpop.f32.mrb[0].mxu0
    %v867 = vpop.f32.mrb[0].mxu0
    %868 = vdwg.mxu0
    %869 = vmatprep.subr.bf16.mxu0 %v799
    %870 = vmatpush1.bf16.msra.mxu0 %v798
    %871 = vmatprep.subr.bf16.mxu0 %v803
    %872 = vmatpush1.bf16.msra.mxu0 %v802
    %873 = vmatprep.subr.bf16.mxu0 %v807
    %874 = vmatpush1.bf16.msra.mxu0 %v806
    %875 = vmatprep.subr.bf16.mxu0 %v811
    %876 = vmatpush1.bf16.msra.mxu0 %v810
    %877 = vmatprep.subr.bf16.mxu0 %v815
    %878 = vmatpush1.bf16.msra.mxu0 %v814
    %879 = vmatprep.subr.bf16.mxu0 %v819
    %880 = vmatpush1.bf16.msra.mxu0 %v818
    %881 = vmatprep.subr.bf16.mxu0 %v823
    %882 = vmatpush1.bf16.msra.mxu0 %v822
    %883 = vmatprep.subr.bf16.mxu0 %v827
    %884 = vmatpush1.bf16.msra.mxu0 %v826
    %885 = vmatprep.subr.bf16.mxu0 0
    %886 = vmatpush1.bf16.msra.mxu0 0
    %887 = vmatprep.subr.bf16.mxu0 0
    %888 = vmatpush1.bf16.msra.mxu0 0
    %889 = vmatprep.subr.bf16.mxu0 0
    %890 = vmatpush1.bf16.msra.mxu0 0
    %891 = vmatprep.subr.bf16.mxu0 0
    %892 = vmatpush1.bf16.msra.mxu0 0
    %893 = vmatprep.subr.bf16.mxu0 0
    %894 = vmatpush1.bf16.msra.mxu0 0
    %895 = vmatprep.subr.bf16.mxu0 0
    %896 = vmatpush1.bf16.msra.mxu0 0
    %897 = vmatprep.subr.bf16.mxu0 0
    %898 = vmatpush1.bf16.msra.mxu0 0
    %899 = vmatprep.subr.bf16.mxu0 0
    %900 = vmatpush1.bf16.msra.mxu0 0
    %901 = vmatprep.mubr.bf16.mxu0 0
    %902 = vmatmul.mubr.bf16.gmra.mrb[0].mxu0 %v795
    %v903 = vpop.f32.mrb[0].mxu0
    %v904 = vadd.f32 0.0, %v903
    %v905 = vpop.f32.mrb[0].mxu0
    %v906 = vadd.f32 0.0, %v905
    %v907 = vpop.f32.mrb[0].mxu0
    %v908 = vpop.f32.mrb[0].mxu0
    %909 = vdwg.mxu0
    %v914 = vrot.slane %v863, 7
    %v915 = vrot.slane %v865, 7
    %v916 = vrot.slane %v904, 7
    %v917 = vrot.slane %v906, 7
    %v922 = vadd.f32 %v602, %v914
    %v923 = vadd.f32 %v604, %v915
    %v924 = vadd.f32 %v643, %v916
    %v925 = vadd.f32 %v645, %v917
    %v926 = vxor.u32 %v922, 2147483648
    %v927 = vmul.f32 %v926, 1.442695
    %v928 = vpow.pop %v927
    %v929 = vadd.f32 %v928, 1.0
    %v930 = vrcp.pop %v929
    %v931 = vmul.f32 1.0, %v930
    %v932 = vxor.u32 %v923, 2147483648
    %v933 = vmul.f32 %v932, 1.442695
    %v934 = vpow.pop %v933
    %v935 = vadd.f32 %v934, 1.0
    %v936 = vrcp.pop %v935
    %v937 = vmul.f32 1.0, %v936
    %v938 = vtanh.pop %v924
    %v939 = vxor.u32 %v925, 2147483648
    %v940 = vmul.f32 %v939, 1.442695
    %v941 = vpow.pop %v940
    %v942 = vadd.f32 %v941, 1.0
    %v943 = vrcp.pop %v942
    %v944 = vmul.f32 1.0, %v943
    %v946 = vrot.slane %v788, 7
    %v948 = vmul.f32 %v937, %v946
    %v949 = vmul.f32 %v931, %v938
    %v950 = vadd.f32 %v948, %v949
    %v951 = vtanh.pop %v950
    %v952 = vmul.f32 %v944, %v951
    %v953 = vld [vmem:[%s113] sm:$0xff]
    %v954 = vld [vmem:[%s113 + $0x8] sm:$0xff]
    %v955 = vld [vmem:[%s113 + $0x10] sm:$0xff]
    %v956 = vld [vmem:[%s113 + $0x18] sm:$0xff]
    %v957 = vld [vmem:[%s113 + $0x20] sm:$0xff]
    %v958 = vld [vmem:[%s113 + $0x28] sm:$0xff]
    %v959 = vld [vmem:[%s113 + $0x30] sm:$0xff]
    %v960 = vld [vmem:[%s113 + $0x38] sm:$0xff]
    %v961 = vld [vmem:[%s113 + $0x40] sm:$0xff]
    %v962 = vld [vmem:[%s113 + $0x48] sm:$0xff]
    %v963 = vld [vmem:[%s113 + $0x50] sm:$0xff]
    %v964 = vld [vmem:[%s113 + $0x58] sm:$0xff]
    %v965 = vld [vmem:[%s113 + $0x60] sm:$0xff]
    %v966 = vld [vmem:[%s113 + $0x68] sm:$0xff]
    %v967 = vld [vmem:[%s113 + $0x70] sm:$0xff]
    %v968 = vld [vmem:[%s113 + $0x78] sm:$0xff]
    %v969 = vld [vmem:[%s113 + $0x80] sm:$0xff]
    %v970 = vld [vmem:[%s113 + $0x88] sm:$0xff]
    %v971 = vld [vmem:[%s113 + $0x90] sm:$0xff]
    %v972 = vld [vmem:[%s113 + $0x98] sm:$0xff]
    %v973 = vld [vmem:[%s113 + $0xa0] sm:$0xff]
    %v974 = vld [vmem:[%s113 + $0xa8] sm:$0xff]
    %v975 = vld [vmem:[%s113 + $0xb0] sm:$0xff]
    %v976 = vld [vmem:[%s113 + $0xb8] sm:$0xff]
    %v977 = vld [vmem:[%s113 + $0xc0] sm:$0xff]
    %v978 = vld [vmem:[%s113 + $0xc8] sm:$0xff]
    %v979 = vld [vmem:[%s113 + $0xd0] sm:$0xff]
    %v980 = vld [vmem:[%s113 + $0xd8] sm:$0xff]
    %v981 = vld [vmem:[%s113 + $0xe0] sm:$0xff]
    %v982 = vld [vmem:[%s113 + $0xe8] sm:$0xff]
    %v983 = vld [vmem:[%s113 + $0xf0] sm:$0xff]
    %v984 = vld [vmem:[%s113 + $0xf8] sm:$0xff]
    %v985 = vld [vmem:[%s150] sm:$0xff]
    %v986 = vld [vmem:[%s150 + $0x8] sm:$0xff]
    %v987 = vld [vmem:[%s150 + $0x10] sm:$0xff]
    %v988 = vld [vmem:[%s150 + $0x18] sm:$0xff]
    %v989 = vld [vmem:[%s150 + $0x20] sm:$0xff]
    %v990 = vld [vmem:[%s150 + $0x28] sm:$0xff]
    %v991 = vld [vmem:[%s150 + $0x30] sm:$0xff]
    %v992 = vld [vmem:[%s150 + $0x38] sm:$0xff]
    %v993 = vld [vmem:[%s150 + $0x40] sm:$0xff]
    %v994 = vld [vmem:[%s150 + $0x48] sm:$0xff]
    %v995 = vld [vmem:[%s150 + $0x50] sm:$0xff]
    %v996 = vld [vmem:[%s150 + $0x58] sm:$0xff]
    %v997 = vld [vmem:[%s150 + $0x60] sm:$0xff]
    %v998 = vld [vmem:[%s150 + $0x68] sm:$0xff]
    %v999 = vld [vmem:[%s150 + $0x70] sm:$0xff]
    %v1000 = vld [vmem:[%s150 + $0x78] sm:$0xff]
    %v1001 = vld [vmem:[%s150 + $0x80] sm:$0xff]
    %v1002 = vld [vmem:[%s150 + $0x88] sm:$0xff]
    %v1003 = vld [vmem:[%s150 + $0x90] sm:$0xff]
    %v1004 = vld [vmem:[%s150 + $0x98] sm:$0xff]
    %v1005 = vld [vmem:[%s150 + $0xa0] sm:$0xff]
    %v1006 = vld [vmem:[%s150 + $0xa8] sm:$0xff]
    %v1007 = vld [vmem:[%s150 + $0xb0] sm:$0xff]
    %v1008 = vld [vmem:[%s150 + $0xb8] sm:$0xff]
    %v1009 = vld [vmem:[%s150 + $0xc0] sm:$0xff]
    %v1010 = vld [vmem:[%s150 + $0xc8] sm:$0xff]
    %v1011 = vld [vmem:[%s150 + $0xd0] sm:$0xff]
    %v1012 = vld [vmem:[%s150 + $0xd8] sm:$0xff]
    %v1013 = vld [vmem:[%s150 + $0xe0] sm:$0xff]
    %v1014 = vld [vmem:[%s150 + $0xe8] sm:$0xff]
    %v1015 = vld [vmem:[%s150 + $0xf0] sm:$0xff]
    %v1016 = vld [vmem:[%s150 + $0xf8] sm:$0xff]
    %1017 = vmatprep.subr.bf16.mxu0 %v986
    %1018 = vmatpush1.bf16.msra.mxu0 %v985
    %1019 = vmatprep.subr.bf16.mxu0 %v990
    %1020 = vmatpush1.bf16.msra.mxu0 %v989
    %1021 = vmatprep.subr.bf16.mxu0 %v994
    %1022 = vmatpush1.bf16.msra.mxu0 %v993
    %1023 = vmatprep.subr.bf16.mxu0 %v998
    %1024 = vmatpush1.bf16.msra.mxu0 %v997
    %1025 = vmatprep.subr.bf16.mxu0 %v1002
    %1026 = vmatpush1.bf16.msra.mxu0 %v1001
    %1027 = vmatprep.subr.bf16.mxu0 %v1006
    %1028 = vmatpush1.bf16.msra.mxu0 %v1005
    %1029 = vmatprep.subr.bf16.mxu0 %v1010
    %1030 = vmatpush1.bf16.msra.mxu0 %v1009
    %1031 = vmatprep.subr.bf16.mxu0 %v1014
    %1032 = vmatpush1.bf16.msra.mxu0 %v1013
    %1033 = vmatprep.subr.bf16.mxu0 0
    %1034 = vmatpush1.bf16.msra.mxu0 0
    %1035 = vmatprep.subr.bf16.mxu0 0
    %1036 = vmatpush1.bf16.msra.mxu0 0
    %1037 = vmatprep.subr.bf16.mxu0 0
    %1038 = vmatpush1.bf16.msra.mxu0 0
    %1039 = vmatprep.subr.bf16.mxu0 0
    %1040 = vmatpush1.bf16.msra.mxu0 0
    %1041 = vmatprep.subr.bf16.mxu0 0
    %1042 = vmatpush1.bf16.msra.mxu0 0
    %1043 = vmatprep.subr.bf16.mxu0 0
    %1044 = vmatpush1.bf16.msra.mxu0 0
    %1045 = vmatprep.subr.bf16.mxu0 0
    %1046 = vmatpush1.bf16.msra.mxu0 0
    %1047 = vmatprep.subr.bf16.mxu0 0
    %1048 = vmatpush1.bf16.msra.mxu0 0
    %1049 = vmatprep.mubr.bf16.mxu0 0
    %1050 = vmatmul.mubr.bf16.gmra.mrb[0].mxu0 0
    %v1051 = vpop.f32.mrb[0].mxu0
    %v1052 = vadd.f32 0.0, %v1051
    %v1053 = vpop.f32.mrb[0].mxu0
    %v1054 = vadd.f32 0.0, %v1053
    %v1055 = vpop.f32.mrb[0].mxu0
    %v1056 = vpop.f32.mrb[0].mxu0
    %1057 = vdwg.mxu0
    %1058 = vmatprep.subr.bf16.mxu0 %v988
    %1059 = vmatpush1.bf16.msra.mxu0 %v987
    %1060 = vmatprep.subr.bf16.mxu0 %v992
    %1061 = vmatpush1.bf16.msra.mxu0 %v991
    %1062 = vmatprep.subr.bf16.mxu0 %v996
    %1063 = vmatpush1.bf16.msra.mxu0 %v995
    %1064 = vmatprep.subr.bf16.mxu0 %v1000
    %1065 = vmatpush1.bf16.msra.mxu0 %v999
    %1066 = vmatprep.subr.bf16.mxu0 %v1004
    %1067 = vmatpush1.bf16.msra.mxu0 %v1003
    %1068 = vmatprep.subr.bf16.mxu0 %v1008
    %1069 = vmatpush1.bf16.msra.mxu0 %v1007
    %1070 = vmatprep.subr.bf16.mxu0 %v1012
    %1071 = vmatpush1.bf16.msra.mxu0 %v1011
    %1072 = vmatprep.subr.bf16.mxu0 %v1016
    %1073 = vmatpush1.bf16.msra.mxu0 %v1015
    %1074 = vmatprep.subr.bf16.mxu0 0
    %1075 = vmatpush1.bf16.msra.mxu0 0
    %1076 = vmatprep.subr.bf16.mxu0 0
    %1077 = vmatpush1.bf16.msra.mxu0 0
    %1078 = vmatprep.subr.bf16.mxu0 0
    %1079 = vmatpush1.bf16.msra.mxu0 0
    %1080 = vmatprep.subr.bf16.mxu0 0
    %1081 = vmatpush1.bf16.msra.mxu0 0
    %1082 = vmatprep.subr.bf16.mxu0 0
    %1083 = vmatpush1.bf16.msra.mxu0 0
    %1084 = vmatprep.subr.bf16.mxu0 0
    %1085 = vmatpush1.bf16.msra.mxu0 0
    %1086 = vmatprep.subr.bf16.mxu0 0
    %1087 = vmatpush1.bf16.msra.mxu0 0
    %1088 = vmatprep.subr.bf16.mxu0 0
    %1089 = vmatpush1.bf16.msra.mxu0 0
    %1090 = vmatprep.mubr.bf16.mxu0 0
    %1091 = vmatmul.mubr.bf16.gmra.mrb[0].mxu0 0
    %v1092 = vpop.f32.mrb[0].mxu0
    %v1093 = vadd.f32 0.0, %v1092
    %v1094 = vpop.f32.mrb[0].mxu0
    %v1095 = vadd.f32 0.0, %v1094
    %v1096 = vpop.f32.mrb[0].mxu0
    %v1097 = vpop.f32.mrb[0].mxu0
    %1098 = vdwg.mxu0
    %1099 = vmatprep.subr.bf16.mxu0 %v954
    %1100 = vmatpush1.bf16.msra.mxu0 %v953
    %1101 = vmatprep.subr.bf16.mxu0 %v958
    %1102 = vmatpush1.bf16.msra.mxu0 %v957
    %1103 = vmatprep.subr.bf16.mxu0 %v962
    %1104 = vmatpush1.bf16.msra.mxu0 %v961
    %1105 = vmatprep.subr.bf16.mxu0 %v966
    %1106 = vmatpush1.bf16.msra.mxu0 %v965
    %1107 = vmatprep.subr.bf16.mxu0 %v970
    %1108 = vmatpush1.bf16.msra.mxu0 %v969
    %1109 = vmatprep.subr.bf16.mxu0 %v974
    %1110 = vmatpush1.bf16.msra.mxu0 %v973
    %1111 = vmatprep.subr.bf16.mxu0 %v978
    %1112 = vmatpush1.bf16.msra.mxu0 %v977
    %1113 = vmatprep.subr.bf16.mxu0 %v982
    %1114 = vmatpush1.bf16.msra.mxu0 %v981
    %1115 = vmatprep.subr.bf16.mxu0 0
    %1116 = vmatpush1.bf16.msra.mxu0 0
    %1117 = vmatprep.subr.bf16.mxu0 0
    %1118 = vmatpush1.bf16.msra.mxu0 0
    %1119 = vmatprep.subr.bf16.mxu0 0
    %1120 = vmatpush1.bf16.msra.mxu0 0
    %1121 = vmatprep.subr.bf16.mxu0 0
    %1122 = vmatpush1.bf16.msra.mxu0 0
    %1123 = vmatprep.subr.bf16.mxu0 0
    %1124 = vmatpush1.bf16.msra.mxu0 0
    %1125 = vmatprep.subr.bf16.mxu0 0
    %1126 = vmatpush1.bf16.msra.mxu0 0
    %1127 = vmatprep.subr.bf16.mxu0 0
    %1128 = vmatpush1.bf16.msra.mxu0 0
    %1129 = vmatprep.subr.bf16.mxu0 0
    %1130 = vmatpush1.bf16.msra.mxu0 0
    %1131 = vmatprep.mubr.bf16.mxu0 0
    %1132 = vmatmul.mubr.bf16.gmra.mrb[0].mxu0 %v795
    %v1133 = vpop.f32.mrb[0].mxu0
    %v1134 = vadd.f32 %v1052, %v1133
    %v1135 = vpop.f32.mrb[0].mxu0
    %v1136 = vadd.f32 %v1054, %v1135
    %v1137 = vpop.f32.mrb[0].mxu0
    %v1138 = vpop.f32.mrb[0].mxu0
    %1139 = vdwg.mxu0
    %1140 = vmatprep.subr.bf16.mxu0 %v956
    %1141 = vmatpush1.bf16.msra.mxu0 %v955
    %1142 = vmatprep.subr.bf16.mxu0 %v960
    %1143 = vmatpush1.bf16.msra.mxu0 %v959
    %1144 = vmatprep.subr.bf16.mxu0 %v964
    %1145 = vmatpush1.bf16.msra.mxu0 %v963
    %1146 = vmatprep.subr.bf16.mxu0 %v968
    %1147 = vmatpush1.bf16.msra.mxu0 %v967
    %1148 = vmatprep.subr.bf16.mxu0 %v972
    %1149 = vmatpush1.bf16.msra.mxu0 %v971
    %1150 = vmatprep.subr.bf16.mxu0 %v976
    %1151 = vmatpush1.bf16.msra.mxu0 %v975
    %1152 = vmatprep.subr.bf16.mxu0 %v980
    %1153 = vmatpush1.bf16.msra.mxu0 %v979
    %1154 = vmatprep.subr.bf16.mxu0 %v984
    %1155 = vmatpush1.bf16.msra.mxu0 %v983
    %1156 = vmatprep.subr.bf16.mxu0 0
    %1157 = vmatpush1.bf16.msra.mxu0 0
    %1158 = vmatprep.subr.bf16.mxu0 0
    %1159 = vmatpush1.bf16.msra.mxu0 0
    %1160 = vmatprep.subr.bf16.mxu0 0
    %1161 = vmatpush1.bf16.msra.mxu0 0
    %1162 = vmatprep.subr.bf16.mxu0 0
    %1163 = vmatpush1.bf16.msra.mxu0 0
    %1164 = vmatprep.subr.bf16.mxu0 0
    %1165 = vmatpush1.bf16.msra.mxu0 0
    %1166 = vmatprep.subr.bf16.mxu0 0
    %1167 = vmatpush1.bf16.msra.mxu0 0
    %1168 = vmatprep.subr.bf16.mxu0 0
    %1169 = vmatpush1.bf16.msra.mxu0 0
    %1170 = vmatprep.subr.bf16.mxu0 0
    %1171 = vmatpush1.bf16.msra.mxu0 0
    %1172 = vmatprep.mubr.bf16.mxu0 0
    %1173 = vmatmul.mubr.bf16.gmra.mrb[0].mxu0 %v795
    %v1174 = vpop.f32.mrb[0].mxu0
    %v1175 = vadd.f32 %v1093, %v1174
    %v1176 = vpop.f32.mrb[0].mxu0
    %v1177 = vadd.f32 %v1095, %v1176
    %v1178 = vpop.f32.mrb[0].mxu0
    %v1179 = vpop.f32.mrb[0].mxu0
    %1180 = vdwg.mxu0
    %s1181 = scalar_lea.vmem %s4, 4
    %v1182 = vld [vmem:[%s1181] sm:$0xf]
    %v1184 = vlaneseq
    %v1185 = vshrl.u32 %v1184, 7
    %v1186 = vsub.s32 0, %v1185
    %v1187 = vrot.slane %v1182, %v1186
    %v1188 = vlaneseq
    %v1189 = vshrl.u32 %v1188, 7
    %v1190 = vsub.s32 1, %v1189
    %v1191 = vrot.slane %v1182, %v1190
    %v1192 = vlaneseq
    %v1193 = vshrl.u32 %v1192, 7
    %v1194 = vsub.s32 2, %v1193
    %v1195 = vrot.slane %v1182, %v1194
    %v1196 = vlaneseq
    %v1197 = vshrl.u32 %v1196, 7
    %v1198 = vsub.s32 3, %v1197
    %v1199 = vrot.slane %v1182, %v1198
    %v1204 = vadd.f32 %v1134, %v1187
    %v1205 = vadd.f32 %v1136, %v1191
    %v1206 = vadd.f32 %v1175, %v1195
    %v1207 = vadd.f32 %v1177, %v1199
    %v1208 = vxor.u32 %v1204, 2147483648
    %v1209 = vmul.f32 %v1208, 1.442695
    %v1210 = vpow.pop %v1209
    %v1211 = vadd.f32 %v1210, 1.0
    %v1212 = vrcp.pop %v1211
    %v1213 = vmul.f32 1.0, %v1212
    %v1214 = vxor.u32 %v1205, 2147483648
    %v1215 = vmul.f32 %v1214, 1.442695
    %v1216 = vpow.pop %v1215
    %v1217 = vadd.f32 %v1216, 1.0
    %v1218 = vrcp.pop %v1217
    %v1219 = vmul.f32 1.0, %v1218
    %v1220 = vtanh.pop %v1206
    %v1221 = vxor.u32 %v1207, 2147483648
    %v1222 = vmul.f32 %v1221, 1.442695
    %v1223 = vpow.pop %v1222
    %v1224 = vadd.f32 %v1223, 1.0
    %v1225 = vrcp.pop %v1224
    %v1226 = vmul.f32 1.0, %v1225
    %v1227 = vmul.f32 %v1219, 0.0
    %v1228 = vmul.f32 %v1213, %v1220
    %v1229 = vadd.f32 %v1227, %v1228
    %v1230 = vtanh.pop %v1229
    %v1231 = vmul.f32 %v1226, %v1230
    %s1232 = sshll.u32 %s508, 4
    %1233 = dma.done %s188, %s1232
    %s1234 = sshll.u32 %s508, 4
    %1235 = dma.done %s225, %s1234
    %v1236 = vpack.c.bf16 %v952, %v952
    %v1237 = vld [vmem:[#allocation3] sm:$0xff]
    %v1238 = vld [vmem:[#allocation3 + $0x8] sm:$0xff]
    %v1239 = vld [vmem:[#allocation3 + $0x10] sm:$0xff]
    %v1240 = vld [vmem:[#allocation3 + $0x18] sm:$0xff]
    %v1241 = vld [vmem:[#allocation3 + $0x20] sm:$0xff]
    %v1242 = vld [vmem:[#allocation3 + $0x28] sm:$0xff]
    %v1243 = vld [vmem:[#allocation3 + $0x30] sm:$0xff]
    %v1244 = vld [vmem:[#allocation3 + $0x38] sm:$0xff]
    %v1245 = vld [vmem:[#allocation3 + $0x40] sm:$0xff]
    %v1246 = vld [vmem:[#allocation3 + $0x48] sm:$0xff]
    %v1247 = vld [vmem:[#allocation3 + $0x50] sm:$0xff]
    %v1248 = vld [vmem:[#allocation3 + $0x58] sm:$0xff]
    %v1249 = vld [vmem:[#allocation3 + $0x60] sm:$0xff]
    %v1250 = vld [vmem:[#allocation3 + $0x68] sm:$0xff]
    %v1251 = vld [vmem:[#allocation3 + $0x70] sm:$0xff]
    %v1252 = vld [vmem:[#allocation3 + $0x78] sm:$0xff]
    %v1253 = vld [vmem:[#allocation3 + $0x80] sm:$0xff]
    %v1254 = vld [vmem:[#allocation3 + $0x88] sm:$0xff]
    %v1255 = vld [vmem:[#allocation3 + $0x90] sm:$0xff]
    %v1256 = vld [vmem:[#allocation3 + $0x98] sm:$0xff]
    %v1257 = vld [vmem:[#allocation3 + $0xa0] sm:$0xff]
    %v1258 = vld [vmem:[#allocation3 + $0xa8] sm:$0xff]
    %v1259 = vld [vmem:[#allocation3 + $0xb0] sm:$0xff]
    %v1260 = vld [vmem:[#allocation3 + $0xb8] sm:$0xff]
    %v1261 = vld [vmem:[#allocation3 + $0xc0] sm:$0xff]
    %v1262 = vld [vmem:[#allocation3 + $0xc8] sm:$0xff]
    %v1263 = vld [vmem:[#allocation3 + $0xd0] sm:$0xff]
    %v1264 = vld [vmem:[#allocation3 + $0xd8] sm:$0xff]
    %v1265 = vld [vmem:[#allocation3 + $0xe0] sm:$0xff]
    %v1266 = vld [vmem:[#allocation3 + $0xe8] sm:$0xff]
    %v1267 = vld [vmem:[#allocation3 + $0xf0] sm:$0xff]
    %v1268 = vld [vmem:[#allocation3 + $0xf8] sm:$0xff]
    %v1270 = vshrl.u32 %v1236, 16
    %1273 = vmatprep.subr.bf16.mxu0 %v1238
    %1274 = vmatpush1.bf16.msra.mxu0 %v1237
    %1275 = vmatprep.subr.bf16.mxu0 %v1242
    %1276 = vmatpush1.bf16.msra.mxu0 %v1241
    %1277 = vmatprep.subr.bf16.mxu0 %v1246
    %1278 = vmatpush1.bf16.msra.mxu0 %v1245
    %1279 = vmatprep.subr.bf16.mxu0 %v1250
    %1280 = vmatpush1.bf16.msra.mxu0 %v1249
    %1281 = vmatprep.subr.bf16.mxu0 %v1254
    %1282 = vmatpush1.bf16.msra.mxu0 %v1253
    %1283 = vmatprep.subr.bf16.mxu0 %v1258
    %1284 = vmatpush1.bf16.msra.mxu0 %v1257
    %1285 = vmatprep.subr.bf16.mxu0 %v1262
    %1286 = vmatpush1.bf16.msra.mxu0 %v1261
    %1287 = vmatprep.subr.bf16.mxu0 %v1266
    %1288 = vmatpush1.bf16.msra.mxu0 %v1265
    %1289 = vmatprep.subr.bf16.mxu0 0
    %1290 = vmatpush1.bf16.msra.mxu0 0
    %1291 = vmatprep.subr.bf16.mxu0 0
    %1292 = vmatpush1.bf16.msra.mxu0 0
    %1293 = vmatprep.subr.bf16.mxu0 0
    %1294 = vmatpush1.bf16.msra.mxu0 0
    %1295 = vmatprep.subr.bf16.mxu0 0
    %1296 = vmatpush1.bf16.msra.mxu0 0
    %1297 = vmatprep.subr.bf16.mxu0 0
    %1298 = vmatpush1.bf16.msra.mxu0 0
    %1299 = vmatprep.subr.bf16.mxu0 0
    %1300 = vmatpush1.bf16.msra.mxu0 0
    %1301 = vmatprep.subr.bf16.mxu0 0
    %1302 = vmatpush1.bf16.msra.mxu0 0
    %1303 = vmatprep.subr.bf16.mxu0 0
    %1304 = vmatpush1.bf16.msra.mxu0 0
    %1305 = vmatprep.mubr.bf16.mxu0 0
    %1306 = vmatmul.mubr.bf16.gmra.mrb[0].mxu0 %v1270
    %v1307 = vpop.f32.mrb[0].mxu0
    %v1308 = vadd.f32 0.0, %v1307
    %v1309 = vpop.f32.mrb[0].mxu0
    %v1310 = vadd.f32 0.0, %v1309
    %v1311 = vpop.f32.mrb[0].mxu0
    %v1312 = vpop.f32.mrb[0].mxu0
    %1313 = vdwg.mxu0
    %1314 = vmatprep.subr.bf16.mxu0 %v1240
    %1315 = vmatpush1.bf16.msra.mxu0 %v1239
    %1316 = vmatprep.subr.bf16.mxu0 %v1244
    %1317 = vmatpush1.bf16.msra.mxu0 %v1243
    %1318 = vmatprep.subr.bf16.mxu0 %v1248
    %1319 = vmatpush1.bf16.msra.mxu0 %v1247
    %1320 = vmatprep.subr.bf16.mxu0 %v1252
    %1321 = vmatpush1.bf16.msra.mxu0 %v1251
    %1322 = vmatprep.subr.bf16.mxu0 %v1256
    %1323 = vmatpush1.bf16.msra.mxu0 %v1255
    %1324 = vmatprep.subr.bf16.mxu0 %v1260
    %1325 = vmatpush1.bf16.msra.mxu0 %v1259
    %1326 = vmatprep.subr.bf16.mxu0 %v1264
    %1327 = vmatpush1.bf16.msra.mxu0 %v1263
    %1328 = vmatprep.subr.bf16.mxu0 %v1268
    %1329 = vmatpush1.bf16.msra.mxu0 %v1267
    %1330 = vmatprep.subr.bf16.mxu0 0
    %1331 = vmatpush1.bf16.msra.mxu0 0
    %1332 = vmatprep.subr.bf16.mxu0 0
    %1333 = vmatpush1.bf16.msra.mxu0 0
    %1334 = vmatprep.subr.bf16.mxu0 0
    %1335 = vmatpush1.bf16.msra.mxu0 0
    %1336 = vmatprep.subr.bf16.mxu0 0
    %1337 = vmatpush1.bf16.msra.mxu0 0
    %1338 = vmatprep.subr.bf16.mxu0 0
    %1339 = vmatpush1.bf16.msra.mxu0 0
    %1340 = vmatprep.subr.bf16.mxu0 0
    %1341 = vmatpush1.bf16.msra.mxu0 0
    %1342 = vmatprep.subr.bf16.mxu0 0
    %1343 = vmatpush1.bf16.msra.mxu0 0
    %1344 = vmatprep.subr.bf16.mxu0 0
    %1345 = vmatpush1.bf16.msra.mxu0 0
    %1346 = vmatprep.mubr.bf16.mxu0 0
    %1347 = vmatmul.mubr.bf16.gmra.mrb[0].mxu0 %v1270
    %v1348 = vpop.f32.mrb[0].mxu0
    %v1349 = vadd.f32 0.0, %v1348
    %v1350 = vpop.f32.mrb[0].mxu0
    %v1351 = vadd.f32 0.0, %v1350
    %v1352 = vpop.f32.mrb[0].mxu0
    %v1353 = vpop.f32.mrb[0].mxu0
    %1354 = vdwg.mxu0
    %v1359 = vrot.slane %v1308, 6
    %v1360 = vrot.slane %v1310, 6
    %v1361 = vrot.slane %v1349, 6
    %v1362 = vrot.slane %v1351, 6
    %v1367 = vadd.f32 %v602, %v1359
    %v1368 = vadd.f32 %v604, %v1360
    %v1369 = vadd.f32 %v643, %v1361
    %v1370 = vadd.f32 %v645, %v1362
    %v1371 = vxor.u32 %v1367, 2147483648
    %v1372 = vmul.f32 %v1371, 1.442695
    %v1373 = vpow.pop %v1372
    %v1374 = vadd.f32 %v1373, 1.0
    %v1375 = vrcp.pop %v1374
    %v1376 = vmul.f32 1.0, %v1375
    %v1377 = vxor.u32 %v1368, 2147483648
    %v1378 = vmul.f32 %v1377, 1.442695
    %v1379 = vpow.pop %v1378
    %v1380 = vadd.f32 %v1379, 1.0
    %v1381 = vrcp.pop %v1380
    %v1382 = vmul.f32 1.0, %v1381
    %v1383 = vtanh.pop %v1369
    %v1384 = vxor.u32 %v1370, 2147483648
    %v1385 = vmul.f32 %v1384, 1.442695
    %v1386 = vpow.pop %v1385
    %v1387 = vadd.f32 %v1386, 1.0
    %v1388 = vrcp.pop %v1387
    %v1389 = vmul.f32 1.0, %v1388
    %v1391 = vrot.slane %v950, 7
    %v1393 = vmul.f32 %v1382, %v1391
    %v1394 = vmul.f32 %v1376, %v1383
    %v1395 = vadd.f32 %v1393, %v1394
    %v1396 = vtanh.pop %v1395
    %v1397 = vmul.f32 %v1389, %v1396
    %v1398 = vld [vmem:[%s113] sm:$0xff]
    %v1399 = vld [vmem:[%s113 + $0x8] sm:$0xff]
    %v1400 = vld [vmem:[%s113 + $0x10] sm:$0xff]
    %v1401 = vld [vmem:[%s113 + $0x18] sm:$0xff]
    %v1402 = vld [vmem:[%s113 + $0x20] sm:$0xff]
    %v1403 = vld [vmem:[%s113 + $0x28] sm:$0xff]
    %v1404 = vld [vmem:[%s113 + $0x30] sm:$0xff]
    %v1405 = vld [vmem:[%s113 + $0x38] sm:$0xff]
    %v1406 = vld [vmem:[%s113 + $0x40] sm:$0xff]
    %v1407 = vld [vmem:[%s113 + $0x48] sm:$0xff]
    %v1408 = vld [vmem:[%s113 + $0x50] sm:$0xff]
    %v1409 = vld [vmem:[%s113 + $0x58] sm:$0xff]
    %v1410 = vld [vmem:[%s113 + $0x60] sm:$0xff]
    %v1411 = vld [vmem:[%s113 + $0x68] sm:$0xff]
    %v1412 = vld [vmem:[%s113 + $0x70] sm:$0xff]
    %v1413 = vld [vmem:[%s113 + $0x78] sm:$0xff]
    %v1414 = vld [vmem:[%s113 + $0x80] sm:$0xff]
    %v1415 = vld [vmem:[%s113 + $0x88] sm:$0xff]
    %v1416 = vld [vmem:[%s113 + $0x90] sm:$0xff]
    %v1417 = vld [vmem:[%s113 + $0x98] sm:$0xff]
    %v1418 = vld [vmem:[%s113 + $0xa0] sm:$0xff]
    %v1419 = vld [vmem:[%s113 + $0xa8] sm:$0xff]
    %v1420 = vld [vmem:[%s113 + $0xb0] sm:$0xff]
    %v1421 = vld [vmem:[%s113 + $0xb8] sm:$0xff]
    %v1422 = vld [vmem:[%s113 + $0xc0] sm:$0xff]
    %v1423 = vld [vmem:[%s113 + $0xc8] sm:$0xff]
    %v1424 = vld [vmem:[%s113 + $0xd0] sm:$0xff]
    %v1425 = vld [vmem:[%s113 + $0xd8] sm:$0xff]
    %v1426 = vld [vmem:[%s113 + $0xe0] sm:$0xff]
    %v1427 = vld [vmem:[%s113 + $0xe8] sm:$0xff]
    %v1428 = vld [vmem:[%s113 + $0xf0] sm:$0xff]
    %v1429 = vld [vmem:[%s113 + $0xf8] sm:$0xff]
    %v1430 = vpack.c.bf16 %v1231, %v1231
    %v1431 = vld [vmem:[%s150] sm:$0xff]
    %v1432 = vld [vmem:[%s150 + $0x8] sm:$0xff]
    %v1433 = vld [vmem:[%s150 + $0x10] sm:$0xff]
    %v1434 = vld [vmem:[%s150 + $0x18] sm:$0xff]
    %v1435 = vld [vmem:[%s150 + $0x20] sm:$0xff]
    %v1436 = vld [vmem:[%s150 + $0x28] sm:$0xff]
    %v1437 = vld [vmem:[%s150 + $0x30] sm:$0xff]
    %v1438 = vld [vmem:[%s150 + $0x38] sm:$0xff]
    %v1439 = vld [vmem:[%s150 + $0x40] sm:$0xff]
    %v1440 = vld [vmem:[%s150 + $0x48] sm:$0xff]
    %v1441 = vld [vmem:[%s150 + $0x50] sm:$0xff]
    %v1442 = vld [vmem:[%s150 + $0x58] sm:$0xff]
    %v1443 = vld [vmem:[%s150 + $0x60] sm:$0xff]
    %v1444 = vld [vmem:[%s150 + $0x68] sm:$0xff]
    %v1445 = vld [vmem:[%s150 + $0x70] sm:$0xff]
    %v1446 = vld [vmem:[%s150 + $0x78] sm:$0xff]
    %v1447 = vld [vmem:[%s150 + $0x80] sm:$0xff]
    %v1448 = vld [vmem:[%s150 + $0x88] sm:$0xff]
    %v1449 = vld [vmem:[%s150 + $0x90] sm:$0xff]
    %v1450 = vld [vmem:[%s150 + $0x98] sm:$0xff]
    %v1451 = vld [vmem:[%s150 + $0xa0] sm:$0xff]
    %v1452 = vld [vmem:[%s150 + $0xa8] sm:$0xff]
    %v1453 = vld [vmem:[%s150 + $0xb0] sm:$0xff]
    %v1454 = vld [vmem:[%s150 + $0xb8] sm:$0xff]
    %v1455 = vld [vmem:[%s150 + $0xc0] sm:$0xff]
    %v1456 = vld [vmem:[%s150 + $0xc8] sm:$0xff]
    %v1457 = vld [vmem:[%s150 + $0xd0] sm:$0xff]
    %v1458 = vld [vmem:[%s150 + $0xd8] sm:$0xff]
    %v1459 = vld [vmem:[%s150 + $0xe0] sm:$0xff]
    %v1460 = vld [vmem:[%s150 + $0xe8] sm:$0xff]
    %v1461 = vld [vmem:[%s150 + $0xf0] sm:$0xff]
    %v1462 = vld [vmem:[%s150 + $0xf8] sm:$0xff]
    %1463 = vmatprep.subr.bf16.mxu0 %v1432
    %1464 = vmatpush1.bf16.msra.mxu0 %v1431
    %1465 = vmatprep.subr.bf16.mxu0 %v1436
    %1466 = vmatpush1.bf16.msra.mxu0 %v1435
    %1467 = vmatprep.subr.bf16.mxu0 %v1440
    %1468 = vmatpush1.bf16.msra.mxu0 %v1439
    %1469 = vmatprep.subr.bf16.mxu0 %v1444
    %1470 = vmatpush1.bf16.msra.mxu0 %v1443
    %1471 = vmatprep.subr.bf16.mxu0 %v1448
    %1472 = vmatpush1.bf16.msra.mxu0 %v1447
    %1473 = vmatprep.subr.bf16.mxu0 %v1452
    %1474 = vmatpush1.bf16.msra.mxu0 %v1451
    %1475 = vmatprep.subr.bf16.mxu0 %v1456
    %1476 = vmatpush1.bf16.msra.mxu0 %v1455
    %1477 = vmatprep.subr.bf16.mxu0 %v1460
    %1478 = vmatpush1.bf16.msra.mxu0 %v1459
    %1479 = vmatprep.subr.bf16.mxu0 0
    %1480 = vmatpush1.bf16.msra.mxu0 0
    %1481 = vmatprep.subr.bf16.mxu0 0
    %1482 = vmatpush1.bf16.msra.mxu0 0
    %1483 = vmatprep.subr.bf16.mxu0 0
    %1484 = vmatpush1.bf16.msra.mxu0 0
    %1485 = vmatprep.subr.bf16.mxu0 0
    %1486 = vmatpush1.bf16.msra.mxu0 0
    %1487 = vmatprep.subr.bf16.mxu0 0
    %1488 = vmatpush1.bf16.msra.mxu0 0
    %1489 = vmatprep.subr.bf16.mxu0 0
    %1490 = vmatpush1.bf16.msra.mxu0 0
    %1491 = vmatprep.subr.bf16.mxu0 0
    %1492 = vmatpush1.bf16.msra.mxu0 0
    %1493 = vmatprep.subr.bf16.mxu0 0
    %1494 = vmatpush1.bf16.msra.mxu0 0
    %1495 = vmatprep.mubr.bf16.mxu0 0
    %1496 = vmatmul.mubr.bf16.gmra.mrb[0].mxu0 %v1430
    %v1497 = vpop.f32.mrb[0].mxu0
    %v1498 = vadd.f32 0.0, %v1497
    %v1499 = vpop.f32.mrb[0].mxu0
    %v1500 = vadd.f32 0.0, %v1499
    %v1501 = vpop.f32.mrb[0].mxu0
    %v1502 = vpop.f32.mrb[0].mxu0
    %1503 = vdwg.mxu0
    %1504 = vmatprep.subr.bf16.mxu0 %v1434
    %1505 = vmatpush1.bf16.msra.mxu0 %v1433
    %1506 = vmatprep.subr.bf16.mxu0 %v1438
    %1507 = vmatpush1.bf16.msra.mxu0 %v1437
    %1508 = vmatprep.subr.bf16.mxu0 %v1442
    %1509 = vmatpush1.bf16.msra.mxu0 %v1441
    %1510 = vmatprep.subr.bf16.mxu0 %v1446
    %1511 = vmatpush1.bf16.msra.mxu0 %v1445
    %1512 = vmatprep.subr.bf16.mxu0 %v1450
    %1513 = vmatpush1.bf16.msra.mxu0 %v1449
    %1514 = vmatprep.subr.bf16.mxu0 %v1454
    %1515 = vmatpush1.bf16.msra.mxu0 %v1453
    %1516 = vmatprep.subr.bf16.mxu0 %v1458
    %1517 = vmatpush1.bf16.msra.mxu0 %v1457
    %1518 = vmatprep.subr.bf16.mxu0 %v1462
    %1519 = vmatpush1.bf16.msra.mxu0 %v1461
    %1520 = vmatprep.subr.bf16.mxu0 0
    %1521 = vmatpush1.bf16.msra.mxu0 0
    %1522 = vmatprep.subr.bf16.mxu0 0
    %1523 = vmatpush1.bf16.msra.mxu0 0
    %1524 = vmatprep.subr.bf16.mxu0 0
    %1525 = vmatpush1.bf16.msra.mxu0 0
    %1526 = vmatprep.subr.bf16.mxu0 0
    %1527 = vmatpush1.bf16.msra.mxu0 0
    %1528 = vmatprep.subr.bf16.mxu0 0
    %1529 = vmatpush1.bf16.msra.mxu0 0
    %1530 = vmatprep.subr.bf16.mxu0 0
    %1531 = vmatpush1.bf16.msra.mxu0 0
    %1532 = vmatprep.subr.bf16.mxu0 0
    %1533 = vmatpush1.bf16.msra.mxu0 0
    %1534 = vmatprep.subr.bf16.mxu0 0
    %1535 = vmatpush1.bf16.msra.mxu0 0
    %1536 = vmatprep.mubr.bf16.mxu0 0
    %1537 = vmatmul.mubr.bf16.gmra.mrb[0].mxu0 %v1430
    %v1538 = vpop.f32.mrb[0].mxu0
    %v1539 = vadd.f32 0.0, %v1538
    %v1540 = vpop.f32.mrb[0].mxu0
    %v1541 = vadd.f32 0.0, %v1540
    %v1542 = vpop.f32.mrb[0].mxu0
    %v1543 = vpop.f32.mrb[0].mxu0
    %1544 = vdwg.mxu0
    %1545 = vmatprep.subr.bf16.mxu0 %v1399
    %1546 = vmatpush1.bf16.msra.mxu0 %v1398
    %1547 = vmatprep.subr.bf16.mxu0 %v1403
    %1548 = vmatpush1.bf16.msra.mxu0 %v1402
    %1549 = vmatprep.subr.bf16.mxu0 %v1407
    %1550 = vmatpush1.bf16.msra.mxu0 %v1406
    %1551 = vmatprep.subr.bf16.mxu0 %v1411
    %1552 = vmatpush1.bf16.msra.mxu0 %v1410
    %1553 = vmatprep.subr.bf16.mxu0 %v1415
    %1554 = vmatpush1.bf16.msra.mxu0 %v1414
    %1555 = vmatprep.subr.bf16.mxu0 %v1419
    %1556 = vmatpush1.bf16.msra.mxu0 %v1418
    %1557 = vmatprep.subr.bf16.mxu0 %v1423
    %1558 = vmatpush1.bf16.msra.mxu0 %v1422
    %1559 = vmatprep.subr.bf16.mxu0 %v1427
    %1560 = vmatpush1.bf16.msra.mxu0 %v1426
    %1561 = vmatprep.subr.bf16.mxu0 0
    %1562 = vmatpush1.bf16.msra.mxu0 0
    %1563 = vmatprep.subr.bf16.mxu0 0
    %1564 = vmatpush1.bf16.msra.mxu0 0
    %1565 = vmatprep.subr.bf16.mxu0 0
    %1566 = vmatpush1.bf16.msra.mxu0 0
    %1567 = vmatprep.subr.bf16.mxu0 0
    %1568 = vmatpush1.bf16.msra.mxu0 0
    %1569 = vmatprep.subr.bf16.mxu0 0
    %1570 = vmatpush1.bf16.msra.mxu0 0
    %1571 = vmatprep.subr.bf16.mxu0 0
    %1572 = vmatpush1.bf16.msra.mxu0 0
    %1573 = vmatprep.subr.bf16.mxu0 0
    %1574 = vmatpush1.bf16.msra.mxu0 0
    %1575 = vmatprep.subr.bf16.mxu0 0
    %1576 = vmatpush1.bf16.msra.mxu0 0
    %1577 = vmatprep.mubr.bf16.mxu0 0
    %1578 = vmatmul.mubr.bf16.gmra.mrb[0].mxu0 %v1270
    %v1579 = vpop.f32.mrb[0].mxu0
    %v1580 = vadd.f32 %v1498, %v1579
    %v1581 = vpop.f32.mrb[0].mxu0
    %v1582 = vadd.f32 %v1500, %v1581
    %v1583 = vpop.f32.mrb[0].mxu0
    %v1584 = vpop.f32.mrb[0].mxu0
    %1585 = vdwg.mxu0
    %1586 = vmatprep.subr.bf16.mxu0 %v1401
    %1587 = vmatpush1.bf16.msra.mxu0 %v1400
    %1588 = vmatprep.subr.bf16.mxu0 %v1405
    %1589 = vmatpush1.bf16.msra.mxu0 %v1404
    %1590 = vmatprep.subr.bf16.mxu0 %v1409
    %1591 = vmatpush1.bf16.msra.mxu0 %v1408
    %1592 = vmatprep.subr.bf16.mxu0 %v1413
    %1593 = vmatpush1.bf16.msra.mxu0 %v1412
    %1594 = vmatprep.subr.bf16.mxu0 %v1417
    %1595 = vmatpush1.bf16.msra.mxu0 %v1416
    %1596 = vmatprep.subr.bf16.mxu0 %v1421
    %1597 = vmatpush1.bf16.msra.mxu0 %v1420
    %1598 = vmatprep.subr.bf16.mxu0 %v1425
    %1599 = vmatpush1.bf16.msra.mxu0 %v1424
    %1600 = vmatprep.subr.bf16.mxu0 %v1429
    %1601 = vmatpush1.bf16.msra.mxu0 %v1428
    %1602 = vmatprep.subr.bf16.mxu0 0
    %1603 = vmatpush1.bf16.msra.mxu0 0
    %1604 = vmatprep.subr.bf16.mxu0 0
    %1605 = vmatpush1.bf16.msra.mxu0 0
    %1606 = vmatprep.subr.bf16.mxu0 0
    %1607 = vmatpush1.bf16.msra.mxu0 0
    %1608 = vmatprep.subr.bf16.mxu0 0
    %1609 = vmatpush1.bf16.msra.mxu0 0
    %1610 = vmatprep.subr.bf16.mxu0 0
    %1611 = vmatpush1.bf16.msra.mxu0 0
    %1612 = vmatprep.subr.bf16.mxu0 0
    %1613 = vmatpush1.bf16.msra.mxu0 0
    %1614 = vmatprep.subr.bf16.mxu0 0
    %1615 = vmatpush1.bf16.msra.mxu0 0
    %1616 = vmatprep.subr.bf16.mxu0 0
    %1617 = vmatpush1.bf16.msra.mxu0 0
    %1618 = vmatprep.mubr.bf16.mxu0 0
    %1619 = vmatmul.mubr.bf16.gmra.mrb[0].mxu0 %v1270
    %v1620 = vpop.f32.mrb[0].mxu0
    %v1621 = vadd.f32 %v1539, %v1620
    %v1622 = vpop.f32.mrb[0].mxu0
    %v1623 = vadd.f32 %v1541, %v1622
    %v1624 = vpop.f32.mrb[0].mxu0
    %v1625 = vpop.f32.mrb[0].mxu0
    %1626 = vdwg.mxu0
    %v1627 = vld [vmem:[%s1181] sm:$0xf]
    %v1629 = vlaneseq
    %v1630 = vshrl.u32 %v1629, 7
    %v1631 = vsub.s32 0, %v1630
    %v1632 = vrot.slane %v1627, %v1631
    %v1633 = vlaneseq
    %v1634 = vshrl.u32 %v1633, 7
    %v1635 = vsub.s32 1, %v1634
    %v1636 = vrot.slane %v1627, %v1635
    %v1637 = vlaneseq
    %v1638 = vshrl.u32 %v1637, 7
    %v1639 = vsub.s32 2, %v1638
    %v1640 = vrot.slane %v1627, %v1639
    %v1641 = vlaneseq
    %v1642 = vshrl.u32 %v1641, 7
    %v1643 = vsub.s32 3, %v1642
    %v1644 = vrot.slane %v1627, %v1643
    %v1649 = vadd.f32 %v1580, %v1632
    %v1650 = vadd.f32 %v1582, %v1636
    %v1651 = vadd.f32 %v1621, %v1640
    %v1652 = vadd.f32 %v1623, %v1644
    %v1653 = vxor.u32 %v1649, 2147483648
    %v1654 = vmul.f32 %v1653, 1.442695
    %v1655 = vpow.pop %v1654
    %v1656 = vadd.f32 %v1655, 1.0
    %v1657 = vrcp.pop %v1656
    %v1658 = vmul.f32 1.0, %v1657
    %v1659 = vxor.u32 %v1650, 2147483648
    %v1660 = vmul.f32 %v1659, 1.442695
    %v1661 = vpow.pop %v1660
    %v1662 = vadd.f32 %v1661, 1.0
    %v1663 = vrcp.pop %v1662
    %v1664 = vmul.f32 1.0, %v1663
    %v1665 = vtanh.pop %v1651
    %v1666 = vxor.u32 %v1652, 2147483648
    %v1667 = vmul.f32 %v1666, 1.442695
    %v1668 = vpow.pop %v1667
    %v1669 = vadd.f32 %v1668, 1.0
    %v1670 = vrcp.pop %v1669
    %v1671 = vmul.f32 1.0, %v1670
    %v1672 = vmul.f32 %v1664, %v1229
    %v1673 = vmul.f32 %v1658, %v1665
    %v1674 = vadd.f32 %v1672, %v1673
    %v1675 = vtanh.pop %v1674
    %v1676 = vmul.f32 %v1671, %v1675
    %v1677 = vld [vmem:[%s187] sm:$0xff]
    %v1678 = vld [vmem:[%s187 + $0x8] sm:$0xff]
    %v1679 = vld [vmem:[%s187 + $0x10] sm:$0xff]
    %v1680 = vld [vmem:[%s187 + $0x18] sm:$0xff]
    %v1681 = vld [vmem:[%s187 + $0x20] sm:$0xff]
    %v1682 = vld [vmem:[%s187 + $0x28] sm:$0xff]
    %v1683 = vld [vmem:[%s187 + $0x30] sm:$0xff]
    %v1684 = vld [vmem:[%s187 + $0x38] sm:$0xff]
    %v1685 = vld [vmem:[%s187 + $0x40] sm:$0xff]
    %v1686 = vld [vmem:[%s187 + $0x48] sm:$0xff]
    %v1687 = vld [vmem:[%s187 + $0x50] sm:$0xff]
    %v1688 = vld [vmem:[%s187 + $0x58] sm:$0xff]
    %v1689 = vld [vmem:[%s187 + $0x60] sm:$0xff]
    %v1690 = vld [vmem:[%s187 + $0x68] sm:$0xff]
    %v1691 = vld [vmem:[%s187 + $0x70] sm:$0xff]
    %v1692 = vld [vmem:[%s187 + $0x78] sm:$0xff]
    %v1693 = vld [vmem:[%s187 + $0x80] sm:$0xff]
    %v1694 = vld [vmem:[%s187 + $0x88] sm:$0xff]
    %v1695 = vld [vmem:[%s187 + $0x90] sm:$0xff]
    %v1696 = vld [vmem:[%s187 + $0x98] sm:$0xff]
    %v1697 = vld [vmem:[%s187 + $0xa0] sm:$0xff]
    %v1698 = vld [vmem:[%s187 + $0xa8] sm:$0xff]
    %v1699 = vld [vmem:[%s187 + $0xb0] sm:$0xff]
    %v1700 = vld [vmem:[%s187 + $0xb8] sm:$0xff]
    %v1701 = vld [vmem:[%s187 + $0xc0] sm:$0xff]
    %v1702 = vld [vmem:[%s187 + $0xc8] sm:$0xff]
    %v1703 = vld [vmem:[%s187 + $0xd0] sm:$0xff]
    %v1704 = vld [vmem:[%s187 + $0xd8] sm:$0xff]
    %v1705 = vld [vmem:[%s187 + $0xe0] sm:$0xff]
    %v1706 = vld [vmem:[%s187 + $0xe8] sm:$0xff]
    %v1707 = vld [vmem:[%s187 + $0xf0] sm:$0xff]
    %v1708 = vld [vmem:[%s187 + $0xf8] sm:$0xff]
    %v1709 = vld [vmem:[%s224] sm:$0xff]
    %v1710 = vld [vmem:[%s224 + $0x8] sm:$0xff]
    %v1711 = vld [vmem:[%s224 + $0x10] sm:$0xff]
    %v1712 = vld [vmem:[%s224 + $0x18] sm:$0xff]
    %v1713 = vld [vmem:[%s224 + $0x20] sm:$0xff]
    %v1714 = vld [vmem:[%s224 + $0x28] sm:$0xff]
    %v1715 = vld [vmem:[%s224 + $0x30] sm:$0xff]
    %v1716 = vld [vmem:[%s224 + $0x38] sm:$0xff]
    %v1717 = vld [vmem:[%s224 + $0x40] sm:$0xff]
    %v1718 = vld [vmem:[%s224 + $0x48] sm:$0xff]
    %v1719 = vld [vmem:[%s224 + $0x50] sm:$0xff]
    %v1720 = vld [vmem:[%s224 + $0x58] sm:$0xff]
    %v1721 = vld [vmem:[%s224 + $0x60] sm:$0xff]
    %v1722 = vld [vmem:[%s224 + $0x68] sm:$0xff]
    %v1723 = vld [vmem:[%s224 + $0x70] sm:$0xff]
    %v1724 = vld [vmem:[%s224 + $0x78] sm:$0xff]
    %v1725 = vld [vmem:[%s224 + $0x80] sm:$0xff]
    %v1726 = vld [vmem:[%s224 + $0x88] sm:$0xff]
    %v1727 = vld [vmem:[%s224 + $0x90] sm:$0xff]
    %v1728 = vld [vmem:[%s224 + $0x98] sm:$0xff]
    %v1729 = vld [vmem:[%s224 + $0xa0] sm:$0xff]
    %v1730 = vld [vmem:[%s224 + $0xa8] sm:$0xff]
    %v1731 = vld [vmem:[%s224 + $0xb0] sm:$0xff]
    %v1732 = vld [vmem:[%s224 + $0xb8] sm:$0xff]
    %v1733 = vld [vmem:[%s224 + $0xc0] sm:$0xff]
    %v1734 = vld [vmem:[%s224 + $0xc8] sm:$0xff]
    %v1735 = vld [vmem:[%s224 + $0xd0] sm:$0xff]
    %v1736 = vld [vmem:[%s224 + $0xd8] sm:$0xff]
    %v1737 = vld [vmem:[%s224 + $0xe0] sm:$0xff]
    %v1738 = vld [vmem:[%s224 + $0xe8] sm:$0xff]
    %v1739 = vld [vmem:[%s224 + $0xf0] sm:$0xff]
    %v1740 = vld [vmem:[%s224 + $0xf8] sm:$0xff]
    %1741 = vmatprep.subr.bf16.mxu0 %v1710
    %1742 = vmatpush1.bf16.msra.mxu0 %v1709
    %1743 = vmatprep.subr.bf16.mxu0 %v1714
    %1744 = vmatpush1.bf16.msra.mxu0 %v1713
    %1745 = vmatprep.subr.bf16.mxu0 %v1718
    %1746 = vmatpush1.bf16.msra.mxu0 %v1717
    %1747 = vmatprep.subr.bf16.mxu0 %v1722
    %1748 = vmatpush1.bf16.msra.mxu0 %v1721
    %1749 = vmatprep.subr.bf16.mxu0 %v1726
    %1750 = vmatpush1.bf16.msra.mxu0 %v1725
    %1751 = vmatprep.subr.bf16.mxu0 %v1730
    %1752 = vmatpush1.bf16.msra.mxu0 %v1729
    %1753 = vmatprep.subr.bf16.mxu0 %v1734
    %1754 = vmatpush1.bf16.msra.mxu0 %v1733
    %1755 = vmatprep.subr.bf16.mxu0 %v1738
    %1756 = vmatpush1.bf16.msra.mxu0 %v1737
    %1757 = vmatprep.subr.bf16.mxu0 0
    %1758 = vmatpush1.bf16.msra.mxu0 0
    %1759 = vmatprep.subr.bf16.mxu0 0
    %1760 = vmatpush1.bf16.msra.mxu0 0
    %1761 = vmatprep.subr.bf16.mxu0 0
    %1762 = vmatpush1.bf16.msra.mxu0 0
    %1763 = vmatprep.subr.bf16.mxu0 0
    %1764 = vmatpush1.bf16.msra.mxu0 0
    %1765 = vmatprep.subr.bf16.mxu0 0
    %1766 = vmatpush1.bf16.msra.mxu0 0
    %1767 = vmatprep.subr.bf16.mxu0 0
    %1768 = vmatpush1.bf16.msra.mxu0 0
    %1769 = vmatprep.subr.bf16.mxu0 0
    %1770 = vmatpush1.bf16.msra.mxu0 0
    %1771 = vmatprep.subr.bf16.mxu0 0
    %1772 = vmatpush1.bf16.msra.mxu0 0
    %1773 = vmatprep.mubr.bf16.mxu0 0
    %1774 = vmatmul.mubr.bf16.gmra.mrb[0].mxu0 0
    %v1775 = vpop.f32.mrb[0].mxu0
    %v1776 = vadd.f32 0.0, %v1775
    %v1777 = vpop.f32.mrb[0].mxu0
    %v1778 = vadd.f32 0.0, %v1777
    %v1779 = vpop.f32.mrb[0].mxu0
    %v1780 = vpop.f32.mrb[0].mxu0
    %1781 = vdwg.mxu0
    %1782 = vmatprep.subr.bf16.mxu0 %v1712
    %1783 = vmatpush1.bf16.msra.mxu0 %v1711
    %1784 = vmatprep.subr.bf16.mxu0 %v1716
    %1785 = vmatpush1.bf16.msra.mxu0 %v1715
    %1786 = vmatprep.subr.bf16.mxu0 %v1720
    %1787 = vmatpush1.bf16.msra.mxu0 %v1719
    %1788 = vmatprep.subr.bf16.mxu0 %v1724
    %1789 = vmatpush1.bf16.msra.mxu0 %v1723
    %1790 = vmatprep.subr.bf16.mxu0 %v1728
    %1791 = vmatpush1.bf16.msra.mxu0 %v1727
    %1792 = vmatprep.subr.bf16.mxu0 %v1732
    %1793 = vmatpush1.bf16.msra.mxu0 %v1731
    %1794 = vmatprep.subr.bf16.mxu0 %v1736
    %1795 = vmatpush1.bf16.msra.mxu0 %v1735
    %1796 = vmatprep.subr.bf16.mxu0 %v1740
    %1797 = vmatpush1.bf16.msra.mxu0 %v1739
    %1798 = vmatprep.subr.bf16.mxu0 0
    %1799 = vmatpush1.bf16.msra.mxu0 0
    %1800 = vmatprep.subr.bf16.mxu0 0
    %1801 = vmatpush1.bf16.msra.mxu0 0
    %1802 = vmatprep.subr.bf16.mxu0 0
    %1803 = vmatpush1.bf16.msra.mxu0 0
    %1804 = vmatprep.subr.bf16.mxu0 0
    %1805 = vmatpush1.bf16.msra.mxu0 0
    %1806 = vmatprep.subr.bf16.mxu0 0
    %1807 = vmatpush1.bf16.msra.mxu0 0
    %1808 = vmatprep.subr.bf16.mxu0 0
    %1809 = vmatpush1.bf16.msra.mxu0 0
    %1810 = vmatprep.subr.bf16.mxu0 0
    %1811 = vmatpush1.bf16.msra.mxu0 0
    %1812 = vmatprep.subr.bf16.mxu0 0
    %1813 = vmatpush1.bf16.msra.mxu0 0
    %1814 = vmatprep.mubr.bf16.mxu0 0
    %1815 = vmatmul.mubr.bf16.gmra.mrb[0].mxu0 0
    %v1816 = vpop.f32.mrb[0].mxu0
    %v1817 = vadd.f32 0.0, %v1816
    %v1818 = vpop.f32.mrb[0].mxu0
    %v1819 = vadd.f32 0.0, %v1818
    %v1820 = vpop.f32.mrb[0].mxu0
    %v1821 = vpop.f32.mrb[0].mxu0
    %1822 = vdwg.mxu0
    %1823 = vmatprep.subr.bf16.mxu0 %v1678
    %1824 = vmatpush1.bf16.msra.mxu0 %v1677
    %1825 = vmatprep.subr.bf16.mxu0 %v1682
    %1826 = vmatpush1.bf16.msra.mxu0 %v1681
    %1827 = vmatprep.subr.bf16.mxu0 %v1686
    %1828 = vmatpush1.bf16.msra.mxu0 %v1685
    %1829 = vmatprep.subr.bf16.mxu0 %v1690
    %1830 = vmatpush1.bf16.msra.mxu0 %v1689
    %1831 = vmatprep.subr.bf16.mxu0 %v1694
    %1832 = vmatpush1.bf16.msra.mxu0 %v1693
    %1833 = vmatprep.subr.bf16.mxu0 %v1698
    %1834 = vmatpush1.bf16.msra.mxu0 %v1697
    %1835 = vmatprep.subr.bf16.mxu0 %v1702
    %1836 = vmatpush1.bf16.msra.mxu0 %v1701
    %1837 = vmatprep.subr.bf16.mxu0 %v1706
    %1838 = vmatpush1.bf16.msra.mxu0 %v1705
    %1839 = vmatprep.subr.bf16.mxu0 0
    %1840 = vmatpush1.bf16.msra.mxu0 0
    %1841 = vmatprep.subr.bf16.mxu0 0
    %1842 = vmatpush1.bf16.msra.mxu0 0
    %1843 = vmatprep.subr.bf16.mxu0 0
    %1844 = vmatpush1.bf16.msra.mxu0 0
    %1845 = vmatprep.subr.bf16.mxu0 0
    %1846 = vmatpush1.bf16.msra.mxu0 0
    %1847 = vmatprep.subr.bf16.mxu0 0
    %1848 = vmatpush1.bf16.msra.mxu0 0
    %1849 = vmatprep.subr.bf16.mxu0 0
    %1850 = vmatpush1.bf16.msra.mxu0 0
    %1851 = vmatprep.subr.bf16.mxu0 0
    %1852 = vmatpush1.bf16.msra.mxu0 0
    %1853 = vmatprep.subr.bf16.mxu0 0
    %1854 = vmatpush1.bf16.msra.mxu0 0
    %1855 = vmatprep.mubr.bf16.mxu0 0
    %1856 = vmatmul.mubr.bf16.gmra.mrb[0].mxu0 %v1430
    %v1857 = vpop.f32.mrb[0].mxu0
    %v1858 = vadd.f32 %v1776, %v1857
    %v1859 = vpop.f32.mrb[0].mxu0
    %v1860 = vadd.f32 %v1778, %v1859
    %v1861 = vpop.f32.mrb[0].mxu0
    %v1862 = vpop.f32.mrb[0].mxu0
    %1863 = vdwg.mxu0
    %1864 = vmatprep.subr.bf16.mxu0 %v1680
    %1865 = vmatpush1.bf16.msra.mxu0 %v1679
    %1866 = vmatprep.subr.bf16.mxu0 %v1684
    %1867 = vmatpush1.bf16.msra.mxu0 %v1683
    %1868 = vmatprep.subr.bf16.mxu0 %v1688
    %1869 = vmatpush1.bf16.msra.mxu0 %v1687
    %1870 = vmatprep.subr.bf16.mxu0 %v1692
    %1871 = vmatpush1.bf16.msra.mxu0 %v1691
    %1872 = vmatprep.subr.bf16.mxu0 %v1696
    %1873 = vmatpush1.bf16.msra.mxu0 %v1695
    %1874 = vmatprep.subr.bf16.mxu0 %v1700
    %1875 = vmatpush1.bf16.msra.mxu0 %v1699
    %1876 = vmatprep.subr.bf16.mxu0 %v1704
    %1877 = vmatpush1.bf16.msra.mxu0 %v1703
    %1878 = vmatprep.subr.bf16.mxu0 %v1708
    %1879 = vmatpush1.bf16.msra.mxu0 %v1707
    %1880 = vmatprep.subr.bf16.mxu0 0
    %1881 = vmatpush1.bf16.msra.mxu0 0
    %1882 = vmatprep.subr.bf16.mxu0 0
    %1883 = vmatpush1.bf16.msra.mxu0 0
    %1884 = vmatprep.subr.bf16.mxu0 0
    %1885 = vmatpush1.bf16.msra.mxu0 0
    %1886 = vmatprep.subr.bf16.mxu0 0
    %1887 = vmatpush1.bf16.msra.mxu0 0
    %1888 = vmatprep.subr.bf16.mxu0 0
    %1889 = vmatpush1.bf16.msra.mxu0 0
    %1890 = vmatprep.subr.bf16.mxu0 0
    %1891 = vmatpush1.bf16.msra.mxu0 0
    %1892 = vmatprep.subr.bf16.mxu0 0
    %1893 = vmatpush1.bf16.msra.mxu0 0
    %1894 = vmatprep.subr.bf16.mxu0 0
    %1895 = vmatpush1.bf16.msra.mxu0 0
    %1896 = vmatprep.mubr.bf16.mxu0 0
    %1897 = vmatmul.mubr.bf16.gmra.mrb[0].mxu0 %v1430
    %v1898 = vpop.f32.mrb[0].mxu0
    %v1899 = vadd.f32 %v1817, %v1898
    %v1900 = vpop.f32.mrb[0].mxu0
    %v1901 = vadd.f32 %v1819, %v1900
    %v1902 = vpop.f32.mrb[0].mxu0
    %v1903 = vpop.f32.mrb[0].mxu0
    %1904 = vdwg.mxu0
    %s1905 = scalar_lea.vmem %s4, 8
    %v1906 = vld [vmem:[%s1905] sm:$0xf]
    %v1908 = vlaneseq
    %v1909 = vshrl.u32 %v1908, 7
    %v1910 = vsub.s32 0, %v1909
    %v1911 = vrot.slane %v1906, %v1910
    %v1912 = vlaneseq
    %v1913 = vshrl.u32 %v1912, 7
    %v1914 = vsub.s32 1, %v1913
    %v1915 = vrot.slane %v1906, %v1914
    %v1916 = vlaneseq
    %v1917 = vshrl.u32 %v1916, 7
    %v1918 = vsub.s32 2, %v1917
    %v1919 = vrot.slane %v1906, %v1918
    %v1920 = vlaneseq
    %v1921 = vshrl.u32 %v1920, 7
    %v1922 = vsub.s32 3, %v1921
    %v1923 = vrot.slane %v1906, %v1922
    %v1928 = vadd.f32 %v1858, %v1911
    %v1929 = vadd.f32 %v1860, %v1915
    %v1930 = vadd.f32 %v1899, %v1919
    %v1931 = vadd.f32 %v1901, %v1923
    %v1932 = vxor.u32 %v1928, 2147483648
    %v1933 = vmul.f32 %v1932, 1.442695
    %v1934 = vpow.pop %v1933
    %v1935 = vadd.f32 %v1934, 1.0
    %v1936 = vrcp.pop %v1935
    %v1937 = vmul.f32 1.0, %v1936
    %v1938 = vxor.u32 %v1929, 2147483648
    %v1939 = vmul.f32 %v1938, 1.442695
    %v1940 = vpow.pop %v1939
    %v1941 = vadd.f32 %v1940, 1.0
    %v1942 = vrcp.pop %v1941
    %v1943 = vmul.f32 1.0, %v1942
    %v1944 = vtanh.pop %v1930
    %v1945 = vxor.u32 %v1931, 2147483648
    %v1946 = vmul.f32 %v1945, 1.442695
    %v1947 = vpow.pop %v1946
    %v1948 = vadd.f32 %v1947, 1.0
    %v1949 = vrcp.pop %v1948
    %v1950 = vmul.f32 1.0, %v1949
    %v1951 = vmul.f32 %v1943, 0.0
    %v1952 = vmul.f32 %v1937, %v1944
    %v1953 = vadd.f32 %v1951, %v1952
    %v1954 = vtanh.pop %v1953
    %v1955 = vmul.f32 %v1950, %v1954
    %v1956 = vpack.c.bf16 %v1397, %v1397
    %v1958 = vrot.slane %v1956, 1
    %1960 = vmatprep.subr.bf16.mxu0 %v1238
    %1961 = vmatpush1.bf16.msra.mxu0 %v1237
    %1962 = vmatprep.subr.bf16.mxu0 %v1242
    %1963 = vmatpush1.bf16.msra.mxu0 %v1241
    %1964 = vmatprep.subr.bf16.mxu0 %v1246
    %1965 = vmatpush1.bf16.msra.mxu0 %v1245
    %1966 = vmatprep.subr.bf16.mxu0 %v1250
    %1967 = vmatpush1.bf16.msra.mxu0 %v1249
    %1968 = vmatprep.subr.bf16.mxu0 %v1254
    %1969 = vmatpush1.bf16.msra.mxu0 %v1253
    %1970 = vmatprep.subr.bf16.mxu0 %v1258
    %1971 = vmatpush1.bf16.msra.mxu0 %v1257
    %1972 = vmatprep.subr.bf16.mxu0 %v1262
    %1973 = vmatpush1.bf16.msra.mxu0 %v1261
    %1974 = vmatprep.subr.bf16.mxu0 %v1266
    %1975 = vmatpush1.bf16.msra.mxu0 %v1265
    %1976 = vmatprep.subr.bf16.mxu0 0
    %1977 = vmatpush1.bf16.msra.mxu0 0
    %1978 = vmatprep.subr.bf16.mxu0 0
    %1979 = vmatpush1.bf16.msra.mxu0 0
    %1980 = vmatprep.subr.bf16.mxu0 0
    %1981 = vmatpush1.bf16.msra.mxu0 0
    %1982 = vmatprep.subr.bf16.mxu0 0
    %1983 = vmatpush1.bf16.msra.mxu0 0
    %1984 = vmatprep.subr.bf16.mxu0 0
    %1985 = vmatpush1.bf16.msra.mxu0 0
    %1986 = vmatprep.subr.bf16.mxu0 0
    %1987 = vmatpush1.bf16.msra.mxu0 0
    %1988 = vmatprep.subr.bf16.mxu0 0
    %1989 = vmatpush1.bf16.msra.mxu0 0
    %1990 = vmatprep.subr.bf16.mxu0 0
    %1991 = vmatpush1.bf16.msra.mxu0 0
    %1992 = vmatprep.mubr.bf16.mxu0 0
    %1993 = vmatmul.mubr.bf16.gmra.mrb[0].mxu0 %v1958
    %v1994 = vpop.f32.mrb[0].mxu0
    %v1995 = vadd.f32 0.0, %v1994
    %v1996 = vpop.f32.mrb[0].mxu0
    %v1997 = vadd.f32 0.0, %v1996
    %v1998 = vpop.f32.mrb[0].mxu0
    %v1999 = vpop.f32.mrb[0].mxu0
    %2000 = vdwg.mxu0
    %2001 = vmatprep.subr.bf16.mxu0 %v1240
    %2002 = vmatpush1.bf16.msra.mxu0 %v1239
    %2003 = vmatprep.subr.bf16.mxu0 %v1244
    %2004 = vmatpush1.bf16.msra.mxu0 %v1243
    %2005 = vmatprep.subr.bf16.mxu0 %v1248
    %2006 = vmatpush1.bf16.msra.mxu0 %v1247
    %2007 = vmatprep.subr.bf16.mxu0 %v1252
    %2008 = vmatpush1.bf16.msra.mxu0 %v1251
    %2009 = vmatprep.subr.bf16.mxu0 %v1256
    %2010 = vmatpush1.bf16.msra.mxu0 %v1255
    %2011 = vmatprep.subr.bf16.mxu0 %v1260
    %2012 = vmatpush1.bf16.msra.mxu0 %v1259
    %2013 = vmatprep.subr.bf16.mxu0 %v1264
    %2014 = vmatpush1.bf16.msra.mxu0 %v1263
    %2015 = vmatprep.subr.bf16.mxu0 %v1268
    %2016 = vmatpush1.bf16.msra.mxu0 %v1267
    %2017 = vmatprep.subr.bf16.mxu0 0
    %2018 = vmatpush1.bf16.msra.mxu0 0
    %2019 = vmatprep.subr.bf16.mxu0 0
    %2020 = vmatpush1.bf16.msra.mxu0 0
    %2021 = vmatprep.subr.bf16.mxu0 0
    %2022 = vmatpush1.bf16.msra.mxu0 0
    %2023 = vmatprep.subr.bf16.mxu0 0
    %2024 = vmatpush1.bf16.msra.mxu0 0
    %2025 = vmatprep.subr.bf16.mxu0 0
    %2026 = vmatpush1.bf16.msra.mxu0 0
    %2027 = vmatprep.subr.bf16.mxu0 0
    %2028 = vmatpush1.bf16.msra.mxu0 0
    %2029 = vmatprep.subr.bf16.mxu0 0
    %2030 = vmatpush1.bf16.msra.mxu0 0
    %2031 = vmatprep.subr.bf16.mxu0 0
    %2032 = vmatpush1.bf16.msra.mxu0 0
    %2033 = vmatprep.mubr.bf16.mxu0 0
    %2034 = vmatmul.mubr.bf16.gmra.mrb[0].mxu0 %v1958
    %v2035 = vpop.f32.mrb[0].mxu0
    %v2036 = vadd.f32 0.0, %v2035
    %v2037 = vpop.f32.mrb[0].mxu0
    %v2038 = vadd.f32 0.0, %v2037
    %v2039 = vpop.f32.mrb[0].mxu0
    %v2040 = vpop.f32.mrb[0].mxu0
    %2041 = vdwg.mxu0
    %v2046 = vrot.slane %v1995, 5
    %v2047 = vrot.slane %v1997, 5
    %v2048 = vrot.slane %v2036, 5
    %v2049 = vrot.slane %v2038, 5
    %v2054 = vadd.f32 %v602, %v2046
    %v2055 = vadd.f32 %v604, %v2047
    %v2056 = vadd.f32 %v643, %v2048
    %v2057 = vadd.f32 %v645, %v2049
    %v2058 = vxor.u32 %v2054, 2147483648
    %v2059 = vmul.f32 %v2058, 1.442695
    %v2060 = vpow.pop %v2059
    %v2061 = vadd.f32 %v2060, 1.0
    %v2062 = vrcp.pop %v2061
    %v2063 = vmul.f32 1.0, %v2062
    %v2064 = vxor.u32 %v2055, 2147483648
    %v2065 = vmul.f32 %v2064, 1.442695
    %v2066 = vpow.pop %v2065
    %v2067 = vadd.f32 %v2066, 1.0
    %v2068 = vrcp.pop %v2067
    %v2069 = vmul.f32 1.0, %v2068
    %v2070 = vtanh.pop %v2056
    %v2071 = vxor.u32 %v2057, 2147483648
    %v2072 = vmul.f32 %v2071, 1.442695
    %v2073 = vpow.pop %v2072
    %v2074 = vadd.f32 %v2073, 1.0
    %v2075 = vrcp.pop %v2074
    %v2076 = vmul.f32 1.0, %v2075
    %v2078 = vrot.slane %v1395, 7
    %v2080 = vmul.f32 %v2069, %v2078
    %v2081 = vmul.f32 %v2063, %v2070
    %v2082 = vadd.f32 %v2080, %v2081
    %v2083 = vtanh.pop %v2082
    %v2084 = vmul.f32 %v2076, %v2083
    %v2085 = vpack.c.bf16 %v1676, %v1676
    %2086 = vmatprep.subr.bf16.mxu0 %v1432
    %2087 = vmatpush1.bf16.msra.mxu0 %v1431
    %2088 = vmatprep.subr.bf16.mxu0 %v1436
    %2089 = vmatpush1.bf16.msra.mxu0 %v1435
    %2090 = vmatprep.subr.bf16.mxu0 %v1440
    %2091 = vmatpush1.bf16.msra.mxu0 %v1439
    %2092 = vmatprep.subr.bf16.mxu0 %v1444
    %2093 = vmatpush1.bf16.msra.mxu0 %v1443
    %2094 = vmatprep.subr.bf16.mxu0 %v1448
    %2095 = vmatpush1.bf16.msra.mxu0 %v1447
    %2096 = vmatprep.subr.bf16.mxu0 %v1452
    %2097 = vmatpush1.bf16.msra.mxu0 %v1451
    %2098 = vmatprep.subr.bf16.mxu0 %v1456
    %2099 = vmatpush1.bf16.msra.mxu0 %v1455
    %2100 = vmatprep.subr.bf16.mxu0 %v1460
    %2101 = vmatpush1.bf16.msra.mxu0 %v1459
    %2102 = vmatprep.subr.bf16.mxu0 0
    %2103 = vmatpush1.bf16.msra.mxu0 0
    %2104 = vmatprep.subr.bf16.mxu0 0
    %2105 = vmatpush1.bf16.msra.mxu0 0
    %2106 = vmatprep.subr.bf16.mxu0 0
    %2107 = vmatpush1.bf16.msra.mxu0 0
    %2108 = vmatprep.subr.bf16.mxu0 0
    %2109 = vmatpush1.bf16.msra.mxu0 0
    %2110 = vmatprep.subr.bf16.mxu0 0
    %2111 = vmatpush1.bf16.msra.mxu0 0
    %2112 = vmatprep.subr.bf16.mxu0 0
    %2113 = vmatpush1.bf16.msra.mxu0 0
    %2114 = vmatprep.subr.bf16.mxu0 0
    %2115 = vmatpush1.bf16.msra.mxu0 0
    %2116 = vmatprep.subr.bf16.mxu0 0
    %2117 = vmatpush1.bf16.msra.mxu0 0
    %2118 = vmatprep.mubr.bf16.mxu0 0
    %2119 = vmatmul.mubr.bf16.gmra.mrb[0].mxu0 %v2085
    %v2120 = vpop.f32.mrb[0].mxu0
    %v2121 = vadd.f32 0.0, %v2120
    %v2122 = vpop.f32.mrb[0].mxu0
    %v2123 = vadd.f32 0.0, %v2122
    %v2124 = vpop.f32.mrb[0].mxu0
    %v2125 = vpop.f32.mrb[0].mxu0
    %2126 = vdwg.mxu0
    %2127 = vmatprep.subr.bf16.mxu0 %v1434
    %2128 = vmatpush1.bf16.msra.mxu0 %v1433
    %2129 = vmatprep.subr.bf16.mxu0 %v1438
    %2130 = vmatpush1.bf16.msra.mxu0 %v1437
    %2131 = vmatprep.subr.bf16.mxu0 %v1442
    %2132 = vmatpush1.bf16.msra.mxu0 %v1441
    %2133 = vmatprep.subr.bf16.mxu0 %v1446
    %2134 = vmatpush1.bf16.msra.mxu0 %v1445
    %2135 = vmatprep.subr.bf16.mxu0 %v1450
    %2136 = vmatpush1.bf16.msra.mxu0 %v1449
    %2137 = vmatprep.subr.bf16.mxu0 %v1454
    %2138 = vmatpush1.bf16.msra.mxu0 %v1453
    %2139 = vmatprep.subr.bf16.mxu0 %v1458
    %2140 = vmatpush1.bf16.msra.mxu0 %v1457
    %2141 = vmatprep.subr.bf16.mxu0 %v1462
    %2142 = vmatpush1.bf16.msra.mxu0 %v1461
    %2143 = vmatprep.subr.bf16.mxu0 0
    %2144 = vmatpush1.bf16.msra.mxu0 0
    %2145 = vmatprep.subr.bf16.mxu0 0
    %2146 = vmatpush1.bf16.msra.mxu0 0
    %2147 = vmatprep.subr.bf16.mxu0 0
    %2148 = vmatpush1.bf16.msra.mxu0 0
    %2149 = vmatprep.subr.bf16.mxu0 0
    %2150 = vmatpush1.bf16.msra.mxu0 0
    %2151 = vmatprep.subr.bf16.mxu0 0
    %2152 = vmatpush1.bf16.msra.mxu0 0
    %2153 = vmatprep.subr.bf16.mxu0 0
    %2154 = vmatpush1.bf16.msra.mxu0 0
    %2155 = vmatprep.subr.bf16.mxu0 0
    %2156 = vmatpush1.bf16.msra.mxu0 0
    %2157 = vmatprep.subr.bf16.mxu0 0
    %2158 = vmatpush1.bf16.msra.mxu0 0
    %2159 = vmatprep.mubr.bf16.mxu0 0
    %2160 = vmatmul.mubr.bf16.gmra.mrb[0].mxu0 %v2085
    %v2161 = vpop.f32.mrb[0].mxu0
    %v2162 = vadd.f32 0.0, %v2161
    %v2163 = vpop.f32.mrb[0].mxu0
    %v2164 = vadd.f32 0.0, %v2163
    %v2165 = vpop.f32.mrb[0].mxu0
    %v2166 = vpop.f32.mrb[0].mxu0
    %2167 = vdwg.mxu0
    %2168 = vmatprep.subr.bf16.mxu0 %v1399
    %2169 = vmatpush1.bf16.msra.mxu0 %v1398
    %2170 = vmatprep.subr.bf16.mxu0 %v1403
    %2171 = vmatpush1.bf16.msra.mxu0 %v1402
    %2172 = vmatprep.subr.bf16.mxu0 %v1407
    %2173 = vmatpush1.bf16.msra.mxu0 %v1406
    %2174 = vmatprep.subr.bf16.mxu0 %v1411
    %2175 = vmatpush1.bf16.msra.mxu0 %v1410
    %2176 = vmatprep.subr.bf16.mxu0 %v1415
    %2177 = vmatpush1.bf16.msra.mxu0 %v1414
    %2178 = vmatprep.subr.bf16.mxu0 %v1419
    %2179 = vmatpush1.bf16.msra.mxu0 %v1418
    %2180 = vmatprep.subr.bf16.mxu0 %v1423
    %2181 = vmatpush1.bf16.msra.mxu0 %v1422
    %2182 = vmatprep.subr.bf16.mxu0 %v1427
    %2183 = vmatpush1.bf16.msra.mxu0 %v1426
    %2184 = vmatprep.subr.bf16.mxu0 0
    %2185 = vmatpush1.bf16.msra.mxu0 0
    %2186 = vmatprep.subr.bf16.mxu0 0
    %2187 = vmatpush1.bf16.msra.mxu0 0
    %2188 = vmatprep.subr.bf16.mxu0 0
    %2189 = vmatpush1.bf16.msra.mxu0 0
    %2190 = vmatprep.subr.bf16.mxu0 0
    %2191 = vmatpush1.bf16.msra.mxu0 0
    %2192 = vmatprep.subr.bf16.mxu0 0
    %2193 = vmatpush1.bf16.msra.mxu0 0
    %2194 = vmatprep.subr.bf16.mxu0 0
    %2195 = vmatpush1.bf16.msra.mxu0 0
    %2196 = vmatprep.subr.bf16.mxu0 0
    %2197 = vmatpush1.bf16.msra.mxu0 0
    %2198 = vmatprep.subr.bf16.mxu0 0
    %2199 = vmatpush1.bf16.msra.mxu0 0
    %2200 = vmatprep.mubr.bf16.mxu0 0
    %2201 = vmatmul.mubr.bf16.gmra.mrb[0].mxu0 %v1958
    %v2202 = vpop.f32.mrb[0].mxu0
    %v2203 = vadd.f32 %v2121, %v2202
    %v2204 = vpop.f32.mrb[0].mxu0
    %v2205 = vadd.f32 %v2123, %v2204
    %v2206 = vpop.f32.mrb[0].mxu0
    %v2207 = vpop.f32.mrb[0].mxu0
    %2208 = vdwg.mxu0
    %2209 = vmatprep.subr.bf16.mxu0 %v1401
    %2210 = vmatpush1.bf16.msra.mxu0 %v1400
    %2211 = vmatprep.subr.bf16.mxu0 %v1405
    %2212 = vmatpush1.bf16.msra.mxu0 %v1404
    %2213 = vmatprep.subr.bf16.mxu0 %v1409
    %2214 = vmatpush1.bf16.msra.mxu0 %v1408
    %2215 = vmatprep.subr.bf16.mxu0 %v1413
    %2216 = vmatpush1.bf16.msra.mxu0 %v1412
    %2217 = vmatprep.subr.bf16.mxu0 %v1417
    %2218 = vmatpush1.bf16.msra.mxu0 %v1416
    %2219 = vmatprep.subr.bf16.mxu0 %v1421
    %2220 = vmatpush1.bf16.msra.mxu0 %v1420
    %2221 = vmatprep.subr.bf16.mxu0 %v1425
    %2222 = vmatpush1.bf16.msra.mxu0 %v1424
    %2223 = vmatprep.subr.bf16.mxu0 %v1429
    %2224 = vmatpush1.bf16.msra.mxu0 %v1428
    %2225 = vmatprep.subr.bf16.mxu0 0
    %2226 = vmatpush1.bf16.msra.mxu0 0
    %2227 = vmatprep.subr.bf16.mxu0 0
    %2228 = vmatpush1.bf16.msra.mxu0 0
    %2229 = vmatprep.subr.bf16.mxu0 0
    %2230 = vmatpush1.bf16.msra.mxu0 0
    %2231 = vmatprep.subr.bf16.mxu0 0
    %2232 = vmatpush1.bf16.msra.mxu0 0
    %2233 = vmatprep.subr.bf16.mxu0 0
    %2234 = vmatpush1.bf16.msra.mxu0 0
    %2235 = vmatprep.subr.bf16.mxu0 0
    %2236 = vmatpush1.bf16.msra.mxu0 0
    %2237 = vmatprep.subr.bf16.mxu0 0
    %2238 = vmatpush1.bf16.msra.mxu0 0
    %2239 = vmatprep.subr.bf16.mxu0 0
    %2240 = vmatpush1.bf16.msra.mxu0 0
    %2241 = vmatprep.mubr.bf16.mxu0 0
    %2242 = vmatmul.mubr.bf16.gmra.mrb[0].mxu0 %v1958
    %v2243 = vpop.f32.mrb[0].mxu0
    %v2244 = vadd.f32 %v2162, %v2243
    %v2245 = vpop.f32.mrb[0].mxu0
    %v2246 = vadd.f32 %v2164, %v2245
    %v2247 = vpop.f32.mrb[0].mxu0
    %v2248 = vpop.f32.mrb[0].mxu0
    %2249 = vdwg.mxu0
    %v2250 = vadd.f32 %v2203, %v1632
    %v2251 = vadd.f32 %v2205, %v1636
    %v2252 = vadd.f32 %v2244, %v1640
    %v2253 = vadd.f32 %v2246, %v1644
    %v2254 = vxor.u32 %v2250, 2147483648
    %v2255 = vmul.f32 %v2254, 1.442695
    %v2256 = vpow.pop %v2255
    %v2257 = vadd.f32 %v2256, 1.0
    %v2258 = vrcp.pop %v2257
    %v2259 = vmul.f32 1.0, %v2258
    %v2260 = vxor.u32 %v2251, 2147483648
    %v2261 = vmul.f32 %v2260, 1.442695
    %v2262 = vpow.pop %v2261
    %v2263 = vadd.f32 %v2262, 1.0
    %v2264 = vrcp.pop %v2263
    %v2265 = vmul.f32 1.0, %v2264
    %v2266 = vtanh.pop %v2252
    %v2267 = vxor.u32 %v2253, 2147483648
    %v2268 = vmul.f32 %v2267, 1.442695
    %v2269 = vpow.pop %v2268
    %v2270 = vadd.f32 %v2269, 1.0
    %v2271 = vrcp.pop %v2270
    %v2272 = vmul.f32 1.0, %v2271
    %v2273 = vmul.f32 %v2265, %v1674
    %v2274 = vmul.f32 %v2259, %v2266
    %v2275 = vadd.f32 %v2273, %v2274
    %v2276 = vtanh.pop %v2275
    %v2277 = vmul.f32 %v2272, %v2276
    %v2278 = vpack.c.bf16 %v1955, %v1955
    %2279 = vmatprep.subr.bf16.mxu0 %v1710
    %2280 = vmatpush1.bf16.msra.mxu0 %v1709
    %2281 = vmatprep.subr.bf16.mxu0 %v1714
    %2282 = vmatpush1.bf16.msra.mxu0 %v1713
    %2283 = vmatprep.subr.bf16.mxu0 %v1718
    %2284 = vmatpush1.bf16.msra.mxu0 %v1717
    %2285 = vmatprep.subr.bf16.mxu0 %v1722
    %2286 = vmatpush1.bf16.msra.mxu0 %v1721
    %2287 = vmatprep.subr.bf16.mxu0 %v1726
    %2288 = vmatpush1.bf16.msra.mxu0 %v1725
    %2289 = vmatprep.subr.bf16.mxu0 %v1730
    %2290 = vmatpush1.bf16.msra.mxu0 %v1729
    %2291 = vmatprep.subr.bf16.mxu0 %v1734
    %2292 = vmatpush1.bf16.msra.mxu0 %v1733
    %2293 = vmatprep.subr.bf16.mxu0 %v1738
    %2294 = vmatpush1.bf16.msra.mxu0 %v1737
    %2295 = vmatprep.subr.bf16.mxu0 0
    %2296 = vmatpush1.bf16.msra.mxu0 0
    %2297 = vmatprep.subr.bf16.mxu0 0
    %2298 = vmatpush1.bf16.msra.mxu0 0
    %2299 = vmatprep.subr.bf16.mxu0 0
    %2300 = vmatpush1.bf16.msra.mxu0 0
    %2301 = vmatprep.subr.bf16.mxu0 0
    %2302 = vmatpush1.bf16.msra.mxu0 0
    %2303 = vmatprep.subr.bf16.mxu0 0
    %2304 = vmatpush1.bf16.msra.mxu0 0
    %2305 = vmatprep.subr.bf16.mxu0 0
    %2306 = vmatpush1.bf16.msra.mxu0 0
    %2307 = vmatprep.subr.bf16.mxu0 0
    %2308 = vmatpush1.bf16.msra.mxu0 0
    %2309 = vmatprep.subr.bf16.mxu0 0
    %2310 = vmatpush1.bf16.msra.mxu0 0
    %2311 = vmatprep.mubr.bf16.mxu0 0
    %2312 = vmatmul.mubr.bf16.gmra.mrb[0].mxu0 %v2278
    %v2313 = vpop.f32.mrb[0].mxu0
    %v2314 = vadd.f32 0.0, %v2313
    %v2315 = vpop.f32.mrb[0].mxu0
    %v2316 = vadd.f32 0.0, %v2315
    %v2317 = vpop.f32.mrb[0].mxu0
    %v2318 = vpop.f32.mrb[0].mxu0
    %2319 = vdwg.mxu0
    %2320 = vmatprep.subr.bf16.mxu0 %v1712
    %2321 = vmatpush1.bf16.msra.mxu0 %v1711
    %2322 = vmatprep.subr.bf16.mxu0 %v1716
    %2323 = vmatpush1.bf16.msra.mxu0 %v1715
    %2324 = vmatprep.subr.bf16.mxu0 %v1720
    %2325 = vmatpush1.bf16.msra.mxu0 %v1719
    %2326 = vmatprep.subr.bf16.mxu0 %v1724
    %2327 = vmatpush1.bf16.msra.mxu0 %v1723
    %2328 = vmatprep.subr.bf16.mxu0 %v1728
    %2329 = vmatpush1.bf16.msra.mxu0 %v1727
    %2330 = vmatprep.subr.bf16.mxu0 %v1732
    %2331 = vmatpush1.bf16.msra.mxu0 %v1731
    %2332 = vmatprep.subr.bf16.mxu0 %v1736
    %2333 = vmatpush1.bf16.msra.mxu0 %v1735
    %2334 = vmatprep.subr.bf16.mxu0 %v1740
    %2335 = vmatpush1.bf16.msra.mxu0 %v1739
    %2336 = vmatprep.subr.bf16.mxu0 0
    %2337 = vmatpush1.bf16.msra.mxu0 0
    %2338 = vmatprep.subr.bf16.mxu0 0
    %2339 = vmatpush1.bf16.msra.mxu0 0
    %2340 = vmatprep.subr.bf16.mxu0 0
    %2341 = vmatpush1.bf16.msra.mxu0 0
    %2342 = vmatprep.subr.bf16.mxu0 0
    %2343 = vmatpush1.bf16.msra.mxu0 0
    %2344 = vmatprep.subr.bf16.mxu0 0
    %2345 = vmatpush1.bf16.msra.mxu0 0
    %2346 = vmatprep.subr.bf16.mxu0 0
    %2347 = vmatpush1.bf16.msra.mxu0 0
    %2348 = vmatprep.subr.bf16.mxu0 0
    %2349 = vmatpush1.bf16.msra.mxu0 0
    %2350 = vmatprep.subr.bf16.mxu0 0
    %2351 = vmatpush1.bf16.msra.mxu0 0
    %2352 = vmatprep.mubr.bf16.mxu0 0
    %2353 = vmatmul.mubr.bf16.gmra.mrb[0].mxu0 %v2278
    %v2354 = vpop.f32.mrb[0].mxu0
    %v2355 = vadd.f32 0.0, %v2354
    %v2356 = vpop.f32.mrb[0].mxu0
    %v2357 = vadd.f32 0.0, %v2356
    %v2358 = vpop.f32.mrb[0].mxu0
    %v2359 = vpop.f32.mrb[0].mxu0
    %2360 = vdwg.mxu0
    %2361 = vmatprep.subr.bf16.mxu0 %v1678
    %2362 = vmatpush1.bf16.msra.mxu0 %v1677
    %2363 = vmatprep.subr.bf16.mxu0 %v1682
    %2364 = vmatpush1.bf16.msra.mxu0 %v1681
    %2365 = vmatprep.subr.bf16.mxu0 %v1686
    %2366 = vmatpush1.bf16.msra.mxu0 %v1685
    %2367 = vmatprep.subr.bf16.mxu0 %v1690
    %2368 = vmatpush1.bf16.msra.mxu0 %v1689
    %2369 = vmatprep.subr.bf16.mxu0 %v1694
    %2370 = vmatpush1.bf16.msra.mxu0 %v1693
    %2371 = vmatprep.subr.bf16.mxu0 %v1698
    %2372 = vmatpush1.bf16.msra.mxu0 %v1697
    %2373 = vmatprep.subr.bf16.mxu0 %v1702
    %2374 = vmatpush1.bf16.msra.mxu0 %v1701
    %2375 = vmatprep.subr.bf16.mxu0 %v1706
    %2376 = vmatpush1.bf16.msra.mxu0 %v1705
    %2377 = vmatprep.subr.bf16.mxu0 0
    %2378 = vmatpush1.bf16.msra.mxu0 0
    %2379 = vmatprep.subr.bf16.mxu0 0
    %2380 = vmatpush1.bf16.msra.mxu0 0
    %2381 = vmatprep.subr.bf16.mxu0 0
    %2382 = vmatpush1.bf16.msra.mxu0 0
    %2383 = vmatprep.subr.bf16.mxu0 0
    %2384 = vmatpush1.bf16.msra.mxu0 0
    %2385 = vmatprep.subr.bf16.mxu0 0
    %2386 = vmatpush1.bf16.msra.mxu0 0
    %2387 = vmatprep.subr.bf16.mxu0 0
    %2388 = vmatpush1.bf16.msra.mxu0 0
    %2389 = vmatprep.subr.bf16.mxu0 0
    %2390 = vmatpush1.bf16.msra.mxu0 0
    %2391 = vmatprep.subr.bf16.mxu0 0
    %2392 = vmatpush1.bf16.msra.mxu0 0
    %2393 = vmatprep.mubr.bf16.mxu0 0
    %2394 = vmatmul.mubr.bf16.gmra.mrb[0].mxu0 %v2085
    %v2395 = vpop.f32.mrb[0].mxu0
    %v2396 = vadd.f32 %v2314, %v2395
    %v2397 = vpop.f32.mrb[0].mxu0
    %v2398 = vadd.f32 %v2316, %v2397
    %v2399 = vpop.f32.mrb[0].mxu0
    %v2400 = vpop.f32.mrb[0].mxu0
    %2401 = vdwg.mxu0
    %2402 = vmatprep.subr.bf16.mxu0 %v1680
    %2403 = vmatpush1.bf16.msra.mxu0 %v1679
    %2404 = vmatprep.subr.bf16.mxu0 %v1684
    %2405 = vmatpush1.bf16.msra.mxu0 %v1683
    %2406 = vmatprep.subr.bf16.mxu0 %v1688
    %2407 = vmatpush1.bf16.msra.mxu0 %v1687
    %2408 = vmatprep.subr.bf16.mxu0 %v1692
    %2409 = vmatpush1.bf16.msra.mxu0 %v1691
    %2410 = vmatprep.subr.bf16.mxu0 %v1696
    %2411 = vmatpush1.bf16.msra.mxu0 %v1695
    %2412 = vmatprep.subr.bf16.mxu0 %v1700
    %2413 = vmatpush1.bf16.msra.mxu0 %v1699
    %2414 = vmatprep.subr.bf16.mxu0 %v1704
    %2415 = vmatpush1.bf16.msra.mxu0 %v1703
    %2416 = vmatprep.subr.bf16.mxu0 %v1708
    %2417 = vmatpush1.bf16.msra.mxu0 %v1707
    %2418 = vmatprep.subr.bf16.mxu0 0
    %2419 = vmatpush1.bf16.msra.mxu0 0
    %2420 = vmatprep.subr.bf16.mxu0 0
    %2421 = vmatpush1.bf16.msra.mxu0 0
    %2422 = vmatprep.subr.bf16.mxu0 0
    %2423 = vmatpush1.bf16.msra.mxu0 0
    %2424 = vmatprep.subr.bf16.mxu0 0
    %2425 = vmatpush1.bf16.msra.mxu0 0
    %2426 = vmatprep.subr.bf16.mxu0 0
    %2427 = vmatpush1.bf16.msra.mxu0 0
    %2428 = vmatprep.subr.bf16.mxu0 0
    %2429 = vmatpush1.bf16.msra.mxu0 0
    %2430 = vmatprep.subr.bf16.mxu0 0
    %2431 = vmatpush1.bf16.msra.mxu0 0
    %2432 = vmatprep.subr.bf16.mxu0 0
    %2433 = vmatpush1.bf16.msra.mxu0 0
    %2434 = vmatprep.mubr.bf16.mxu0 0
    %2435 = vmatmul.mubr.bf16.gmra.mrb[0].mxu0 %v2085
    %v2436 = vpop.f32.mrb[0].mxu0
    %v2437 = vadd.f32 %v2355, %v2436
    %v2438 = vpop.f32.mrb[0].mxu0
    %v2439 = vadd.f32 %v2357, %v2438
    %v2440 = vpop.f32.mrb[0].mxu0
    %v2441 = vpop.f32.mrb[0].mxu0
    %2442 = vdwg.mxu0
    %v2443 = vadd.f32 %v2396, %v1911
    %v2444 = vadd.f32 %v2398, %v1915
    %v2445 = vadd.f32 %v2437, %v1919
    %v2446 = vadd.f32 %v2439, %v1923
    %v2447 = vxor.u32 %v2443, 2147483648
    %v2448 = vmul.f32 %v2447, 1.442695
    %v2449 = vpow.pop %v2448
    %v2450 = vadd.f32 %v2449, 1.0
    %v2451 = vrcp.pop %v2450
    %v2452 = vmul.f32 1.0, %v2451
    %v2453 = vxor.u32 %v2444, 2147483648
    %v2454 = vmul.f32 %v2453, 1.442695
    %v2455 = vpow.pop %v2454
    %v2456 = vadd.f32 %v2455, 1.0
    %v2457 = vrcp.pop %v2456
    %v2458 = vmul.f32 1.0, %v2457
    %v2459 = vtanh.pop %v2445
    %v2460 = vxor.u32 %v2446, 2147483648
    %v2461 = vmul.f32 %v2460, 1.442695
    %v2462 = vpow.pop %v2461
    %v2463 = vadd.f32 %v2462, 1.0
    %v2464 = vrcp.pop %v2463
    %v2465 = vmul.f32 1.0, %v2464
    %v2466 = vmul.f32 %v2458, %v1953
    %v2467 = vmul.f32 %v2452, %v2459
    %v2468 = vadd.f32 %v2466, %v2467
    %v2469 = vtanh.pop %v2468
    %v2470 = vmul.f32 %v2465, %v2469
    %v2471 = vpack.c.bf16 %v2084, %v2084
    %v2473 = vshrl.u32 %v2471, 16
    %v2475 = vrot.slane %v2473, 1
    %2477 = vmatprep.subr.bf16.mxu0 %v1238
    %2478 = vmatpush1.bf16.msra.mxu0 %v1237
    %2479 = vmatprep.subr.bf16.mxu0 %v1242
    %2480 = vmatpush1.bf16.msra.mxu0 %v1241
    %2481 = vmatprep.subr.bf16.mxu0 %v1246
    %2482 = vmatpush1.bf16.msra.mxu0 %v1245
    %2483 = vmatprep.subr.bf16.mxu0 %v1250
    %2484 = vmatpush1.bf16.msra.mxu0 %v1249
    %2485 = vmatprep.subr.bf16.mxu0 %v1254
    %2486 = vmatpush1.bf16.msra.mxu0 %v1253
    %2487 = vmatprep.subr.bf16.mxu0 %v1258
    %2488 = vmatpush1.bf16.msra.mxu0 %v1257
    %2489 = vmatprep.subr.bf16.mxu0 %v1262
    %2490 = vmatpush1.bf16.msra.mxu0 %v1261
    %2491 = vmatprep.subr.bf16.mxu0 %v1266
    %2492 = vmatpush1.bf16.msra.mxu0 %v1265
    %2493 = vmatprep.subr.bf16.mxu0 0
    %2494 = vmatpush1.bf16.msra.mxu0 0
    %2495 = vmatprep.subr.bf16.mxu0 0
    %2496 = vmatpush1.bf16.msra.mxu0 0
    %2497 = vmatprep.subr.bf16.mxu0 0
    %2498 = vmatpush1.bf16.msra.mxu0 0
    %2499 = vmatprep.subr.bf16.mxu0 0
    %2500 = vmatpush1.bf16.msra.mxu0 0
    %2501 = vmatprep.subr.bf16.mxu0 0
    %2502 = vmatpush1.bf16.msra.mxu0 0
    %2503 = vmatprep.subr.bf16.mxu0 0
    %2504 = vmatpush1.bf16.msra.mxu0 0
    %2505 = vmatprep.subr.bf16.mxu0 0
    %2506 = vmatpush1.bf16.msra.mxu0 0
    %2507 = vmatprep.subr.bf16.mxu0 0
    %2508 = vmatpush1.bf16.msra.mxu0 0
    %2509 = vmatprep.mubr.bf16.mxu0 0
    %2510 = vmatmul.mubr.bf16.gmra.mrb[0].mxu0 %v2475
    %v2511 = vpop.f32.mrb[0].mxu0
    %v2512 = vadd.f32 0.0, %v2511
    %v2513 = vpop.f32.mrb[0].mxu0
    %v2514 = vadd.f32 0.0, %v2513
    %v2515 = vpop.f32.mrb[0].mxu0
    %v2516 = vpop.f32.mrb[0].mxu0
    %2517 = vdwg.mxu0
    %2518 = vmatprep.subr.bf16.mxu0 %v1240
    %2519 = vmatpush1.bf16.msra.mxu0 %v1239
    %2520 = vmatprep.subr.bf16.mxu0 %v1244
    %2521 = vmatpush1.bf16.msra.mxu0 %v1243
    %2522 = vmatprep.subr.bf16.mxu0 %v1248
    %2523 = vmatpush1.bf16.msra.mxu0 %v1247
    %2524 = vmatprep.subr.bf16.mxu0 %v1252
    %2525 = vmatpush1.bf16.msra.mxu0 %v1251
    %2526 = vmatprep.subr.bf16.mxu0 %v1256
    %2527 = vmatpush1.bf16.msra.mxu0 %v1255
    %2528 = vmatprep.subr.bf16.mxu0 %v1260
    %2529 = vmatpush1.bf16.msra.mxu0 %v1259
    %2530 = vmatprep.subr.bf16.mxu0 %v1264
    %2531 = vmatpush1.bf16.msra.mxu0 %v1263
    %2532 = vmatprep.subr.bf16.mxu0 %v1268
    %2533 = vmatpush1.bf16.msra.mxu0 %v1267
    %2534 = vmatprep.subr.bf16.mxu0 0
    %2535 = vmatpush1.bf16.msra.mxu0 0
    %2536 = vmatprep.subr.bf16.mxu0 0
    %2537 = vmatpush1.bf16.msra.mxu0 0
    %2538 = vmatprep.subr.bf16.mxu0 0
    %2539 = vmatpush1.bf16.msra.mxu0 0
    %2540 = vmatprep.subr.bf16.mxu0 0
    %2541 = vmatpush1.bf16.msra.mxu0 0
    %2542 = vmatprep.subr.bf16.mxu0 0
    %2543 = vmatpush1.bf16.msra.mxu0 0
    %2544 = vmatprep.subr.bf16.mxu0 0
    %2545 = vmatpush1.bf16.msra.mxu0 0
    %2546 = vmatprep.subr.bf16.mxu0 0
    %2547 = vmatpush1.bf16.msra.mxu0 0
    %2548 = vmatprep.subr.bf16.mxu0 0
    %2549 = vmatpush1.bf16.msra.mxu0 0
    %2550 = vmatprep.mubr.bf16.mxu0 0
    %2551 = vmatmul.mubr.bf16.gmra.mrb[0].mxu0 %v2475
    %v2552 = vpop.f32.mrb[0].mxu0
    %v2553 = vadd.f32 0.0, %v2552
    %v2554 = vpop.f32.mrb[0].mxu0
    %v2555 = vadd.f32 0.0, %v2554
    %v2556 = vpop.f32.mrb[0].mxu0
    %v2557 = vpop.f32.mrb[0].mxu0
    %2558 = vdwg.mxu0
    %v2563 = vrot.slane %v2512, 4
    %v2564 = vrot.slane %v2514, 4
    %v2565 = vrot.slane %v2553, 4
    %v2566 = vrot.slane %v2555, 4
    %v2571 = vadd.f32 %v602, %v2563
    %v2572 = vadd.f32 %v604, %v2564
    %v2573 = vadd.f32 %v643, %v2565
    %v2574 = vadd.f32 %v645, %v2566
    %v2575 = vxor.u32 %v2571, 2147483648
    %v2576 = vmul.f32 %v2575, 1.442695
    %v2577 = vpow.pop %v2576
    %v2578 = vadd.f32 %v2577, 1.0
    %v2579 = vrcp.pop %v2578
    %v2580 = vmul.f32 1.0, %v2579
    %v2581 = vxor.u32 %v2572, 2147483648
    %v2582 = vmul.f32 %v2581, 1.442695
    %v2583 = vpow.pop %v2582
    %v2584 = vadd.f32 %v2583, 1.0
    %v2585 = vrcp.pop %v2584
    %v2586 = vmul.f32 1.0, %v2585
    %v2587 = vtanh.pop %v2573
    %v2588 = vxor.u32 %v2574, 2147483648
    %v2589 = vmul.f32 %v2588, 1.442695
    %v2590 = vpow.pop %v2589
    %v2591 = vadd.f32 %v2590, 1.0
    %v2592 = vrcp.pop %v2591
    %v2593 = vmul.f32 1.0, %v2592
    %v2595 = vrot.slane %v2082, 7
    %v2597 = vmul.f32 %v2586, %v2595
    %v2598 = vmul.f32 %v2580, %v2587
    %v2599 = vadd.f32 %v2597, %v2598
    %v2600 = vtanh.pop %v2599
    %v2601 = vmul.f32 %v2593, %v2600
    %v2602 = vpack.c.bf16 %v2277, %v2277
    %2603 = vmatprep.subr.bf16.mxu0 %v1432
    %2604 = vmatpush1.bf16.msra.mxu0 %v1431
    %2605 = vmatprep.subr.bf16.mxu0 %v1436
    %2606 = vmatpush1.bf16.msra.mxu0 %v1435
    %2607 = vmatprep.subr.bf16.mxu0 %v1440
    %2608 = vmatpush1.bf16.msra.mxu0 %v1439
    %2609 = vmatprep.subr.bf16.mxu0 %v1444
    %2610 = vmatpush1.bf16.msra.mxu0 %v1443
    %2611 = vmatprep.subr.bf16.mxu0 %v1448
    %2612 = vmatpush1.bf16.msra.mxu0 %v1447
    %2613 = vmatprep.subr.bf16.mxu0 %v1452
    %2614 = vmatpush1.bf16.msra.mxu0 %v1451
    %2615 = vmatprep.subr.bf16.mxu0 %v1456
    %2616 = vmatpush1.bf16.msra.mxu0 %v1455
    %2617 = vmatprep.subr.bf16.mxu0 %v1460
    %2618 = vmatpush1.bf16.msra.mxu0 %v1459
    %2619 = vmatprep.subr.bf16.mxu0 0
    %2620 = vmatpush1.bf16.msra.mxu0 0
    %2621 = vmatprep.subr.bf16.mxu0 0
    %2622 = vmatpush1.bf16.msra.mxu0 0
    %2623 = vmatprep.subr.bf16.mxu0 0
    %2624 = vmatpush1.bf16.msra.mxu0 0
    %2625 = vmatprep.subr.bf16.mxu0 0
    %2626 = vmatpush1.bf16.msra.mxu0 0
    %2627 = vmatprep.subr.bf16.mxu0 0
    %2628 = vmatpush1.bf16.msra.mxu0 0
    %2629 = vmatprep.subr.bf16.mxu0 0
    %2630 = vmatpush1.bf16.msra.mxu0 0
    %2631 = vmatprep.subr.bf16.mxu0 0
    %2632 = vmatpush1.bf16.msra.mxu0 0
    %2633 = vmatprep.subr.bf16.mxu0 0
    %2634 = vmatpush1.bf16.msra.mxu0 0
    %2635 = vmatprep.mubr.bf16.mxu0 0
    %2636 = vmatmul.mubr.bf16.gmra.mrb[0].mxu0 %v2602
    %v2637 = vpop.f32.mrb[0].mxu0
    %v2638 = vadd.f32 0.0, %v2637
    %v2639 = vpop.f32.mrb[0].mxu0
    %v2640 = vadd.f32 0.0, %v2639
    %v2641 = vpop.f32.mrb[0].mxu0
    %v2642 = vpop.f32.mrb[0].mxu0
    %2643 = vdwg.mxu0
    %2644 = vmatprep.subr.bf16.mxu0 %v1434
    %2645 = vmatpush1.bf16.msra.mxu0 %v1433
    %2646 = vmatprep.subr.bf16.mxu0 %v1438
    %2647 = vmatpush1.bf16.msra.mxu0 %v1437
    %2648 = vmatprep.subr.bf16.mxu0 %v1442
    %2649 = vmatpush1.bf16.msra.mxu0 %v1441
    %2650 = vmatprep.subr.bf16.mxu0 %v1446
    %2651 = vmatpush1.bf16.msra.mxu0 %v1445
    %2652 = vmatprep.subr.bf16.mxu0 %v1450
    %2653 = vmatpush1.bf16.msra.mxu0 %v1449
    %2654 = vmatprep.subr.bf16.mxu0 %v1454
    %2655 = vmatpush1.bf16.msra.mxu0 %v1453
    %2656 = vmatprep.subr.bf16.mxu0 %v1458
    %2657 = vmatpush1.bf16.msra.mxu0 %v1457
    %2658 = vmatprep.subr.bf16.mxu0 %v1462
    %2659 = vmatpush1.bf16.msra.mxu0 %v1461
    %2660 = vmatprep.subr.bf16.mxu0 0
    %2661 = vmatpush1.bf16.msra.mxu0 0
    %2662 = vmatprep.subr.bf16.mxu0 0
    %2663 = vmatpush1.bf16.msra.mxu0 0
    %2664 = vmatprep.subr.bf16.mxu0 0
    %2665 = vmatpush1.bf16.msra.mxu0 0
    %2666 = vmatprep.subr.bf16.mxu0 0
    %2667 = vmatpush1.bf16.msra.mxu0 0
    %2668 = vmatprep.subr.bf16.mxu0 0
    %2669 = vmatpush1.bf16.msra.mxu0 0
    %2670 = vmatprep.subr.bf16.mxu0 0
    %2671 = vmatpush1.bf16.msra.mxu0 0
    %2672 = vmatprep.subr.bf16.mxu0 0
    %2673 = vmatpush1.bf16.msra.mxu0 0
    %2674 = vmatprep.subr.bf16.mxu0 0
    %2675 = vmatpush1.bf16.msra.mxu0 0
    %2676 = vmatprep.mubr.bf16.mxu0 0
    %2677 = vmatmul.mubr.bf16.gmra.mrb[0].mxu0 %v2602
    %v2678 = vpop.f32.mrb[0].mxu0
    %v2679 = vadd.f32 0.0, %v2678
    %v2680 = vpop.f32.mrb[0].mxu0
    %v2681 = vadd.f32 0.0, %v2680
    %v2682 = vpop.f32.mrb[0].mxu0
    %v2683 = vpop.f32.mrb[0].mxu0
    %2684 = vdwg.mxu0
    %2685 = vmatprep.subr.bf16.mxu0 %v1399
    %2686 = vmatpush1.bf16.msra.mxu0 %v1398
    %2687 = vmatprep.subr.bf16.mxu0 %v1403
    %2688 = vmatpush1.bf16.msra.mxu0 %v1402
    %2689 = vmatprep.subr.bf16.mxu0 %v1407
    %2690 = vmatpush1.bf16.msra.mxu0 %v1406
    %2691 = vmatprep.subr.bf16.mxu0 %v1411
    %2692 = vmatpush1.bf16.msra.mxu0 %v1410
    %2693 = vmatprep.subr.bf16.mxu0 %v1415
    %2694 = vmatpush1.bf16.msra.mxu0 %v1414
    %2695 = vmatprep.subr.bf16.mxu0 %v1419
    %2696 = vmatpush1.bf16.msra.mxu0 %v1418
    %2697 = vmatprep.subr.bf16.mxu0 %v1423
    %2698 = vmatpush1.bf16.msra.mxu0 %v1422
    %2699 = vmatprep.subr.bf16.mxu0 %v1427
    %2700 = vmatpush1.bf16.msra.mxu0 %v1426
    %2701 = vmatprep.subr.bf16.mxu0 0
    %2702 = vmatpush1.bf16.msra.mxu0 0
    %2703 = vmatprep.subr.bf16.mxu0 0
    %2704 = vmatpush1.bf16.msra.mxu0 0
    %2705 = vmatprep.subr.bf16.mxu0 0
    %2706 = vmatpush1.bf16.msra.mxu0 0
    %2707 = vmatprep.subr.bf16.mxu0 0
    %2708 = vmatpush1.bf16.msra.mxu0 0
    %2709 = vmatprep.subr.bf16.mxu0 0
    %2710 = vmatpush1.bf16.msra.mxu0 0
    %2711 = vmatprep.subr.bf16.mxu0 0
    %2712 = vmatpush1.bf16.msra.mxu0 0
    %2713 = vmatprep.subr.bf16.mxu0 0
    %2714 = vmatpush1.bf16.msra.mxu0 0
    %2715 = vmatprep.subr.bf16.mxu0 0
    %2716 = vmatpush1.bf16.msra.mxu0 0
    %2717 = vmatprep.mubr.bf16.mxu0 0
    %2718 = vmatmul.mubr.bf16.gmra.mrb[0].mxu0 %v2475
    %v2719 = vpop.f32.mrb[0].mxu0
    %v2720 = vadd.f32 %v2638, %v2719
    %v2721 = vpop.f32.mrb[0].mxu0
    %v2722 = vadd.f32 %v2640, %v2721
    %v2723 = vpop.f32.mrb[0].mxu0
    %v2724 = vpop.f32.mrb[0].mxu0
    %2725 = vdwg.mxu0
    %2726 = vmatprep.subr.bf16.mxu0 %v1401
    %2727 = vmatpush1.bf16.msra.mxu0 %v1400
    %2728 = vmatprep.subr.bf16.mxu0 %v1405
    %2729 = vmatpush1.bf16.msra.mxu0 %v1404
    %2730 = vmatprep.subr.bf16.mxu0 %v1409
    %2731 = vmatpush1.bf16.msra.mxu0 %v1408
    %2732 = vmatprep.subr.bf16.mxu0 %v1413
    %2733 = vmatpush1.bf16.msra.mxu0 %v1412
    %2734 = vmatprep.subr.bf16.mxu0 %v1417
    %2735 = vmatpush1.bf16.msra.mxu0 %v1416
    %2736 = vmatprep.subr.bf16.mxu0 %v1421
    %2737 = vmatpush1.bf16.msra.mxu0 %v1420
    %2738 = vmatprep.subr.bf16.mxu0 %v1425
    %2739 = vmatpush1.bf16.msra.mxu0 %v1424
    %2740 = vmatprep.subr.bf16.mxu0 %v1429
    %2741 = vmatpush1.bf16.msra.mxu0 %v1428
    %2742 = vmatprep.subr.bf16.mxu0 0
    %2743 = vmatpush1.bf16.msra.mxu0 0
    %2744 = vmatprep.subr.bf16.mxu0 0
    %2745 = vmatpush1.bf16.msra.mxu0 0
    %2746 = vmatprep.subr.bf16.mxu0 0
    %2747 = vmatpush1.bf16.msra.mxu0 0
    %2748 = vmatprep.subr.bf16.mxu0 0
    %2749 = vmatpush1.bf16.msra.mxu0 0
    %2750 = vmatprep.subr.bf16.mxu0 0
    %2751 = vmatpush1.bf16.msra.mxu0 0
    %2752 = vmatprep.subr.bf16.mxu0 0
    %2753 = vmatpush1.bf16.msra.mxu0 0
    %2754 = vmatprep.subr.bf16.mxu0 0
    %2755 = vmatpush1.bf16.msra.mxu0 0
    %2756 = vmatprep.subr.bf16.mxu0 0
    %2757 = vmatpush1.bf16.msra.mxu0 0
    %2758 = vmatprep.mubr.bf16.mxu0 0
    %2759 = vmatmul.mubr.bf16.gmra.mrb[0].mxu0 %v2475
    %v2760 = vpop.f32.mrb[0].mxu0
    %v2761 = vadd.f32 %v2679, %v2760
    %v2762 = vpop.f32.mrb[0].mxu0
    %v2763 = vadd.f32 %v2681, %v2762
    %v2764 = vpop.f32.mrb[0].mxu0
    %v2765 = vpop.f32.mrb[0].mxu0
    %2766 = vdwg.mxu0
    %v2767 = vadd.f32 %v2720, %v1632
    %v2768 = vadd.f32 %v2722, %v1636
    %v2769 = vadd.f32 %v2761, %v1640
    %v2770 = vadd.f32 %v2763, %v1644
    %v2771 = vxor.u32 %v2767, 2147483648
    %v2772 = vmul.f32 %v2771, 1.442695
    %v2773 = vpow.pop %v2772
    %v2774 = vadd.f32 %v2773, 1.0
    %v2775 = vrcp.pop %v2774
    %v2776 = vmul.f32 1.0, %v2775
    %v2777 = vxor.u32 %v2768, 2147483648
    %v2778 = vmul.f32 %v2777, 1.442695
    %v2779 = vpow.pop %v2778
    %v2780 = vadd.f32 %v2779, 1.0
    %v2781 = vrcp.pop %v2780
    %v2782 = vmul.f32 1.0, %v2781
    %v2783 = vtanh.pop %v2769
    %v2784 = vxor.u32 %v2770, 2147483648
    %v2785 = vmul.f32 %v2784, 1.442695
    %v2786 = vpow.pop %v2785
    %v2787 = vadd.f32 %v2786, 1.0
    %v2788 = vrcp.pop %v2787
    %v2789 = vmul.f32 1.0, %v2788
    %v2790 = vmul.f32 %v2782, %v2275
    %v2791 = vmul.f32 %v2776, %v2783
    %v2792 = vadd.f32 %v2790, %v2791
    %v2793 = vtanh.pop %v2792
    %v2794 = vmul.f32 %v2789, %v2793
    %v2795 = vpack.c.bf16 %v2470, %v2470
    %2796 = vmatprep.subr.bf16.mxu0 %v1710
    %2797 = vmatpush1.bf16.msra.mxu0 %v1709
    %2798 = vmatprep.subr.bf16.mxu0 %v1714
    %2799 = vmatpush1.bf16.msra.mxu0 %v1713
    %2800 = vmatprep.subr.bf16.mxu0 %v1718
    %2801 = vmatpush1.bf16.msra.mxu0 %v1717
    %2802 = vmatprep.subr.bf16.mxu0 %v1722
    %2803 = vmatpush1.bf16.msra.mxu0 %v1721
    %2804 = vmatprep.subr.bf16.mxu0 %v1726
    %2805 = vmatpush1.bf16.msra.mxu0 %v1725
    %2806 = vmatprep.subr.bf16.mxu0 %v1730
    %2807 = vmatpush1.bf16.msra.mxu0 %v1729
    %2808 = vmatprep.subr.bf16.mxu0 %v1734
    %2809 = vmatpush1.bf16.msra.mxu0 %v1733
    %2810 = vmatprep.subr.bf16.mxu0 %v1738
    %2811 = vmatpush1.bf16.msra.mxu0 %v1737
    %2812 = vmatprep.subr.bf16.mxu0 0
    %2813 = vmatpush1.bf16.msra.mxu0 0
    %2814 = vmatprep.subr.bf16.mxu0 0
    %2815 = vmatpush1.bf16.msra.mxu0 0
    %2816 = vmatprep.subr.bf16.mxu0 0
    %2817 = vmatpush1.bf16.msra.mxu0 0
    %2818 = vmatprep.subr.bf16.mxu0 0
    %2819 = vmatpush1.bf16.msra.mxu0 0
    %2820 = vmatprep.subr.bf16.mxu0 0
    %2821 = vmatpush1.bf16.msra.mxu0 0
    %2822 = vmatprep.subr.bf16.mxu0 0
    %2823 = vmatpush1.bf16.msra.mxu0 0
    %2824 = vmatprep.subr.bf16.mxu0 0
    %2825 = vmatpush1.bf16.msra.mxu0 0
    %2826 = vmatprep.subr.bf16.mxu0 0
    %2827 = vmatpush1.bf16.msra.mxu0 0
    %2828 = vmatprep.mubr.bf16.mxu0 0
    %2829 = vmatmul.mubr.bf16.gmra.mrb[0].mxu0 %v2795
    %v2830 = vpop.f32.mrb[0].mxu0
    %v2831 = vadd.f32 0.0, %v2830
    %v2832 = vpop.f32.mrb[0].mxu0
    %v2833 = vadd.f32 0.0, %v2832
    %v2834 = vpop.f32.mrb[0].mxu0
    %v2835 = vpop.f32.mrb[0].mxu0
    %2836 = vdwg.mxu0
    %2837 = vmatprep.subr.bf16.mxu0 %v1712
    %2838 = vmatpush1.bf16.msra.mxu0 %v1711
    %2839 = vmatprep.subr.bf16.mxu0 %v1716
    %2840 = vmatpush1.bf16.msra.mxu0 %v1715
    %2841 = vmatprep.subr.bf16.mxu0 %v1720
    %2842 = vmatpush1.bf16.msra.mxu0 %v1719
    %2843 = vmatprep.subr.bf16.mxu0 %v1724
    %2844 = vmatpush1.bf16.msra.mxu0 %v1723
    %2845 = vmatprep.subr.bf16.mxu0 %v1728
    %2846 = vmatpush1.bf16.msra.mxu0 %v1727
    %2847 = vmatprep.subr.bf16.mxu0 %v1732
    %2848 = vmatpush1.bf16.msra.mxu0 %v1731
    %2849 = vmatprep.subr.bf16.mxu0 %v1736
    %2850 = vmatpush1.bf16.msra.mxu0 %v1735
    %2851 = vmatprep.subr.bf16.mxu0 %v1740
    %2852 = vmatpush1.bf16.msra.mxu0 %v1739
    %2853 = vmatprep.subr.bf16.mxu0 0
    %2854 = vmatpush1.bf16.msra.mxu0 0
    %2855 = vmatprep.subr.bf16.mxu0 0
    %2856 = vmatpush1.bf16.msra.mxu0 0
    %2857 = vmatprep.subr.bf16.mxu0 0
    %2858 = vmatpush1.bf16.msra.mxu0 0
    %2859 = vmatprep.subr.bf16.mxu0 0
    %2860 = vmatpush1.bf16.msra.mxu0 0
    %2861 = vmatprep.subr.bf16.mxu0 0
    %2862 = vmatpush1.bf16.msra.mxu0 0
    %2863 = vmatprep.subr.bf16.mxu0 0
    %2864 = vmatpush1.bf16.msra.mxu0 0
    %2865 = vmatprep.subr.bf16.mxu0 0
    %2866 = vmatpush1.bf16.msra.mxu0 0
    %2867 = vmatprep.subr.bf16.mxu0 0
    %2868 = vmatpush1.bf16.msra.mxu0 0
    %2869 = vmatprep.mubr.bf16.mxu0 0
    %2870 = vmatmul.mubr.bf16.gmra.mrb[0].mxu0 %v2795
    %v2871 = vpop.f32.mrb[0].mxu0
    %v2872 = vadd.f32 0.0, %v2871
    %v2873 = vpop.f32.mrb[0].mxu0
    %v2874 = vadd.f32 0.0, %v2873
    %v2875 = vpop.f32.mrb[0].mxu0
    %v2876 = vpop.f32.mrb[0].mxu0
    %2877 = vdwg.mxu0
    %2878 = vmatprep.subr.bf16.mxu0 %v1678
    %2879 = vmatpush1.bf16.msra.mxu0 %v1677
    %2880 = vmatprep.subr.bf16.mxu0 %v1682
    %2881 = vmatpush1.bf16.msra.mxu0 %v1681
    %2882 = vmatprep.subr.bf16.mxu0 %v1686
    %2883 = vmatpush1.bf16.msra.mxu0 %v1685
    %2884 = vmatprep.subr.bf16.mxu0 %v1690
    %2885 = vmatpush1.bf16.msra.mxu0 %v1689
    %2886 = vmatprep.subr.bf16.mxu0 %v1694
    %2887 = vmatpush1.bf16.msra.mxu0 %v1693
    %2888 = vmatprep.subr.bf16.mxu0 %v1698
    %2889 = vmatpush1.bf16.msra.mxu0 %v1697
    %2890 = vmatprep.subr.bf16.mxu0 %v1702
    %2891 = vmatpush1.bf16.msra.mxu0 %v1701
    %2892 = vmatprep.subr.bf16.mxu0 %v1706
    %2893 = vmatpush1.bf16.msra.mxu0 %v1705
    %2894 = vmatprep.subr.bf16.mxu0 0
    %2895 = vmatpush1.bf16.msra.mxu0 0
    %2896 = vmatprep.subr.bf16.mxu0 0
    %2897 = vmatpush1.bf16.msra.mxu0 0
    %2898 = vmatprep.subr.bf16.mxu0 0
    %2899 = vmatpush1.bf16.msra.mxu0 0
    %2900 = vmatprep.subr.bf16.mxu0 0
    %2901 = vmatpush1.bf16.msra.mxu0 0
    %2902 = vmatprep.subr.bf16.mxu0 0
    %2903 = vmatpush1.bf16.msra.mxu0 0
    %2904 = vmatprep.subr.bf16.mxu0 0
    %2905 = vmatpush1.bf16.msra.mxu0 0
    %2906 = vmatprep.subr.bf16.mxu0 0
    %2907 = vmatpush1.bf16.msra.mxu0 0
    %2908 = vmatprep.subr.bf16.mxu0 0
    %2909 = vmatpush1.bf16.msra.mxu0 0
    %2910 = vmatprep.mubr.bf16.mxu0 0
    %2911 = vmatmul.mubr.bf16.gmra.mrb[0].mxu0 %v2602
    %v2912 = vpop.f32.mrb[0].mxu0
    %v2913 = vadd.f32 %v2831, %v2912
    %v2914 = vpop.f32.mrb[0].mxu0
    %v2915 = vadd.f32 %v2833, %v2914
    %v2916 = vpop.f32.mrb[0].mxu0
    %v2917 = vpop.f32.mrb[0].mxu0
    %2918 = vdwg.mxu0
    %2919 = vmatprep.subr.bf16.mxu0 %v1680
    %2920 = vmatpush1.bf16.msra.mxu0 %v1679
    %2921 = vmatprep.subr.bf16.mxu0 %v1684
    %2922 = vmatpush1.bf16.msra.mxu0 %v1683
    %2923 = vmatprep.subr.bf16.mxu0 %v1688
    %2924 = vmatpush1.bf16.msra.mxu0 %v1687
    %2925 = vmatprep.subr.bf16.mxu0 %v1692
    %2926 = vmatpush1.bf16.msra.mxu0 %v1691
    %2927 = vmatprep.subr.bf16.mxu0 %v1696
    %2928 = vmatpush1.bf16.msra.mxu0 %v1695
    %2929 = vmatprep.subr.bf16.mxu0 %v1700
    %2930 = vmatpush1.bf16.msra.mxu0 %v1699
    %2931 = vmatprep.subr.bf16.mxu0 %v1704
    %2932 = vmatpush1.bf16.msra.mxu0 %v1703
    %2933 = vmatprep.subr.bf16.mxu0 %v1708
    %2934 = vmatpush1.bf16.msra.mxu0 %v1707
    %2935 = vmatprep.subr.bf16.mxu0 0
    %2936 = vmatpush1.bf16.msra.mxu0 0
    %2937 = vmatprep.subr.bf16.mxu0 0
    %2938 = vmatpush1.bf16.msra.mxu0 0
    %2939 = vmatprep.subr.bf16.mxu0 0
    %2940 = vmatpush1.bf16.msra.mxu0 0
    %2941 = vmatprep.subr.bf16.mxu0 0
    %2942 = vmatpush1.bf16.msra.mxu0 0
    %2943 = vmatprep.subr.bf16.mxu0 0
    %2944 = vmatpush1.bf16.msra.mxu0 0
    %2945 = vmatprep.subr.bf16.mxu0 0
    %2946 = vmatpush1.bf16.msra.mxu0 0
    %2947 = vmatprep.subr.bf16.mxu0 0
    %2948 = vmatpush1.bf16.msra.mxu0 0
    %2949 = vmatprep.subr.bf16.mxu0 0
    %2950 = vmatpush1.bf16.msra.mxu0 0
    %2951 = vmatprep.mubr.bf16.mxu0 0
    %2952 = vmatmul.mubr.bf16.gmra.mrb[0].mxu0 %v2602
    %v2953 = vpop.f32.mrb[0].mxu0
    %v2954 = vadd.f32 %v2872, %v2953
    %v2955 = vpop.f32.mrb[0].mxu0
    %v2956 = vadd.f32 %v2874, %v2955
    %v2957 = vpop.f32.mrb[0].mxu0
    %v2958 = vpop.f32.mrb[0].mxu0
    %2959 = vdwg.mxu0
    %v2960 = vadd.f32 %v2913, %v1911
    %v2961 = vadd.f32 %v2915, %v1915
    %v2962 = vadd.f32 %v2954, %v1919
    %v2963 = vadd.f32 %v2956, %v1923
    %v2964 = vxor.u32 %v2960, 2147483648
    %v2965 = vmul.f32 %v2964, 1.442695
    %v2966 = vpow.pop %v2965
    %v2967 = vadd.f32 %v2966, 1.0
    %v2968 = vrcp.pop %v2967
    %v2969 = vmul.f32 1.0, %v2968
    %v2970 = vxor.u32 %v2961, 2147483648
    %v2971 = vmul.f32 %v2970, 1.442695
    %v2972 = vpow.pop %v2971
    %v2973 = vadd.f32 %v2972, 1.0
    %v2974 = vrcp.pop %v2973
    %v2975 = vmul.f32 1.0, %v2974
    %v2976 = vtanh.pop %v2962
    %v2977 = vxor.u32 %v2963, 2147483648
    %v2978 = vmul.f32 %v2977, 1.442695
    %v2979 = vpow.pop %v2978
    %v2980 = vadd.f32 %v2979, 1.0
    %v2981 = vrcp.pop %v2980
    %v2982 = vmul.f32 1.0, %v2981
    %v2983 = vmul.f32 %v2975, %v2468
    %v2984 = vmul.f32 %v2969, %v2976
    %v2985 = vadd.f32 %v2983, %v2984
    %v2986 = vtanh.pop %v2985
    %v2987 = vmul.f32 %v2982, %v2986
    %v2988 = vpack.c.bf16 %v2601, %v2601
    %v2990 = vrot.slane %v2988, 2
    %2992 = vmatprep.subr.bf16.mxu0 %v1238
    %2993 = vmatpush1.bf16.msra.mxu0 %v1237
    %2994 = vmatprep.subr.bf16.mxu0 %v1242
    %2995 = vmatpush1.bf16.msra.mxu0 %v1241
    %2996 = vmatprep.subr.bf16.mxu0 %v1246
    %2997 = vmatpush1.bf16.msra.mxu0 %v1245
    %2998 = vmatprep.subr.bf16.mxu0 %v1250
    %2999 = vmatpush1.bf16.msra.mxu0 %v1249
    %3000 = vmatprep.subr.bf16.mxu0 %v1254
    %3001 = vmatpush1.bf16.msra.mxu0 %v1253
    %3002 = vmatprep.subr.bf16.mxu0 %v1258
    %3003 = vmatpush1.bf16.msra.mxu0 %v1257
    %3004 = vmatprep.subr.bf16.mxu0 %v1262
    %3005 = vmatpush1.bf16.msra.mxu0 %v1261
    %3006 = vmatprep.subr.bf16.mxu0 %v1266
    %3007 = vmatpush1.bf16.msra.mxu0 %v1265
    %3008 = vmatprep.subr.bf16.mxu0 0
    %3009 = vmatpush1.bf16.msra.mxu0 0
    %3010 = vmatprep.subr.bf16.mxu0 0
    %3011 = vmatpush1.bf16.msra.mxu0 0
    %3012 = vmatprep.subr.bf16.mxu0 0
    %3013 = vmatpush1.bf16.msra.mxu0 0
    %3014 = vmatprep.subr.bf16.mxu0 0
    %3015 = vmatpush1.bf16.msra.mxu0 0
    %3016 = vmatprep.subr.bf16.mxu0 0
    %3017 = vmatpush1.bf16.msra.mxu0 0
    %3018 = vmatprep.subr.bf16.mxu0 0
    %3019 = vmatpush1.bf16.msra.mxu0 0
    %3020 = vmatprep.subr.bf16.mxu0 0
    %3021 = vmatpush1.bf16.msra.mxu0 0
    %3022 = vmatprep.subr.bf16.mxu0 0
    %3023 = vmatpush1.bf16.msra.mxu0 0
    %3024 = vmatprep.mubr.bf16.mxu0 0
    %3025 = vmatmul.mubr.bf16.gmra.mrb[0].mxu0 %v2990
    %v3026 = vpop.f32.mrb[0].mxu0
    %v3027 = vadd.f32 0.0, %v3026
    %v3028 = vpop.f32.mrb[0].mxu0
    %v3029 = vadd.f32 0.0, %v3028
    %v3030 = vpop.f32.mrb[0].mxu0
    %v3031 = vpop.f32.mrb[0].mxu0
    %3032 = vdwg.mxu0
    %3033 = vmatprep.subr.bf16.mxu0 %v1240
    %3034 = vmatpush1.bf16.msra.mxu0 %v1239
    %3035 = vmatprep.subr.bf16.mxu0 %v1244
    %3036 = vmatpush1.bf16.msra.mxu0 %v1243
    %3037 = vmatprep.subr.bf16.mxu0 %v1248
    %3038 = vmatpush1.bf16.msra.mxu0 %v1247
    %3039 = vmatprep.subr.bf16.mxu0 %v1252
    %3040 = vmatpush1.bf16.msra.mxu0 %v1251
    %3041 = vmatprep.subr.bf16.mxu0 %v1256
    %3042 = vmatpush1.bf16.msra.mxu0 %v1255
    %3043 = vmatprep.subr.bf16.mxu0 %v1260
    %3044 = vmatpush1.bf16.msra.mxu0 %v1259
    %3045 = vmatprep.subr.bf16.mxu0 %v1264
    %3046 = vmatpush1.bf16.msra.mxu0 %v1263
    %3047 = vmatprep.subr.bf16.mxu0 %v1268
    %3048 = vmatpush1.bf16.msra.mxu0 %v1267
    %3049 = vmatprep.subr.bf16.mxu0 0
    %3050 = vmatpush1.bf16.msra.mxu0 0
    %3051 = vmatprep.subr.bf16.mxu0 0
    %3052 = vmatpush1.bf16.msra.mxu0 0
    %3053 = vmatprep.subr.bf16.mxu0 0
    %3054 = vmatpush1.bf16.msra.mxu0 0
    %3055 = vmatprep.subr.bf16.mxu0 0
    %3056 = vmatpush1.bf16.msra.mxu0 0
    %3057 = vmatprep.subr.bf16.mxu0 0
    %3058 = vmatpush1.bf16.msra.mxu0 0
    %3059 = vmatprep.subr.bf16.mxu0 0
    %3060 = vmatpush1.bf16.msra.mxu0 0
    %3061 = vmatprep.subr.bf16.mxu0 0
    %3062 = vmatpush1.bf16.msra.mxu0 0
    %3063 = vmatprep.subr.bf16.mxu0 0
    %3064 = vmatpush1.bf16.msra.mxu0 0
    %3065 = vmatprep.mubr.bf16.mxu0 0
    %3066 = vmatmul.mubr.bf16.gmra.mrb[0].mxu0 %v2990
    %v3067 = vpop.f32.mrb[0].mxu0
    %v3068 = vadd.f32 0.0, %v3067
    %v3069 = vpop.f32.mrb[0].mxu0
    %v3070 = vadd.f32 0.0, %v3069
    %v3071 = vpop.f32.mrb[0].mxu0
    %v3072 = vpop.f32.mrb[0].mxu0
    %3073 = vdwg.mxu0
    %v3078 = vrot.slane %v3027, 3
    %v3079 = vrot.slane %v3029, 3
    %v3080 = vrot.slane %v3068, 3
    %v3081 = vrot.slane %v3070, 3
    %v3086 = vadd.f32 %v602, %v3078
    %v3087 = vadd.f32 %v604, %v3079
    %v3088 = vadd.f32 %v643, %v3080
    %v3089 = vadd.f32 %v645, %v3081
    %v3090 = vxor.u32 %v3086, 2147483648
    %v3091 = vmul.f32 %v3090, 1.442695
    %v3092 = vpow.pop %v3091
    %v3093 = vadd.f32 %v3092, 1.0
    %v3094 = vrcp.pop %v3093
    %v3095 = vmul.f32 1.0, %v3094
    %v3096 = vxor.u32 %v3087, 2147483648
    %v3097 = vmul.f32 %v3096, 1.442695
    %v3098 = vpow.pop %v3097
    %v3099 = vadd.f32 %v3098, 1.0
    %v3100 = vrcp.pop %v3099
    %v3101 = vmul.f32 1.0, %v3100
    %v3102 = vtanh.pop %v3088
    %v3103 = vxor.u32 %v3089, 2147483648
    %v3104 = vmul.f32 %v3103, 1.442695
    %v3105 = vpow.pop %v3104
    %v3106 = vadd.f32 %v3105, 1.0
    %v3107 = vrcp.pop %v3106
    %v3108 = vmul.f32 1.0, %v3107
    %v3110 = vrot.slane %v2599, 7
    %v3112 = vmul.f32 %v3101, %v3110
    %v3113 = vmul.f32 %v3095, %v3102
    %v3114 = vadd.f32 %v3112, %v3113
    %v3115 = vtanh.pop %v3114
    %v3116 = vmul.f32 %v3108, %v3115
    %v3117 = vpack.c.bf16 %v2794, %v2794
    %3118 = vmatprep.subr.bf16.mxu0 %v1432
    %3119 = vmatpush1.bf16.msra.mxu0 %v1431
    %3120 = vmatprep.subr.bf16.mxu0 %v1436
    %3121 = vmatpush1.bf16.msra.mxu0 %v1435
    %3122 = vmatprep.subr.bf16.mxu0 %v1440
    %3123 = vmatpush1.bf16.msra.mxu0 %v1439
    %3124 = vmatprep.subr.bf16.mxu0 %v1444
    %3125 = vmatpush1.bf16.msra.mxu0 %v1443
    %3126 = vmatprep.subr.bf16.mxu0 %v1448
    %3127 = vmatpush1.bf16.msra.mxu0 %v1447
    %3128 = vmatprep.subr.bf16.mxu0 %v1452
    %3129 = vmatpush1.bf16.msra.mxu0 %v1451
    %3130 = vmatprep.subr.bf16.mxu0 %v1456
    %3131 = vmatpush1.bf16.msra.mxu0 %v1455
    %3132 = vmatprep.subr.bf16.mxu0 %v1460
    %3133 = vmatpush1.bf16.msra.mxu0 %v1459
    %3134 = vmatprep.subr.bf16.mxu0 0
    %3135 = vmatpush1.bf16.msra.mxu0 0
    %3136 = vmatprep.subr.bf16.mxu0 0
    %3137 = vmatpush1.bf16.msra.mxu0 0
    %3138 = vmatprep.subr.bf16.mxu0 0
    %3139 = vmatpush1.bf16.msra.mxu0 0
    %3140 = vmatprep.subr.bf16.mxu0 0
    %3141 = vmatpush1.bf16.msra.mxu0 0
    %3142 = vmatprep.subr.bf16.mxu0 0
    %3143 = vmatpush1.bf16.msra.mxu0 0
    %3144 = vmatprep.subr.bf16.mxu0 0
    %3145 = vmatpush1.bf16.msra.mxu0 0
    %3146 = vmatprep.subr.bf16.mxu0 0
    %3147 = vmatpush1.bf16.msra.mxu0 0
    %3148 = vmatprep.subr.bf16.mxu0 0
    %3149 = vmatpush1.bf16.msra.mxu0 0
    %3150 = vmatprep.mubr.bf16.mxu0 0
    %3151 = vmatmul.mubr.bf16.gmra.mrb[0].mxu0 %v3117
    %v3152 = vpop.f32.mrb[0].mxu0
    %v3153 = vadd.f32 0.0, %v3152
    %v3154 = vpop.f32.mrb[0].mxu0
    %v3155 = vadd.f32 0.0, %v3154
    %v3156 = vpop.f32.mrb[0].mxu0
    %v3157 = vpop.f32.mrb[0].mxu0
    %3158 = vdwg.mxu0
    %3159 = vmatprep.subr.bf16.mxu0 %v1434
    %3160 = vmatpush1.bf16.msra.mxu0 %v1433
    %3161 = vmatprep.subr.bf16.mxu0 %v1438
    %3162 = vmatpush1.bf16.msra.mxu0 %v1437
    %3163 = vmatprep.subr.bf16.mxu0 %v1442
    %3164 = vmatpush1.bf16.msra.mxu0 %v1441
    %3165 = vmatprep.subr.bf16.mxu0 %v1446
    %3166 = vmatpush1.bf16.msra.mxu0 %v1445
    %3167 = vmatprep.subr.bf16.mxu0 %v1450
    %3168 = vmatpush1.bf16.msra.mxu0 %v1449
    %3169 = vmatprep.subr.bf16.mxu0 %v1454
    %3170 = vmatpush1.bf16.msra.mxu0 %v1453
    %3171 = vmatprep.subr.bf16.mxu0 %v1458
    %3172 = vmatpush1.bf16.msra.mxu0 %v1457
    %3173 = vmatprep.subr.bf16.mxu0 %v1462
    %3174 = vmatpush1.bf16.msra.mxu0 %v1461
    %3175 = vmatprep.subr.bf16.mxu0 0
    %3176 = vmatpush1.bf16.msra.mxu0 0
    %3177 = vmatprep.subr.bf16.mxu0 0
    %3178 = vmatpush1.bf16.msra.mxu0 0
    %3179 = vmatprep.subr.bf16.mxu0 0
    %3180 = vmatpush1.bf16.msra.mxu0 0
    %3181 = vmatprep.subr.bf16.mxu0 0
    %3182 = vmatpush1.bf16.msra.mxu0 0
    %3183 = vmatprep.subr.bf16.mxu0 0
    %3184 = vmatpush1.bf16.msra.mxu0 0
    %3185 = vmatprep.subr.bf16.mxu0 0
    %3186 = vmatpush1.bf16.msra.mxu0 0
    %3187 = vmatprep.subr.bf16.mxu0 0
    %3188 = vmatpush1.bf16.msra.mxu0 0
    %3189 = vmatprep.subr.bf16.mxu0 0
    %3190 = vmatpush1.bf16.msra.mxu0 0
    %3191 = vmatprep.mubr.bf16.mxu0 0
    %3192 = vmatmul.mubr.bf16.gmra.mrb[0].mxu0 %v3117
    %v3193 = vpop.f32.mrb[0].mxu0
    %v3194 = vadd.f32 0.0, %v3193
    %v3195 = vpop.f32.mrb[0].mxu0
    %v3196 = vadd.f32 0.0, %v3195
    %v3197 = vpop.f32.mrb[0].mxu0
    %v3198 = vpop.f32.mrb[0].mxu0
    %3199 = vdwg.mxu0
    %3200 = vmatprep.subr.bf16.mxu0 %v1399
    %3201 = vmatpush1.bf16.msra.mxu0 %v1398
    %3202 = vmatprep.subr.bf16.mxu0 %v1403
    %3203 = vmatpush1.bf16.msra.mxu0 %v1402
    %3204 = vmatprep.subr.bf16.mxu0 %v1407
    %3205 = vmatpush1.bf16.msra.mxu0 %v1406
    %3206 = vmatprep.subr.bf16.mxu0 %v1411
    %3207 = vmatpush1.bf16.msra.mxu0 %v1410
    %3208 = vmatprep.subr.bf16.mxu0 %v1415
    %3209 = vmatpush1.bf16.msra.mxu0 %v1414
    %3210 = vmatprep.subr.bf16.mxu0 %v1419
    %3211 = vmatpush1.bf16.msra.mxu0 %v1418
    %3212 = vmatprep.subr.bf16.mxu0 %v1423
    %3213 = vmatpush1.bf16.msra.mxu0 %v1422
    %3214 = vmatprep.subr.bf16.mxu0 %v1427
    %3215 = vmatpush1.bf16.msra.mxu0 %v1426
    %3216 = vmatprep.subr.bf16.mxu0 0
    %3217 = vmatpush1.bf16.msra.mxu0 0
    %3218 = vmatprep.subr.bf16.mxu0 0
    %3219 = vmatpush1.bf16.msra.mxu0 0
    %3220 = vmatprep.subr.bf16.mxu0 0
    %3221 = vmatpush1.bf16.msra.mxu0 0
    %3222 = vmatprep.subr.bf16.mxu0 0
    %3223 = vmatpush1.bf16.msra.mxu0 0
    %3224 = vmatprep.subr.bf16.mxu0 0
    %3225 = vmatpush1.bf16.msra.mxu0 0
    %3226 = vmatprep.subr.bf16.mxu0 0
    %3227 = vmatpush1.bf16.msra.mxu0 0
    %3228 = vmatprep.subr.bf16.mxu0 0
    %3229 = vmatpush1.bf16.msra.mxu0 0
    %3230 = vmatprep.subr.bf16.mxu0 0
    %3231 = vmatpush1.bf16.msra.mxu0 0
    %3232 = vmatprep.mubr.bf16.mxu0 0
    %3233 = vmatmul.mubr.bf16.gmra.mrb[0].mxu0 %v2990
    %v3234 = vpop.f32.mrb[0].mxu0
    %v3235 = vadd.f32 %v3153, %v3234
    %v3236 = vpop.f32.mrb[0].mxu0
    %v3237 = vadd.f32 %v3155, %v3236
    %v3238 = vpop.f32.mrb[0].mxu0
    %v3239 = vpop.f32.mrb[0].mxu0
    %3240 = vdwg.mxu0
    %3241 = vmatprep.subr.bf16.mxu0 %v1401
    %3242 = vmatpush1.bf16.msra.mxu0 %v1400
    %3243 = vmatprep.subr.bf16.mxu0 %v1405
    %3244 = vmatpush1.bf16.msra.mxu0 %v1404
    %3245 = vmatprep.subr.bf16.mxu0 %v1409
    %3246 = vmatpush1.bf16.msra.mxu0 %v1408
    %3247 = vmatprep.subr.bf16.mxu0 %v1413
    %3248 = vmatpush1.bf16.msra.mxu0 %v1412
    %3249 = vmatprep.subr.bf16.mxu0 %v1417
    %3250 = vmatpush1.bf16.msra.mxu0 %v1416
    %3251 = vmatprep.subr.bf16.mxu0 %v1421
    %3252 = vmatpush1.bf16.msra.mxu0 %v1420
    %3253 = vmatprep.subr.bf16.mxu0 %v1425
    %3254 = vmatpush1.bf16.msra.mxu0 %v1424
    %3255 = vmatprep.subr.bf16.mxu0 %v1429
    %3256 = vmatpush1.bf16.msra.mxu0 %v1428
    %3257 = vmatprep.subr.bf16.mxu0 0
    %3258 = vmatpush1.bf16.msra.mxu0 0
    %3259 = vmatprep.subr.bf16.mxu0 0
    %3260 = vmatpush1.bf16.msra.mxu0 0
    %3261 = vmatprep.subr.bf16.mxu0 0
    %3262 = vmatpush1.bf16.msra.mxu0 0
    %3263 = vmatprep.subr.bf16.mxu0 0
    %3264 = vmatpush1.bf16.msra.mxu0 0
    %3265 = vmatprep.subr.bf16.mxu0 0
    %3266 = vmatpush1.bf16.msra.mxu0 0
    %3267 = vmatprep.subr.bf16.mxu0 0
    %3268 = vmatpush1.bf16.msra.mxu0 0
    %3269 = vmatprep.subr.bf16.mxu0 0
    %3270 = vmatpush1.bf16.msra.mxu0 0
    %3271 = vmatprep.subr.bf16.mxu0 0
    %3272 = vmatpush1.bf16.msra.mxu0 0
    %3273 = vmatprep.mubr.bf16.mxu0 0
    %3274 = vmatmul.mubr.bf16.gmra.mrb[0].mxu0 %v2990
    %v3275 = vpop.f32.mrb[0].mxu0
    %v3276 = vadd.f32 %v3194, %v3275
    %v3277 = vpop.f32.mrb[0].mxu0
    %v3278 = vadd.f32 %v3196, %v3277
    %v3279 = vpop.f32.mrb[0].mxu0
    %v3280 = vpop.f32.mrb[0].mxu0
    %3281 = vdwg.mxu0
    %v3282 = vadd.f32 %v3235, %v1632
    %v3283 = vadd.f32 %v3237, %v1636
    %v3284 = vadd.f32 %v3276, %v1640
    %v3285 = vadd.f32 %v3278, %v1644
    %v3286 = vxor.u32 %v3282, 2147483648
    %v3287 = vmul.f32 %v3286, 1.442695
    %v3288 = vpow.pop %v3287
    %v3289 = vadd.f32 %v3288, 1.0
    %v3290 = vrcp.pop %v3289
    %v3291 = vmul.f32 1.0, %v3290
    %v3292 = vxor.u32 %v3283, 2147483648
    %v3293 = vmul.f32 %v3292, 1.442695
    %v3294 = vpow.pop %v3293
    %v3295 = vadd.f32 %v3294, 1.0
    %v3296 = vrcp.pop %v3295
    %v3297 = vmul.f32 1.0, %v3296
    %v3298 = vtanh.pop %v3284
    %v3299 = vxor.u32 %v3285, 2147483648
    %v3300 = vmul.f32 %v3299, 1.442695
    %v3301 = vpow.pop %v3300
    %v3302 = vadd.f32 %v3301, 1.0
    %v3303 = vrcp.pop %v3302
    %v3304 = vmul.f32 1.0, %v3303
    %v3305 = vmul.f32 %v3297, %v2792
    %v3306 = vmul.f32 %v3291, %v3298
    %v3307 = vadd.f32 %v3305, %v3306
    %v3308 = vtanh.pop %v3307
    %v3309 = vmul.f32 %v3304, %v3308
    %v3310 = vpack.c.bf16 %v2987, %v2987
    %3311 = vmatprep.subr.bf16.mxu0 %v1710
    %3312 = vmatpush1.bf16.msra.mxu0 %v1709
    %3313 = vmatprep.subr.bf16.mxu0 %v1714
    %3314 = vmatpush1.bf16.msra.mxu0 %v1713
    %3315 = vmatprep.subr.bf16.mxu0 %v1718
    %3316 = vmatpush1.bf16.msra.mxu0 %v1717
    %3317 = vmatprep.subr.bf16.mxu0 %v1722
    %3318 = vmatpush1.bf16.msra.mxu0 %v1721
    %3319 = vmatprep.subr.bf16.mxu0 %v1726
    %3320 = vmatpush1.bf16.msra.mxu0 %v1725
    %3321 = vmatprep.subr.bf16.mxu0 %v1730
    %3322 = vmatpush1.bf16.msra.mxu0 %v1729
    %3323 = vmatprep.subr.bf16.mxu0 %v1734
    %3324 = vmatpush1.bf16.msra.mxu0 %v1733
    %3325 = vmatprep.subr.bf16.mxu0 %v1738
    %3326 = vmatpush1.bf16.msra.mxu0 %v1737
    %3327 = vmatprep.subr.bf16.mxu0 0
    %3328 = vmatpush1.bf16.msra.mxu0 0
    %3329 = vmatprep.subr.bf16.mxu0 0
    %3330 = vmatpush1.bf16.msra.mxu0 0
    %3331 = vmatprep.subr.bf16.mxu0 0
    %3332 = vmatpush1.bf16.msra.mxu0 0
    %3333 = vmatprep.subr.bf16.mxu0 0
    %3334 = vmatpush1.bf16.msra.mxu0 0
    %3335 = vmatprep.subr.bf16.mxu0 0
    %3336 = vmatpush1.bf16.msra.mxu0 0
    %3337 = vmatprep.subr.bf16.mxu0 0
    %3338 = vmatpush1.bf16.msra.mxu0 0
    %3339 = vmatprep.subr.bf16.mxu0 0
    %3340 = vmatpush1.bf16.msra.mxu0 0
    %3341 = vmatprep.subr.bf16.mxu0 0
    %3342 = vmatpush1.bf16.msra.mxu0 0
    %3343 = vmatprep.mubr.bf16.mxu0 0
    %3344 = vmatmul.mubr.bf16.gmra.mrb[0].mxu0 %v3310
    %v3345 = vpop.f32.mrb[0].mxu0
    %v3346 = vadd.f32 0.0, %v3345
    %v3347 = vpop.f32.mrb[0].mxu0
    %v3348 = vadd.f32 0.0, %v3347
    %v3349 = vpop.f32.mrb[0].mxu0
    %v3350 = vpop.f32.mrb[0].mxu0
    %3351 = vdwg.mxu0
    %3352 = vmatprep.subr.bf16.mxu0 %v1712
    %3353 = vmatpush1.bf16.msra.mxu0 %v1711
    %3354 = vmatprep.subr.bf16.mxu0 %v1716
    %3355 = vmatpush1.bf16.msra.mxu0 %v1715
    %3356 = vmatprep.subr.bf16.mxu0 %v1720
    %3357 = vmatpush1.bf16.msra.mxu0 %v1719
    %3358 = vmatprep.subr.bf16.mxu0 %v1724
    %3359 = vmatpush1.bf16.msra.mxu0 %v1723
    %3360 = vmatprep.subr.bf16.mxu0 %v1728
    %3361 = vmatpush1.bf16.msra.mxu0 %v1727
    %3362 = vmatprep.subr.bf16.mxu0 %v1732
    %3363 = vmatpush1.bf16.msra.mxu0 %v1731
    %3364 = vmatprep.subr.bf16.mxu0 %v1736
    %3365 = vmatpush1.bf16.msra.mxu0 %v1735
    %3366 = vmatprep.subr.bf16.mxu0 %v1740
    %3367 = vmatpush1.bf16.msra.mxu0 %v1739
    %3368 = vmatprep.subr.bf16.mxu0 0
    %3369 = vmatpush1.bf16.msra.mxu0 0
    %3370 = vmatprep.subr.bf16.mxu0 0
    %3371 = vmatpush1.bf16.msra.mxu0 0
    %3372 = vmatprep.subr.bf16.mxu0 0
    %3373 = vmatpush1.bf16.msra.mxu0 0
    %3374 = vmatprep.subr.bf16.mxu0 0
    %3375 = vmatpush1.bf16.msra.mxu0 0
    %3376 = vmatprep.subr.bf16.mxu0 0
    %3377 = vmatpush1.bf16.msra.mxu0 0
    %3378 = vmatprep.subr.bf16.mxu0 0
    %3379 = vmatpush1.bf16.msra.mxu0 0
    %3380 = vmatprep.subr.bf16.mxu0 0
    %3381 = vmatpush1.bf16.msra.mxu0 0
    %3382 = vmatprep.subr.bf16.mxu0 0
    %3383 = vmatpush1.bf16.msra.mxu0 0
    %3384 = vmatprep.mubr.bf16.mxu0 0
    %3385 = vmatmul.mubr.bf16.gmra.mrb[0].mxu0 %v3310
    %v3386 = vpop.f32.mrb[0].mxu0
    %v3387 = vadd.f32 0.0, %v3386
    %v3388 = vpop.f32.mrb[0].mxu0
    %v3389 = vadd.f32 0.0, %v3388
    %v3390 = vpop.f32.mrb[0].mxu0
    %v3391 = vpop.f32.mrb[0].mxu0
    %3392 = vdwg.mxu0
    %3393 = vmatprep.subr.bf16.mxu0 %v1678
    %3394 = vmatpush1.bf16.msra.mxu0 %v1677
    %3395 = vmatprep.subr.bf16.mxu0 %v1682
    %3396 = vmatpush1.bf16.msra.mxu0 %v1681
    %3397 = vmatprep.subr.bf16.mxu0 %v1686
    %3398 = vmatpush1.bf16.msra.mxu0 %v1685
    %3399 = vmatprep.subr.bf16.mxu0 %v1690
    %3400 = vmatpush1.bf16.msra.mxu0 %v1689
    %3401 = vmatprep.subr.bf16.mxu0 %v1694
    %3402 = vmatpush1.bf16.msra.mxu0 %v1693
    %3403 = vmatprep.subr.bf16.mxu0 %v1698
    %3404 = vmatpush1.bf16.msra.mxu0 %v1697
    %3405 = vmatprep.subr.bf16.mxu0 %v1702
    %3406 = vmatpush1.bf16.msra.mxu0 %v1701
    %3407 = vmatprep.subr.bf16.mxu0 %v1706
    %3408 = vmatpush1.bf16.msra.mxu0 %v1705
    %3409 = vmatprep.subr.bf16.mxu0 0
    %3410 = vmatpush1.bf16.msra.mxu0 0
    %3411 = vmatprep.subr.bf16.mxu0 0
    %3412 = vmatpush1.bf16.msra.mxu0 0
    %3413 = vmatprep.subr.bf16.mxu0 0
    %3414 = vmatpush1.bf16.msra.mxu0 0
    %3415 = vmatprep.subr.bf16.mxu0 0
    %3416 = vmatpush1.bf16.msra.mxu0 0
    %3417 = vmatprep.subr.bf16.mxu0 0
    %3418 = vmatpush1.bf16.msra.mxu0 0
    %3419 = vmatprep.subr.bf16.mxu0 0
    %3420 = vmatpush1.bf16.msra.mxu0 0
    %3421 = vmatprep.subr.bf16.mxu0 0
    %3422 = vmatpush1.bf16.msra.mxu0 0
    %3423 = vmatprep.subr.bf16.mxu0 0
    %3424 = vmatpush1.bf16.msra.mxu0 0
    %3425 = vmatprep.mubr.bf16.mxu0 0
    %3426 = vmatmul.mubr.bf16.gmra.mrb[0].mxu0 %v3117
    %v3427 = vpop.f32.mrb[0].mxu0
    %v3428 = vadd.f32 %v3346, %v3427
    %v3429 = vpop.f32.mrb[0].mxu0
    %v3430 = vadd.f32 %v3348, %v3429
    %v3431 = vpop.f32.mrb[0].mxu0
    %v3432 = vpop.f32.mrb[0].mxu0
    %3433 = vdwg.mxu0
    %3434 = vmatprep.subr.bf16.mxu0 %v1680
    %3435 = vmatpush1.bf16.msra.mxu0 %v1679
    %3436 = vmatprep.subr.bf16.mxu0 %v1684
    %3437 = vmatpush1.bf16.msra.mxu0 %v1683
    %3438 = vmatprep.subr.bf16.mxu0 %v1688
    %3439 = vmatpush1.bf16.msra.mxu0 %v1687
    %3440 = vmatprep.subr.bf16.mxu0 %v1692
    %3441 = vmatpush1.bf16.msra.mxu0 %v1691
    %3442 = vmatprep.subr.bf16.mxu0 %v1696
    %3443 = vmatpush1.bf16.msra.mxu0 %v1695
    %3444 = vmatprep.subr.bf16.mxu0 %v1700
    %3445 = vmatpush1.bf16.msra.mxu0 %v1699
    %3446 = vmatprep.subr.bf16.mxu0 %v1704
    %3447 = vmatpush1.bf16.msra.mxu0 %v1703
    %3448 = vmatprep.subr.bf16.mxu0 %v1708
    %3449 = vmatpush1.bf16.msra.mxu0 %v1707
    %3450 = vmatprep.subr.bf16.mxu0 0
    %3451 = vmatpush1.bf16.msra.mxu0 0
    %3452 = vmatprep.subr.bf16.mxu0 0
    %3453 = vmatpush1.bf16.msra.mxu0 0
    %3454 = vmatprep.subr.bf16.mxu0 0
    %3455 = vmatpush1.bf16.msra.mxu0 0
    %3456 = vmatprep.subr.bf16.mxu0 0
    %3457 = vmatpush1.bf16.msra.mxu0 0
    %3458 = vmatprep.subr.bf16.mxu0 0
    %3459 = vmatpush1.bf16.msra.mxu0 0
    %3460 = vmatprep.subr.bf16.mxu0 0
    %3461 = vmatpush1.bf16.msra.mxu0 0
    %3462 = vmatprep.subr.bf16.mxu0 0
    %3463 = vmatpush1.bf16.msra.mxu0 0
    %3464 = vmatprep.subr.bf16.mxu0 0
    %3465 = vmatpush1.bf16.msra.mxu0 0
    %3466 = vmatprep.mubr.bf16.mxu0 0
    %3467 = vmatmul.mubr.bf16.gmra.mrb[0].mxu0 %v3117
    %v3468 = vpop.f32.mrb[0].mxu0
    %v3469 = vadd.f32 %v3387, %v3468
    %v3470 = vpop.f32.mrb[0].mxu0
    %v3471 = vadd.f32 %v3389, %v3470
    %v3472 = vpop.f32.mrb[0].mxu0
    %v3473 = vpop.f32.mrb[0].mxu0
    %3474 = vdwg.mxu0
    %v3475 = vadd.f32 %v3428, %v1911
    %v3476 = vadd.f32 %v3430, %v1915
    %v3477 = vadd.f32 %v3469, %v1919
    %v3478 = vadd.f32 %v3471, %v1923
    %v3479 = vxor.u32 %v3475, 2147483648
    %v3480 = vmul.f32 %v3479, 1.442695
    %v3481 = vpow.pop %v3480
    %v3482 = vadd.f32 %v3481, 1.0
    %v3483 = vrcp.pop %v3482
    %v3484 = vmul.f32 1.0, %v3483
    %v3485 = vxor.u32 %v3476, 2147483648
    %v3486 = vmul.f32 %v3485, 1.442695
    %v3487 = vpow.pop %v3486
    %v3488 = vadd.f32 %v3487, 1.0
    %v3489 = vrcp.pop %v3488
    %v3490 = vmul.f32 1.0, %v3489
    %v3491 = vtanh.pop %v3477
    %v3492 = vxor.u32 %v3478, 2147483648
    %v3493 = vmul.f32 %v3492, 1.442695
    %v3494 = vpow.pop %v3493
    %v3495 = vadd.f32 %v3494, 1.0
    %v3496 = vrcp.pop %v3495
    %v3497 = vmul.f32 1.0, %v3496
    %v3498 = vmul.f32 %v3490, %v2985
    %v3499 = vmul.f32 %v3484, %v3491
    %v3500 = vadd.f32 %v3498, %v3499
    %v3501 = vtanh.pop %v3500
    %v3502 = vmul.f32 %v3497, %v3501
    %v3503 = vpack.c.bf16 %v3116, %v3116
    %v3505 = vshrl.u32 %v3503, 16
    %v3507 = vrot.slane %v3505, 2
    %3509 = vmatprep.subr.bf16.mxu0 %v1238
    %3510 = vmatpush1.bf16.msra.mxu0 %v1237
    %3511 = vmatprep.subr.bf16.mxu0 %v1242
    %3512 = vmatpush1.bf16.msra.mxu0 %v1241
    %3513 = vmatprep.subr.bf16.mxu0 %v1246
    %3514 = vmatpush1.bf16.msra.mxu0 %v1245
    %3515 = vmatprep.subr.bf16.mxu0 %v1250
    %3516 = vmatpush1.bf16.msra.mxu0 %v1249
    %3517 = vmatprep.subr.bf16.mxu0 %v1254
    %3518 = vmatpush1.bf16.msra.mxu0 %v1253
    %3519 = vmatprep.subr.bf16.mxu0 %v1258
    %3520 = vmatpush1.bf16.msra.mxu0 %v1257
    %3521 = vmatprep.subr.bf16.mxu0 %v1262
    %3522 = vmatpush1.bf16.msra.mxu0 %v1261
    %3523 = vmatprep.subr.bf16.mxu0 %v1266
    %3524 = vmatpush1.bf16.msra.mxu0 %v1265
    %3525 = vmatprep.subr.bf16.mxu0 0
    %3526 = vmatpush1.bf16.msra.mxu0 0
    %3527 = vmatprep.subr.bf16.mxu0 0
    %3528 = vmatpush1.bf16.msra.mxu0 0
    %3529 = vmatprep.subr.bf16.mxu0 0
    %3530 = vmatpush1.bf16.msra.mxu0 0
    %3531 = vmatprep.subr.bf16.mxu0 0
    %3532 = vmatpush1.bf16.msra.mxu0 0
    %3533 = vmatprep.subr.bf16.mxu0 0
    %3534 = vmatpush1.bf16.msra.mxu0 0
    %3535 = vmatprep.subr.bf16.mxu0 0
    %3536 = vmatpush1.bf16.msra.mxu0 0
    %3537 = vmatprep.subr.bf16.mxu0 0
    %3538 = vmatpush1.bf16.msra.mxu0 0
    %3539 = vmatprep.subr.bf16.mxu0 0
    %3540 = vmatpush1.bf16.msra.mxu0 0
    %3541 = vmatprep.mubr.bf16.mxu0 0
    %3542 = vmatmul.mubr.bf16.gmra.mrb[0].mxu0 %v3507
    %v3543 = vpop.f32.mrb[0].mxu0
    %v3544 = vadd.f32 0.0, %v3543
    %v3545 = vpop.f32.mrb[0].mxu0
    %v3546 = vadd.f32 0.0, %v3545
    %v3547 = vpop.f32.mrb[0].mxu0
    %v3548 = vpop.f32.mrb[0].mxu0
    %3549 = vdwg.mxu0
    %3550 = vmatprep.subr.bf16.mxu0 %v1240
    %3551 = vmatpush1.bf16.msra.mxu0 %v1239
    %3552 = vmatprep.subr.bf16.mxu0 %v1244
    %3553 = vmatpush1.bf16.msra.mxu0 %v1243
    %3554 = vmatprep.subr.bf16.mxu0 %v1248
    %3555 = vmatpush1.bf16.msra.mxu0 %v1247
    %3556 = vmatprep.subr.bf16.mxu0 %v1252
    %3557 = vmatpush1.bf16.msra.mxu0 %v1251
    %3558 = vmatprep.subr.bf16.mxu0 %v1256
    %3559 = vmatpush1.bf16.msra.mxu0 %v1255
    %3560 = vmatprep.subr.bf16.mxu0 %v1260
    %3561 = vmatpush1.bf16.msra.mxu0 %v1259
    %3562 = vmatprep.subr.bf16.mxu0 %v1264
    %3563 = vmatpush1.bf16.msra.mxu0 %v1263
    %3564 = vmatprep.subr.bf16.mxu0 %v1268
    %3565 = vmatpush1.bf16.msra.mxu0 %v1267
    %3566 = vmatprep.subr.bf16.mxu0 0
    %3567 = vmatpush1.bf16.msra.mxu0 0
    %3568 = vmatprep.subr.bf16.mxu0 0
    %3569 = vmatpush1.bf16.msra.mxu0 0
    %3570 = vmatprep.subr.bf16.mxu0 0
    %3571 = vmatpush1.bf16.msra.mxu0 0
    %3572 = vmatprep.subr.bf16.mxu0 0
    %3573 = vmatpush1.bf16.msra.mxu0 0
    %3574 = vmatprep.subr.bf16.mxu0 0
    %3575 = vmatpush1.bf16.msra.mxu0 0
    %3576 = vmatprep.subr.bf16.mxu0 0
    %3577 = vmatpush1.bf16.msra.mxu0 0
    %3578 = vmatprep.subr.bf16.mxu0 0
    %3579 = vmatpush1.bf16.msra.mxu0 0
    %3580 = vmatprep.subr.bf16.mxu0 0
    %3581 = vmatpush1.bf16.msra.mxu0 0
    %3582 = vmatprep.mubr.bf16.mxu0 0
    %3583 = vmatmul.mubr.bf16.gmra.mrb[0].mxu0 %v3507
    %v3584 = vpop.f32.mrb[0].mxu0
    %v3585 = vadd.f32 0.0, %v3584
    %v3586 = vpop.f32.mrb[0].mxu0
    %v3587 = vadd.f32 0.0, %v3586
    %v3588 = vpop.f32.mrb[0].mxu0
    %v3589 = vpop.f32.mrb[0].mxu0
    %3590 = vdwg.mxu0
    %v3595 = vrot.slane %v3544, 2
    %v3596 = vrot.slane %v3546, 2
    %v3597 = vrot.slane %v3585, 2
    %v3598 = vrot.slane %v3587, 2
    %v3603 = vadd.f32 %v602, %v3595
    %v3604 = vadd.f32 %v604, %v3596
    %v3605 = vadd.f32 %v643, %v3597
    %v3606 = vadd.f32 %v645, %v3598
    %v3607 = vxor.u32 %v3603, 2147483648
    %v3608 = vmul.f32 %v3607, 1.442695
    %v3609 = vpow.pop %v3608
    %v3610 = vadd.f32 %v3609, 1.0
    %v3611 = vrcp.pop %v3610
    %v3612 = vmul.f32 1.0, %v3611
    %v3613 = vxor.u32 %v3604, 2147483648
    %v3614 = vmul.f32 %v3613, 1.442695
    %v3615 = vpow.pop %v3614
    %v3616 = vadd.f32 %v3615, 1.0
    %v3617 = vrcp.pop %v3616
    %v3618 = vmul.f32 1.0, %v3617
    %v3619 = vtanh.pop %v3605
    %v3620 = vxor.u32 %v3606, 2147483648
    %v3621 = vmul.f32 %v3620, 1.442695
    %v3622 = vpow.pop %v3621
    %v3623 = vadd.f32 %v3622, 1.0
    %v3624 = vrcp.pop %v3623
    %v3625 = vmul.f32 1.0, %v3624
    %v3627 = vrot.slane %v3114, 7
    %v3629 = vmul.f32 %v3618, %v3627
    %v3630 = vmul.f32 %v3612, %v3619
    %v3631 = vadd.f32 %v3629, %v3630
    %v3632 = vtanh.pop %v3631
    %v3633 = vmul.f32 %v3625, %v3632
    %v3634 = vpack.c.bf16 %v3309, %v3309
    %3635 = vmatprep.subr.bf16.mxu0 %v1432
    %3636 = vmatpush1.bf16.msra.mxu0 %v1431
    %3637 = vmatprep.subr.bf16.mxu0 %v1436
    %3638 = vmatpush1.bf16.msra.mxu0 %v1435
    %3639 = vmatprep.subr.bf16.mxu0 %v1440
    %3640 = vmatpush1.bf16.msra.mxu0 %v1439
    %3641 = vmatprep.subr.bf16.mxu0 %v1444
    %3642 = vmatpush1.bf16.msra.mxu0 %v1443
    %3643 = vmatprep.subr.bf16.mxu0 %v1448
    %3644 = vmatpush1.bf16.msra.mxu0 %v1447
    %3645 = vmatprep.subr.bf16.mxu0 %v1452
    %3646 = vmatpush1.bf16.msra.mxu0 %v1451
    %3647 = vmatprep.subr.bf16.mxu0 %v1456
    %3648 = vmatpush1.bf16.msra.mxu0 %v1455
    %3649 = vmatprep.subr.bf16.mxu0 %v1460
    %3650 = vmatpush1.bf16.msra.mxu0 %v1459
    %3651 = vmatprep.subr.bf16.mxu0 0
    %3652 = vmatpush1.bf16.msra.mxu0 0
    %3653 = vmatprep.subr.bf16.mxu0 0
    %3654 = vmatpush1.bf16.msra.mxu0 0
    %3655 = vmatprep.subr.bf16.mxu0 0
    %3656 = vmatpush1.bf16.msra.mxu0 0
    %3657 = vmatprep.subr.bf16.mxu0 0
    %3658 = vmatpush1.bf16.msra.mxu0 0
    %3659 = vmatprep.subr.bf16.mxu0 0
    %3660 = vmatpush1.bf16.msra.mxu0 0
    %3661 = vmatprep.subr.bf16.mxu0 0
    %3662 = vmatpush1.bf16.msra.mxu0 0
    %3663 = vmatprep.subr.bf16.mxu0 0
    %3664 = vmatpush1.bf16.msra.mxu0 0
    %3665 = vmatprep.subr.bf16.mxu0 0
    %3666 = vmatpush1.bf16.msra.mxu0 0
    %3667 = vmatprep.mubr.bf16.mxu0 0
    %3668 = vmatmul.mubr.bf16.gmra.mrb[0].mxu0 %v3634
    %v3669 = vpop.f32.mrb[0].mxu0
    %v3670 = vadd.f32 0.0, %v3669
    %v3671 = vpop.f32.mrb[0].mxu0
    %v3672 = vadd.f32 0.0, %v3671
    %v3673 = vpop.f32.mrb[0].mxu0
    %v3674 = vpop.f32.mrb[0].mxu0
    %3675 = vdwg.mxu0
    %3676 = vmatprep.subr.bf16.mxu0 %v1434
    %3677 = vmatpush1.bf16.msra.mxu0 %v1433
    %3678 = vmatprep.subr.bf16.mxu0 %v1438
    %3679 = vmatpush1.bf16.msra.mxu0 %v1437
    %3680 = vmatprep.subr.bf16.mxu0 %v1442
    %3681 = vmatpush1.bf16.msra.mxu0 %v1441
    %3682 = vmatprep.subr.bf16.mxu0 %v1446
    %3683 = vmatpush1.bf16.msra.mxu0 %v1445
    %3684 = vmatprep.subr.bf16.mxu0 %v1450
    %3685 = vmatpush1.bf16.msra.mxu0 %v1449
    %3686 = vmatprep.subr.bf16.mxu0 %v1454
    %3687 = vmatpush1.bf16.msra.mxu0 %v1453
    %3688 = vmatprep.subr.bf16.mxu0 %v1458
    %3689 = vmatpush1.bf16.msra.mxu0 %v1457
    %3690 = vmatprep.subr.bf16.mxu0 %v1462
    %3691 = vmatpush1.bf16.msra.mxu0 %v1461
    %3692 = vmatprep.subr.bf16.mxu0 0
    %3693 = vmatpush1.bf16.msra.mxu0 0
    %3694 = vmatprep.subr.bf16.mxu0 0
    %3695 = vmatpush1.bf16.msra.mxu0 0
    %3696 = vmatprep.subr.bf16.mxu0 0
    %3697 = vmatpush1.bf16.msra.mxu0 0
    %3698 = vmatprep.subr.bf16.mxu0 0
    %3699 = vmatpush1.bf16.msra.mxu0 0
    %3700 = vmatprep.subr.bf16.mxu0 0
    %3701 = vmatpush1.bf16.msra.mxu0 0
    %3702 = vmatprep.subr.bf16.mxu0 0
    %3703 = vmatpush1.bf16.msra.mxu0 0
    %3704 = vmatprep.subr.bf16.mxu0 0
    %3705 = vmatpush1.bf16.msra.mxu0 0
    %3706 = vmatprep.subr.bf16.mxu0 0
    %3707 = vmatpush1.bf16.msra.mxu0 0
    %3708 = vmatprep.mubr.bf16.mxu0 0
    %3709 = vmatmul.mubr.bf16.gmra.mrb[0].mxu0 %v3634
    %v3710 = vpop.f32.mrb[0].mxu0
    %v3711 = vadd.f32 0.0, %v3710
    %v3712 = vpop.f32.mrb[0].mxu0
    %v3713 = vadd.f32 0.0, %v3712
    %v3714 = vpop.f32.mrb[0].mxu0
    %v3715 = vpop.f32.mrb[0].mxu0
    %3716 = vdwg.mxu0
    %3717 = vmatprep.subr.bf16.mxu0 %v1399
    %3718 = vmatpush1.bf16.msra.mxu0 %v1398
    %3719 = vmatprep.subr.bf16.mxu0 %v1403
    %3720 = vmatpush1.bf16.msra.mxu0 %v1402
    %3721 = vmatprep.subr.bf16.mxu0 %v1407
    %3722 = vmatpush1.bf16.msra.mxu0 %v1406
    %3723 = vmatprep.subr.bf16.mxu0 %v1411
    %3724 = vmatpush1.bf16.msra.mxu0 %v1410
    %3725 = vmatprep.subr.bf16.mxu0 %v1415
    %3726 = vmatpush1.bf16.msra.mxu0 %v1414
    %3727 = vmatprep.subr.bf16.mxu0 %v1419
    %3728 = vmatpush1.bf16.msra.mxu0 %v1418
    %3729 = vmatprep.subr.bf16.mxu0 %v1423
    %3730 = vmatpush1.bf16.msra.mxu0 %v1422
    %3731 = vmatprep.subr.bf16.mxu0 %v1427
    %3732 = vmatpush1.bf16.msra.mxu0 %v1426
    %3733 = vmatprep.subr.bf16.mxu0 0
    %3734 = vmatpush1.bf16.msra.mxu0 0
    %3735 = vmatprep.subr.bf16.mxu0 0
    %3736 = vmatpush1.bf16.msra.mxu0 0
    %3737 = vmatprep.subr.bf16.mxu0 0
    %3738 = vmatpush1.bf16.msra.mxu0 0
    %3739 = vmatprep.subr.bf16.mxu0 0
    %3740 = vmatpush1.bf16.msra.mxu0 0
    %3741 = vmatprep.subr.bf16.mxu0 0
    %3742 = vmatpush1.bf16.msra.mxu0 0
    %3743 = vmatprep.subr.bf16.mxu0 0
    %3744 = vmatpush1.bf16.msra.mxu0 0
    %3745 = vmatprep.subr.bf16.mxu0 0
    %3746 = vmatpush1.bf16.msra.mxu0 0
    %3747 = vmatprep.subr.bf16.mxu0 0
    %3748 = vmatpush1.bf16.msra.mxu0 0
    %3749 = vmatprep.mubr.bf16.mxu0 0
    %3750 = vmatmul.mubr.bf16.gmra.mrb[0].mxu0 %v3507
    %v3751 = vpop.f32.mrb[0].mxu0
    %v3752 = vadd.f32 %v3670, %v3751
    %v3753 = vpop.f32.mrb[0].mxu0
    %v3754 = vadd.f32 %v3672, %v3753
    %v3755 = vpop.f32.mrb[0].mxu0
    %v3756 = vpop.f32.mrb[0].mxu0
    %3757 = vdwg.mxu0
    %3758 = vmatprep.subr.bf16.mxu0 %v1401
    %3759 = vmatpush1.bf16.msra.mxu0 %v1400
    %3760 = vmatprep.subr.bf16.mxu0 %v1405
    %3761 = vmatpush1.bf16.msra.mxu0 %v1404
    %3762 = vmatprep.subr.bf16.mxu0 %v1409
    %3763 = vmatpush1.bf16.msra.mxu0 %v1408
    %3764 = vmatprep.subr.bf16.mxu0 %v1413
    %3765 = vmatpush1.bf16.msra.mxu0 %v1412
    %3766 = vmatprep.subr.bf16.mxu0 %v1417
    %3767 = vmatpush1.bf16.msra.mxu0 %v1416
    %3768 = vmatprep.subr.bf16.mxu0 %v1421
    %3769 = vmatpush1.bf16.msra.mxu0 %v1420
    %3770 = vmatprep.subr.bf16.mxu0 %v1425
    %3771 = vmatpush1.bf16.msra.mxu0 %v1424
    %3772 = vmatprep.subr.bf16.mxu0 %v1429
    %3773 = vmatpush1.bf16.msra.mxu0 %v1428
    %3774 = vmatprep.subr.bf16.mxu0 0
    %3775 = vmatpush1.bf16.msra.mxu0 0
    %3776 = vmatprep.subr.bf16.mxu0 0
    %3777 = vmatpush1.bf16.msra.mxu0 0
    %3778 = vmatprep.subr.bf16.mxu0 0
    %3779 = vmatpush1.bf16.msra.mxu0 0
    %3780 = vmatprep.subr.bf16.mxu0 0
    %3781 = vmatpush1.bf16.msra.mxu0 0
    %3782 = vmatprep.subr.bf16.mxu0 0
    %3783 = vmatpush1.bf16.msra.mxu0 0
    %3784 = vmatprep.subr.bf16.mxu0 0
    %3785 = vmatpush1.bf16.msra.mxu0 0
    %3786 = vmatprep.subr.bf16.mxu0 0
    %3787 = vmatpush1.bf16.msra.mxu0 0
    %3788 = vmatprep.subr.bf16.mxu0 0
    %3789 = vmatpush1.bf16.msra.mxu0 0
    %3790 = vmatprep.mubr.bf16.mxu0 0
    %3791 = vmatmul.mubr.bf16.gmra.mrb[0].mxu0 %v3507
    %v3792 = vpop.f32.mrb[0].mxu0
    %v3793 = vadd.f32 %v3711, %v3792
    %v3794 = vpop.f32.mrb[0].mxu0
    %v3795 = vadd.f32 %v3713, %v3794
    %v3796 = vpop.f32.mrb[0].mxu0
    %v3797 = vpop.f32.mrb[0].mxu0
    %3798 = vdwg.mxu0
    %v3799 = vadd.f32 %v3752, %v1632
    %v3800 = vadd.f32 %v3754, %v1636
    %v3801 = vadd.f32 %v3793, %v1640
    %v3802 = vadd.f32 %v3795, %v1644
    %v3803 = vxor.u32 %v3799, 2147483648
    %v3804 = vmul.f32 %v3803, 1.442695
    %v3805 = vpow.pop %v3804
    %v3806 = vadd.f32 %v3805, 1.0
    %v3807 = vrcp.pop %v3806
    %v3808 = vmul.f32 1.0, %v3807
    %v3809 = vxor.u32 %v3800, 2147483648
    %v3810 = vmul.f32 %v3809, 1.442695
    %v3811 = vpow.pop %v3810
    %v3812 = vadd.f32 %v3811, 1.0
    %v3813 = vrcp.pop %v3812
    %v3814 = vmul.f32 1.0, %v3813
    %v3815 = vtanh.pop %v3801
    %v3816 = vxor.u32 %v3802, 2147483648
    %v3817 = vmul.f32 %v3816, 1.442695
    %v3818 = vpow.pop %v3817
    %v3819 = vadd.f32 %v3818, 1.0
    %v3820 = vrcp.pop %v3819
    %v3821 = vmul.f32 1.0, %v3820
    %v3822 = vmul.f32 %v3814, %v3307
    %v3823 = vmul.f32 %v3808, %v3815
    %v3824 = vadd.f32 %v3822, %v3823
    %v3825 = vtanh.pop %v3824
    %v3826 = vmul.f32 %v3821, %v3825
    %v3827 = vpack.c.bf16 %v3502, %v3502
    %3828 = vmatprep.subr.bf16.mxu0 %v1710
    %3829 = vmatpush1.bf16.msra.mxu0 %v1709
    %3830 = vmatprep.subr.bf16.mxu0 %v1714
    %3831 = vmatpush1.bf16.msra.mxu0 %v1713
    %3832 = vmatprep.subr.bf16.mxu0 %v1718
    %3833 = vmatpush1.bf16.msra.mxu0 %v1717
    %3834 = vmatprep.subr.bf16.mxu0 %v1722
    %3835 = vmatpush1.bf16.msra.mxu0 %v1721
    %3836 = vmatprep.subr.bf16.mxu0 %v1726
    %3837 = vmatpush1.bf16.msra.mxu0 %v1725
    %3838 = vmatprep.subr.bf16.mxu0 %v1730
    %3839 = vmatpush1.bf16.msra.mxu0 %v1729
    %3840 = vmatprep.subr.bf16.mxu0 %v1734
    %3841 = vmatpush1.bf16.msra.mxu0 %v1733
    %3842 = vmatprep.subr.bf16.mxu0 %v1738
    %3843 = vmatpush1.bf16.msra.mxu0 %v1737
    %3844 = vmatprep.subr.bf16.mxu0 0
    %3845 = vmatpush1.bf16.msra.mxu0 0
    %3846 = vmatprep.subr.bf16.mxu0 0
    %3847 = vmatpush1.bf16.msra.mxu0 0
    %3848 = vmatprep.subr.bf16.mxu0 0
    %3849 = vmatpush1.bf16.msra.mxu0 0
    %3850 = vmatprep.subr.bf16.mxu0 0
    %3851 = vmatpush1.bf16.msra.mxu0 0
    %3852 = vmatprep.subr.bf16.mxu0 0
    %3853 = vmatpush1.bf16.msra.mxu0 0
    %3854 = vmatprep.subr.bf16.mxu0 0
    %3855 = vmatpush1.bf16.msra.mxu0 0
    %3856 = vmatprep.subr.bf16.mxu0 0
    %3857 = vmatpush1.bf16.msra.mxu0 0
    %3858 = vmatprep.subr.bf16.mxu0 0
    %3859 = vmatpush1.bf16.msra.mxu0 0
    %3860 = vmatprep.mubr.bf16.mxu0 0
    %3861 = vmatmul.mubr.bf16.gmra.mrb[0].mxu0 %v3827
    %v3862 = vpop.f32.mrb[0].mxu0
    %v3863 = vadd.f32 0.0, %v3862
    %v3864 = vpop.f32.mrb[0].mxu0
    %v3865 = vadd.f32 0.0, %v3864
    %v3866 = vpop.f32.mrb[0].mxu0
    %v3867 = vpop.f32.mrb[0].mxu0
    %3868 = vdwg.mxu0
    %3869 = vmatprep.subr.bf16.mxu0 %v1712
    %3870 = vmatpush1.bf16.msra.mxu0 %v1711
    %3871 = vmatprep.subr.bf16.mxu0 %v1716
    %3872 = vmatpush1.bf16.msra.mxu0 %v1715
    %3873 = vmatprep.subr.bf16.mxu0 %v1720
    %3874 = vmatpush1.bf16.msra.mxu0 %v1719
    %3875 = vmatprep.subr.bf16.mxu0 %v1724
    %3876 = vmatpush1.bf16.msra.mxu0 %v1723
    %3877 = vmatprep.subr.bf16.mxu0 %v1728
    %3878 = vmatpush1.bf16.msra.mxu0 %v1727
    %3879 = vmatprep.subr.bf16.mxu0 %v1732
    %3880 = vmatpush1.bf16.msra.mxu0 %v1731
    %3881 = vmatprep.subr.bf16.mxu0 %v1736
    %3882 = vmatpush1.bf16.msra.mxu0 %v1735
    %3883 = vmatprep.subr.bf16.mxu0 %v1740
    %3884 = vmatpush1.bf16.msra.mxu0 %v1739
    %3885 = vmatprep.subr.bf16.mxu0 0
    %3886 = vmatpush1.bf16.msra.mxu0 0
    %3887 = vmatprep.subr.bf16.mxu0 0
    %3888 = vmatpush1.bf16.msra.mxu0 0
    %3889 = vmatprep.subr.bf16.mxu0 0
    %3890 = vmatpush1.bf16.msra.mxu0 0
    %3891 = vmatprep.subr.bf16.mxu0 0
    %3892 = vmatpush1.bf16.msra.mxu0 0
    %3893 = vmatprep.subr.bf16.mxu0 0
    %3894 = vmatpush1.bf16.msra.mxu0 0
    %3895 = vmatprep.subr.bf16.mxu0 0
    %3896 = vmatpush1.bf16.msra.mxu0 0
    %3897 = vmatprep.subr.bf16.mxu0 0
    %3898 = vmatpush1.bf16.msra.mxu0 0
    %3899 = vmatprep.subr.bf16.mxu0 0
    %3900 = vmatpush1.bf16.msra.mxu0 0
    %3901 = vmatprep.mubr.bf16.mxu0 0
    %3902 = vmatmul.mubr.bf16.gmra.mrb[0].mxu0 %v3827
    %v3903 = vpop.f32.mrb[0].mxu0
    %v3904 = vadd.f32 0.0, %v3903
    %v3905 = vpop.f32.mrb[0].mxu0
    %v3906 = vadd.f32 0.0, %v3905
    %v3907 = vpop.f32.mrb[0].mxu0
    %v3908 = vpop.f32.mrb[0].mxu0
    %3909 = vdwg.mxu0
    %3910 = vmatprep.subr.bf16.mxu0 %v1678
    %3911 = vmatpush1.bf16.msra.mxu0 %v1677
    %3912 = vmatprep.subr.bf16.mxu0 %v1682
    %3913 = vmatpush1.bf16.msra.mxu0 %v1681
    %3914 = vmatprep.subr.bf16.mxu0 %v1686
    %3915 = vmatpush1.bf16.msra.mxu0 %v1685
    %3916 = vmatprep.subr.bf16.mxu0 %v1690
    %3917 = vmatpush1.bf16.msra.mxu0 %v1689
    %3918 = vmatprep.subr.bf16.mxu0 %v1694
    %3919 = vmatpush1.bf16.msra.mxu0 %v1693
    %3920 = vmatprep.subr.bf16.mxu0 %v1698
    %3921 = vmatpush1.bf16.msra.mxu0 %v1697
    %3922 = vmatprep.subr.bf16.mxu0 %v1702
    %3923 = vmatpush1.bf16.msra.mxu0 %v1701
    %3924 = vmatprep.subr.bf16.mxu0 %v1706
    %3925 = vmatpush1.bf16.msra.mxu0 %v1705
    %3926 = vmatprep.subr.bf16.mxu0 0
    %3927 = vmatpush1.bf16.msra.mxu0 0
    %3928 = vmatprep.subr.bf16.mxu0 0
    %3929 = vmatpush1.bf16.msra.mxu0 0
    %3930 = vmatprep.subr.bf16.mxu0 0
    %3931 = vmatpush1.bf16.msra.mxu0 0
    %3932 = vmatprep.subr.bf16.mxu0 0
    %3933 = vmatpush1.bf16.msra.mxu0 0
    %3934 = vmatprep.subr.bf16.mxu0 0
    %3935 = vmatpush1.bf16.msra.mxu0 0
    %3936 = vmatprep.subr.bf16.mxu0 0
    %3937 = vmatpush1.bf16.msra.mxu0 0
    %3938 = vmatprep.subr.bf16.mxu0 0
    %3939 = vmatpush1.bf16.msra.mxu0 0
    %3940 = vmatprep.subr.bf16.mxu0 0
    %3941 = vmatpush1.bf16.msra.mxu0 0
    %3942 = vmatprep.mubr.bf16.mxu0 0
    %3943 = vmatmul.mubr.bf16.gmra.mrb[0].mxu0 %v3634
    %v3944 = vpop.f32.mrb[0].mxu0
    %v3945 = vadd.f32 %v3863, %v3944
    %v3946 = vpop.f32.mrb[0].mxu0
    %v3947 = vadd.f32 %v3865, %v3946
    %v3948 = vpop.f32.mrb[0].mxu0
    %v3949 = vpop.f32.mrb[0].mxu0
    %3950 = vdwg.mxu0
    %3951 = vmatprep.subr.bf16.mxu0 %v1680
    %3952 = vmatpush1.bf16.msra.mxu0 %v1679
    %3953 = vmatprep.subr.bf16.mxu0 %v1684
    %3954 = vmatpush1.bf16.msra.mxu0 %v1683
    %3955 = vmatprep.subr.bf16.mxu0 %v1688
    %3956 = vmatpush1.bf16.msra.mxu0 %v1687
    %3957 = vmatprep.subr.bf16.mxu0 %v1692
    %3958 = vmatpush1.bf16.msra.mxu0 %v1691
    %3959 = vmatprep.subr.bf16.mxu0 %v1696
    %3960 = vmatpush1.bf16.msra.mxu0 %v1695
    %3961 = vmatprep.subr.bf16.mxu0 %v1700
    %3962 = vmatpush1.bf16.msra.mxu0 %v1699
    %3963 = vmatprep.subr.bf16.mxu0 %v1704
    %3964 = vmatpush1.bf16.msra.mxu0 %v1703
    %3965 = vmatprep.subr.bf16.mxu0 %v1708
    %3966 = vmatpush1.bf16.msra.mxu0 %v1707
    %3967 = vmatprep.subr.bf16.mxu0 0
    %3968 = vmatpush1.bf16.msra.mxu0 0
    %3969 = vmatprep.subr.bf16.mxu0 0
    %3970 = vmatpush1.bf16.msra.mxu0 0
    %3971 = vmatprep.subr.bf16.mxu0 0
    %3972 = vmatpush1.bf16.msra.mxu0 0
    %3973 = vmatprep.subr.bf16.mxu0 0
    %3974 = vmatpush1.bf16.msra.mxu0 0
    %3975 = vmatprep.subr.bf16.mxu0 0
    %3976 = vmatpush1.bf16.msra.mxu0 0
    %3977 = vmatprep.subr.bf16.mxu0 0
    %3978 = vmatpush1.bf16.msra.mxu0 0
    %3979 = vmatprep.subr.bf16.mxu0 0
    %3980 = vmatpush1.bf16.msra.mxu0 0
    %3981 = vmatprep.subr.bf16.mxu0 0
    %3982 = vmatpush1.bf16.msra.mxu0 0
    %3983 = vmatprep.mubr.bf16.mxu0 0
    %3984 = vmatmul.mubr.bf16.gmra.mrb[0].mxu0 %v3634
    %v3985 = vpop.f32.mrb[0].mxu0
    %v3986 = vadd.f32 %v3904, %v3985
    %v3987 = vpop.f32.mrb[0].mxu0
    %v3988 = vadd.f32 %v3906, %v3987
    %v3989 = vpop.f32.mrb[0].mxu0
    %v3990 = vpop.f32.mrb[0].mxu0
    %3991 = vdwg.mxu0
    %v3992 = vadd.f32 %v3945, %v1911
    %v3993 = vadd.f32 %v3947, %v1915
    %v3994 = vadd.f32 %v3986, %v1919
    %v3995 = vadd.f32 %v3988, %v1923
    %v3996 = vxor.u32 %v3992, 2147483648
    %v3997 = vmul.f32 %v3996, 1.442695
    %v3998 = vpow.pop %v3997
    %v3999 = vadd.f32 %v3998, 1.0
    %v4000 = vrcp.pop %v3999
    %v4001 = vmul.f32 1.0, %v4000
    %v4002 = vxor.u32 %v3993, 2147483648
    %v4003 = vmul.f32 %v4002, 1.442695
    %v4004 = vpow.pop %v4003
    %v4005 = vadd.f32 %v4004, 1.0
    %v4006 = vrcp.pop %v4005
    %v4007 = vmul.f32 1.0, %v4006
    %v4008 = vtanh.pop %v3994
    %v4009 = vxor.u32 %v3995, 2147483648
    %v4010 = vmul.f32 %v4009, 1.442695
    %v4011 = vpow.pop %v4010
    %v4012 = vadd.f32 %v4011, 1.0
    %v4013 = vrcp.pop %v4012
    %v4014 = vmul.f32 1.0, %v4013
    %v4015 = vmul.f32 %v4007, %v3500
    %v4016 = vmul.f32 %v4001, %v4008
    %v4017 = vadd.f32 %v4015, %v4016
    %v4018 = vtanh.pop %v4017
    %v4019 = vmul.f32 %v4014, %v4018
    %v4020 = vpack.c.bf16 %v3633, %v3633
    %v4022 = vrot.slane %v4020, 3
    %4024 = vmatprep.subr.bf16.mxu0 %v1238
    %4025 = vmatpush1.bf16.msra.mxu0 %v1237
    %4026 = vmatprep.subr.bf16.mxu0 %v1242
    %4027 = vmatpush1.bf16.msra.mxu0 %v1241
    %4028 = vmatprep.subr.bf16.mxu0 %v1246
    %4029 = vmatpush1.bf16.msra.mxu0 %v1245
    %4030 = vmatprep.subr.bf16.mxu0 %v1250
    %4031 = vmatpush1.bf16.msra.mxu0 %v1249
    %4032 = vmatprep.subr.bf16.mxu0 %v1254
    %4033 = vmatpush1.bf16.msra.mxu0 %v1253
    %4034 = vmatprep.subr.bf16.mxu0 %v1258
    %4035 = vmatpush1.bf16.msra.mxu0 %v1257
    %4036 = vmatprep.subr.bf16.mxu0 %v1262
    %4037 = vmatpush1.bf16.msra.mxu0 %v1261
    %4038 = vmatprep.subr.bf16.mxu0 %v1266
    %4039 = vmatpush1.bf16.msra.mxu0 %v1265
    %4040 = vmatprep.subr.bf16.mxu0 0
    %4041 = vmatpush1.bf16.msra.mxu0 0
    %4042 = vmatprep.subr.bf16.mxu0 0
    %4043 = vmatpush1.bf16.msra.mxu0 0
    %4044 = vmatprep.subr.bf16.mxu0 0
    %4045 = vmatpush1.bf16.msra.mxu0 0
    %4046 = vmatprep.subr.bf16.mxu0 0
    %4047 = vmatpush1.bf16.msra.mxu0 0
    %4048 = vmatprep.subr.bf16.mxu0 0
    %4049 = vmatpush1.bf16.msra.mxu0 0
    %4050 = vmatprep.subr.bf16.mxu0 0
    %4051 = vmatpush1.bf16.msra.mxu0 0
    %4052 = vmatprep.subr.bf16.mxu0 0
    %4053 = vmatpush1.bf16.msra.mxu0 0
    %4054 = vmatprep.subr.bf16.mxu0 0
    %4055 = vmatpush1.bf16.msra.mxu0 0
    %4056 = vmatprep.mubr.bf16.mxu0 0
    %4057 = vmatmul.mubr.bf16.gmra.mrb[0].mxu0 %v4022
    %v4058 = vpop.f32.mrb[0].mxu0
    %v4059 = vadd.f32 0.0, %v4058
    %v4060 = vpop.f32.mrb[0].mxu0
    %v4061 = vadd.f32 0.0, %v4060
    %v4062 = vpop.f32.mrb[0].mxu0
    %v4063 = vpop.f32.mrb[0].mxu0
    %4064 = vdwg.mxu0
    %4065 = vmatprep.subr.bf16.mxu0 %v1240
    %4066 = vmatpush1.bf16.msra.mxu0 %v1239
    %4067 = vmatprep.subr.bf16.mxu0 %v1244
    %4068 = vmatpush1.bf16.msra.mxu0 %v1243
    %4069 = vmatprep.subr.bf16.mxu0 %v1248
    %4070 = vmatpush1.bf16.msra.mxu0 %v1247
    %4071 = vmatprep.subr.bf16.mxu0 %v1252
    %4072 = vmatpush1.bf16.msra.mxu0 %v1251
    %4073 = vmatprep.subr.bf16.mxu0 %v1256
    %4074 = vmatpush1.bf16.msra.mxu0 %v1255
    %4075 = vmatprep.subr.bf16.mxu0 %v1260
    %4076 = vmatpush1.bf16.msra.mxu0 %v1259
    %4077 = vmatprep.subr.bf16.mxu0 %v1264
    %4078 = vmatpush1.bf16.msra.mxu0 %v1263
    %4079 = vmatprep.subr.bf16.mxu0 %v1268
    %4080 = vmatpush1.bf16.msra.mxu0 %v1267
    %4081 = vmatprep.subr.bf16.mxu0 0
    %4082 = vmatpush1.bf16.msra.mxu0 0
    %4083 = vmatprep.subr.bf16.mxu0 0
    %4084 = vmatpush1.bf16.msra.mxu0 0
    %4085 = vmatprep.subr.bf16.mxu0 0
    %4086 = vmatpush1.bf16.msra.mxu0 0
    %4087 = vmatprep.subr.bf16.mxu0 0
    %4088 = vmatpush1.bf16.msra.mxu0 0
    %4089 = vmatprep.subr.bf16.mxu0 0
    %4090 = vmatpush1.bf16.msra.mxu0 0
    %4091 = vmatprep.subr.bf16.mxu0 0
    %4092 = vmatpush1.bf16.msra.mxu0 0
    %4093 = vmatprep.subr.bf16.mxu0 0
    %4094 = vmatpush1.bf16.msra.mxu0 0
    %4095 = vmatprep.subr.bf16.mxu0 0
    %4096 = vmatpush1.bf16.msra.mxu0 0
    %4097 = vmatprep.mubr.bf16.mxu0 0
    %4098 = vmatmul.mubr.bf16.gmra.mrb[0].mxu0 %v4022
    %v4099 = vpop.f32.mrb[0].mxu0
    %v4100 = vadd.f32 0.0, %v4099
    %v4101 = vpop.f32.mrb[0].mxu0
    %v4102 = vadd.f32 0.0, %v4101
    %v4103 = vpop.f32.mrb[0].mxu0
    %v4104 = vpop.f32.mrb[0].mxu0
    %4105 = vdwg.mxu0
    %v4110 = vrot.slane %v4059, 1
    %v4111 = vrot.slane %v4061, 1
    %v4112 = vrot.slane %v4100, 1
    %v4113 = vrot.slane %v4102, 1
    %v4118 = vadd.f32 %v602, %v4110
    %v4119 = vadd.f32 %v604, %v4111
    %v4120 = vadd.f32 %v643, %v4112
    %v4121 = vadd.f32 %v645, %v4113
    %v4122 = vxor.u32 %v4118, 2147483648
    %v4123 = vmul.f32 %v4122, 1.442695
    %v4124 = vpow.pop %v4123
    %v4125 = vadd.f32 %v4124, 1.0
    %v4126 = vrcp.pop %v4125
    %v4127 = vmul.f32 1.0, %v4126
    %v4128 = vxor.u32 %v4119, 2147483648
    %v4129 = vmul.f32 %v4128, 1.442695
    %v4130 = vpow.pop %v4129
    %v4131 = vadd.f32 %v4130, 1.0
    %v4132 = vrcp.pop %v4131
    %v4133 = vmul.f32 1.0, %v4132
    %v4134 = vtanh.pop %v4120
    %v4135 = vxor.u32 %v4121, 2147483648
    %v4136 = vmul.f32 %v4135, 1.442695
    %v4137 = vpow.pop %v4136
    %v4138 = vadd.f32 %v4137, 1.0
    %v4139 = vrcp.pop %v4138
    %v4140 = vmul.f32 1.0, %v4139
    %v4142 = vrot.slane %v3631, 7
    %v4144 = vmul.f32 %v4133, %v4142
    %v4145 = vmul.f32 %v4127, %v4134
    %v4146 = vadd.f32 %v4144, %v4145
    %v4147 = vtanh.pop %v4146
    %v4148 = vmul.f32 %v4140, %v4147
    %v4149 = vpack.c.bf16 %v3826, %v3826
    %4150 = vmatprep.subr.bf16.mxu0 %v1432
    %4151 = vmatpush1.bf16.msra.mxu0 %v1431
    %4152 = vmatprep.subr.bf16.mxu0 %v1436
    %4153 = vmatpush1.bf16.msra.mxu0 %v1435
    %4154 = vmatprep.subr.bf16.mxu0 %v1440
    %4155 = vmatpush1.bf16.msra.mxu0 %v1439
    %4156 = vmatprep.subr.bf16.mxu0 %v1444
    %4157 = vmatpush1.bf16.msra.mxu0 %v1443
    %4158 = vmatprep.subr.bf16.mxu0 %v1448
    %4159 = vmatpush1.bf16.msra.mxu0 %v1447
    %4160 = vmatprep.subr.bf16.mxu0 %v1452
    %4161 = vmatpush1.bf16.msra.mxu0 %v1451
    %4162 = vmatprep.subr.bf16.mxu0 %v1456
    %4163 = vmatpush1.bf16.msra.mxu0 %v1455
    %4164 = vmatprep.subr.bf16.mxu0 %v1460
    %4165 = vmatpush1.bf16.msra.mxu0 %v1459
    %4166 = vmatprep.subr.bf16.mxu0 0
    %4167 = vmatpush1.bf16.msra.mxu0 0
    %4168 = vmatprep.subr.bf16.mxu0 0
    %4169 = vmatpush1.bf16.msra.mxu0 0
    %4170 = vmatprep.subr.bf16.mxu0 0
    %4171 = vmatpush1.bf16.msra.mxu0 0
    %4172 = vmatprep.subr.bf16.mxu0 0
    %4173 = vmatpush1.bf16.msra.mxu0 0
    %4174 = vmatprep.subr.bf16.mxu0 0
    %4175 = vmatpush1.bf16.msra.mxu0 0
    %4176 = vmatprep.subr.bf16.mxu0 0
    %4177 = vmatpush1.bf16.msra.mxu0 0
    %4178 = vmatprep.subr.bf16.mxu0 0
    %4179 = vmatpush1.bf16.msra.mxu0 0
    %4180 = vmatprep.subr.bf16.mxu0 0
    %4181 = vmatpush1.bf16.msra.mxu0 0
    %4182 = vmatprep.mubr.bf16.mxu0 0
    %4183 = vmatmul.mubr.bf16.gmra.mrb[0].mxu0 %v4149
    %v4184 = vpop.f32.mrb[0].mxu0
    %v4185 = vadd.f32 0.0, %v4184
    %v4186 = vpop.f32.mrb[0].mxu0
    %v4187 = vadd.f32 0.0, %v4186
    %v4188 = vpop.f32.mrb[0].mxu0
    %v4189 = vpop.f32.mrb[0].mxu0
    %4190 = vdwg.mxu0
    %4191 = vmatprep.subr.bf16.mxu0 %v1434
    %4192 = vmatpush1.bf16.msra.mxu0 %v1433
    %4193 = vmatprep.subr.bf16.mxu0 %v1438
    %4194 = vmatpush1.bf16.msra.mxu0 %v1437
    %4195 = vmatprep.subr.bf16.mxu0 %v1442
    %4196 = vmatpush1.bf16.msra.mxu0 %v1441
    %4197 = vmatprep.subr.bf16.mxu0 %v1446
    %4198 = vmatpush1.bf16.msra.mxu0 %v1445
    %4199 = vmatprep.subr.bf16.mxu0 %v1450
    %4200 = vmatpush1.bf16.msra.mxu0 %v1449
    %4201 = vmatprep.subr.bf16.mxu0 %v1454
    %4202 = vmatpush1.bf16.msra.mxu0 %v1453
    %4203 = vmatprep.subr.bf16.mxu0 %v1458
    %4204 = vmatpush1.bf16.msra.mxu0 %v1457
    %4205 = vmatprep.subr.bf16.mxu0 %v1462
    %4206 = vmatpush1.bf16.msra.mxu0 %v1461
    %4207 = vmatprep.subr.bf16.mxu0 0
    %4208 = vmatpush1.bf16.msra.mxu0 0
    %4209 = vmatprep.subr.bf16.mxu0 0
    %4210 = vmatpush1.bf16.msra.mxu0 0
    %4211 = vmatprep.subr.bf16.mxu0 0
    %4212 = vmatpush1.bf16.msra.mxu0 0
    %4213 = vmatprep.subr.bf16.mxu0 0
    %4214 = vmatpush1.bf16.msra.mxu0 0
    %4215 = vmatprep.subr.bf16.mxu0 0
    %4216 = vmatpush1.bf16.msra.mxu0 0
    %4217 = vmatprep.subr.bf16.mxu0 0
    %4218 = vmatpush1.bf16.msra.mxu0 0
    %4219 = vmatprep.subr.bf16.mxu0 0
    %4220 = vmatpush1.bf16.msra.mxu0 0
    %4221 = vmatprep.subr.bf16.mxu0 0
    %4222 = vmatpush1.bf16.msra.mxu0 0
    %4223 = vmatprep.mubr.bf16.mxu0 0
    %4224 = vmatmul.mubr.bf16.gmra.mrb[0].mxu0 %v4149
    %v4225 = vpop.f32.mrb[0].mxu0
    %v4226 = vadd.f32 0.0, %v4225
    %v4227 = vpop.f32.mrb[0].mxu0
    %v4228 = vadd.f32 0.0, %v4227
    %v4229 = vpop.f32.mrb[0].mxu0
    %v4230 = vpop.f32.mrb[0].mxu0
    %4231 = vdwg.mxu0
    %4232 = vmatprep.subr.bf16.mxu0 %v1399
    %4233 = vmatpush1.bf16.msra.mxu0 %v1398
    %4234 = vmatprep.subr.bf16.mxu0 %v1403
    %4235 = vmatpush1.bf16.msra.mxu0 %v1402
    %4236 = vmatprep.subr.bf16.mxu0 %v1407
    %4237 = vmatpush1.bf16.msra.mxu0 %v1406
    %4238 = vmatprep.subr.bf16.mxu0 %v1411
    %4239 = vmatpush1.bf16.msra.mxu0 %v1410
    %4240 = vmatprep.subr.bf16.mxu0 %v1415
    %4241 = vmatpush1.bf16.msra.mxu0 %v1414
    %4242 = vmatprep.subr.bf16.mxu0 %v1419
    %4243 = vmatpush1.bf16.msra.mxu0 %v1418
    %4244 = vmatprep.subr.bf16.mxu0 %v1423
    %4245 = vmatpush1.bf16.msra.mxu0 %v1422
    %4246 = vmatprep.subr.bf16.mxu0 %v1427
    %4247 = vmatpush1.bf16.msra.mxu0 %v1426
    %4248 = vmatprep.subr.bf16.mxu0 0
    %4249 = vmatpush1.bf16.msra.mxu0 0
    %4250 = vmatprep.subr.bf16.mxu0 0
    %4251 = vmatpush1.bf16.msra.mxu0 0
    %4252 = vmatprep.subr.bf16.mxu0 0
    %4253 = vmatpush1.bf16.msra.mxu0 0
    %4254 = vmatprep.subr.bf16.mxu0 0
    %4255 = vmatpush1.bf16.msra.mxu0 0
    %4256 = vmatprep.subr.bf16.mxu0 0
    %4257 = vmatpush1.bf16.msra.mxu0 0
    %4258 = vmatprep.subr.bf16.mxu0 0
    %4259 = vmatpush1.bf16.msra.mxu0 0
    %4260 = vmatprep.subr.bf16.mxu0 0
    %4261 = vmatpush1.bf16.msra.mxu0 0
    %4262 = vmatprep.subr.bf16.mxu0 0
    %4263 = vmatpush1.bf16.msra.mxu0 0
    %4264 = vmatprep.mubr.bf16.mxu0 0
    %4265 = vmatmul.mubr.bf16.gmra.mrb[0].mxu0 %v4022
    %v4266 = vpop.f32.mrb[0].mxu0
    %v4267 = vadd.f32 %v4185, %v4266
    %v4268 = vpop.f32.mrb[0].mxu0
    %v4269 = vadd.f32 %v4187, %v4268
    %v4270 = vpop.f32.mrb[0].mxu0
    %v4271 = vpop.f32.mrb[0].mxu0
    %4272 = vdwg.mxu0
    %4273 = vmatprep.subr.bf16.mxu0 %v1401
    %4274 = vmatpush1.bf16.msra.mxu0 %v1400
    %4275 = vmatprep.subr.bf16.mxu0 %v1405
    %4276 = vmatpush1.bf16.msra.mxu0 %v1404
    %4277 = vmatprep.subr.bf16.mxu0 %v1409
    %4278 = vmatpush1.bf16.msra.mxu0 %v1408
    %4279 = vmatprep.subr.bf16.mxu0 %v1413
    %4280 = vmatpush1.bf16.msra.mxu0 %v1412
    %4281 = vmatprep.subr.bf16.mxu0 %v1417
    %4282 = vmatpush1.bf16.msra.mxu0 %v1416
    %4283 = vmatprep.subr.bf16.mxu0 %v1421
    %4284 = vmatpush1.bf16.msra.mxu0 %v1420
    %4285 = vmatprep.subr.bf16.mxu0 %v1425
    %4286 = vmatpush1.bf16.msra.mxu0 %v1424
    %4287 = vmatprep.subr.bf16.mxu0 %v1429
    %4288 = vmatpush1.bf16.msra.mxu0 %v1428
    %4289 = vmatprep.subr.bf16.mxu0 0
    %4290 = vmatpush1.bf16.msra.mxu0 0
    %4291 = vmatprep.subr.bf16.mxu0 0
    %4292 = vmatpush1.bf16.msra.mxu0 0
    %4293 = vmatprep.subr.bf16.mxu0 0
    %4294 = vmatpush1.bf16.msra.mxu0 0
    %4295 = vmatprep.subr.bf16.mxu0 0
    %4296 = vmatpush1.bf16.msra.mxu0 0
    %4297 = vmatprep.subr.bf16.mxu0 0
    %4298 = vmatpush1.bf16.msra.mxu0 0
    %4299 = vmatprep.subr.bf16.mxu0 0
    %4300 = vmatpush1.bf16.msra.mxu0 0
    %4301 = vmatprep.subr.bf16.mxu0 0
    %4302 = vmatpush1.bf16.msra.mxu0 0
    %4303 = vmatprep.subr.bf16.mxu0 0
    %4304 = vmatpush1.bf16.msra.mxu0 0
    %4305 = vmatprep.mubr.bf16.mxu0 0
    %4306 = vmatmul.mubr.bf16.gmra.mrb[0].mxu0 %v4022
    %v4307 = vpop.f32.mrb[0].mxu0
    %v4308 = vadd.f32 %v4226, %v4307
    %v4309 = vpop.f32.mrb[0].mxu0
    %v4310 = vadd.f32 %v4228, %v4309
    %v4311 = vpop.f32.mrb[0].mxu0
    %v4312 = vpop.f32.mrb[0].mxu0
    %4313 = vdwg.mxu0
    %v4314 = vadd.f32 %v4267, %v1632
    %v4315 = vadd.f32 %v4269, %v1636
    %v4316 = vadd.f32 %v4308, %v1640
    %v4317 = vadd.f32 %v4310, %v1644
    %v4318 = vxor.u32 %v4314, 2147483648
    %v4319 = vmul.f32 %v4318, 1.442695
    %v4320 = vpow.pop %v4319
    %v4321 = vadd.f32 %v4320, 1.0
    %v4322 = vrcp.pop %v4321
    %v4323 = vmul.f32 1.0, %v4322
    %v4324 = vxor.u32 %v4315, 2147483648
    %v4325 = vmul.f32 %v4324, 1.442695
    %v4326 = vpow.pop %v4325
    %v4327 = vadd.f32 %v4326, 1.0
    %v4328 = vrcp.pop %v4327
    %v4329 = vmul.f32 1.0, %v4328
    %v4330 = vtanh.pop %v4316
    %v4331 = vxor.u32 %v4317, 2147483648
    %v4332 = vmul.f32 %v4331, 1.442695
    %v4333 = vpow.pop %v4332
    %v4334 = vadd.f32 %v4333, 1.0
    %v4335 = vrcp.pop %v4334
    %v4336 = vmul.f32 1.0, %v4335
    %v4337 = vmul.f32 %v4329, %v3824
    %v4338 = vmul.f32 %v4323, %v4330
    %v4339 = vadd.f32 %v4337, %v4338
    %v4340 = vtanh.pop %v4339
    %v4341 = vmul.f32 %v4336, %v4340
    %v4342 = vpack.c.bf16 %v4019, %v4019
    %4343 = vmatprep.subr.bf16.mxu0 %v1710
    %4344 = vmatpush1.bf16.msra.mxu0 %v1709
    %4345 = vmatprep.subr.bf16.mxu0 %v1714
    %4346 = vmatpush1.bf16.msra.mxu0 %v1713
    %4347 = vmatprep.subr.bf16.mxu0 %v1718
    %4348 = vmatpush1.bf16.msra.mxu0 %v1717
    %4349 = vmatprep.subr.bf16.mxu0 %v1722
    %4350 = vmatpush1.bf16.msra.mxu0 %v1721
    %4351 = vmatprep.subr.bf16.mxu0 %v1726
    %4352 = vmatpush1.bf16.msra.mxu0 %v1725
    %4353 = vmatprep.subr.bf16.mxu0 %v1730
    %4354 = vmatpush1.bf16.msra.mxu0 %v1729
    %4355 = vmatprep.subr.bf16.mxu0 %v1734
    %4356 = vmatpush1.bf16.msra.mxu0 %v1733
    %4357 = vmatprep.subr.bf16.mxu0 %v1738
    %4358 = vmatpush1.bf16.msra.mxu0 %v1737
    %4359 = vmatprep.subr.bf16.mxu0 0
    %4360 = vmatpush1.bf16.msra.mxu0 0
    %4361 = vmatprep.subr.bf16.mxu0 0
    %4362 = vmatpush1.bf16.msra.mxu0 0
    %4363 = vmatprep.subr.bf16.mxu0 0
    %4364 = vmatpush1.bf16.msra.mxu0 0
    %4365 = vmatprep.subr.bf16.mxu0 0
    %4366 = vmatpush1.bf16.msra.mxu0 0
    %4367 = vmatprep.subr.bf16.mxu0 0
    %4368 = vmatpush1.bf16.msra.mxu0 0
    %4369 = vmatprep.subr.bf16.mxu0 0
    %4370 = vmatpush1.bf16.msra.mxu0 0
    %4371 = vmatprep.subr.bf16.mxu0 0
    %4372 = vmatpush1.bf16.msra.mxu0 0
    %4373 = vmatprep.subr.bf16.mxu0 0
    %4374 = vmatpush1.bf16.msra.mxu0 0
    %4375 = vmatprep.mubr.bf16.mxu0 0
    %4376 = vmatmul.mubr.bf16.gmra.mrb[0].mxu0 %v4342
    %v4377 = vpop.f32.mrb[0].mxu0
    %v4378 = vadd.f32 0.0, %v4377
    %v4379 = vpop.f32.mrb[0].mxu0
    %v4380 = vadd.f32 0.0, %v4379
    %v4381 = vpop.f32.mrb[0].mxu0
    %v4382 = vpop.f32.mrb[0].mxu0
    %4383 = vdwg.mxu0
    %4384 = vmatprep.subr.bf16.mxu0 %v1712
    %4385 = vmatpush1.bf16.msra.mxu0 %v1711
    %4386 = vmatprep.subr.bf16.mxu0 %v1716
    %4387 = vmatpush1.bf16.msra.mxu0 %v1715
    %4388 = vmatprep.subr.bf16.mxu0 %v1720
    %4389 = vmatpush1.bf16.msra.mxu0 %v1719
    %4390 = vmatprep.subr.bf16.mxu0 %v1724
    %4391 = vmatpush1.bf16.msra.mxu0 %v1723
    %4392 = vmatprep.subr.bf16.mxu0 %v1728
    %4393 = vmatpush1.bf16.msra.mxu0 %v1727
    %4394 = vmatprep.subr.bf16.mxu0 %v1732
    %4395 = vmatpush1.bf16.msra.mxu0 %v1731
    %4396 = vmatprep.subr.bf16.mxu0 %v1736
    %4397 = vmatpush1.bf16.msra.mxu0 %v1735
    %4398 = vmatprep.subr.bf16.mxu0 %v1740
    %4399 = vmatpush1.bf16.msra.mxu0 %v1739
    %4400 = vmatprep.subr.bf16.mxu0 0
    %4401 = vmatpush1.bf16.msra.mxu0 0
    %4402 = vmatprep.subr.bf16.mxu0 0
    %4403 = vmatpush1.bf16.msra.mxu0 0
    %4404 = vmatprep.subr.bf16.mxu0 0
    %4405 = vmatpush1.bf16.msra.mxu0 0
    %4406 = vmatprep.subr.bf16.mxu0 0
    %4407 = vmatpush1.bf16.msra.mxu0 0
    %4408 = vmatprep.subr.bf16.mxu0 0
    %4409 = vmatpush1.bf16.msra.mxu0 0
    %4410 = vmatprep.subr.bf16.mxu0 0
    %4411 = vmatpush1.bf16.msra.mxu0 0
    %4412 = vmatprep.subr.bf16.mxu0 0
    %4413 = vmatpush1.bf16.msra.mxu0 0
    %4414 = vmatprep.subr.bf16.mxu0 0
    %4415 = vmatpush1.bf16.msra.mxu0 0
    %4416 = vmatprep.mubr.bf16.mxu0 0
    %4417 = vmatmul.mubr.bf16.gmra.mrb[0].mxu0 %v4342
    %v4418 = vpop.f32.mrb[0].mxu0
    %v4419 = vadd.f32 0.0, %v4418
    %v4420 = vpop.f32.mrb[0].mxu0
    %v4421 = vadd.f32 0.0, %v4420
    %v4422 = vpop.f32.mrb[0].mxu0
    %v4423 = vpop.f32.mrb[0].mxu0
    %4424 = vdwg.mxu0
    %4425 = vmatprep.subr.bf16.mxu0 %v1678
    %4426 = vmatpush1.bf16.msra.mxu0 %v1677
    %4427 = vmatprep.subr.bf16.mxu0 %v1682
    %4428 = vmatpush1.bf16.msra.mxu0 %v1681
    %4429 = vmatprep.subr.bf16.mxu0 %v1686
    %4430 = vmatpush1.bf16.msra.mxu0 %v1685
    %4431 = vmatprep.subr.bf16.mxu0 %v1690
    %4432 = vmatpush1.bf16.msra.mxu0 %v1689
    %4433 = vmatprep.subr.bf16.mxu0 %v1694
    %4434 = vmatpush1.bf16.msra.mxu0 %v1693
    %4435 = vmatprep.subr.bf16.mxu0 %v1698
    %4436 = vmatpush1.bf16.msra.mxu0 %v1697
    %4437 = vmatprep.subr.bf16.mxu0 %v1702
    %4438 = vmatpush1.bf16.msra.mxu0 %v1701
    %4439 = vmatprep.subr.bf16.mxu0 %v1706
    %4440 = vmatpush1.bf16.msra.mxu0 %v1705
    %4441 = vmatprep.subr.bf16.mxu0 0
    %4442 = vmatpush1.bf16.msra.mxu0 0
    %4443 = vmatprep.subr.bf16.mxu0 0
    %4444 = vmatpush1.bf16.msra.mxu0 0
    %4445 = vmatprep.subr.bf16.mxu0 0
    %4446 = vmatpush1.bf16.msra.mxu0 0
    %4447 = vmatprep.subr.bf16.mxu0 0
    %4448 = vmatpush1.bf16.msra.mxu0 0
    %4449 = vmatprep.subr.bf16.mxu0 0
    %4450 = vmatpush1.bf16.msra.mxu0 0
    %4451 = vmatprep.subr.bf16.mxu0 0
    %4452 = vmatpush1.bf16.msra.mxu0 0
    %4453 = vmatprep.subr.bf16.mxu0 0
    %4454 = vmatpush1.bf16.msra.mxu0 0
    %4455 = vmatprep.subr.bf16.mxu0 0
    %4456 = vmatpush1.bf16.msra.mxu0 0
    %4457 = vmatprep.mubr.bf16.mxu0 0
    %4458 = vmatmul.mubr.bf16.gmra.mrb[0].mxu0 %v4149
    %v4459 = vpop.f32.mrb[0].mxu0
    %v4460 = vadd.f32 %v4378, %v4459
    %v4461 = vpop.f32.mrb[0].mxu0
    %v4462 = vadd.f32 %v4380, %v4461
    %v4463 = vpop.f32.mrb[0].mxu0
    %v4464 = vpop.f32.mrb[0].mxu0
    %4465 = vdwg.mxu0
    %4466 = vmatprep.subr.bf16.mxu0 %v1680
    %4467 = vmatpush1.bf16.msra.mxu0 %v1679
    %4468 = vmatprep.subr.bf16.mxu0 %v1684
    %4469 = vmatpush1.bf16.msra.mxu0 %v1683
    %4470 = vmatprep.subr.bf16.mxu0 %v1688
    %4471 = vmatpush1.bf16.msra.mxu0 %v1687
    %4472 = vmatprep.subr.bf16.mxu0 %v1692
    %4473 = vmatpush1.bf16.msra.mxu0 %v1691
    %4474 = vmatprep.subr.bf16.mxu0 %v1696
    %4475 = vmatpush1.bf16.msra.mxu0 %v1695
    %4476 = vmatprep.subr.bf16.mxu0 %v1700
    %4477 = vmatpush1.bf16.msra.mxu0 %v1699
    %4478 = vmatprep.subr.bf16.mxu0 %v1704
    %4479 = vmatpush1.bf16.msra.mxu0 %v1703
    %4480 = vmatprep.subr.bf16.mxu0 %v1708
    %4481 = vmatpush1.bf16.msra.mxu0 %v1707
    %4482 = vmatprep.subr.bf16.mxu0 0
    %4483 = vmatpush1.bf16.msra.mxu0 0
    %4484 = vmatprep.subr.bf16.mxu0 0
    %4485 = vmatpush1.bf16.msra.mxu0 0
    %4486 = vmatprep.subr.bf16.mxu0 0
    %4487 = vmatpush1.bf16.msra.mxu0 0
    %4488 = vmatprep.subr.bf16.mxu0 0
    %4489 = vmatpush1.bf16.msra.mxu0 0
    %4490 = vmatprep.subr.bf16.mxu0 0
    %4491 = vmatpush1.bf16.msra.mxu0 0
    %4492 = vmatprep.subr.bf16.mxu0 0
    %4493 = vmatpush1.bf16.msra.mxu0 0
    %4494 = vmatprep.subr.bf16.mxu0 0
    %4495 = vmatpush1.bf16.msra.mxu0 0
    %4496 = vmatprep.subr.bf16.mxu0 0
    %4497 = vmatpush1.bf16.msra.mxu0 0
    %4498 = vmatprep.mubr.bf16.mxu0 0
    %4499 = vmatmul.mubr.bf16.gmra.mrb[0].mxu0 %v4149
    %v4500 = vpop.f32.mrb[0].mxu0
    %v4501 = vadd.f32 %v4419, %v4500
    %v4502 = vpop.f32.mrb[0].mxu0
    %v4503 = vadd.f32 %v4421, %v4502
    %v4504 = vpop.f32.mrb[0].mxu0
    %v4505 = vpop.f32.mrb[0].mxu0
    %4506 = vdwg.mxu0
    %v4507 = vadd.f32 %v4460, %v1911
    %v4508 = vadd.f32 %v4462, %v1915
    %v4509 = vadd.f32 %v4501, %v1919
    %v4510 = vadd.f32 %v4503, %v1923
    %v4511 = vxor.u32 %v4507, 2147483648
    %v4512 = vmul.f32 %v4511, 1.442695
    %v4513 = vpow.pop %v4512
    %v4514 = vadd.f32 %v4513, 1.0
    %v4515 = vrcp.pop %v4514
    %v4516 = vmul.f32 1.0, %v4515
    %v4517 = vxor.u32 %v4508, 2147483648
    %v4518 = vmul.f32 %v4517, 1.442695
    %v4519 = vpow.pop %v4518
    %v4520 = vadd.f32 %v4519, 1.0
    %v4521 = vrcp.pop %v4520
    %v4522 = vmul.f32 1.0, %v4521
    %v4523 = vtanh.pop %v4509
    %v4524 = vxor.u32 %v4510, 2147483648
    %v4525 = vmul.f32 %v4524, 1.442695
    %v4526 = vpow.pop %v4525
    %v4527 = vadd.f32 %v4526, 1.0
    %v4528 = vrcp.pop %v4527
    %v4529 = vmul.f32 1.0, %v4528
    %v4530 = vmul.f32 %v4522, %v4017
    %v4531 = vmul.f32 %v4516, %v4523
    %v4532 = vadd.f32 %v4530, %v4531
    %v4533 = vtanh.pop %v4532
    %v4534 = vmul.f32 %v4529, %v4533
    %v4535 = vpack.c.bf16 %v4148, %v4148
    %v4536 = vpack.c.bf16 %v4341, %v4341
    %4537 = vmatprep.subr.bf16.mxu0 %v1432
    %4538 = vmatpush1.bf16.msra.mxu0 %v1431
    %4539 = vmatprep.subr.bf16.mxu0 %v1436
    %4540 = vmatpush1.bf16.msra.mxu0 %v1435
    %4541 = vmatprep.subr.bf16.mxu0 %v1440
    %4542 = vmatpush1.bf16.msra.mxu0 %v1439
    %4543 = vmatprep.subr.bf16.mxu0 %v1444
    %4544 = vmatpush1.bf16.msra.mxu0 %v1443
    %4545 = vmatprep.subr.bf16.mxu0 %v1448
    %4546 = vmatpush1.bf16.msra.mxu0 %v1447
    %4547 = vmatprep.subr.bf16.mxu0 %v1452
    %4548 = vmatpush1.bf16.msra.mxu0 %v1451
    %4549 = vmatprep.subr.bf16.mxu0 %v1456
    %4550 = vmatpush1.bf16.msra.mxu0 %v1455
    %4551 = vmatprep.subr.bf16.mxu0 %v1460
    %4552 = vmatpush1.bf16.msra.mxu0 %v1459
    %4553 = vmatprep.subr.bf16.mxu0 0
    %4554 = vmatpush1.bf16.msra.mxu0 0
    %4555 = vmatprep.subr.bf16.mxu0 0
    %4556 = vmatpush1.bf16.msra.mxu0 0
    %4557 = vmatprep.subr.bf16.mxu0 0
    %4558 = vmatpush1.bf16.msra.mxu0 0
    %4559 = vmatprep.subr.bf16.mxu0 0
    %4560 = vmatpush1.bf16.msra.mxu0 0
    %4561 = vmatprep.subr.bf16.mxu0 0
    %4562 = vmatpush1.bf16.msra.mxu0 0
    %4563 = vmatprep.subr.bf16.mxu0 0
    %4564 = vmatpush1.bf16.msra.mxu0 0
    %4565 = vmatprep.subr.bf16.mxu0 0
    %4566 = vmatpush1.bf16.msra.mxu0 0
    %4567 = vmatprep.subr.bf16.mxu0 0
    %4568 = vmatpush1.bf16.msra.mxu0 0
    %4569 = vmatprep.mubr.bf16.mxu0 0
    %4570 = vmatmul.mubr.bf16.gmra.mrb[0].mxu0 %v4536
    %v4571 = vpop.f32.mrb[0].mxu0
    %v4572 = vadd.f32 0.0, %v4571
    %v4573 = vpop.f32.mrb[0].mxu0
    %v4574 = vadd.f32 0.0, %v4573
    %v4575 = vpop.f32.mrb[0].mxu0
    %v4576 = vpop.f32.mrb[0].mxu0
    %4577 = vdwg.mxu0
    %4578 = vmatprep.subr.bf16.mxu0 %v1434
    %4579 = vmatpush1.bf16.msra.mxu0 %v1433
    %4580 = vmatprep.subr.bf16.mxu0 %v1438
    %4581 = vmatpush1.bf16.msra.mxu0 %v1437
    %4582 = vmatprep.subr.bf16.mxu0 %v1442
    %4583 = vmatpush1.bf16.msra.mxu0 %v1441
    %4584 = vmatprep.subr.bf16.mxu0 %v1446
    %4585 = vmatpush1.bf16.msra.mxu0 %v1445
    %4586 = vmatprep.subr.bf16.mxu0 %v1450
    %4587 = vmatpush1.bf16.msra.mxu0 %v1449
    %4588 = vmatprep.subr.bf16.mxu0 %v1454
    %4589 = vmatpush1.bf16.msra.mxu0 %v1453
    %4590 = vmatprep.subr.bf16.mxu0 %v1458
    %4591 = vmatpush1.bf16.msra.mxu0 %v1457
    %4592 = vmatprep.subr.bf16.mxu0 %v1462
    %4593 = vmatpush1.bf16.msra.mxu0 %v1461
    %4594 = vmatprep.subr.bf16.mxu0 0
    %4595 = vmatpush1.bf16.msra.mxu0 0
    %4596 = vmatprep.subr.bf16.mxu0 0
    %4597 = vmatpush1.bf16.msra.mxu0 0
    %4598 = vmatprep.subr.bf16.mxu0 0
    %4599 = vmatpush1.bf16.msra.mxu0 0
    %4600 = vmatprep.subr.bf16.mxu0 0
    %4601 = vmatpush1.bf16.msra.mxu0 0
    %4602 = vmatprep.subr.bf16.mxu0 0
    %4603 = vmatpush1.bf16.msra.mxu0 0
    %4604 = vmatprep.subr.bf16.mxu0 0
    %4605 = vmatpush1.bf16.msra.mxu0 0
    %4606 = vmatprep.subr.bf16.mxu0 0
    %4607 = vmatpush1.bf16.msra.mxu0 0
    %4608 = vmatprep.subr.bf16.mxu0 0
    %4609 = vmatpush1.bf16.msra.mxu0 0
    %4610 = vmatprep.mubr.bf16.mxu0 0
    %4611 = vmatmul.mubr.bf16.gmra.mrb[0].mxu0 %v4536
    %v4612 = vpop.f32.mrb[0].mxu0
    %v4613 = vadd.f32 0.0, %v4612
    %v4614 = vpop.f32.mrb[0].mxu0
    %v4615 = vadd.f32 0.0, %v4614
    %v4616 = vpop.f32.mrb[0].mxu0
    %v4617 = vpop.f32.mrb[0].mxu0
    %4618 = vdwg.mxu0
    %v4620 = vshrl.u32 %v4535, 16
    %v4622 = vrot.slane %v4620, 3
    %4624 = vmatprep.subr.bf16.mxu0 %v1399
    %4625 = vmatpush1.bf16.msra.mxu0 %v1398
    %4626 = vmatprep.subr.bf16.mxu0 %v1403
    %4627 = vmatpush1.bf16.msra.mxu0 %v1402
    %4628 = vmatprep.subr.bf16.mxu0 %v1407
    %4629 = vmatpush1.bf16.msra.mxu0 %v1406
    %4630 = vmatprep.subr.bf16.mxu0 %v1411
    %4631 = vmatpush1.bf16.msra.mxu0 %v1410
    %4632 = vmatprep.subr.bf16.mxu0 %v1415
    %4633 = vmatpush1.bf16.msra.mxu0 %v1414
    %4634 = vmatprep.subr.bf16.mxu0 %v1419
    %4635 = vmatpush1.bf16.msra.mxu0 %v1418
    %4636 = vmatprep.subr.bf16.mxu0 %v1423
    %4637 = vmatpush1.bf16.msra.mxu0 %v1422
    %4638 = vmatprep.subr.bf16.mxu0 %v1427
    %4639 = vmatpush1.bf16.msra.mxu0 %v1426
    %4640 = vmatprep.subr.bf16.mxu0 0
    %4641 = vmatpush1.bf16.msra.mxu0 0
    %4642 = vmatprep.subr.bf16.mxu0 0
    %4643 = vmatpush1.bf16.msra.mxu0 0
    %4644 = vmatprep.subr.bf16.mxu0 0
    %4645 = vmatpush1.bf16.msra.mxu0 0
    %4646 = vmatprep.subr.bf16.mxu0 0
    %4647 = vmatpush1.bf16.msra.mxu0 0
    %4648 = vmatprep.subr.bf16.mxu0 0
    %4649 = vmatpush1.bf16.msra.mxu0 0
    %4650 = vmatprep.subr.bf16.mxu0 0
    %4651 = vmatpush1.bf16.msra.mxu0 0
    %4652 = vmatprep.subr.bf16.mxu0 0
    %4653 = vmatpush1.bf16.msra.mxu0 0
    %4654 = vmatprep.subr.bf16.mxu0 0
    %4655 = vmatpush1.bf16.msra.mxu0 0
    %4656 = vmatprep.mubr.bf16.mxu0 0
    %4657 = vmatmul.mubr.bf16.gmra.mrb[0].mxu0 %v4622
    %v4658 = vpop.f32.mrb[0].mxu0
    %v4659 = vadd.f32 %v4572, %v4658
    %v4660 = vpop.f32.mrb[0].mxu0
    %v4661 = vadd.f32 %v4574, %v4660
    %v4662 = vpop.f32.mrb[0].mxu0
    %v4663 = vpop.f32.mrb[0].mxu0
    %4664 = vdwg.mxu0
    %4665 = vmatprep.subr.bf16.mxu0 %v1401
    %4666 = vmatpush1.bf16.msra.mxu0 %v1400
    %4667 = vmatprep.subr.bf16.mxu0 %v1405
    %4668 = vmatpush1.bf16.msra.mxu0 %v1404
    %4669 = vmatprep.subr.bf16.mxu0 %v1409
    %4670 = vmatpush1.bf16.msra.mxu0 %v1408
    %4671 = vmatprep.subr.bf16.mxu0 %v1413
    %4672 = vmatpush1.bf16.msra.mxu0 %v1412
    %4673 = vmatprep.subr.bf16.mxu0 %v1417
    %4674 = vmatpush1.bf16.msra.mxu0 %v1416
    %4675 = vmatprep.subr.bf16.mxu0 %v1421
    %4676 = vmatpush1.bf16.msra.mxu0 %v1420
    %4677 = vmatprep.subr.bf16.mxu0 %v1425
    %4678 = vmatpush1.bf16.msra.mxu0 %v1424
    %4679 = vmatprep.subr.bf16.mxu0 %v1429
    %4680 = vmatpush1.bf16.msra.mxu0 %v1428
    %4681 = vmatprep.subr.bf16.mxu0 0
    %4682 = vmatpush1.bf16.msra.mxu0 0
    %4683 = vmatprep.subr.bf16.mxu0 0
    %4684 = vmatpush1.bf16.msra.mxu0 0
    %4685 = vmatprep.subr.bf16.mxu0 0
    %4686 = vmatpush1.bf16.msra.mxu0 0
    %4687 = vmatprep.subr.bf16.mxu0 0
    %4688 = vmatpush1.bf16.msra.mxu0 0
    %4689 = vmatprep.subr.bf16.mxu0 0
    %4690 = vmatpush1.bf16.msra.mxu0 0
    %4691 = vmatprep.subr.bf16.mxu0 0
    %4692 = vmatpush1.bf16.msra.mxu0 0
    %4693 = vmatprep.subr.bf16.mxu0 0
    %4694 = vmatpush1.bf16.msra.mxu0 0
    %4695 = vmatprep.subr.bf16.mxu0 0
    %4696 = vmatpush1.bf16.msra.mxu0 0
    %4697 = vmatprep.mubr.bf16.mxu0 0
    %4698 = vmatmul.mubr.bf16.gmra.mrb[0].mxu0 %v4622
    %v4699 = vpop.f32.mrb[0].mxu0
    %v4700 = vadd.f32 %v4613, %v4699
    %v4701 = vpop.f32.mrb[0].mxu0
    %v4702 = vadd.f32 %v4615, %v4701
    %v4703 = vpop.f32.mrb[0].mxu0
    %v4704 = vpop.f32.mrb[0].mxu0
    %4705 = vdwg.mxu0
    %v4706 = vadd.f32 %v4659, %v1632
    %v4707 = vadd.f32 %v4661, %v1636
    %v4708 = vadd.f32 %v4700, %v1640
    %v4709 = vadd.f32 %v4702, %v1644
    %v4710 = vxor.u32 %v4706, 2147483648
    %v4711 = vmul.f32 %v4710, 1.442695
    %v4712 = vpow.pop %v4711
    %v4713 = vadd.f32 %v4712, 1.0
    %v4714 = vrcp.pop %v4713
    %v4715 = vmul.f32 1.0, %v4714
    %v4716 = vxor.u32 %v4707, 2147483648
    %v4717 = vmul.f32 %v4716, 1.442695
    %v4718 = vpow.pop %v4717
    %v4719 = vadd.f32 %v4718, 1.0
    %v4720 = vrcp.pop %v4719
    %v4721 = vmul.f32 1.0, %v4720
    %v4722 = vtanh.pop %v4708
    %v4723 = vxor.u32 %v4709, 2147483648
    %v4724 = vmul.f32 %v4723, 1.442695
    %v4725 = vpow.pop %v4724
    %v4726 = vadd.f32 %v4725, 1.0
    %v4727 = vrcp.pop %v4726
    %v4728 = vmul.f32 1.0, %v4727
    %v4729 = vmul.f32 %v4721, %v4339
    %v4730 = vmul.f32 %v4715, %v4722
    %v4731 = vadd.f32 %v4729, %v4730
    %v4732 = vtanh.pop %v4731
    %v4733 = vmul.f32 %v4728, %v4732
    %v4734 = vpack.c.bf16 %v4534, %v4534
    %4735 = vmatprep.subr.bf16.mxu0 %v1710
    %4736 = vmatpush1.bf16.msra.mxu0 %v1709
    %4737 = vmatprep.subr.bf16.mxu0 %v1714
    %4738 = vmatpush1.bf16.msra.mxu0 %v1713
    %4739 = vmatprep.subr.bf16.mxu0 %v1718
    %4740 = vmatpush1.bf16.msra.mxu0 %v1717
    %4741 = vmatprep.subr.bf16.mxu0 %v1722
    %4742 = vmatpush1.bf16.msra.mxu0 %v1721
    %4743 = vmatprep.subr.bf16.mxu0 %v1726
    %4744 = vmatpush1.bf16.msra.mxu0 %v1725
    %4745 = vmatprep.subr.bf16.mxu0 %v1730
    %4746 = vmatpush1.bf16.msra.mxu0 %v1729
    %4747 = vmatprep.subr.bf16.mxu0 %v1734
    %4748 = vmatpush1.bf16.msra.mxu0 %v1733
    %4749 = vmatprep.subr.bf16.mxu0 %v1738
    %4750 = vmatpush1.bf16.msra.mxu0 %v1737
    %4751 = vmatprep.subr.bf16.mxu0 0
    %4752 = vmatpush1.bf16.msra.mxu0 0
    %4753 = vmatprep.subr.bf16.mxu0 0
    %4754 = vmatpush1.bf16.msra.mxu0 0
    %4755 = vmatprep.subr.bf16.mxu0 0
    %4756 = vmatpush1.bf16.msra.mxu0 0
    %4757 = vmatprep.subr.bf16.mxu0 0
    %4758 = vmatpush1.bf16.msra.mxu0 0
    %4759 = vmatprep.subr.bf16.mxu0 0
    %4760 = vmatpush1.bf16.msra.mxu0 0
    %4761 = vmatprep.subr.bf16.mxu0 0
    %4762 = vmatpush1.bf16.msra.mxu0 0
    %4763 = vmatprep.subr.bf16.mxu0 0
    %4764 = vmatpush1.bf16.msra.mxu0 0
    %4765 = vmatprep.subr.bf16.mxu0 0
    %4766 = vmatpush1.bf16.msra.mxu0 0
    %4767 = vmatprep.mubr.bf16.mxu0 0
    %4768 = vmatmul.mubr.bf16.gmra.mrb[0].mxu0 %v4734
    %v4769 = vpop.f32.mrb[0].mxu0
    %v4770 = vadd.f32 0.0, %v4769
    %v4771 = vpop.f32.mrb[0].mxu0
    %v4772 = vadd.f32 0.0, %v4771
    %v4773 = vpop.f32.mrb[0].mxu0
    %v4774 = vpop.f32.mrb[0].mxu0
    %4775 = vdwg.mxu0
    %4776 = vmatprep.subr.bf16.mxu0 %v1712
    %4777 = vmatpush1.bf16.msra.mxu0 %v1711
    %4778 = vmatprep.subr.bf16.mxu0 %v1716
    %4779 = vmatpush1.bf16.msra.mxu0 %v1715
    %4780 = vmatprep.subr.bf16.mxu0 %v1720
    %4781 = vmatpush1.bf16.msra.mxu0 %v1719
    %4782 = vmatprep.subr.bf16.mxu0 %v1724
    %4783 = vmatpush1.bf16.msra.mxu0 %v1723
    %4784 = vmatprep.subr.bf16.mxu0 %v1728
    %4785 = vmatpush1.bf16.msra.mxu0 %v1727
    %4786 = vmatprep.subr.bf16.mxu0 %v1732
    %4787 = vmatpush1.bf16.msra.mxu0 %v1731
    %4788 = vmatprep.subr.bf16.mxu0 %v1736
    %4789 = vmatpush1.bf16.msra.mxu0 %v1735
    %4790 = vmatprep.subr.bf16.mxu0 %v1740
    %4791 = vmatpush1.bf16.msra.mxu0 %v1739
    %4792 = vmatprep.subr.bf16.mxu0 0
    %4793 = vmatpush1.bf16.msra.mxu0 0
    %4794 = vmatprep.subr.bf16.mxu0 0
    %4795 = vmatpush1.bf16.msra.mxu0 0
    %4796 = vmatprep.subr.bf16.mxu0 0
    %4797 = vmatpush1.bf16.msra.mxu0 0
    %4798 = vmatprep.subr.bf16.mxu0 0
    %4799 = vmatpush1.bf16.msra.mxu0 0
    %4800 = vmatprep.subr.bf16.mxu0 0
    %4801 = vmatpush1.bf16.msra.mxu0 0
    %4802 = vmatprep.subr.bf16.mxu0 0
    %4803 = vmatpush1.bf16.msra.mxu0 0
    %4804 = vmatprep.subr.bf16.mxu0 0
    %4805 = vmatpush1.bf16.msra.mxu0 0
    %4806 = vmatprep.subr.bf16.mxu0 0
    %4807 = vmatpush1.bf16.msra.mxu0 0
    %4808 = vmatprep.mubr.bf16.mxu0 0
    %4809 = vmatmul.mubr.bf16.gmra.mrb[0].mxu0 %v4734
    %v4810 = vpop.f32.mrb[0].mxu0
    %v4811 = vadd.f32 0.0, %v4810
    %v4812 = vpop.f32.mrb[0].mxu0
    %v4813 = vadd.f32 0.0, %v4812
    %v4814 = vpop.f32.mrb[0].mxu0
    %v4815 = vpop.f32.mrb[0].mxu0
    %4816 = vdwg.mxu0
    %4817 = vmatprep.subr.bf16.mxu0 %v1678
    %4818 = vmatpush1.bf16.msra.mxu0 %v1677
    %4819 = vmatprep.subr.bf16.mxu0 %v1682
    %4820 = vmatpush1.bf16.msra.mxu0 %v1681
    %4821 = vmatprep.subr.bf16.mxu0 %v1686
    %4822 = vmatpush1.bf16.msra.mxu0 %v1685
    %4823 = vmatprep.subr.bf16.mxu0 %v1690
    %4824 = vmatpush1.bf16.msra.mxu0 %v1689
    %4825 = vmatprep.subr.bf16.mxu0 %v1694
    %4826 = vmatpush1.bf16.msra.mxu0 %v1693
    %4827 = vmatprep.subr.bf16.mxu0 %v1698
    %4828 = vmatpush1.bf16.msra.mxu0 %v1697
    %4829 = vmatprep.subr.bf16.mxu0 %v1702
    %4830 = vmatpush1.bf16.msra.mxu0 %v1701
    %4831 = vmatprep.subr.bf16.mxu0 %v1706
    %4832 = vmatpush1.bf16.msra.mxu0 %v1705
    %4833 = vmatprep.subr.bf16.mxu0 0
    %4834 = vmatpush1.bf16.msra.mxu0 0
    %4835 = vmatprep.subr.bf16.mxu0 0
    %4836 = vmatpush1.bf16.msra.mxu0 0
    %4837 = vmatprep.subr.bf16.mxu0 0
    %4838 = vmatpush1.bf16.msra.mxu0 0
    %4839 = vmatprep.subr.bf16.mxu0 0
    %4840 = vmatpush1.bf16.msra.mxu0 0
    %4841 = vmatprep.subr.bf16.mxu0 0
    %4842 = vmatpush1.bf16.msra.mxu0 0
    %4843 = vmatprep.subr.bf16.mxu0 0
    %4844 = vmatpush1.bf16.msra.mxu0 0
    %4845 = vmatprep.subr.bf16.mxu0 0
    %4846 = vmatpush1.bf16.msra.mxu0 0
    %4847 = vmatprep.subr.bf16.mxu0 0
    %4848 = vmatpush1.bf16.msra.mxu0 0
    %4849 = vmatprep.mubr.bf16.mxu0 0
    %4850 = vmatmul.mubr.bf16.gmra.mrb[0].mxu0 %v4536
    %v4851 = vpop.f32.mrb[0].mxu0
    %v4852 = vadd.f32 %v4770, %v4851
    %v4853 = vpop.f32.mrb[0].mxu0
    %v4854 = vadd.f32 %v4772, %v4853
    %v4855 = vpop.f32.mrb[0].mxu0
    %v4856 = vpop.f32.mrb[0].mxu0
    %4857 = vdwg.mxu0
    %4858 = vmatprep.subr.bf16.mxu0 %v1680
    %4859 = vmatpush1.bf16.msra.mxu0 %v1679
    %4860 = vmatprep.subr.bf16.mxu0 %v1684
    %4861 = vmatpush1.bf16.msra.mxu0 %v1683
    %4862 = vmatprep.subr.bf16.mxu0 %v1688
    %4863 = vmatpush1.bf16.msra.mxu0 %v1687
    %4864 = vmatprep.subr.bf16.mxu0 %v1692
    %4865 = vmatpush1.bf16.msra.mxu0 %v1691
    %4866 = vmatprep.subr.bf16.mxu0 %v1696
    %4867 = vmatpush1.bf16.msra.mxu0 %v1695
    %4868 = vmatprep.subr.bf16.mxu0 %v1700
    %4869 = vmatpush1.bf16.msra.mxu0 %v1699
    %4870 = vmatprep.subr.bf16.mxu0 %v1704
    %4871 = vmatpush1.bf16.msra.mxu0 %v1703
    %4872 = vmatprep.subr.bf16.mxu0 %v1708
    %4873 = vmatpush1.bf16.msra.mxu0 %v1707
    %4874 = vmatprep.subr.bf16.mxu0 0
    %4875 = vmatpush1.bf16.msra.mxu0 0
    %4876 = vmatprep.subr.bf16.mxu0 0
    %4877 = vmatpush1.bf16.msra.mxu0 0
    %4878 = vmatprep.subr.bf16.mxu0 0
    %4879 = vmatpush1.bf16.msra.mxu0 0
    %4880 = vmatprep.subr.bf16.mxu0 0
    %4881 = vmatpush1.bf16.msra.mxu0 0
    %4882 = vmatprep.subr.bf16.mxu0 0
    %4883 = vmatpush1.bf16.msra.mxu0 0
    %4884 = vmatprep.subr.bf16.mxu0 0
    %4885 = vmatpush1.bf16.msra.mxu0 0
    %4886 = vmatprep.subr.bf16.mxu0 0
    %4887 = vmatpush1.bf16.msra.mxu0 0
    %4888 = vmatprep.subr.bf16.mxu0 0
    %4889 = vmatpush1.bf16.msra.mxu0 0
    %4890 = vmatprep.mubr.bf16.mxu0 0
    %4891 = vmatmul.mubr.bf16.gmra.mrb[0].mxu0 %v4536
    %v4892 = vpop.f32.mrb[0].mxu0
    %v4893 = vadd.f32 %v4811, %v4892
    %v4894 = vpop.f32.mrb[0].mxu0
    %v4895 = vadd.f32 %v4813, %v4894
    %v4896 = vpop.f32.mrb[0].mxu0
    %v4897 = vpop.f32.mrb[0].mxu0
    %4898 = vdwg.mxu0
    %v4899 = vadd.f32 %v4852, %v1911
    %v4900 = vadd.f32 %v4854, %v1915
    %v4901 = vadd.f32 %v4893, %v1919
    %v4902 = vadd.f32 %v4895, %v1923
    %v4903 = vxor.u32 %v4899, 2147483648
    %v4904 = vmul.f32 %v4903, 1.442695
    %v4905 = vpow.pop %v4904
    %v4906 = vadd.f32 %v4905, 1.0
    %v4907 = vrcp.pop %v4906
    %v4908 = vmul.f32 1.0, %v4907
    %v4909 = vxor.u32 %v4900, 2147483648
    %v4910 = vmul.f32 %v4909, 1.442695
    %v4911 = vpow.pop %v4910
    %v4912 = vadd.f32 %v4911, 1.0
    %v4913 = vrcp.pop %v4912
    %v4914 = vmul.f32 1.0, %v4913
    %v4915 = vtanh.pop %v4901
    %v4916 = vxor.u32 %v4902, 2147483648
    %v4917 = vmul.f32 %v4916, 1.442695
    %v4918 = vpow.pop %v4917
    %v4919 = vadd.f32 %v4918, 1.0
    %v4920 = vrcp.pop %v4919
    %v4921 = vmul.f32 1.0, %v4920
    %v4922 = vmul.f32 %v4914, %v4532
    %v4923 = vmul.f32 %v4908, %v4915
    %v4924 = vadd.f32 %v4922, %v4923
    %v4925 = vtanh.pop %v4924
    %v4926 = vmul.f32 %v4921, %v4925
    %v4927 = vpack.c.bf16 %v4733, %v4733
    %v4928 = vpack.c.bf16 %v4926, %v4926
    %4929 = vmatprep.subr.bf16.mxu0 %v1710
    %4930 = vmatpush1.bf16.msra.mxu0 %v1709
    %4931 = vmatprep.subr.bf16.mxu0 %v1714
    %4932 = vmatpush1.bf16.msra.mxu0 %v1713
    %4933 = vmatprep.subr.bf16.mxu0 %v1718
    %4934 = vmatpush1.bf16.msra.mxu0 %v1717
    %4935 = vmatprep.subr.bf16.mxu0 %v1722
    %4936 = vmatpush1.bf16.msra.mxu0 %v1721
    %4937 = vmatprep.subr.bf16.mxu0 %v1726
    %4938 = vmatpush1.bf16.msra.mxu0 %v1725
    %4939 = vmatprep.subr.bf16.mxu0 %v1730
    %4940 = vmatpush1.bf16.msra.mxu0 %v1729
    %4941 = vmatprep.subr.bf16.mxu0 %v1734
    %4942 = vmatpush1.bf16.msra.mxu0 %v1733
    %4943 = vmatprep.subr.bf16.mxu0 %v1738
    %4944 = vmatpush1.bf16.msra.mxu0 %v1737
    %4945 = vmatprep.subr.bf16.mxu0 0
    %4946 = vmatpush1.bf16.msra.mxu0 0
    %4947 = vmatprep.subr.bf16.mxu0 0
    %4948 = vmatpush1.bf16.msra.mxu0 0
    %4949 = vmatprep.subr.bf16.mxu0 0
    %4950 = vmatpush1.bf16.msra.mxu0 0
    %4951 = vmatprep.subr.bf16.mxu0 0
    %4952 = vmatpush1.bf16.msra.mxu0 0
    %4953 = vmatprep.subr.bf16.mxu0 0
    %4954 = vmatpush1.bf16.msra.mxu0 0
    %4955 = vmatprep.subr.bf16.mxu0 0
    %4956 = vmatpush1.bf16.msra.mxu0 0
    %4957 = vmatprep.subr.bf16.mxu0 0
    %4958 = vmatpush1.bf16.msra.mxu0 0
    %4959 = vmatprep.subr.bf16.mxu0 0
    %4960 = vmatpush1.bf16.msra.mxu0 0
    %4961 = vmatprep.mubr.bf16.mxu0 0
    %4962 = vmatmul.mubr.bf16.gmra.mrb[0].mxu0 %v4928
    %v4963 = vpop.f32.mrb[0].mxu0
    %v4964 = vadd.f32 0.0, %v4963
    %v4965 = vpop.f32.mrb[0].mxu0
    %v4966 = vadd.f32 0.0, %v4965
    %v4967 = vpop.f32.mrb[0].mxu0
    %v4968 = vpop.f32.mrb[0].mxu0
    %4969 = vdwg.mxu0
    %4970 = vmatprep.subr.bf16.mxu0 %v1712
    %4971 = vmatpush1.bf16.msra.mxu0 %v1711
    %4972 = vmatprep.subr.bf16.mxu0 %v1716
    %4973 = vmatpush1.bf16.msra.mxu0 %v1715
    %4974 = vmatprep.subr.bf16.mxu0 %v1720
    %4975 = vmatpush1.bf16.msra.mxu0 %v1719
    %4976 = vmatprep.subr.bf16.mxu0 %v1724
    %4977 = vmatpush1.bf16.msra.mxu0 %v1723
    %4978 = vmatprep.subr.bf16.mxu0 %v1728
    %4979 = vmatpush1.bf16.msra.mxu0 %v1727
    %4980 = vmatprep.subr.bf16.mxu0 %v1732
    %4981 = vmatpush1.bf16.msra.mxu0 %v1731
    %4982 = vmatprep.subr.bf16.mxu0 %v1736
    %4983 = vmatpush1.bf16.msra.mxu0 %v1735
    %4984 = vmatprep.subr.bf16.mxu0 %v1740
    %4985 = vmatpush1.bf16.msra.mxu0 %v1739
    %4986 = vmatprep.subr.bf16.mxu0 0
    %4987 = vmatpush1.bf16.msra.mxu0 0
    %4988 = vmatprep.subr.bf16.mxu0 0
    %4989 = vmatpush1.bf16.msra.mxu0 0
    %4990 = vmatprep.subr.bf16.mxu0 0
    %4991 = vmatpush1.bf16.msra.mxu0 0
    %4992 = vmatprep.subr.bf16.mxu0 0
    %4993 = vmatpush1.bf16.msra.mxu0 0
    %4994 = vmatprep.subr.bf16.mxu0 0
    %4995 = vmatpush1.bf16.msra.mxu0 0
    %4996 = vmatprep.subr.bf16.mxu0 0
    %4997 = vmatpush1.bf16.msra.mxu0 0
    %4998 = vmatprep.subr.bf16.mxu0 0
    %4999 = vmatpush1.bf16.msra.mxu0 0
    %5000 = vmatprep.subr.bf16.mxu0 0
    %5001 = vmatpush1.bf16.msra.mxu0 0
    %5002 = vmatprep.mubr.bf16.mxu0 0
    %5003 = vmatmul.mubr.bf16.gmra.mrb[0].mxu0 %v4928
    %v5004 = vpop.f32.mrb[0].mxu0
    %v5005 = vadd.f32 0.0, %v5004
    %v5006 = vpop.f32.mrb[0].mxu0
    %v5007 = vadd.f32 0.0, %v5006
    %v5008 = vpop.f32.mrb[0].mxu0
    %v5009 = vpop.f32.mrb[0].mxu0
    %5010 = vdwg.mxu0
    %5011 = vmatprep.subr.bf16.mxu0 %v1678
    %5012 = vmatpush1.bf16.msra.mxu0 %v1677
    %5013 = vmatprep.subr.bf16.mxu0 %v1682
    %5014 = vmatpush1.bf16.msra.mxu0 %v1681
    %5015 = vmatprep.subr.bf16.mxu0 %v1686
    %5016 = vmatpush1.bf16.msra.mxu0 %v1685
    %5017 = vmatprep.subr.bf16.mxu0 %v1690
    %5018 = vmatpush1.bf16.msra.mxu0 %v1689
    %5019 = vmatprep.subr.bf16.mxu0 %v1694
    %5020 = vmatpush1.bf16.msra.mxu0 %v1693
    %5021 = vmatprep.subr.bf16.mxu0 %v1698
    %5022 = vmatpush1.bf16.msra.mxu0 %v1697
    %5023 = vmatprep.subr.bf16.mxu0 %v1702
    %5024 = vmatpush1.bf16.msra.mxu0 %v1701
    %5025 = vmatprep.subr.bf16.mxu0 %v1706
    %5026 = vmatpush1.bf16.msra.mxu0 %v1705
    %5027 = vmatprep.subr.bf16.mxu0 0
    %5028 = vmatpush1.bf16.msra.mxu0 0
    %5029 = vmatprep.subr.bf16.mxu0 0
    %5030 = vmatpush1.bf16.msra.mxu0 0
    %5031 = vmatprep.subr.bf16.mxu0 0
    %5032 = vmatpush1.bf16.msra.mxu0 0
    %5033 = vmatprep.subr.bf16.mxu0 0
    %5034 = vmatpush1.bf16.msra.mxu0 0
    %5035 = vmatprep.subr.bf16.mxu0 0
    %5036 = vmatpush1.bf16.msra.mxu0 0
    %5037 = vmatprep.subr.bf16.mxu0 0
    %5038 = vmatpush1.bf16.msra.mxu0 0
    %5039 = vmatprep.subr.bf16.mxu0 0
    %5040 = vmatpush1.bf16.msra.mxu0 0
    %5041 = vmatprep.subr.bf16.mxu0 0
    %5042 = vmatpush1.bf16.msra.mxu0 0
    %5043 = vmatprep.mubr.bf16.mxu0 0
    %5044 = vmatmul.mubr.bf16.gmra.mrb[0].mxu0 %v4927
    %v5045 = vpop.f32.mrb[0].mxu0
    %v5046 = vadd.f32 %v4964, %v5045
    %v5047 = vpop.f32.mrb[0].mxu0
    %v5048 = vadd.f32 %v4966, %v5047
    %v5049 = vpop.f32.mrb[0].mxu0
    %v5050 = vpop.f32.mrb[0].mxu0
    %5051 = vdwg.mxu0
    %5052 = vmatprep.subr.bf16.mxu0 %v1680
    %5053 = vmatpush1.bf16.msra.mxu0 %v1679
    %5054 = vmatprep.subr.bf16.mxu0 %v1684
    %5055 = vmatpush1.bf16.msra.mxu0 %v1683
    %5056 = vmatprep.subr.bf16.mxu0 %v1688
    %5057 = vmatpush1.bf16.msra.mxu0 %v1687
    %5058 = vmatprep.subr.bf16.mxu0 %v1692
    %5059 = vmatpush1.bf16.msra.mxu0 %v1691
    %5060 = vmatprep.subr.bf16.mxu0 %v1696
    %5061 = vmatpush1.bf16.msra.mxu0 %v1695
    %5062 = vmatprep.subr.bf16.mxu0 %v1700
    %5063 = vmatpush1.bf16.msra.mxu0 %v1699
    %5064 = vmatprep.subr.bf16.mxu0 %v1704
    %5065 = vmatpush1.bf16.msra.mxu0 %v1703
    %5066 = vmatprep.subr.bf16.mxu0 %v1708
    %5067 = vmatpush1.bf16.msra.mxu0 %v1707
    %5068 = vmatprep.subr.bf16.mxu0 0
    %5069 = vmatpush1.bf16.msra.mxu0 0
    %5070 = vmatprep.subr.bf16.mxu0 0
    %5071 = vmatpush1.bf16.msra.mxu0 0
    %5072 = vmatprep.subr.bf16.mxu0 0
    %5073 = vmatpush1.bf16.msra.mxu0 0
    %5074 = vmatprep.subr.bf16.mxu0 0
    %5075 = vmatpush1.bf16.msra.mxu0 0
    %5076 = vmatprep.subr.bf16.mxu0 0
    %5077 = vmatpush1.bf16.msra.mxu0 0
    %5078 = vmatprep.subr.bf16.mxu0 0
    %5079 = vmatpush1.bf16.msra.mxu0 0
    %5080 = vmatprep.subr.bf16.mxu0 0
    %5081 = vmatpush1.bf16.msra.mxu0 0
    %5082 = vmatprep.subr.bf16.mxu0 0
    %5083 = vmatpush1.bf16.msra.mxu0 0
    %5084 = vmatprep.mubr.bf16.mxu0 0
    %5085 = vmatmul.mubr.bf16.gmra.mrb[0].mxu0 %v4927
    %v5086 = vpop.f32.mrb[0].mxu0
    %v5087 = vadd.f32 %v5005, %v5086
    %v5088 = vpop.f32.mrb[0].mxu0
    %v5089 = vadd.f32 %v5007, %v5088
    %v5090 = vpop.f32.mrb[0].mxu0
    %v5091 = vpop.f32.mrb[0].mxu0
    %5092 = vdwg.mxu0
    %v5093 = vadd.f32 %v5046, %v1911
    %v5094 = vadd.f32 %v5048, %v1915
    %v5095 = vadd.f32 %v5087, %v1919
    %v5096 = vadd.f32 %v5089, %v1923
    %v5097 = vxor.u32 %v5093, 2147483648
    %v5098 = vmul.f32 %v5097, 1.442695
    %v5099 = vpow.pop %v5098
    %v5100 = vadd.f32 %v5099, 1.0
    %v5101 = vrcp.pop %v5100
    %v5102 = vmul.f32 1.0, %v5101
    %v5103 = vxor.u32 %v5094, 2147483648
    %v5104 = vmul.f32 %v5103, 1.442695
    %v5105 = vpow.pop %v5104
    %v5106 = vadd.f32 %v5105, 1.0
    %v5107 = vrcp.pop %v5106
    %v5108 = vmul.f32 1.0, %v5107
    %v5109 = vtanh.pop %v5095
    %v5110 = vxor.u32 %v5096, 2147483648
    %v5111 = vmul.f32 %v5110, 1.442695
    %v5112 = vpow.pop %v5111
    %v5113 = vadd.f32 %v5112, 1.0
    %v5114 = vrcp.pop %v5113
    %v5115 = vmul.f32 1.0, %v5114
    %v5116 = vmul.f32 %v5108, %v4924
    %v5117 = vmul.f32 %v5102, %v5109
    %v5118 = vadd.f32 %v5116, %v5117
    %v5119 = vtanh.pop %v5118
    %v5120 = vmul.f32 %v5115, %v5119
    %5121 = vst [vmem:[#allocation12 - $0x7] sm:$0x80] %v4148
    %5122 = vst [vmem:[#allocation14 - $0x7] sm:$0x80] %v4146
    %s5123 = scalar_lea.vmem [#allocation12], 1
    %5124 = vst [vmem:[%s5123] sm:$0x1] %v4733
    %s5125 = scalar_lea.vmem [#allocation14], 1
    %5126 = vst [vmem:[%s5125] sm:$0x1] %v4731
    %s5127 = scalar_lea.vmem [#allocation12], 2
    %5128 = vst [vmem:[%s5127] sm:$0x1] %v5120
    %s5129 = scalar_lea.vmem [#allocation14], 2
    %5130 = vst [vmem:[%s5129] sm:$0x1] %v5118
    %v5132 = vrot.slane %v2470, 7
    %v5135 = vrot.slane %v2987, 6
    %v5138 = vrot.slane %v3502, 5
    %v5141 = vrot.slane %v4019, 4
    %v5144 = vrot.slane %v4534, 3
    %v5147 = vrot.slane %v4926, 2
    %v5150 = vrot.slane %v5120, 1
    %vm5152 = vcmask 1040384
    %v5153 = vsel %vm5152, %v1955, %v5132
    %vm5154 = vcmask 1041408
    %v5155 = vsel %vm5154, %v5153, %v5135
    %vm5156 = vcmask 1042432
    %v5157 = vsel %vm5156, %v5155, %v5138
    %vm5158 = vcmask 1043456
    %v5159 = vsel %vm5158, %v5157, %v5141
    %vm5160 = vcmask 1044480
    %v5161 = vsel %vm5160, %v5159, %v5144
    %vm5162 = vcmask 1045504
    %v5163 = vsel %vm5162, %v5161, %v5147
    %vm5164 = vcmask 1046528
    %v5165 = vsel %vm5164, %v5163, %v5150
    %v5166 = vpack.c.bf16 %v5165, %v5165
    %s5167 = smul.u32 %s507, 2
    %s5168 = sshll.u32 %s5167, 4
    %5169 = dma.done %s260, %s5168
    %v5170 = vld [vmem:[#allocation4] sm:$0xff]
    %v5171 = vld [vmem:[#allocation4 + $0x8] sm:$0xff]
    %v5172 = vld [vmem:[#allocation4 + $0x10] sm:$0xff]
    %v5173 = vld [vmem:[#allocation4 + $0x18] sm:$0xff]
    %v5174 = vld [vmem:[#allocation4 + $0x20] sm:$0xff]
    %v5175 = vld [vmem:[#allocation4 + $0x28] sm:$0xff]
    %v5176 = vld [vmem:[#allocation4 + $0x30] sm:$0xff]
    %v5177 = vld [vmem:[#allocation4 + $0x38] sm:$0xff]
    %v5178 = vld [vmem:[#allocation4 + $0x40] sm:$0xff]
    %v5179 = vld [vmem:[#allocation4 + $0x48] sm:$0xff]
    %v5180 = vld [vmem:[#allocation4 + $0x50] sm:$0xff]
    %v5181 = vld [vmem:[#allocation4 + $0x58] sm:$0xff]
    %v5182 = vld [vmem:[#allocation4 + $0x60] sm:$0xff]
    %v5183 = vld [vmem:[#allocation4 + $0x68] sm:$0xff]
    %v5184 = vld [vmem:[#allocation4 + $0x70] sm:$0xff]
    %v5185 = vld [vmem:[#allocation4 + $0x78] sm:$0xff]
    %v5186 = vld [vmem:[%s6] sm:$0x3]
    %v5188 = vlaneseq
    %v5189 = vshrl.u32 %v5188, 7
    %v5190 = vsub.s32 0, %v5189
    %v5191 = vrot.slane %v5186, %v5190
    %v5192 = vlaneseq
    %v5193 = vshrl.u32 %v5192, 7
    %v5194 = vsub.s32 1, %v5193
    %v5195 = vrot.slane %v5186, %v5194
    %5198 = vmatprep.subr.bf16.mxu0 %v5171
    %5199 = vmatpush1.bf16.msra.mxu0 %v5170
    %5200 = vmatprep.subr.bf16.mxu0 %v5173
    %5201 = vmatpush1.bf16.msra.mxu0 %v5172
    %5202 = vmatprep.subr.bf16.mxu0 %v5175
    %5203 = vmatpush1.bf16.msra.mxu0 %v5174
    %5204 = vmatprep.subr.bf16.mxu0 %v5177
    %5205 = vmatpush1.bf16.msra.mxu0 %v5176
    %5206 = vmatprep.subr.bf16.mxu0 %v5179
    %5207 = vmatpush1.bf16.msra.mxu0 %v5178
    %5208 = vmatprep.subr.bf16.mxu0 %v5181
    %5209 = vmatpush1.bf16.msra.mxu0 %v5180
    %5210 = vmatprep.subr.bf16.mxu0 %v5183
    %5211 = vmatpush1.bf16.msra.mxu0 %v5182
    %5212 = vmatprep.subr.bf16.mxu0 %v5185
    %5213 = vmatpush1.bf16.msra.mxu0 %v5184
    %5214 = vmatprep.subr.bf16.mxu0 0
    %5215 = vmatpush1.bf16.msra.mxu0 0
    %5216 = vmatprep.subr.bf16.mxu0 0
    %5217 = vmatpush1.bf16.msra.mxu0 0
    %5218 = vmatprep.subr.bf16.mxu0 0
    %5219 = vmatpush1.bf16.msra.mxu0 0
    %5220 = vmatprep.subr.bf16.mxu0 0
    %5221 = vmatpush1.bf16.msra.mxu0 0
    %5222 = vmatprep.subr.bf16.mxu0 0
    %5223 = vmatpush1.bf16.msra.mxu0 0
    %5224 = vmatprep.subr.bf16.mxu0 0
    %5225 = vmatpush1.bf16.msra.mxu0 0
    %5226 = vmatprep.subr.bf16.mxu0 0
    %5227 = vmatpush1.bf16.msra.mxu0 0
    %5228 = vmatprep.subr.bf16.mxu0 0
    %5229 = vmatpush1.bf16.msra.mxu0 0
    %5230 = vmatprep.mubr.bf16.mxu0 0
    %5231 = vmatmul.mubr.bf16.gmra.mrb[0].mxu0 %v5166
    %v5232 = vpop.f32.mrb[0].mxu0
    %v5233 = vadd.f32 %v5191, %v5232
    %v5234 = vpop.f32.mrb[0].mxu0
    %v5235 = vadd.f32 %v5195, %v5234
    %v5236 = vpop.f32.mrb[0].mxu0
    %v5237 = vpop.f32.mrb[0].mxu0
    %5238 = vdwg.mxu0
    %5239 = vst [vmem:[#allocation11] sm:$0xff] %v5233
    %5240 = vst [vmem:[#allocation11 + $0x8] sm:$0xff] %v5235
    // Predicated region
    $region18: #{tpu_custom_call.1} parent=1 // pred_check
      _
    $region19: #{tpu_custom_call.1} parent=1 // pred_check_branch
      %5242 = sbr.rel (0) target = $region21
    $region20: #{tpu_custom_call.1} parent=1 // pred_region
      %s5244 = ssub.s32 256, 256
      %5245 = vsyncadd [#allocation10], %s5244
      %s5247 = sshll.u32 [#allocation11], 4
      %s5248 = int_to_ptr.vmem [resolvable:$true] %s5247
      %5250 = dma.vmem_to_hbm [thread:$0]  %s5248, 256, %s7, [#allocation10]
    $region21: #{tpu_custom_call.1} parent=1 // pred_fallthru
      _
    // Predicated region
    $region22: #{tpu_custom_call.1} parent=1 // pred_check
      _
    $region23: #{tpu_custom_call.1} parent=1 // pred_check_branch
      %5252 = sbr.rel (0) target = $region25
    $region24: #{tpu_custom_call.1} parent=1 // pred_region
      %s5254 = ssub.s32 48, 48
      %5255 = vsyncadd [#allocation13], %s5254
      %s5256 = sshll.u32 [#allocation12], 4
      %s5257 = int_to_ptr.vmem [resolvable:$true] %s5256
      %5262 = dma.vmem_to_hbm [thread:$0]  %s5257, 48, %s8, [#allocation13], 16, 16, 1
    $region25: #{tpu_custom_call.1} parent=1 // pred_fallthru
      _
    // Predicated region
    $region26: #{tpu_custom_call.1} parent=1 // pred_check
      _
    $region27: #{tpu_custom_call.1} parent=1 // pred_check_branch
      %5264 = sbr.rel (0) target = $region29
    $region28: #{tpu_custom_call.1} parent=1 // pred_region
      %s5266 = ssub.s32 48, 48
      %5267 = vsyncadd [#allocation13], %s5266
      %s5268 = sshll.u32 [#allocation14], 4
      %s5269 = int_to_ptr.vmem [resolvable:$true] %s5268
      %5274 = dma.vmem_to_hbm [thread:$0]  %s5269, 48, %s9, [#allocation13], 16, 16, 1
    $region29: #{tpu_custom_call.1} parent=1 // pred_fallthru
      _
    // Predicated region
    $region30: #{tpu_custom_call.1} parent=1 // pred_check
      _
    $region31: #{tpu_custom_call.1} parent=1 // pred_check_branch
      %5276 = sbr.rel (0) target = $region33
    $region32: #{tpu_custom_call.1} parent=1 // pred_region
      %5277 = dma.done [#allocation10], 256
    $region33: #{tpu_custom_call.1} parent=1 // pred_fallthru
      _
    // Predicated region
    $region34: #{tpu_custom_call.1} parent=1 // pred_check
      _
    $region35: #{tpu_custom_call.1} parent=1 // pred_check_branch
      %5279 = sbr.rel (0) target = $region37
    $region36: #{tpu_custom_call.1} parent=1 // pred_region
      %5280 = dma.done [#allocation13], 48
    $region37: #{tpu_custom_call.1} parent=1 // pred_fallthru
      _
    // Predicated region
    $region38: #{tpu_custom_call.1} parent=1 // pred_check
      _
    $region39: #{tpu_custom_call.1} parent=1 // pred_check_branch
      %5282 = sbr.rel (0) target = $region41
    $region40: #{tpu_custom_call.1} parent=1 // pred_region
      %5283 = dma.done [#allocation13], 48
    $region41: #{tpu_custom_call.1} parent=1 // pred_fallthru
      _
    %5284 = vsyncpa [#allocation9], 1
    %5285 = vsyncpa [#allocation10], 1
    %5286 = vsyncpa [#allocation13], 1
  %5287 = vsyncmov [#allocation5]
  %s5288 = vpop.sfrf %5287
  %p5289 = scmp.eq.s32.totalorder %s5288, 0
  %p5290 = pneg %p5289
  %5292 = shalt.err (%p5290)
  %s5293 = scalar_lea.sflag [#allocation5], 1
  %5294 = vsyncmov %s5293
  %s5295 = vpop.sfrf %5294
  %p5296 = scmp.eq.s32.totalorder %s5295, 0
  %p5297 = pneg %p5296
  %5299 = shalt.err (%p5297)
  %s5300 = scalar_lea.sflag [#allocation5], 2
  %5301 = vsyncmov %s5300
  %s5302 = vpop.sfrf %5301
  %p5303 = scmp.eq.s32.totalorder %s5302, 0
  %p5304 = pneg %p5303
  %5306 = shalt.err (%p5304)
  %s5307 = scalar_lea.sflag [#allocation5], 3
  %5308 = vsyncmov %s5307
  %s5309 = vpop.sfrf %5308
  %p5310 = scmp.eq.s32.totalorder %s5309, 0
  %p5311 = pneg %p5310
  %5313 = shalt.err (%p5311)
  %s5314 = scalar_lea.sflag [#allocation5], 4
  %5315 = vsyncmov %s5314
  %s5316 = vpop.sfrf %5315
  %p5317 = scmp.eq.s32.totalorder %s5316, 0
  %p5318 = pneg %p5317
  %5320 = shalt.err (%p5318)
  %s5321 = scalar_lea.sflag [#allocation5], 5
  %5322 = vsyncmov %s5321
  %s5323 = vpop.sfrf %5322
  %p5324 = scmp.eq.s32.totalorder %s5323, 0
  %p5325 = pneg %p5324
  %5327 = shalt.err (%p5325)
  %s5328 = scalar_lea.sflag [#allocation5], 6
  %5329 = vsyncmov %s5328
  %s5330 = vpop.sfrf %5329
  %p5331 = scmp.eq.s32.totalorder %s5330, 0
  %p5332 = pneg %p5331
  %5334 = shalt.err (%p5332)

</llo_original>
